<compile_context>
chip_gen: v5e
topology: v5e:2x2
jax: 0.10.0
libtpu: 0.0.40
codegen_flags: <defaults>
</compile_context>

<pallas_src>
from functools import partial

import jax
import jax.numpy as jnp
from jax import lax
from jax.experimental import pallas as pl
from jax.experimental.pallas import tpu as pltpu

K = 15        # conv1xk with k = 3 * 5
PAD = 7       # padding = dilation * 7, dilation = 1
BN_EPS = 1e-5


def basic_block_kernel(x_ref, w1_ref, w2_ref, s1_ref, b1_ref, s2_ref, b2_ref,
                       out_ref, *, tm, w, cin, cout, cdt):
    # x_ref  : (tm*w, cin)    flattened channels-last input rows
    # w1_ref : (K*cin, cout)  im2col conv1 weights (tap-major rows)
    # w2_ref : (K*cout, cout) im2col conv2 weights
    # s*/b*  : (1, cout)      folded eval-mode BN scale / shift (f32)
    # out_ref: (tm*w, cout)   flattened channels-last output rows
    x2 = x_ref[...].astype(jnp.float32)          # residual operand, f32
    x3d = x2.reshape(tm, w, cin)                 # layout-preserving unfold

    def im2col(h3d):
        # (tm, w, c) f32 -> (tm*w, K*c); tap t occupies columns [t*c, (t+1)*c)
        c = h3d.shape[-1]
        zpad = jnp.zeros((tm, PAD, c), h3d.dtype)
        hp = jnp.concatenate([zpad, h3d, zpad], axis=1)        # (tm, w+2*PAD, c)
        cols = jnp.concatenate([hp[:, t:t + w, :] for t in range(K)], axis=-1)
        return cols.reshape(tm * w, K * c)       # layout-preserving fold

    # conv1: single im2col matmul on the MXU, f32 accumulation.
    h1 = jnp.dot(im2col(x3d).astype(cdt), w1_ref[...],
                 preferred_element_type=jnp.float32)           # (tm*w, cout)
    # bn1 (folded) + relu, in f32 on the VPU.
    h1 = jnp.maximum(h1 * s1_ref[...] + b1_ref[...], 0.0)

    # conv2: second im2col matmul.
    h2 = jnp.dot(im2col(h1.reshape(tm, w, cout)).astype(cdt), w2_ref[...],
                 preferred_element_type=jnp.float32)           # (tm*w, cout)
    # bn2 (folded) + residual add + relu, in f32.
    out = jnp.maximum(h2 * s2_ref[...] + b2_ref[...] + x2, 0.0)
    out_ref[...] = out.astype(out_ref.dtype)


def _fold_bn(bn_params):
    gamma, beta, mean, var = (t.astype(jnp.float32) for t in bn_params)
    scale = gamma / jnp.sqrt(var + BN_EPS)
    shift = beta - mean * scale
    return scale.reshape(1, -1), shift.reshape(1, -1)


def _pick_tm(m, target=256):
    # Largest divisor of m that is <= target and a multiple of 8 (or m itself).
    # On v7x (64 MiB VMEM) use roughly half the v5e/v6e target for big shapes.
    tm = min(m, target)
    while tm > 1 and (m % tm != 0 or (tm != m and tm % 8 != 0)):
        tm -= 1
    return tm


@partial(jax.jit, static_argnames=("tm", "compute_dtype"))
def basic_block(x_nchw, w1_oihw, w2_oihw, bn1, bn2, *,
                tm=None, compute_dtype=jnp.float32):
    N, Cin, H, W = x_nchw.shape
    Cout = w1_oihw.shape[0]
    assert Cin == Cout, "stride=1 / downsample=None requires inplanes == planes"
    M = N * H
    if tm is None:
        tm = _pick_tm(M)
    assert M % tm == 0

    # NCHW -> flattened channels-last rows (N*H*W, C).
    # TODO(synk): in a full network keep activations channels-last end-to-end
    # so this transpose pair is paid once per model, not once per block.
    x_flat = jnp.transpose(x_nchw, (0, 2, 3, 1)).reshape(M * W, Cin)

    # PyTorch conv weight (O, I, 1, K) -> im2col matrix (K*I, O), tap-major.
    w1m = jnp.transpose(w1_oihw[:, :, 0, :], (2, 1, 0)).reshape(K * Cin, Cout)
    w2m = jnp.transpose(w2_oihw[:, :, 0, :], (2, 1, 0)).reshape(K * Cout, Cout)
    w1m = w1m.astype(compute_dtype)
    w2m = w2m.astype(compute_dtype)

    s1, b1 = _fold_bn(bn1)
    s2, b2 = _fold_bn(bn2)

    kernel = partial(basic_block_kernel, tm=tm, w=W, cin=Cin, cout=Cout,
                     cdt=compute_dtype)

    out_flat = pl.pallas_call(
        kernel,
        out_shape=jax.ShapeDtypeStruct((M * W, Cout), x_nchw.dtype),
        grid=(M // tm,),
        in_specs=[
            pl.BlockSpec((tm * W, Cin), lambda i: (i, 0)),      # x rows
            pl.BlockSpec((K * Cin, Cout), lambda i: (0, 0)),    # conv1 weights
            pl.BlockSpec((K * Cout, Cout), lambda i: (0, 0)),   # conv2 weights
            pl.BlockSpec((1, Cout), lambda i: (0, 0)),          # bn1 scale
            pl.BlockSpec((1, Cout), lambda i: (0, 0)),          # bn1 shift
            pl.BlockSpec((1, Cout), lambda i: (0, 0)),          # bn2 scale
            pl.BlockSpec((1, Cout), lambda i: (0, 0)),          # bn2 shift
        ],
        out_specs=pl.BlockSpec((tm * W, Cout), lambda i: (i, 0)),
        compiler_params=pltpu.CompilerParams(
            dimension_semantics=("parallel",),
            vmem_limit_bytes=64 * 1024 * 1024),
    )(x_flat, w1m, w2m, s1, b1, s2, b2)

    # (N*H*W, C) -> NCHW
    return jnp.transpose(out_flat.reshape(N, H, W, Cout), (0, 3, 1, 2))


def reference(x, w1, w2, bn1, bn2):
    """Plain-JAX mirror of the PyTorch forward (eval-mode BN)."""
    dn = ('NCHW', 'OIHW', 'NCHW')

    def bn(y, p):
        g, b, m, v = (t.reshape(1, -1, 1, 1) for t in p)
        return (y - m) / jnp.sqrt(v + BN_EPS) * g + b

    out = lax.conv_general_dilated(x, w1, (1, 1), ((0, 0), (PAD, PAD)),
                                   dimension_numbers=dn)
    out = jax.nn.relu(bn(out, bn1))
    out = lax.conv_general_dilated(out, w2, (1, 1), ((0, 0), (PAD, PAD)),
                                   dimension_numbers=dn)
    out = bn(out, bn2) + x
    return jax.nn.relu(out)


if __name__ == "__main__":
    # inplanes = planes = 4, stride = 1, downsample = None
    N, C, H, W = 2, 4, 16, 16
    key = jax.random.PRNGKey(0)
    ks = jax.random.split(key, 12)

    x = jax.random.normal(ks[0], (N, C, H, W), jnp.float32)
    w1 = jax.random.normal(ks[1], (C, C, 1, K), jnp.float32) * 0.1
    w2 = jax.random.normal(ks[2], (C, C, 1, K), jnp.float32) * 0.1

    # BatchNorm params (eval mode): gamma, beta, running_mean, running_var
    bn1 = (1.0 + 0.1 * jax.random.normal(ks[3], (C,), jnp.float32),
           0.1 * jax.random.normal(ks[4], (C,), jnp.float32),
           0.1 * jax.random.normal(ks[5], (C,), jnp.float32),
           0.5 + jax.nn.softplus(jax.random.normal(ks[6], (C,), jnp.float32)))
    bn2 = (1.0 + 0.1 * jax.random.normal(ks[7], (C,), jnp.float32),
           0.1 * jax.random.normal(ks[8], (C,), jnp.float32),
           0.1 * jax.random.normal(ks[9], (C,), jnp.float32),
           0.5 + jax.nn.softplus(jax.random.normal(ks[10], (C,), jnp.float32)))

    y_ref = reference(x, w1, w2, bn1, bn2)

    # f32 path, default row-block (whole problem in one grid step here).
    y = basic_block(x, w1, w2, bn1, bn2)
    jax.block_until_ready(y)
    assert y.shape == (N, C, H, W)
    assert jnp.allclose(y, y_ref, atol=1e-3, rtol=1e-3), "f32 kernel mismatch"

    # f32 path, multi-step grid (exercises index_map + "parallel" sharding).
    y_tiled = basic_block(x, w1, w2, bn1, bn2, tm=8)
    jax.block_until_ready(y_tiled)
    assert jnp.allclose(y_tiled, y_ref, atol=1e-3, rtol=1e-3), "tiled mismatch"

    # bf16-matmul path (f32 accumulate / f32 BN+residual), looser tolerance.
    y_bf16 = basic_block(x, w1, w2, bn1, bn2, compute_dtype=jnp.bfloat16)
    jax.block_until_ready(y_bf16)
    assert jnp.allclose(y_bf16, y_ref, atol=1e-1, rtol=1e-1), "bf16 mismatch"

    print("KERNEL_OK")
</pallas_src>

<mosaic_0001>
module attributes {stable_mosaic.version = 11 : i64} {
  func.func @basic_block_kernel(%arg0: i32, %arg1: memref<512x4xf32, #tpu.memory_space<vmem>>, %arg2: memref<60x4xf32, #tpu.memory_space<vmem>>, %arg3: memref<60x4xf32, #tpu.memory_space<vmem>>, %arg4: memref<1x4xf32, #tpu.memory_space<vmem>>, %arg5: memref<1x4xf32, #tpu.memory_space<vmem>>, %arg6: memref<1x4xf32, #tpu.memory_space<vmem>>, %arg7: memref<1x4xf32, #tpu.memory_space<vmem>>, %arg8: memref<512x4xf32, #tpu.memory_space<vmem>>) attributes {dimension_semantics = [#tpu.dimension_semantics<parallel>], iteration_bounds = array<i64: 1>, scalar_prefetch = 0 : i64, scratch_operands = 0 : i64, tpu.core_type = #tpu.core_type<tc>, window_params = [{transform_indices = @transform_0, window_bounds = array<i64: 512, 4>}, {pipeline_mode = #tpu.pipeline_mode<synchronous>, transform_indices = @transform_1, window_bounds = array<i64: 60, 4>}, {pipeline_mode = #tpu.pipeline_mode<synchronous>, transform_indices = @transform_2, window_bounds = array<i64: 60, 4>}, {pipeline_mode = #tpu.pipeline_mode<synchronous>, transform_indices = @transform_3, window_bounds = array<i64: 1, 4>}, {pipeline_mode = #tpu.pipeline_mode<synchronous>, transform_indices = @transform_4, window_bounds = array<i64: 1, 4>}, {pipeline_mode = #tpu.pipeline_mode<synchronous>, transform_indices = @transform_5, window_bounds = array<i64: 1, 4>}, {pipeline_mode = #tpu.pipeline_mode<synchronous>, transform_indices = @transform_6, window_bounds = array<i64: 1, 4>}, {transform_indices = @transform_7, window_bounds = array<i64: 512, 4>}]} {
    %c0 = arith.constant 0 : index
    %c0_0 = arith.constant 0 : index
    %0 = vector.load %arg1[%c0, %c0_0] : memref<512x4xf32, #tpu.memory_space<vmem>>, vector<512x4xf32>
    %1 = vector.shape_cast %0 : vector<512x4xf32> to vector<32x16x4xf32>
    %cst = arith.constant 0.000000e+00 : f32
    %2 = vector.broadcast %cst : f32 to vector<32x7x4xf32>
    %3 = tpu.concatenate %2, %1, %2 in 1 : vector<32x7x4xf32>, vector<32x16x4xf32>, vector<32x7x4xf32> -> vector<32x30x4xf32>
    %4 = vector.extract_strided_slice %3 {offsets = [0, 0, 0], sizes = [32, 16, 4], strides = [1, 1, 1]} : vector<32x30x4xf32> to vector<32x16x4xf32>
    %5 = vector.extract_strided_slice %3 {offsets = [0, 1, 0], sizes = [32, 16, 4], strides = [1, 1, 1]} : vector<32x30x4xf32> to vector<32x16x4xf32>
    %6 = vector.extract_strided_slice %3 {offsets = [0, 2, 0], sizes = [32, 16, 4], strides = [1, 1, 1]} : vector<32x30x4xf32> to vector<32x16x4xf32>
    %7 = vector.extract_strided_slice %3 {offsets = [0, 3, 0], sizes = [32, 16, 4], strides = [1, 1, 1]} : vector<32x30x4xf32> to vector<32x16x4xf32>
    %8 = vector.extract_strided_slice %3 {offsets = [0, 4, 0], sizes = [32, 16, 4], strides = [1, 1, 1]} : vector<32x30x4xf32> to vector<32x16x4xf32>
    %9 = vector.extract_strided_slice %3 {offsets = [0, 5, 0], sizes = [32, 16, 4], strides = [1, 1, 1]} : vector<32x30x4xf32> to vector<32x16x4xf32>
    %10 = vector.extract_strided_slice %3 {offsets = [0, 6, 0], sizes = [32, 16, 4], strides = [1, 1, 1]} : vector<32x30x4xf32> to vector<32x16x4xf32>
    %11 = vector.extract_strided_slice %3 {offsets = [0, 7, 0], sizes = [32, 16, 4], strides = [1, 1, 1]} : vector<32x30x4xf32> to vector<32x16x4xf32>
    %12 = vector.extract_strided_slice %3 {offsets = [0, 8, 0], sizes = [32, 16, 4], strides = [1, 1, 1]} : vector<32x30x4xf32> to vector<32x16x4xf32>
    %13 = vector.extract_strided_slice %3 {offsets = [0, 9, 0], sizes = [32, 16, 4], strides = [1, 1, 1]} : vector<32x30x4xf32> to vector<32x16x4xf32>
    %14 = vector.extract_strided_slice %3 {offsets = [0, 10, 0], sizes = [32, 16, 4], strides = [1, 1, 1]} : vector<32x30x4xf32> to vector<32x16x4xf32>
    %15 = vector.extract_strided_slice %3 {offsets = [0, 11, 0], sizes = [32, 16, 4], strides = [1, 1, 1]} : vector<32x30x4xf32> to vector<32x16x4xf32>
    %16 = vector.extract_strided_slice %3 {offsets = [0, 12, 0], sizes = [32, 16, 4], strides = [1, 1, 1]} : vector<32x30x4xf32> to vector<32x16x4xf32>
    %17 = vector.extract_strided_slice %3 {offsets = [0, 13, 0], sizes = [32, 16, 4], strides = [1, 1, 1]} : vector<32x30x4xf32> to vector<32x16x4xf32>
    %18 = vector.extract_strided_slice %3 {offsets = [0, 14, 0], sizes = [32, 16, 4], strides = [1, 1, 1]} : vector<32x30x4xf32> to vector<32x16x4xf32>
    %19 = tpu.concatenate %4, %5, %6, %7, %8, %9, %10, %11, %12, %13, %14, %15, %16, %17, %18 in 2 : vector<32x16x4xf32>, vector<32x16x4xf32>, vector<32x16x4xf32>, vector<32x16x4xf32>, vector<32x16x4xf32>, vector<32x16x4xf32>, vector<32x16x4xf32>, vector<32x16x4xf32>, vector<32x16x4xf32>, vector<32x16x4xf32>, vector<32x16x4xf32>, vector<32x16x4xf32>, vector<32x16x4xf32>, vector<32x16x4xf32>, vector<32x16x4xf32> -> vector<32x16x60xf32>
    %20 = vector.shape_cast %19 : vector<32x16x60xf32> to vector<512x60xf32>
    %c0_1 = arith.constant 0 : index
    %c0_2 = arith.constant 0 : index
    %21 = vector.load %arg2[%c0_1, %c0_2] : memref<60x4xf32, #tpu.memory_space<vmem>>, vector<60x4xf32>
    %cst_3 = arith.constant dense<0.000000e+00> : vector<512x4xf32>
    %22 = tpu.matmul %20, %21, %cst_3 {dimension_numbers = #tpu.dot_dimension_numbers<[1], [0], [0], [1], [0, 0, 1, 1], [], []>} : vector<512x60xf32>, vector<60x4xf32>, vector<512x4xf32> -> vector<512x4xf32>
    %c0_4 = arith.constant 0 : index
    %c0_5 = arith.constant 0 : index
    %23 = vector.load %arg4[%c0_4, %c0_5] : memref<1x4xf32, #tpu.memory_space<vmem>>, vector<1x4xf32>
    %24 = vector.broadcast %23 : vector<1x4xf32> to vector<512x4xf32>
    %25 = arith.mulf %22, %24 : vector<512x4xf32>
    %c0_6 = arith.constant 0 : index
    %c0_7 = arith.constant 0 : index
    %26 = vector.load %arg5[%c0_6, %c0_7] : memref<1x4xf32, #tpu.memory_space<vmem>>, vector<1x4xf32>
    %27 = vector.broadcast %26 : vector<1x4xf32> to vector<512x4xf32>
    %28 = arith.addf %25, %27 : vector<512x4xf32>
    %cst_8 = arith.constant 0.000000e+00 : f32
    %29 = vector.broadcast %cst_8 : f32 to vector<512x4xf32>
    %30 = arith.maximumf %28, %29 : vector<512x4xf32>
    %31 = vector.shape_cast %30 : vector<512x4xf32> to vector<32x16x4xf32>
    %cst_9 = arith.constant 0.000000e+00 : f32
    %32 = vector.broadcast %cst_9 : f32 to vector<32x7x4xf32>
    %33 = tpu.concatenate %32, %31, %32 in 1 : vector<32x7x4xf32>, vector<32x16x4xf32>, vector<32x7x4xf32> -> vector<32x30x4xf32>
    %34 = vector.extract_strided_slice %33 {offsets = [0, 0, 0], sizes = [32, 16, 4], strides = [1, 1, 1]} : vector<32x30x4xf32> to vector<32x16x4xf32>
    %35 = vector.extract_strided_slice %33 {offsets = [0, 1, 0], sizes = [32, 16, 4], strides = [1, 1, 1]} : vector<32x30x4xf32> to vector<32x16x4xf32>
    %36 = vector.extract_strided_slice %33 {offsets = [0, 2, 0], sizes = [32, 16, 4], strides = [1, 1, 1]} : vector<32x30x4xf32> to vector<32x16x4xf32>
    %37 = vector.extract_strided_slice %33 {offsets = [0, 3, 0], sizes = [32, 16, 4], strides = [1, 1, 1]} : vector<32x30x4xf32> to vector<32x16x4xf32>
    %38 = vector.extract_strided_slice %33 {offsets = [0, 4, 0], sizes = [32, 16, 4], strides = [1, 1, 1]} : vector<32x30x4xf32> to vector<32x16x4xf32>
    %39 = vector.extract_strided_slice %33 {offsets = [0, 5, 0], sizes = [32, 16, 4], strides = [1, 1, 1]} : vector<32x30x4xf32> to vector<32x16x4xf32>
    %40 = vector.extract_strided_slice %33 {offsets = [0, 6, 0], sizes = [32, 16, 4], strides = [1, 1, 1]} : vector<32x30x4xf32> to vector<32x16x4xf32>
    %41 = vector.extract_strided_slice %33 {offsets = [0, 7, 0], sizes = [32, 16, 4], strides = [1, 1, 1]} : vector<32x30x4xf32> to vector<32x16x4xf32>
    %42 = vector.extract_strided_slice %33 {offsets = [0, 8, 0], sizes = [32, 16, 4], strides = [1, 1, 1]} : vector<32x30x4xf32> to vector<32x16x4xf32>
    %43 = vector.extract_strided_slice %33 {offsets = [0, 9, 0], sizes = [32, 16, 4], strides = [1, 1, 1]} : vector<32x30x4xf32> to vector<32x16x4xf32>
    %44 = vector.extract_strided_slice %33 {offsets = [0, 10, 0], sizes = [32, 16, 4], strides = [1, 1, 1]} : vector<32x30x4xf32> to vector<32x16x4xf32>
    %45 = vector.extract_strided_slice %33 {offsets = [0, 11, 0], sizes = [32, 16, 4], strides = [1, 1, 1]} : vector<32x30x4xf32> to vector<32x16x4xf32>
    %46 = vector.extract_strided_slice %33 {offsets = [0, 12, 0], sizes = [32, 16, 4], strides = [1, 1, 1]} : vector<32x30x4xf32> to vector<32x16x4xf32>
    %47 = vector.extract_strided_slice %33 {offsets = [0, 13, 0], sizes = [32, 16, 4], strides = [1, 1, 1]} : vector<32x30x4xf32> to vector<32x16x4xf32>
    %48 = vector.extract_strided_slice %33 {offsets = [0, 14, 0], sizes = [32, 16, 4], strides = [1, 1, 1]} : vector<32x30x4xf32> to vector<32x16x4xf32>
    %49 = tpu.concatenate %34, %35, %36, %37, %38, %39, %40, %41, %42, %43, %44, %45, %46, %47, %48 in 2 : vector<32x16x4xf32>, vector<32x16x4xf32>, vector<32x16x4xf32>, vector<32x16x4xf32>, vector<32x16x4xf32>, vector<32x16x4xf32>, vector<32x16x4xf32>, vector<32x16x4xf32>, vector<32x16x4xf32>, vector<32x16x4xf32>, vector<32x16x4xf32>, vector<32x16x4xf32>, vector<32x16x4xf32>, vector<32x16x4xf32>, vector<32x16x4xf32> -> vector<32x16x60xf32>
    %50 = vector.shape_cast %49 : vector<32x16x60xf32> to vector<512x60xf32>
    %c0_10 = arith.constant 0 : index
    %c0_11 = arith.constant 0 : index
    %51 = vector.load %arg3[%c0_10, %c0_11] : memref<60x4xf32, #tpu.memory_space<vmem>>, vector<60x4xf32>
    %cst_12 = arith.constant dense<0.000000e+00> : vector<512x4xf32>
    %52 = tpu.matmul %50, %51, %cst_12 {dimension_numbers = #tpu.dot_dimension_numbers<[1], [0], [0], [1], [0, 0, 1, 1], [], []>} : vector<512x60xf32>, vector<60x4xf32>, vector<512x4xf32> -> vector<512x4xf32>
    %c0_13 = arith.constant 0 : index
    %c0_14 = arith.constant 0 : index
    %53 = vector.load %arg6[%c0_13, %c0_14] : memref<1x4xf32, #tpu.memory_space<vmem>>, vector<1x4xf32>
    %54 = vector.broadcast %53 : vector<1x4xf32> to vector<512x4xf32>
    %55 = arith.mulf %52, %54 : vector<512x4xf32>
    %c0_15 = arith.constant 0 : index
    %c0_16 = arith.constant 0 : index
    %56 = vector.load %arg7[%c0_15, %c0_16] : memref<1x4xf32, #tpu.memory_space<vmem>>, vector<1x4xf32>
    %57 = vector.broadcast %56 : vector<1x4xf32> to vector<512x4xf32>
    %58 = arith.addf %55, %57 : vector<512x4xf32>
    %59 = arith.addf %58, %0 : vector<512x4xf32>
    %cst_17 = arith.constant 0.000000e+00 : f32
    %60 = vector.broadcast %cst_17 : f32 to vector<512x4xf32>
    %61 = arith.maximumf %59, %60 : vector<512x4xf32>
    %c0_18 = arith.constant 0 : index
    %c0_19 = arith.constant 0 : index
    %62 = vector.load %arg8[%c0_18, %c0_19] : memref<512x4xf32, #tpu.memory_space<vmem>>, vector<512x4xf32>
    tpu.vector_store %arg8[%c0_18, %c0_19], %61 {strides = array<i32>} : memref<512x4xf32, #tpu.memory_space<vmem>>, vector<512x4xf32>,
    return
  }
  func.func @transform_0(%arg0: i32) -> (i32, i32) {
    %c0_i32 = arith.constant 0 : i32
    %c0_i32_0 = arith.constant 0 : i32
    return %arg0, %c0_i32 : i32, i32
  }
  func.func @transform_1(%arg0: i32) -> (i32, i32) {
    %c0_i32 = arith.constant 0 : i32
    %c0_i32_0 = arith.constant 0 : i32
    %c0_i32_1 = arith.constant 0 : i32
    return %c0_i32, %c0_i32_0 : i32, i32
  }
  func.func @transform_2(%arg0: i32) -> (i32, i32) {
    %c0_i32 = arith.constant 0 : i32
    %c0_i32_0 = arith.constant 0 : i32
    %c0_i32_1 = arith.constant 0 : i32
    return %c0_i32, %c0_i32_0 : i32, i32
  }
  func.func @transform_3(%arg0: i32) -> (i32, i32) {
    %c0_i32 = arith.constant 0 : i32
    %c0_i32_0 = arith.constant 0 : i32
    %c0_i32_1 = arith.constant 0 : i32
    return %c0_i32, %c0_i32_0 : i32, i32
  }
  func.func @transform_4(%arg0: i32) -> (i32, i32) {
    %c0_i32 = arith.constant 0 : i32
    %c0_i32_0 = arith.constant 0 : i32
    %c0_i32_1 = arith.constant 0 : i32
    return %c0_i32, %c0_i32_0 : i32, i32
  }
  func.func @transform_5(%arg0: i32) -> (i32, i32) {
    %c0_i32 = arith.constant 0 : i32
    %c0_i32_0 = arith.constant 0 : i32
    %c0_i32_1 = arith.constant 0 : i32
    return %c0_i32, %c0_i32_0 : i32, i32
  }
  func.func @transform_6(%arg0: i32) -> (i32, i32) {
    %c0_i32 = arith.constant 0 : i32
    %c0_i32_0 = arith.constant 0 : i32
    %c0_i32_1 = arith.constant 0 : i32
    return %c0_i32, %c0_i32_0 : i32, i32
  }
  func.func @transform_7(%arg0: i32) -> (i32, i32) {
    %c0_i32 = arith.constant 0 : i32
    %c0_i32_0 = arith.constant 0 : i32
    return %arg0, %c0_i32 : i32, i32
  }
}

</mosaic_0001>

<llo_original>
// kernel: basic_block.1
$region0: #{basic_block.1}
  #allocation0 [shape = 'u32[]', space=smem, size = 0x4, offset = 0x4, fixed_abs, tag = 'smem constant byte address 0x4 - core index']
  #allocation1 [shape = 'u32[72,128]{1,0:T(1,128)}', space=vmem, size = 0x9000, scoped, tag = 'internal scratch']
  %s0 = inlined_call_operand.vmem [shape: f32[512,4], index: 0, kind: input, shape index: {}]
  %s1 = inlined_call_operand.vmem [shape: f32[60,4], index: 1, kind: input, shape index: {}]
  %s2 = inlined_call_operand.vmem [shape: f32[60,4], index: 2, kind: input, shape index: {}]
  %s3 = inlined_call_operand.vmem [shape: f32[1,4], index: 3, kind: input, shape index: {}]
  %s4 = inlined_call_operand.vmem [shape: f32[1,4], index: 4, kind: input, shape index: {}]
  %s5 = inlined_call_operand.vmem [shape: f32[1,4], index: 5, kind: input, shape index: {}]
  %s6 = inlined_call_operand.vmem [shape: f32[1,4], index: 6, kind: input, shape index: {}]
  %s7 = inlined_call_operand.vmem [shape: f32[512,4], index: 7, kind: output, shape index: {}]
  %s8 = sld [smem:[#allocation0]]
  $region38: #{basic_block.1} parent=0
    _
  %s10 = ssub.s32 1, %s8
  %s11 = scalar_select 0, %s10, %s8
  // Predicated region
  $region2: #{basic_block.1} parent=0 // pred_check
    _
  $region3: #{basic_block.1} parent=0 // pred_check_branch
    %13 = sbr.rel (0) target = $region5
  $region4: #{basic_block.1} parent=0 // pred_region
    _
  $region5: #{basic_block.1} parent=0 // pred_fallthru
    _
  // Predicated region
  $region6: #{basic_block.1} parent=0 // pred_check
    _
  $region7: #{basic_block.1} parent=0 // pred_check_branch
    %15 = sbr.rel (0) target = $region9
  $region8: #{basic_block.1} parent=0 // pred_region
    _
  $region9: #{basic_block.1} parent=0 // pred_fallthru
    _
  // Predicated region
  $region10: #{basic_block.1} parent=0 // pred_check
    _
  $region11: #{basic_block.1} parent=0 // pred_check_branch
    %17 = sbr.rel (0) target = $region13
  $region12: #{basic_block.1} parent=0 // pred_region
    _
  $region13: #{basic_block.1} parent=0 // pred_fallthru
    _
  // Predicated region
  $region14: #{basic_block.1} parent=0 // pred_check
    _
  $region15: #{basic_block.1} parent=0 // pred_check_branch
    %19 = sbr.rel (0) target = $region17
  $region16: #{basic_block.1} parent=0 // pred_region
    _
  $region17: #{basic_block.1} parent=0 // pred_fallthru
    _
  // Predicated region
  $region18: #{basic_block.1} parent=0 // pred_check
    _
  $region19: #{basic_block.1} parent=0 // pred_check_branch
    %21 = sbr.rel (0) target = $region21
  $region20: #{basic_block.1} parent=0 // pred_region
    _
  $region21: #{basic_block.1} parent=0 // pred_fallthru
    _
  // Predicated region
  $region22: #{basic_block.1} parent=0 // pred_check
    _
  $region23: #{basic_block.1} parent=0 // pred_check_branch
    %23 = sbr.rel (0) target = $region25
  $region24: #{basic_block.1} parent=0 // pred_region
    _
  $region25: #{basic_block.1} parent=0 // pred_fallthru
    _
  // Predicated region
  $region26: #{basic_block.1} parent=0 // pred_check
    _
  $region27: #{basic_block.1} parent=0 // pred_check_branch
    %25 = sbr.rel (0) target = $region29
  $region28: #{basic_block.1} parent=0 // pred_region
    _
  $region29: #{basic_block.1} parent=0 // pred_fallthru
    _
  %v26 = vld [vmem:[%s0] sm:$0xff]
  %v27 = vld [vmem:[%s0 + $0x8] sm:$0xff]
  %v28 = vld [vmem:[%s0 + $0x10] sm:$0xff]
  %v29 = vld [vmem:[%s0 + $0x18] sm:$0xff]
  %v30 = vld [vmem:[%s0 + $0x20] sm:$0xff]
  %v31 = vld [vmem:[%s0 + $0x28] sm:$0xff]
  %v32 = vld [vmem:[%s0 + $0x30] sm:$0xff]
  %v33 = vld [vmem:[%s0 + $0x38] sm:$0xff]
  %v34 = vld [vmem:[%s0 + $0x40] sm:$0xff]
  %v35 = vld [vmem:[%s0 + $0x48] sm:$0xff]
  %v36 = vld [vmem:[%s0 + $0x50] sm:$0xff]
  %v37 = vld [vmem:[%s0 + $0x58] sm:$0xff]
  %v38 = vld [vmem:[%s0 + $0x60] sm:$0xff]
  %v39 = vld [vmem:[%s0 + $0x68] sm:$0xff]
  %v40 = vld [vmem:[%s0 + $0x70] sm:$0xff]
  %v41 = vld [vmem:[%s0 + $0x78] sm:$0xff]
  %v42 = vld [vmem:[%s0 + $0x80] sm:$0xff]
  %v43 = vld [vmem:[%s0 + $0x88] sm:$0xff]
  %v44 = vld [vmem:[%s0 + $0x90] sm:$0xff]
  %v45 = vld [vmem:[%s0 + $0x98] sm:$0xff]
  %v46 = vld [vmem:[%s0 + $0xa0] sm:$0xff]
  %v47 = vld [vmem:[%s0 + $0xa8] sm:$0xff]
  %v48 = vld [vmem:[%s0 + $0xb0] sm:$0xff]
  %v49 = vld [vmem:[%s0 + $0xb8] sm:$0xff]
  %v50 = vld [vmem:[%s0 + $0xc0] sm:$0xff]
  %v51 = vld [vmem:[%s0 + $0xc8] sm:$0xff]
  %v52 = vld [vmem:[%s0 + $0xd0] sm:$0xff]
  %v53 = vld [vmem:[%s0 + $0xd8] sm:$0xff]
  %v54 = vld [vmem:[%s0 + $0xe0] sm:$0xff]
  %v55 = vld [vmem:[%s0 + $0xe8] sm:$0xff]
  %v56 = vld [vmem:[%s0 + $0xf0] sm:$0xff]
  %v57 = vld [vmem:[%s0 + $0xf8] sm:$0xff]
  %v58 = vld [vmem:[%s0 + $0x100] sm:$0xff]
  %v59 = vld [vmem:[%s0 + $0x108] sm:$0xff]
  %v60 = vld [vmem:[%s0 + $0x110] sm:$0xff]
  %v61 = vld [vmem:[%s0 + $0x118] sm:$0xff]
  %v62 = vld [vmem:[%s0 + $0x120] sm:$0xff]
  %v63 = vld [vmem:[%s0 + $0x128] sm:$0xff]
  %v64 = vld [vmem:[%s0 + $0x130] sm:$0xff]
  %v65 = vld [vmem:[%s0 + $0x138] sm:$0xff]
  %v66 = vld [vmem:[%s0 + $0x140] sm:$0xff]
  %v67 = vld [vmem:[%s0 + $0x148] sm:$0xff]
  %v68 = vld [vmem:[%s0 + $0x150] sm:$0xff]
  %v69 = vld [vmem:[%s0 + $0x158] sm:$0xff]
  %v70 = vld [vmem:[%s0 + $0x160] sm:$0xff]
  %v71 = vld [vmem:[%s0 + $0x168] sm:$0xff]
  %v72 = vld [vmem:[%s0 + $0x170] sm:$0xff]
  %v73 = vld [vmem:[%s0 + $0x178] sm:$0xff]
  %v74 = vld [vmem:[%s0 + $0x180] sm:$0xff]
  %v75 = vld [vmem:[%s0 + $0x188] sm:$0xff]
  %v76 = vld [vmem:[%s0 + $0x190] sm:$0xff]
  %v77 = vld [vmem:[%s0 + $0x198] sm:$0xff]
  %v78 = vld [vmem:[%s0 + $0x1a0] sm:$0xff]
  %v79 = vld [vmem:[%s0 + $0x1a8] sm:$0xff]
  %v80 = vld [vmem:[%s0 + $0x1b0] sm:$0xff]
  %v81 = vld [vmem:[%s0 + $0x1b8] sm:$0xff]
  %v82 = vld [vmem:[%s0 + $0x1c0] sm:$0xff]
  %v83 = vld [vmem:[%s0 + $0x1c8] sm:$0xff]
  %v84 = vld [vmem:[%s0 + $0x1d0] sm:$0xff]
  %v85 = vld [vmem:[%s0 + $0x1d8] sm:$0xff]
  %v86 = vld [vmem:[%s0 + $0x1e0] sm:$0xff]
  %v87 = vld [vmem:[%s0 + $0x1e8] sm:$0xff]
  %v88 = vld [vmem:[%s0 + $0x1f0] sm:$0xff]
  %v89 = vld [vmem:[%s0 + $0x1f8] sm:$0xff]
  %vm154 = vcmask 1046528
  %v155 = vrot.slane %v26, 1
  %v156 = vrot.slane %v27, 1
  %v157 = vsel %vm154, %v155, %v156
  %v158 = vrot.slane %v28, 1
  %v159 = vrot.slane %v29, 1
  %v160 = vsel %vm154, %v158, %v159
  %v161 = vrot.slane %v30, 1
  %v162 = vrot.slane %v31, 1
  %v163 = vsel %vm154, %v161, %v162
  %v164 = vrot.slane %v32, 1
  %v165 = vrot.slane %v33, 1
  %v166 = vsel %vm154, %v164, %v165
  %v167 = vrot.slane %v34, 1
  %v168 = vrot.slane %v35, 1
  %v169 = vsel %vm154, %v167, %v168
  %v170 = vrot.slane %v36, 1
  %v171 = vrot.slane %v37, 1
  %v172 = vsel %vm154, %v170, %v171
  %v173 = vrot.slane %v38, 1
  %v174 = vrot.slane %v39, 1
  %v175 = vsel %vm154, %v173, %v174
  %v176 = vrot.slane %v40, 1
  %v177 = vrot.slane %v41, 1
  %v178 = vsel %vm154, %v176, %v177
  %v179 = vrot.slane %v42, 1
  %v180 = vrot.slane %v43, 1
  %v181 = vsel %vm154, %v179, %v180
  %v182 = vrot.slane %v44, 1
  %v183 = vrot.slane %v45, 1
  %v184 = vsel %vm154, %v182, %v183
  %v185 = vrot.slane %v46, 1
  %v186 = vrot.slane %v47, 1
  %v187 = vsel %vm154, %v185, %v186
  %v188 = vrot.slane %v48, 1
  %v189 = vrot.slane %v49, 1
  %v190 = vsel %vm154, %v188, %v189
  %v191 = vrot.slane %v50, 1
  %v192 = vrot.slane %v51, 1
  %v193 = vsel %vm154, %v191, %v192
  %v194 = vrot.slane %v52, 1
  %v195 = vrot.slane %v53, 1
  %v196 = vsel %vm154, %v194, %v195
  %v197 = vrot.slane %v54, 1
  %v198 = vrot.slane %v55, 1
  %v199 = vsel %vm154, %v197, %v198
  %v200 = vrot.slane %v56, 1
  %v201 = vrot.slane %v57, 1
  %v202 = vsel %vm154, %v200, %v201
  %v203 = vrot.slane %v58, 1
  %v204 = vrot.slane %v59, 1
  %v205 = vsel %vm154, %v203, %v204
  %v206 = vrot.slane %v60, 1
  %v207 = vrot.slane %v61, 1
  %v208 = vsel %vm154, %v206, %v207
  %v209 = vrot.slane %v62, 1
  %v210 = vrot.slane %v63, 1
  %v211 = vsel %vm154, %v209, %v210
  %v212 = vrot.slane %v64, 1
  %v213 = vrot.slane %v65, 1
  %v214 = vsel %vm154, %v212, %v213
  %v215 = vrot.slane %v66, 1
  %v216 = vrot.slane %v67, 1
  %v217 = vsel %vm154, %v215, %v216
  %v218 = vrot.slane %v68, 1
  %v219 = vrot.slane %v69, 1
  %v220 = vsel %vm154, %v218, %v219
  %v221 = vrot.slane %v70, 1
  %v222 = vrot.slane %v71, 1
  %v223 = vsel %vm154, %v221, %v222
  %v224 = vrot.slane %v72, 1
  %v225 = vrot.slane %v73, 1
  %v226 = vsel %vm154, %v224, %v225
  %v227 = vrot.slane %v74, 1
  %v228 = vrot.slane %v75, 1
  %v229 = vsel %vm154, %v227, %v228
  %v230 = vrot.slane %v76, 1
  %v231 = vrot.slane %v77, 1
  %v232 = vsel %vm154, %v230, %v231
  %v233 = vrot.slane %v78, 1
  %v234 = vrot.slane %v79, 1
  %v235 = vsel %vm154, %v233, %v234
  %v236 = vrot.slane %v80, 1
  %v237 = vrot.slane %v81, 1
  %v238 = vsel %vm154, %v236, %v237
  %v239 = vrot.slane %v82, 1
  %v240 = vrot.slane %v83, 1
  %v241 = vsel %vm154, %v239, %v240
  %v242 = vrot.slane %v84, 1
  %v243 = vrot.slane %v85, 1
  %v244 = vsel %vm154, %v242, %v243
  %v245 = vrot.slane %v86, 1
  %v246 = vrot.slane %v87, 1
  %v247 = vsel %vm154, %v245, %v246
  %v248 = vrot.slane %v88, 1
  %v249 = vrot.slane %v89, 1
  %v250 = vsel %vm154, %v248, %v249
  %v347 = vsel %vm154, 0.0, %v155
  %v348 = vsel %vm154, 0.0, %v158
  %v349 = vsel %vm154, 0.0, %v161
  %v350 = vsel %vm154, 0.0, %v164
  %v351 = vsel %vm154, 0.0, %v167
  %v352 = vsel %vm154, 0.0, %v170
  %v353 = vsel %vm154, 0.0, %v173
  %v354 = vsel %vm154, 0.0, %v176
  %v355 = vsel %vm154, 0.0, %v179
  %v356 = vsel %vm154, 0.0, %v182
  %v357 = vsel %vm154, 0.0, %v185
  %v358 = vsel %vm154, 0.0, %v188
  %v359 = vsel %vm154, 0.0, %v191
  %v360 = vsel %vm154, 0.0, %v194
  %v361 = vsel %vm154, 0.0, %v197
  %v362 = vsel %vm154, 0.0, %v200
  %v363 = vsel %vm154, 0.0, %v203
  %v364 = vsel %vm154, 0.0, %v206
  %v365 = vsel %vm154, 0.0, %v209
  %v366 = vsel %vm154, 0.0, %v212
  %v367 = vsel %vm154, 0.0, %v215
  %v368 = vsel %vm154, 0.0, %v218
  %v369 = vsel %vm154, 0.0, %v221
  %v370 = vsel %vm154, 0.0, %v224
  %v371 = vsel %vm154, 0.0, %v227
  %v372 = vsel %vm154, 0.0, %v230
  %v373 = vsel %vm154, 0.0, %v233
  %v374 = vsel %vm154, 0.0, %v236
  %v375 = vsel %vm154, 0.0, %v239
  %v376 = vsel %vm154, 0.0, %v242
  %v377 = vsel %vm154, 0.0, %v245
  %v378 = vsel %vm154, 0.0, %v248
  %v379 = vsel %vm154, %v156, 0.0
  %v380 = vsel %vm154, %v159, 0.0
  %v381 = vsel %vm154, %v162, 0.0
  %v382 = vsel %vm154, %v165, 0.0
  %v383 = vsel %vm154, %v168, 0.0
  %v384 = vsel %vm154, %v171, 0.0
  %v385 = vsel %vm154, %v174, 0.0
  %v386 = vsel %vm154, %v177, 0.0
  %v387 = vsel %vm154, %v180, 0.0
  %v388 = vsel %vm154, %v183, 0.0
  %v389 = vsel %vm154, %v186, 0.0
  %v390 = vsel %vm154, %v189, 0.0
  %v391 = vsel %vm154, %v192, 0.0
  %v392 = vsel %vm154, %v195, 0.0
  %v393 = vsel %vm154, %v198, 0.0
  %v394 = vsel %vm154, %v201, 0.0
  %v395 = vsel %vm154, %v204, 0.0
  %v396 = vsel %vm154, %v207, 0.0
  %v397 = vsel %vm154, %v210, 0.0
  %v398 = vsel %vm154, %v213, 0.0
  %v399 = vsel %vm154, %v216, 0.0
  %v400 = vsel %vm154, %v219, 0.0
  %v401 = vsel %vm154, %v222, 0.0
  %v402 = vsel %vm154, %v225, 0.0
  %v403 = vsel %vm154, %v228, 0.0
  %v404 = vsel %vm154, %v231, 0.0
  %v405 = vsel %vm154, %v234, 0.0
  %v406 = vsel %vm154, %v237, 0.0
  %v407 = vsel %vm154, %v240, 0.0
  %v408 = vsel %vm154, %v243, 0.0
  %v409 = vsel %vm154, %v246, 0.0
  %v410 = vsel %vm154, %v249, 0.0
  %v475 = vrot.slane %v347, 1
  %v476 = vrot.slane %v157, 1
  %v477 = vsel %vm154, %v475, %v476
  %v478 = vrot.slane %v379, 1
  %v479 = vsel %vm154, %v476, %v478
  %v480 = vrot.slane %v348, 1
  %v481 = vrot.slane %v160, 1
  %v482 = vsel %vm154, %v480, %v481
  %v483 = vrot.slane %v380, 1
  %v484 = vsel %vm154, %v481, %v483
  %v485 = vrot.slane %v349, 1
  %v486 = vrot.slane %v163, 1
  %v487 = vsel %vm154, %v485, %v486
  %v488 = vrot.slane %v381, 1
  %v489 = vsel %vm154, %v486, %v488
  %v490 = vrot.slane %v350, 1
  %v491 = vrot.slane %v166, 1
  %v492 = vsel %vm154, %v490, %v491
  %v493 = vrot.slane %v382, 1
  %v494 = vsel %vm154, %v491, %v493
  %v495 = vrot.slane %v351, 1
  %v496 = vrot.slane %v169, 1
  %v497 = vsel %vm154, %v495, %v496
  %v498 = vrot.slane %v383, 1
  %v499 = vsel %vm154, %v496, %v498
  %v500 = vrot.slane %v352, 1
  %v501 = vrot.slane %v172, 1
  %v502 = vsel %vm154, %v500, %v501
  %v503 = vrot.slane %v384, 1
  %v504 = vsel %vm154, %v501, %v503
  %v505 = vrot.slane %v353, 1
  %v506 = vrot.slane %v175, 1
  %v507 = vsel %vm154, %v505, %v506
  %v508 = vrot.slane %v385, 1
  %v509 = vsel %vm154, %v506, %v508
  %v510 = vrot.slane %v354, 1
  %v511 = vrot.slane %v178, 1
  %v512 = vsel %vm154, %v510, %v511
  %v513 = vrot.slane %v386, 1
  %v514 = vsel %vm154, %v511, %v513
  %v515 = vrot.slane %v355, 1
  %v516 = vrot.slane %v181, 1
  %v517 = vsel %vm154, %v515, %v516
  %v518 = vrot.slane %v387, 1
  %v519 = vsel %vm154, %v516, %v518
  %v520 = vrot.slane %v356, 1
  %v521 = vrot.slane %v184, 1
  %v522 = vsel %vm154, %v520, %v521
  %v523 = vrot.slane %v388, 1
  %v524 = vsel %vm154, %v521, %v523
  %v525 = vrot.slane %v357, 1
  %v526 = vrot.slane %v187, 1
  %v527 = vsel %vm154, %v525, %v526
  %v528 = vrot.slane %v389, 1
  %v529 = vsel %vm154, %v526, %v528
  %v530 = vrot.slane %v358, 1
  %v531 = vrot.slane %v190, 1
  %v532 = vsel %vm154, %v530, %v531
  %v533 = vrot.slane %v390, 1
  %v534 = vsel %vm154, %v531, %v533
  %v535 = vrot.slane %v359, 1
  %v536 = vrot.slane %v193, 1
  %v537 = vsel %vm154, %v535, %v536
  %v538 = vrot.slane %v391, 1
  %v539 = vsel %vm154, %v536, %v538
  %v540 = vrot.slane %v360, 1
  %v541 = vrot.slane %v196, 1
  %v542 = vsel %vm154, %v540, %v541
  %v543 = vrot.slane %v392, 1
  %v544 = vsel %vm154, %v541, %v543
  %v545 = vrot.slane %v361, 1
  %v546 = vrot.slane %v199, 1
  %v547 = vsel %vm154, %v545, %v546
  %v548 = vrot.slane %v393, 1
  %v549 = vsel %vm154, %v546, %v548
  %v550 = vrot.slane %v362, 1
  %v551 = vrot.slane %v202, 1
  %v552 = vsel %vm154, %v550, %v551
  %v553 = vrot.slane %v394, 1
  %v554 = vsel %vm154, %v551, %v553
  %v555 = vrot.slane %v363, 1
  %v556 = vrot.slane %v205, 1
  %v557 = vsel %vm154, %v555, %v556
  %v558 = vrot.slane %v395, 1
  %v559 = vsel %vm154, %v556, %v558
  %v560 = vrot.slane %v364, 1
  %v561 = vrot.slane %v208, 1
  %v562 = vsel %vm154, %v560, %v561
  %v563 = vrot.slane %v396, 1
  %v564 = vsel %vm154, %v561, %v563
  %v565 = vrot.slane %v365, 1
  %v566 = vrot.slane %v211, 1
  %v567 = vsel %vm154, %v565, %v566
  %v568 = vrot.slane %v397, 1
  %v569 = vsel %vm154, %v566, %v568
  %v570 = vrot.slane %v366, 1
  %v571 = vrot.slane %v214, 1
  %v572 = vsel %vm154, %v570, %v571
  %v573 = vrot.slane %v398, 1
  %v574 = vsel %vm154, %v571, %v573
  %v575 = vrot.slane %v367, 1
  %v576 = vrot.slane %v217, 1
  %v577 = vsel %vm154, %v575, %v576
  %v578 = vrot.slane %v399, 1
  %v579 = vsel %vm154, %v576, %v578
  %v580 = vrot.slane %v368, 1
  %v581 = vrot.slane %v220, 1
  %v582 = vsel %vm154, %v580, %v581
  %v583 = vrot.slane %v400, 1
  %v584 = vsel %vm154, %v581, %v583
  %v585 = vrot.slane %v369, 1
  %v586 = vrot.slane %v223, 1
  %v587 = vsel %vm154, %v585, %v586
  %v588 = vrot.slane %v401, 1
  %v589 = vsel %vm154, %v586, %v588
  %v590 = vrot.slane %v370, 1
  %v591 = vrot.slane %v226, 1
  %v592 = vsel %vm154, %v590, %v591
  %v593 = vrot.slane %v402, 1
  %v594 = vsel %vm154, %v591, %v593
  %v595 = vrot.slane %v371, 1
  %v596 = vrot.slane %v229, 1
  %v597 = vsel %vm154, %v595, %v596
  %v598 = vrot.slane %v403, 1
  %v599 = vsel %vm154, %v596, %v598
  %v600 = vrot.slane %v372, 1
  %v601 = vrot.slane %v232, 1
  %v602 = vsel %vm154, %v600, %v601
  %v603 = vrot.slane %v404, 1
  %v604 = vsel %vm154, %v601, %v603
  %v605 = vrot.slane %v373, 1
  %v606 = vrot.slane %v235, 1
  %v607 = vsel %vm154, %v605, %v606
  %v608 = vrot.slane %v405, 1
  %v609 = vsel %vm154, %v606, %v608
  %v610 = vrot.slane %v374, 1
  %v611 = vrot.slane %v238, 1
  %v612 = vsel %vm154, %v610, %v611
  %v613 = vrot.slane %v406, 1
  %v614 = vsel %vm154, %v611, %v613
  %v615 = vrot.slane %v375, 1
  %v616 = vrot.slane %v241, 1
  %v617 = vsel %vm154, %v615, %v616
  %v618 = vrot.slane %v407, 1
  %v619 = vsel %vm154, %v616, %v618
  %v620 = vrot.slane %v376, 1
  %v621 = vrot.slane %v244, 1
  %v622 = vsel %vm154, %v620, %v621
  %v623 = vrot.slane %v408, 1
  %v624 = vsel %vm154, %v621, %v623
  %v625 = vrot.slane %v377, 1
  %v626 = vrot.slane %v247, 1
  %v627 = vsel %vm154, %v625, %v626
  %v628 = vrot.slane %v409, 1
  %v629 = vsel %vm154, %v626, %v628
  %v630 = vrot.slane %v378, 1
  %v631 = vrot.slane %v250, 1
  %v632 = vsel %vm154, %v630, %v631
  %v633 = vrot.slane %v410, 1
  %v634 = vsel %vm154, %v631, %v633
  %635 = vrot.lane.b32.xlu0 %v477, 4
  %v636 = vpop.permute.xlu0 %635
  %637 = vrot.lane.b32.xlu0 %v479, 4
  %v638 = vpop.permute.xlu0 %637
  %639 = vrot.lane.b32.xlu0 %v482, 4
  %v640 = vpop.permute.xlu0 %639
  %641 = vrot.lane.b32.xlu0 %v484, 4
  %v642 = vpop.permute.xlu0 %641
  %643 = vrot.lane.b32.xlu0 %v487, 4
  %v644 = vpop.permute.xlu0 %643
  %645 = vrot.lane.b32.xlu0 %v489, 4
  %v646 = vpop.permute.xlu0 %645
  %647 = vrot.lane.b32.xlu0 %v492, 4
  %v648 = vpop.permute.xlu0 %647
  %649 = vrot.lane.b32.xlu0 %v494, 4
  %v650 = vpop.permute.xlu0 %649
  %651 = vrot.lane.b32.xlu0 %v497, 4
  %v652 = vpop.permute.xlu0 %651
  %653 = vrot.lane.b32.xlu0 %v499, 4
  %v654 = vpop.permute.xlu0 %653
  %655 = vrot.lane.b32.xlu0 %v502, 4
  %v656 = vpop.permute.xlu0 %655
  %657 = vrot.lane.b32.xlu0 %v504, 4
  %v658 = vpop.permute.xlu0 %657
  %659 = vrot.lane.b32.xlu0 %v507, 4
  %v660 = vpop.permute.xlu0 %659
  %661 = vrot.lane.b32.xlu0 %v509, 4
  %v662 = vpop.permute.xlu0 %661
  %663 = vrot.lane.b32.xlu0 %v512, 4
  %v664 = vpop.permute.xlu0 %663
  %665 = vrot.lane.b32.xlu0 %v514, 4
  %v666 = vpop.permute.xlu0 %665
  %667 = vrot.lane.b32.xlu0 %v517, 4
  %v668 = vpop.permute.xlu0 %667
  %669 = vrot.lane.b32.xlu0 %v519, 4
  %v670 = vpop.permute.xlu0 %669
  %671 = vrot.lane.b32.xlu0 %v522, 4
  %v672 = vpop.permute.xlu0 %671
  %673 = vrot.lane.b32.xlu0 %v524, 4
  %v674 = vpop.permute.xlu0 %673
  %675 = vrot.lane.b32.xlu0 %v527, 4
  %v676 = vpop.permute.xlu0 %675
  %677 = vrot.lane.b32.xlu0 %v529, 4
  %v678 = vpop.permute.xlu0 %677
  %679 = vrot.lane.b32.xlu0 %v532, 4
  %v680 = vpop.permute.xlu0 %679
  %681 = vrot.lane.b32.xlu0 %v534, 4
  %v682 = vpop.permute.xlu0 %681
  %683 = vrot.lane.b32.xlu0 %v537, 4
  %v684 = vpop.permute.xlu0 %683
  %685 = vrot.lane.b32.xlu0 %v539, 4
  %v686 = vpop.permute.xlu0 %685
  %687 = vrot.lane.b32.xlu0 %v542, 4
  %v688 = vpop.permute.xlu0 %687
  %689 = vrot.lane.b32.xlu0 %v544, 4
  %v690 = vpop.permute.xlu0 %689
  %691 = vrot.lane.b32.xlu0 %v547, 4
  %v692 = vpop.permute.xlu0 %691
  %693 = vrot.lane.b32.xlu0 %v549, 4
  %v694 = vpop.permute.xlu0 %693
  %695 = vrot.lane.b32.xlu0 %v552, 4
  %v696 = vpop.permute.xlu0 %695
  %697 = vrot.lane.b32.xlu0 %v554, 4
  %v698 = vpop.permute.xlu0 %697
  %699 = vrot.lane.b32.xlu0 %v557, 4
  %v700 = vpop.permute.xlu0 %699
  %701 = vrot.lane.b32.xlu0 %v559, 4
  %v702 = vpop.permute.xlu0 %701
  %703 = vrot.lane.b32.xlu0 %v562, 4
  %v704 = vpop.permute.xlu0 %703
  %705 = vrot.lane.b32.xlu0 %v564, 4
  %v706 = vpop.permute.xlu0 %705
  %707 = vrot.lane.b32.xlu0 %v567, 4
  %v708 = vpop.permute.xlu0 %707
  %709 = vrot.lane.b32.xlu0 %v569, 4
  %v710 = vpop.permute.xlu0 %709
  %711 = vrot.lane.b32.xlu0 %v572, 4
  %v712 = vpop.permute.xlu0 %711
  %713 = vrot.lane.b32.xlu0 %v574, 4
  %v714 = vpop.permute.xlu0 %713
  %715 = vrot.lane.b32.xlu0 %v577, 4
  %v716 = vpop.permute.xlu0 %715
  %717 = vrot.lane.b32.xlu0 %v579, 4
  %v718 = vpop.permute.xlu0 %717
  %719 = vrot.lane.b32.xlu0 %v582, 4
  %v720 = vpop.permute.xlu0 %719
  %721 = vrot.lane.b32.xlu0 %v584, 4
  %v722 = vpop.permute.xlu0 %721
  %723 = vrot.lane.b32.xlu0 %v587, 4
  %v724 = vpop.permute.xlu0 %723
  %725 = vrot.lane.b32.xlu0 %v589, 4
  %v726 = vpop.permute.xlu0 %725
  %727 = vrot.lane.b32.xlu0 %v592, 4
  %v728 = vpop.permute.xlu0 %727
  %729 = vrot.lane.b32.xlu0 %v594, 4
  %v730 = vpop.permute.xlu0 %729
  %731 = vrot.lane.b32.xlu0 %v597, 4
  %v732 = vpop.permute.xlu0 %731
  %733 = vrot.lane.b32.xlu0 %v599, 4
  %v734 = vpop.permute.xlu0 %733
  %735 = vrot.lane.b32.xlu0 %v602, 4
  %v736 = vpop.permute.xlu0 %735
  %737 = vrot.lane.b32.xlu0 %v604, 4
  %v738 = vpop.permute.xlu0 %737
  %739 = vrot.lane.b32.xlu0 %v607, 4
  %v740 = vpop.permute.xlu0 %739
  %741 = vrot.lane.b32.xlu0 %v609, 4
  %v742 = vpop.permute.xlu0 %741
  %743 = vrot.lane.b32.xlu0 %v612, 4
  %v744 = vpop.permute.xlu0 %743
  %745 = vrot.lane.b32.xlu0 %v614, 4
  %v746 = vpop.permute.xlu0 %745
  %747 = vrot.lane.b32.xlu0 %v617, 4
  %v748 = vpop.permute.xlu0 %747
  %749 = vrot.lane.b32.xlu0 %v619, 4
  %v750 = vpop.permute.xlu0 %749
  %751 = vrot.lane.b32.xlu0 %v622, 4
  %v752 = vpop.permute.xlu0 %751
  %753 = vrot.lane.b32.xlu0 %v624, 4
  %v754 = vpop.permute.xlu0 %753
  %755 = vrot.lane.b32.xlu0 %v627, 4
  %v756 = vpop.permute.xlu0 %755
  %757 = vrot.lane.b32.xlu0 %v629, 4
  %v758 = vpop.permute.xlu0 %757
  %759 = vrot.lane.b32.xlu0 %v632, 4
  %v760 = vpop.permute.xlu0 %759
  %761 = vrot.lane.b32.xlu0 %v634, 4
  %v762 = vpop.permute.xlu0 %761
  %vm827 = vcmask 1045504
  %v828 = vrot.slane %v347, 2
  %v829 = vrot.slane %v157, 2
  %v830 = vsel %vm827, %v828, %v829
  %v831 = vrot.slane %v379, 2
  %v832 = vsel %vm827, %v829, %v831
  %v833 = vrot.slane %v348, 2
  %v834 = vrot.slane %v160, 2
  %v835 = vsel %vm827, %v833, %v834
  %v836 = vrot.slane %v380, 2
  %v837 = vsel %vm827, %v834, %v836
  %v838 = vrot.slane %v349, 2
  %v839 = vrot.slane %v163, 2
  %v840 = vsel %vm827, %v838, %v839
  %v841 = vrot.slane %v381, 2
  %v842 = vsel %vm827, %v839, %v841
  %v843 = vrot.slane %v350, 2
  %v844 = vrot.slane %v166, 2
  %v845 = vsel %vm827, %v843, %v844
  %v846 = vrot.slane %v382, 2
  %v847 = vsel %vm827, %v844, %v846
  %v848 = vrot.slane %v351, 2
  %v849 = vrot.slane %v169, 2
  %v850 = vsel %vm827, %v848, %v849
  %v851 = vrot.slane %v383, 2
  %v852 = vsel %vm827, %v849, %v851
  %v853 = vrot.slane %v352, 2
  %v854 = vrot.slane %v172, 2
  %v855 = vsel %vm827, %v853, %v854
  %v856 = vrot.slane %v384, 2
  %v857 = vsel %vm827, %v854, %v856
  %v858 = vrot.slane %v353, 2
  %v859 = vrot.slane %v175, 2
  %v860 = vsel %vm827, %v858, %v859
  %v861 = vrot.slane %v385, 2
  %v862 = vsel %vm827, %v859, %v861
  %v863 = vrot.slane %v354, 2
  %v864 = vrot.slane %v178, 2
  %v865 = vsel %vm827, %v863, %v864
  %v866 = vrot.slane %v386, 2
  %v867 = vsel %vm827, %v864, %v866
  %v868 = vrot.slane %v355, 2
  %v869 = vrot.slane %v181, 2
  %v870 = vsel %vm827, %v868, %v869
  %v871 = vrot.slane %v387, 2
  %v872 = vsel %vm827, %v869, %v871
  %v873 = vrot.slane %v356, 2
  %v874 = vrot.slane %v184, 2
  %v875 = vsel %vm827, %v873, %v874
  %v876 = vrot.slane %v388, 2
  %v877 = vsel %vm827, %v874, %v876
  %v878 = vrot.slane %v357, 2
  %v879 = vrot.slane %v187, 2
  %v880 = vsel %vm827, %v878, %v879
  %v881 = vrot.slane %v389, 2
  %v882 = vsel %vm827, %v879, %v881
  %v883 = vrot.slane %v358, 2
  %v884 = vrot.slane %v190, 2
  %v885 = vsel %vm827, %v883, %v884
  %v886 = vrot.slane %v390, 2
  %v887 = vsel %vm827, %v884, %v886
  %v888 = vrot.slane %v359, 2
  %v889 = vrot.slane %v193, 2
  %v890 = vsel %vm827, %v888, %v889
  %v891 = vrot.slane %v391, 2
  %v892 = vsel %vm827, %v889, %v891
  %v893 = vrot.slane %v360, 2
  %v894 = vrot.slane %v196, 2
  %v895 = vsel %vm827, %v893, %v894
  %v896 = vrot.slane %v392, 2
  %v897 = vsel %vm827, %v894, %v896
  %v898 = vrot.slane %v361, 2
  %v899 = vrot.slane %v199, 2
  %v900 = vsel %vm827, %v898, %v899
  %v901 = vrot.slane %v393, 2
  %v902 = vsel %vm827, %v899, %v901
  %v903 = vrot.slane %v362, 2
  %v904 = vrot.slane %v202, 2
  %v905 = vsel %vm827, %v903, %v904
  %v906 = vrot.slane %v394, 2
  %v907 = vsel %vm827, %v904, %v906
  %v908 = vrot.slane %v363, 2
  %v909 = vrot.slane %v205, 2
  %v910 = vsel %vm827, %v908, %v909
  %v911 = vrot.slane %v395, 2
  %v912 = vsel %vm827, %v909, %v911
  %v913 = vrot.slane %v364, 2
  %v914 = vrot.slane %v208, 2
  %v915 = vsel %vm827, %v913, %v914
  %v916 = vrot.slane %v396, 2
  %v917 = vsel %vm827, %v914, %v916
  %v918 = vrot.slane %v365, 2
  %v919 = vrot.slane %v211, 2
  %v920 = vsel %vm827, %v918, %v919
  %v921 = vrot.slane %v397, 2
  %v922 = vsel %vm827, %v919, %v921
  %v923 = vrot.slane %v366, 2
  %v924 = vrot.slane %v214, 2
  %v925 = vsel %vm827, %v923, %v924
  %v926 = vrot.slane %v398, 2
  %v927 = vsel %vm827, %v924, %v926
  %v928 = vrot.slane %v367, 2
  %v929 = vrot.slane %v217, 2
  %v930 = vsel %vm827, %v928, %v929
  %v931 = vrot.slane %v399, 2
  %v932 = vsel %vm827, %v929, %v931
  %v933 = vrot.slane %v368, 2
  %v934 = vrot.slane %v220, 2
  %v935 = vsel %vm827, %v933, %v934
  %v936 = vrot.slane %v400, 2
  %v937 = vsel %vm827, %v934, %v936
  %v938 = vrot.slane %v369, 2
  %v939 = vrot.slane %v223, 2
  %v940 = vsel %vm827, %v938, %v939
  %v941 = vrot.slane %v401, 2
  %v942 = vsel %vm827, %v939, %v941
  %v943 = vrot.slane %v370, 2
  %v944 = vrot.slane %v226, 2
  %v945 = vsel %vm827, %v943, %v944
  %v946 = vrot.slane %v402, 2
  %v947 = vsel %vm827, %v944, %v946
  %v948 = vrot.slane %v371, 2
  %v949 = vrot.slane %v229, 2
  %v950 = vsel %vm827, %v948, %v949
  %v951 = vrot.slane %v403, 2
  %v952 = vsel %vm827, %v949, %v951
  %v953 = vrot.slane %v372, 2
  %v954 = vrot.slane %v232, 2
  %v955 = vsel %vm827, %v953, %v954
  %v956 = vrot.slane %v404, 2
  %v957 = vsel %vm827, %v954, %v956
  %v958 = vrot.slane %v373, 2
  %v959 = vrot.slane %v235, 2
  %v960 = vsel %vm827, %v958, %v959
  %v961 = vrot.slane %v405, 2
  %v962 = vsel %vm827, %v959, %v961
  %v963 = vrot.slane %v374, 2
  %v964 = vrot.slane %v238, 2
  %v965 = vsel %vm827, %v963, %v964
  %v966 = vrot.slane %v406, 2
  %v967 = vsel %vm827, %v964, %v966
  %v968 = vrot.slane %v375, 2
  %v969 = vrot.slane %v241, 2
  %v970 = vsel %vm827, %v968, %v969
  %v971 = vrot.slane %v407, 2
  %v972 = vsel %vm827, %v969, %v971
  %v973 = vrot.slane %v376, 2
  %v974 = vrot.slane %v244, 2
  %v975 = vsel %vm827, %v973, %v974
  %v976 = vrot.slane %v408, 2
  %v977 = vsel %vm827, %v974, %v976
  %v978 = vrot.slane %v377, 2
  %v979 = vrot.slane %v247, 2
  %v980 = vsel %vm827, %v978, %v979
  %v981 = vrot.slane %v409, 2
  %v982 = vsel %vm827, %v979, %v981
  %v983 = vrot.slane %v378, 2
  %v984 = vrot.slane %v250, 2
  %v985 = vsel %vm827, %v983, %v984
  %v986 = vrot.slane %v410, 2
  %v987 = vsel %vm827, %v984, %v986
  %988 = vrot.lane.b32.xlu0 %v830, 8
  %v989 = vpop.permute.xlu0 %988
  %990 = vrot.lane.b32.xlu0 %v832, 8
  %v991 = vpop.permute.xlu0 %990
  %992 = vrot.lane.b32.xlu0 %v835, 8
  %v993 = vpop.permute.xlu0 %992
  %994 = vrot.lane.b32.xlu0 %v837, 8
  %v995 = vpop.permute.xlu0 %994
  %996 = vrot.lane.b32.xlu0 %v840, 8
  %v997 = vpop.permute.xlu0 %996
  %998 = vrot.lane.b32.xlu0 %v842, 8
  %v999 = vpop.permute.xlu0 %998
  %1000 = vrot.lane.b32.xlu0 %v845, 8
  %v1001 = vpop.permute.xlu0 %1000
  %1002 = vrot.lane.b32.xlu0 %v847, 8
  %v1003 = vpop.permute.xlu0 %1002
  %1004 = vrot.lane.b32.xlu0 %v850, 8
  %v1005 = vpop.permute.xlu0 %1004
  %1006 = vrot.lane.b32.xlu0 %v852, 8
  %v1007 = vpop.permute.xlu0 %1006
  %1008 = vrot.lane.b32.xlu0 %v855, 8
  %v1009 = vpop.permute.xlu0 %1008
  %1010 = vrot.lane.b32.xlu0 %v857, 8
  %v1011 = vpop.permute.xlu0 %1010
  %1012 = vrot.lane.b32.xlu0 %v860, 8
  %v1013 = vpop.permute.xlu0 %1012
  %1014 = vrot.lane.b32.xlu0 %v862, 8
  %v1015 = vpop.permute.xlu0 %1014
  %1016 = vrot.lane.b32.xlu0 %v865, 8
  %v1017 = vpop.permute.xlu0 %1016
  %1018 = vrot.lane.b32.xlu0 %v867, 8
  %v1019 = vpop.permute.xlu0 %1018
  %1020 = vrot.lane.b32.xlu0 %v870, 8
  %v1021 = vpop.permute.xlu0 %1020
  %1022 = vrot.lane.b32.xlu0 %v872, 8
  %v1023 = vpop.permute.xlu0 %1022
  %1024 = vrot.lane.b32.xlu0 %v875, 8
  %v1025 = vpop.permute.xlu0 %1024
  %1026 = vrot.lane.b32.xlu0 %v877, 8
  %v1027 = vpop.permute.xlu0 %1026
  %1028 = vrot.lane.b32.xlu0 %v880, 8
  %v1029 = vpop.permute.xlu0 %1028
  %1030 = vrot.lane.b32.xlu0 %v882, 8
  %v1031 = vpop.permute.xlu0 %1030
  %1032 = vrot.lane.b32.xlu0 %v885, 8
  %v1033 = vpop.permute.xlu0 %1032
  %1034 = vrot.lane.b32.xlu0 %v887, 8
  %v1035 = vpop.permute.xlu0 %1034
  %1036 = vrot.lane.b32.xlu0 %v890, 8
  %v1037 = vpop.permute.xlu0 %1036
  %1038 = vrot.lane.b32.xlu0 %v892, 8
  %v1039 = vpop.permute.xlu0 %1038
  %1040 = vrot.lane.b32.xlu0 %v895, 8
  %v1041 = vpop.permute.xlu0 %1040
  %1042 = vrot.lane.b32.xlu0 %v897, 8
  %v1043 = vpop.permute.xlu0 %1042
  %1044 = vrot.lane.b32.xlu0 %v900, 8
  %v1045 = vpop.permute.xlu0 %1044
  %1046 = vrot.lane.b32.xlu0 %v902, 8
  %v1047 = vpop.permute.xlu0 %1046
  %1048 = vrot.lane.b32.xlu0 %v905, 8
  %v1049 = vpop.permute.xlu0 %1048
  %1050 = vrot.lane.b32.xlu0 %v907, 8
  %v1051 = vpop.permute.xlu0 %1050
  %1052 = vrot.lane.b32.xlu0 %v910, 8
  %v1053 = vpop.permute.xlu0 %1052
  %1054 = vrot.lane.b32.xlu0 %v912, 8
  %v1055 = vpop.permute.xlu0 %1054
  %1056 = vrot.lane.b32.xlu0 %v915, 8
  %v1057 = vpop.permute.xlu0 %1056
  %1058 = vrot.lane.b32.xlu0 %v917, 8
  %v1059 = vpop.permute.xlu0 %1058
  %1060 = vrot.lane.b32.xlu0 %v920, 8
  %v1061 = vpop.permute.xlu0 %1060
  %1062 = vrot.lane.b32.xlu0 %v922, 8
  %v1063 = vpop.permute.xlu0 %1062
  %1064 = vrot.lane.b32.xlu0 %v925, 8
  %v1065 = vpop.permute.xlu0 %1064
  %1066 = vrot.lane.b32.xlu0 %v927, 8
  %v1067 = vpop.permute.xlu0 %1066
  %1068 = vrot.lane.b32.xlu0 %v930, 8
  %v1069 = vpop.permute.xlu0 %1068
  %1070 = vrot.lane.b32.xlu0 %v932, 8
  %v1071 = vpop.permute.xlu0 %1070
  %1072 = vrot.lane.b32.xlu0 %v935, 8
  %v1073 = vpop.permute.xlu0 %1072
  %1074 = vrot.lane.b32.xlu0 %v937, 8
  %v1075 = vpop.permute.xlu0 %1074
  %1076 = vrot.lane.b32.xlu0 %v940, 8
  %v1077 = vpop.permute.xlu0 %1076
  %1078 = vrot.lane.b32.xlu0 %v942, 8
  %v1079 = vpop.permute.xlu0 %1078
  %1080 = vrot.lane.b32.xlu0 %v945, 8
  %v1081 = vpop.permute.xlu0 %1080
  %1082 = vrot.lane.b32.xlu0 %v947, 8
  %v1083 = vpop.permute.xlu0 %1082
  %1084 = vrot.lane.b32.xlu0 %v950, 8
  %v1085 = vpop.permute.xlu0 %1084
  %1086 = vrot.lane.b32.xlu0 %v952, 8
  %v1087 = vpop.permute.xlu0 %1086
  %1088 = vrot.lane.b32.xlu0 %v955, 8
  %v1089 = vpop.permute.xlu0 %1088
  %1090 = vrot.lane.b32.xlu0 %v957, 8
  %v1091 = vpop.permute.xlu0 %1090
  %1092 = vrot.lane.b32.xlu0 %v960, 8
  %v1093 = vpop.permute.xlu0 %1092
  %1094 = vrot.lane.b32.xlu0 %v962, 8
  %v1095 = vpop.permute.xlu0 %1094
  %1096 = vrot.lane.b32.xlu0 %v965, 8
  %v1097 = vpop.permute.xlu0 %1096
  %1098 = vrot.lane.b32.xlu0 %v967, 8
  %v1099 = vpop.permute.xlu0 %1098
  %1100 = vrot.lane.b32.xlu0 %v970, 8
  %v1101 = vpop.permute.xlu0 %1100
  %1102 = vrot.lane.b32.xlu0 %v972, 8
  %v1103 = vpop.permute.xlu0 %1102
  %1104 = vrot.lane.b32.xlu0 %v975, 8
  %v1105 = vpop.permute.xlu0 %1104
  %1106 = vrot.lane.b32.xlu0 %v977, 8
  %v1107 = vpop.permute.xlu0 %1106
  %1108 = vrot.lane.b32.xlu0 %v980, 8
  %v1109 = vpop.permute.xlu0 %1108
  %1110 = vrot.lane.b32.xlu0 %v982, 8
  %v1111 = vpop.permute.xlu0 %1110
  %1112 = vrot.lane.b32.xlu0 %v985, 8
  %v1113 = vpop.permute.xlu0 %1112
  %1114 = vrot.lane.b32.xlu0 %v987, 8
  %v1115 = vpop.permute.xlu0 %1114
  %vm1180 = vcmask 1044480
  %v1181 = vrot.slane %v347, 3
  %v1182 = vrot.slane %v157, 3
  %v1183 = vsel %vm1180, %v1181, %v1182
  %v1184 = vrot.slane %v379, 3
  %v1185 = vsel %vm1180, %v1182, %v1184
  %v1186 = vrot.slane %v348, 3
  %v1187 = vrot.slane %v160, 3
  %v1188 = vsel %vm1180, %v1186, %v1187
  %v1189 = vrot.slane %v380, 3
  %v1190 = vsel %vm1180, %v1187, %v1189
  %v1191 = vrot.slane %v349, 3
  %v1192 = vrot.slane %v163, 3
  %v1193 = vsel %vm1180, %v1191, %v1192
  %v1194 = vrot.slane %v381, 3
  %v1195 = vsel %vm1180, %v1192, %v1194
  %v1196 = vrot.slane %v350, 3
  %v1197 = vrot.slane %v166, 3
  %v1198 = vsel %vm1180, %v1196, %v1197
  %v1199 = vrot.slane %v382, 3
  %v1200 = vsel %vm1180, %v1197, %v1199
  %v1201 = vrot.slane %v351, 3
  %v1202 = vrot.slane %v169, 3
  %v1203 = vsel %vm1180, %v1201, %v1202
  %v1204 = vrot.slane %v383, 3
  %v1205 = vsel %vm1180, %v1202, %v1204
  %v1206 = vrot.slane %v352, 3
  %v1207 = vrot.slane %v172, 3
  %v1208 = vsel %vm1180, %v1206, %v1207
  %v1209 = vrot.slane %v384, 3
  %v1210 = vsel %vm1180, %v1207, %v1209
  %v1211 = vrot.slane %v353, 3
  %v1212 = vrot.slane %v175, 3
  %v1213 = vsel %vm1180, %v1211, %v1212
  %v1214 = vrot.slane %v385, 3
  %v1215 = vsel %vm1180, %v1212, %v1214
  %v1216 = vrot.slane %v354, 3
  %v1217 = vrot.slane %v178, 3
  %v1218 = vsel %vm1180, %v1216, %v1217
  %v1219 = vrot.slane %v386, 3
  %v1220 = vsel %vm1180, %v1217, %v1219
  %v1221 = vrot.slane %v355, 3
  %v1222 = vrot.slane %v181, 3
  %v1223 = vsel %vm1180, %v1221, %v1222
  %v1224 = vrot.slane %v387, 3
  %v1225 = vsel %vm1180, %v1222, %v1224
  %v1226 = vrot.slane %v356, 3
  %v1227 = vrot.slane %v184, 3
  %v1228 = vsel %vm1180, %v1226, %v1227
  %v1229 = vrot.slane %v388, 3
  %v1230 = vsel %vm1180, %v1227, %v1229
  %v1231 = vrot.slane %v357, 3
  %v1232 = vrot.slane %v187, 3
  %v1233 = vsel %vm1180, %v1231, %v1232
  %v1234 = vrot.slane %v389, 3
  %v1235 = vsel %vm1180, %v1232, %v1234
  %v1236 = vrot.slane %v358, 3
  %v1237 = vrot.slane %v190, 3
  %v1238 = vsel %vm1180, %v1236, %v1237
  %v1239 = vrot.slane %v390, 3
  %v1240 = vsel %vm1180, %v1237, %v1239
  %v1241 = vrot.slane %v359, 3
  %v1242 = vrot.slane %v193, 3
  %v1243 = vsel %vm1180, %v1241, %v1242
  %v1244 = vrot.slane %v391, 3
  %v1245 = vsel %vm1180, %v1242, %v1244
  %v1246 = vrot.slane %v360, 3
  %v1247 = vrot.slane %v196, 3
  %v1248 = vsel %vm1180, %v1246, %v1247
  %v1249 = vrot.slane %v392, 3
  %v1250 = vsel %vm1180, %v1247, %v1249
  %v1251 = vrot.slane %v361, 3
  %v1252 = vrot.slane %v199, 3
  %v1253 = vsel %vm1180, %v1251, %v1252
  %v1254 = vrot.slane %v393, 3
  %v1255 = vsel %vm1180, %v1252, %v1254
  %v1256 = vrot.slane %v362, 3
  %v1257 = vrot.slane %v202, 3
  %v1258 = vsel %vm1180, %v1256, %v1257
  %v1259 = vrot.slane %v394, 3
  %v1260 = vsel %vm1180, %v1257, %v1259
  %v1261 = vrot.slane %v363, 3
  %v1262 = vrot.slane %v205, 3
  %v1263 = vsel %vm1180, %v1261, %v1262
  %v1264 = vrot.slane %v395, 3
  %v1265 = vsel %vm1180, %v1262, %v1264
  %v1266 = vrot.slane %v364, 3
  %v1267 = vrot.slane %v208, 3
  %v1268 = vsel %vm1180, %v1266, %v1267
  %v1269 = vrot.slane %v396, 3
  %v1270 = vsel %vm1180, %v1267, %v1269
  %v1271 = vrot.slane %v365, 3
  %v1272 = vrot.slane %v211, 3
  %v1273 = vsel %vm1180, %v1271, %v1272
  %v1274 = vrot.slane %v397, 3
  %v1275 = vsel %vm1180, %v1272, %v1274
  %v1276 = vrot.slane %v366, 3
  %v1277 = vrot.slane %v214, 3
  %v1278 = vsel %vm1180, %v1276, %v1277
  %v1279 = vrot.slane %v398, 3
  %v1280 = vsel %vm1180, %v1277, %v1279
  %v1281 = vrot.slane %v367, 3
  %v1282 = vrot.slane %v217, 3
  %v1283 = vsel %vm1180, %v1281, %v1282
  %v1284 = vrot.slane %v399, 3
  %v1285 = vsel %vm1180, %v1282, %v1284
  %v1286 = vrot.slane %v368, 3
  %v1287 = vrot.slane %v220, 3
  %v1288 = vsel %vm1180, %v1286, %v1287
  %v1289 = vrot.slane %v400, 3
  %v1290 = vsel %vm1180, %v1287, %v1289
  %v1291 = vrot.slane %v369, 3
  %v1292 = vrot.slane %v223, 3
  %v1293 = vsel %vm1180, %v1291, %v1292
  %v1294 = vrot.slane %v401, 3
  %v1295 = vsel %vm1180, %v1292, %v1294
  %v1296 = vrot.slane %v370, 3
  %v1297 = vrot.slane %v226, 3
  %v1298 = vsel %vm1180, %v1296, %v1297
  %v1299 = vrot.slane %v402, 3
  %v1300 = vsel %vm1180, %v1297, %v1299
  %v1301 = vrot.slane %v371, 3
  %v1302 = vrot.slane %v229, 3
  %v1303 = vsel %vm1180, %v1301, %v1302
  %v1304 = vrot.slane %v403, 3
  %v1305 = vsel %vm1180, %v1302, %v1304
  %v1306 = vrot.slane %v372, 3
  %v1307 = vrot.slane %v232, 3
  %v1308 = vsel %vm1180, %v1306, %v1307
  %v1309 = vrot.slane %v404, 3
  %v1310 = vsel %vm1180, %v1307, %v1309
  %v1311 = vrot.slane %v373, 3
  %v1312 = vrot.slane %v235, 3
  %v1313 = vsel %vm1180, %v1311, %v1312
  %v1314 = vrot.slane %v405, 3
  %v1315 = vsel %vm1180, %v1312, %v1314
  %v1316 = vrot.slane %v374, 3
  %v1317 = vrot.slane %v238, 3
  %v1318 = vsel %vm1180, %v1316, %v1317
  %v1319 = vrot.slane %v406, 3
  %v1320 = vsel %vm1180, %v1317, %v1319
  %v1321 = vrot.slane %v375, 3
  %v1322 = vrot.slane %v241, 3
  %v1323 = vsel %vm1180, %v1321, %v1322
  %v1324 = vrot.slane %v407, 3
  %v1325 = vsel %vm1180, %v1322, %v1324
  %v1326 = vrot.slane %v376, 3
  %v1327 = vrot.slane %v244, 3
  %v1328 = vsel %vm1180, %v1326, %v1327
  %v1329 = vrot.slane %v408, 3
  %v1330 = vsel %vm1180, %v1327, %v1329
  %v1331 = vrot.slane %v377, 3
  %v1332 = vrot.slane %v247, 3
  %v1333 = vsel %vm1180, %v1331, %v1332
  %v1334 = vrot.slane %v409, 3
  %v1335 = vsel %vm1180, %v1332, %v1334
  %v1336 = vrot.slane %v378, 3
  %v1337 = vrot.slane %v250, 3
  %v1338 = vsel %vm1180, %v1336, %v1337
  %v1339 = vrot.slane %v410, 3
  %v1340 = vsel %vm1180, %v1337, %v1339
  %1341 = vrot.lane.b32.xlu0 %v1183, 12
  %v1342 = vpop.permute.xlu0 %1341
  %1343 = vrot.lane.b32.xlu0 %v1185, 12
  %v1344 = vpop.permute.xlu0 %1343
  %1345 = vrot.lane.b32.xlu0 %v1188, 12
  %v1346 = vpop.permute.xlu0 %1345
  %1347 = vrot.lane.b32.xlu0 %v1190, 12
  %v1348 = vpop.permute.xlu0 %1347
  %1349 = vrot.lane.b32.xlu0 %v1193, 12
  %v1350 = vpop.permute.xlu0 %1349
  %1351 = vrot.lane.b32.xlu0 %v1195, 12
  %v1352 = vpop.permute.xlu0 %1351
  %1353 = vrot.lane.b32.xlu0 %v1198, 12
  %v1354 = vpop.permute.xlu0 %1353
  %1355 = vrot.lane.b32.xlu0 %v1200, 12
  %v1356 = vpop.permute.xlu0 %1355
  %1357 = vrot.lane.b32.xlu0 %v1203, 12
  %v1358 = vpop.permute.xlu0 %1357
  %1359 = vrot.lane.b32.xlu0 %v1205, 12
  %v1360 = vpop.permute.xlu0 %1359
  %1361 = vrot.lane.b32.xlu0 %v1208, 12
  %v1362 = vpop.permute.xlu0 %1361
  %1363 = vrot.lane.b32.xlu0 %v1210, 12
  %v1364 = vpop.permute.xlu0 %1363
  %1365 = vrot.lane.b32.xlu0 %v1213, 12
  %v1366 = vpop.permute.xlu0 %1365
  %1367 = vrot.lane.b32.xlu0 %v1215, 12
  %v1368 = vpop.permute.xlu0 %1367
  %1369 = vrot.lane.b32.xlu0 %v1218, 12
  %v1370 = vpop.permute.xlu0 %1369
  %1371 = vrot.lane.b32.xlu0 %v1220, 12
  %v1372 = vpop.permute.xlu0 %1371
  %1373 = vrot.lane.b32.xlu0 %v1223, 12
  %v1374 = vpop.permute.xlu0 %1373
  %1375 = vrot.lane.b32.xlu0 %v1225, 12
  %v1376 = vpop.permute.xlu0 %1375
  %1377 = vrot.lane.b32.xlu0 %v1228, 12
  %v1378 = vpop.permute.xlu0 %1377
  %1379 = vrot.lane.b32.xlu0 %v1230, 12
  %v1380 = vpop.permute.xlu0 %1379
  %1381 = vrot.lane.b32.xlu0 %v1233, 12
  %v1382 = vpop.permute.xlu0 %1381
  %1383 = vrot.lane.b32.xlu0 %v1235, 12
  %v1384 = vpop.permute.xlu0 %1383
  %1385 = vrot.lane.b32.xlu0 %v1238, 12
  %v1386 = vpop.permute.xlu0 %1385
  %1387 = vrot.lane.b32.xlu0 %v1240, 12
  %v1388 = vpop.permute.xlu0 %1387
  %1389 = vrot.lane.b32.xlu0 %v1243, 12
  %v1390 = vpop.permute.xlu0 %1389
  %1391 = vrot.lane.b32.xlu0 %v1245, 12
  %v1392 = vpop.permute.xlu0 %1391
  %1393 = vrot.lane.b32.xlu0 %v1248, 12
  %v1394 = vpop.permute.xlu0 %1393
  %1395 = vrot.lane.b32.xlu0 %v1250, 12
  %v1396 = vpop.permute.xlu0 %1395
  %1397 = vrot.lane.b32.xlu0 %v1253, 12
  %v1398 = vpop.permute.xlu0 %1397
  %1399 = vrot.lane.b32.xlu0 %v1255, 12
  %v1400 = vpop.permute.xlu0 %1399
  %1401 = vrot.lane.b32.xlu0 %v1258, 12
  %v1402 = vpop.permute.xlu0 %1401
  %1403 = vrot.lane.b32.xlu0 %v1260, 12
  %v1404 = vpop.permute.xlu0 %1403
  %1405 = vrot.lane.b32.xlu0 %v1263, 12
  %v1406 = vpop.permute.xlu0 %1405
  %1407 = vrot.lane.b32.xlu0 %v1265, 12
  %v1408 = vpop.permute.xlu0 %1407
  %1409 = vrot.lane.b32.xlu0 %v1268, 12
  %v1410 = vpop.permute.xlu0 %1409
  %1411 = vrot.lane.b32.xlu0 %v1270, 12
  %v1412 = vpop.permute.xlu0 %1411
  %1413 = vrot.lane.b32.xlu0 %v1273, 12
  %v1414 = vpop.permute.xlu0 %1413
  %1415 = vrot.lane.b32.xlu0 %v1275, 12
  %v1416 = vpop.permute.xlu0 %1415
  %1417 = vrot.lane.b32.xlu0 %v1278, 12
  %v1418 = vpop.permute.xlu0 %1417
  %1419 = vrot.lane.b32.xlu0 %v1280, 12
  %v1420 = vpop.permute.xlu0 %1419
  %1421 = vrot.lane.b32.xlu0 %v1283, 12
  %v1422 = vpop.permute.xlu0 %1421
  %1423 = vrot.lane.b32.xlu0 %v1285, 12
  %v1424 = vpop.permute.xlu0 %1423
  %1425 = vrot.lane.b32.xlu0 %v1288, 12
  %v1426 = vpop.permute.xlu0 %1425
  %1427 = vrot.lane.b32.xlu0 %v1290, 12
  %v1428 = vpop.permute.xlu0 %1427
  %1429 = vrot.lane.b32.xlu0 %v1293, 12
  %v1430 = vpop.permute.xlu0 %1429
  %1431 = vrot.lane.b32.xlu0 %v1295, 12
  %v1432 = vpop.permute.xlu0 %1431
  %1433 = vrot.lane.b32.xlu0 %v1298, 12
  %v1434 = vpop.permute.xlu0 %1433
  %1435 = vrot.lane.b32.xlu0 %v1300, 12
  %v1436 = vpop.permute.xlu0 %1435
  %1437 = vrot.lane.b32.xlu0 %v1303, 12
  %v1438 = vpop.permute.xlu0 %1437
  %1439 = vrot.lane.b32.xlu0 %v1305, 12
  %v1440 = vpop.permute.xlu0 %1439
  %1441 = vrot.lane.b32.xlu0 %v1308, 12
  %v1442 = vpop.permute.xlu0 %1441
  %1443 = vrot.lane.b32.xlu0 %v1310, 12
  %v1444 = vpop.permute.xlu0 %1443
  %1445 = vrot.lane.b32.xlu0 %v1313, 12
  %v1446 = vpop.permute.xlu0 %1445
  %1447 = vrot.lane.b32.xlu0 %v1315, 12
  %v1448 = vpop.permute.xlu0 %1447
  %1449 = vrot.lane.b32.xlu0 %v1318, 12
  %v1450 = vpop.permute.xlu0 %1449
  %1451 = vrot.lane.b32.xlu0 %v1320, 12
  %v1452 = vpop.permute.xlu0 %1451
  %1453 = vrot.lane.b32.xlu0 %v1323, 12
  %v1454 = vpop.permute.xlu0 %1453
  %1455 = vrot.lane.b32.xlu0 %v1325, 12
  %v1456 = vpop.permute.xlu0 %1455
  %1457 = vrot.lane.b32.xlu0 %v1328, 12
  %v1458 = vpop.permute.xlu0 %1457
  %1459 = vrot.lane.b32.xlu0 %v1330, 12
  %v1460 = vpop.permute.xlu0 %1459
  %1461 = vrot.lane.b32.xlu0 %v1333, 12
  %v1462 = vpop.permute.xlu0 %1461
  %1463 = vrot.lane.b32.xlu0 %v1335, 12
  %v1464 = vpop.permute.xlu0 %1463
  %1465 = vrot.lane.b32.xlu0 %v1338, 12
  %v1466 = vpop.permute.xlu0 %1465
  %1467 = vrot.lane.b32.xlu0 %v1340, 12
  %v1468 = vpop.permute.xlu0 %1467
  %vm1533 = vcmask 1043456
  %v1534 = vrot.slane %v347, 4
  %v1535 = vrot.slane %v157, 4
  %v1536 = vsel %vm1533, %v1534, %v1535
  %v1537 = vrot.slane %v379, 4
  %v1538 = vsel %vm1533, %v1535, %v1537
  %v1539 = vrot.slane %v348, 4
  %v1540 = vrot.slane %v160, 4
  %v1541 = vsel %vm1533, %v1539, %v1540
  %v1542 = vrot.slane %v380, 4
  %v1543 = vsel %vm1533, %v1540, %v1542
  %v1544 = vrot.slane %v349, 4
  %v1545 = vrot.slane %v163, 4
  %v1546 = vsel %vm1533, %v1544, %v1545
  %v1547 = vrot.slane %v381, 4
  %v1548 = vsel %vm1533, %v1545, %v1547
  %v1549 = vrot.slane %v350, 4
  %v1550 = vrot.slane %v166, 4
  %v1551 = vsel %vm1533, %v1549, %v1550
  %v1552 = vrot.slane %v382, 4
  %v1553 = vsel %vm1533, %v1550, %v1552
  %v1554 = vrot.slane %v351, 4
  %v1555 = vrot.slane %v169, 4
  %v1556 = vsel %vm1533, %v1554, %v1555
  %v1557 = vrot.slane %v383, 4
  %v1558 = vsel %vm1533, %v1555, %v1557
  %v1559 = vrot.slane %v352, 4
  %v1560 = vrot.slane %v172, 4
  %v1561 = vsel %vm1533, %v1559, %v1560
  %v1562 = vrot.slane %v384, 4
  %v1563 = vsel %vm1533, %v1560, %v1562
  %v1564 = vrot.slane %v353, 4
  %v1565 = vrot.slane %v175, 4
  %v1566 = vsel %vm1533, %v1564, %v1565
  %v1567 = vrot.slane %v385, 4
  %v1568 = vsel %vm1533, %v1565, %v1567
  %v1569 = vrot.slane %v354, 4
  %v1570 = vrot.slane %v178, 4
  %v1571 = vsel %vm1533, %v1569, %v1570
  %v1572 = vrot.slane %v386, 4
  %v1573 = vsel %vm1533, %v1570, %v1572
  %v1574 = vrot.slane %v355, 4
  %v1575 = vrot.slane %v181, 4
  %v1576 = vsel %vm1533, %v1574, %v1575
  %v1577 = vrot.slane %v387, 4
  %v1578 = vsel %vm1533, %v1575, %v1577
  %v1579 = vrot.slane %v356, 4
  %v1580 = vrot.slane %v184, 4
  %v1581 = vsel %vm1533, %v1579, %v1580
  %v1582 = vrot.slane %v388, 4
  %v1583 = vsel %vm1533, %v1580, %v1582
  %v1584 = vrot.slane %v357, 4
  %v1585 = vrot.slane %v187, 4
  %v1586 = vsel %vm1533, %v1584, %v1585
  %v1587 = vrot.slane %v389, 4
  %v1588 = vsel %vm1533, %v1585, %v1587
  %v1589 = vrot.slane %v358, 4
  %v1590 = vrot.slane %v190, 4
  %v1591 = vsel %vm1533, %v1589, %v1590
  %v1592 = vrot.slane %v390, 4
  %v1593 = vsel %vm1533, %v1590, %v1592
  %v1594 = vrot.slane %v359, 4
  %v1595 = vrot.slane %v193, 4
  %v1596 = vsel %vm1533, %v1594, %v1595
  %v1597 = vrot.slane %v391, 4
  %v1598 = vsel %vm1533, %v1595, %v1597
  %v1599 = vrot.slane %v360, 4
  %v1600 = vrot.slane %v196, 4
  %v1601 = vsel %vm1533, %v1599, %v1600
  %v1602 = vrot.slane %v392, 4
  %v1603 = vsel %vm1533, %v1600, %v1602
  %v1604 = vrot.slane %v361, 4
  %v1605 = vrot.slane %v199, 4
  %v1606 = vsel %vm1533, %v1604, %v1605
  %v1607 = vrot.slane %v393, 4
  %v1608 = vsel %vm1533, %v1605, %v1607
  %v1609 = vrot.slane %v362, 4
  %v1610 = vrot.slane %v202, 4
  %v1611 = vsel %vm1533, %v1609, %v1610
  %v1612 = vrot.slane %v394, 4
  %v1613 = vsel %vm1533, %v1610, %v1612
  %v1614 = vrot.slane %v363, 4
  %v1615 = vrot.slane %v205, 4
  %v1616 = vsel %vm1533, %v1614, %v1615
  %v1617 = vrot.slane %v395, 4
  %v1618 = vsel %vm1533, %v1615, %v1617
  %v1619 = vrot.slane %v364, 4
  %v1620 = vrot.slane %v208, 4
  %v1621 = vsel %vm1533, %v1619, %v1620
  %v1622 = vrot.slane %v396, 4
  %v1623 = vsel %vm1533, %v1620, %v1622
  %v1624 = vrot.slane %v365, 4
  %v1625 = vrot.slane %v211, 4
  %v1626 = vsel %vm1533, %v1624, %v1625
  %v1627 = vrot.slane %v397, 4
  %v1628 = vsel %vm1533, %v1625, %v1627
  %v1629 = vrot.slane %v366, 4
  %v1630 = vrot.slane %v214, 4
  %v1631 = vsel %vm1533, %v1629, %v1630
  %v1632 = vrot.slane %v398, 4
  %v1633 = vsel %vm1533, %v1630, %v1632
  %v1634 = vrot.slane %v367, 4
  %v1635 = vrot.slane %v217, 4
  %v1636 = vsel %vm1533, %v1634, %v1635
  %v1637 = vrot.slane %v399, 4
  %v1638 = vsel %vm1533, %v1635, %v1637
  %v1639 = vrot.slane %v368, 4
  %v1640 = vrot.slane %v220, 4
  %v1641 = vsel %vm1533, %v1639, %v1640
  %v1642 = vrot.slane %v400, 4
  %v1643 = vsel %vm1533, %v1640, %v1642
  %v1644 = vrot.slane %v369, 4
  %v1645 = vrot.slane %v223, 4
  %v1646 = vsel %vm1533, %v1644, %v1645
  %v1647 = vrot.slane %v401, 4
  %v1648 = vsel %vm1533, %v1645, %v1647
  %v1649 = vrot.slane %v370, 4
  %v1650 = vrot.slane %v226, 4
  %v1651 = vsel %vm1533, %v1649, %v1650
  %v1652 = vrot.slane %v402, 4
  %v1653 = vsel %vm1533, %v1650, %v1652
  %v1654 = vrot.slane %v371, 4
  %v1655 = vrot.slane %v229, 4
  %v1656 = vsel %vm1533, %v1654, %v1655
  %v1657 = vrot.slane %v403, 4
  %v1658 = vsel %vm1533, %v1655, %v1657
  %v1659 = vrot.slane %v372, 4
  %v1660 = vrot.slane %v232, 4
  %v1661 = vsel %vm1533, %v1659, %v1660
  %v1662 = vrot.slane %v404, 4
  %v1663 = vsel %vm1533, %v1660, %v1662
  %v1664 = vrot.slane %v373, 4
  %v1665 = vrot.slane %v235, 4
  %v1666 = vsel %vm1533, %v1664, %v1665
  %v1667 = vrot.slane %v405, 4
  %v1668 = vsel %vm1533, %v1665, %v1667
  %v1669 = vrot.slane %v374, 4
  %v1670 = vrot.slane %v238, 4
  %v1671 = vsel %vm1533, %v1669, %v1670
  %v1672 = vrot.slane %v406, 4
  %v1673 = vsel %vm1533, %v1670, %v1672
  %v1674 = vrot.slane %v375, 4
  %v1675 = vrot.slane %v241, 4
  %v1676 = vsel %vm1533, %v1674, %v1675
  %v1677 = vrot.slane %v407, 4
  %v1678 = vsel %vm1533, %v1675, %v1677
  %v1679 = vrot.slane %v376, 4
  %v1680 = vrot.slane %v244, 4
  %v1681 = vsel %vm1533, %v1679, %v1680
  %v1682 = vrot.slane %v408, 4
  %v1683 = vsel %vm1533, %v1680, %v1682
  %v1684 = vrot.slane %v377, 4
  %v1685 = vrot.slane %v247, 4
  %v1686 = vsel %vm1533, %v1684, %v1685
  %v1687 = vrot.slane %v409, 4
  %v1688 = vsel %vm1533, %v1685, %v1687
  %v1689 = vrot.slane %v378, 4
  %v1690 = vrot.slane %v250, 4
  %v1691 = vsel %vm1533, %v1689, %v1690
  %v1692 = vrot.slane %v410, 4
  %v1693 = vsel %vm1533, %v1690, %v1692
  %1694 = vrot.lane.b32.xlu0 %v1536, 16
  %v1695 = vpop.permute.xlu0 %1694
  %1696 = vrot.lane.b32.xlu0 %v1538, 16
  %v1697 = vpop.permute.xlu0 %1696
  %1698 = vrot.lane.b32.xlu0 %v1541, 16
  %v1699 = vpop.permute.xlu0 %1698
  %1700 = vrot.lane.b32.xlu0 %v1543, 16
  %v1701 = vpop.permute.xlu0 %1700
  %1702 = vrot.lane.b32.xlu0 %v1546, 16
  %v1703 = vpop.permute.xlu0 %1702
  %1704 = vrot.lane.b32.xlu0 %v1548, 16
  %v1705 = vpop.permute.xlu0 %1704
  %1706 = vrot.lane.b32.xlu0 %v1551, 16
  %v1707 = vpop.permute.xlu0 %1706
  %1708 = vrot.lane.b32.xlu0 %v1553, 16
  %v1709 = vpop.permute.xlu0 %1708
  %1710 = vrot.lane.b32.xlu0 %v1556, 16
  %v1711 = vpop.permute.xlu0 %1710
  %1712 = vrot.lane.b32.xlu0 %v1558, 16
  %v1713 = vpop.permute.xlu0 %1712
  %1714 = vrot.lane.b32.xlu0 %v1561, 16
  %v1715 = vpop.permute.xlu0 %1714
  %1716 = vrot.lane.b32.xlu0 %v1563, 16
  %v1717 = vpop.permute.xlu0 %1716
  %1718 = vrot.lane.b32.xlu0 %v1566, 16
  %v1719 = vpop.permute.xlu0 %1718
  %1720 = vrot.lane.b32.xlu0 %v1568, 16
  %v1721 = vpop.permute.xlu0 %1720
  %1722 = vrot.lane.b32.xlu0 %v1571, 16
  %v1723 = vpop.permute.xlu0 %1722
  %1724 = vrot.lane.b32.xlu0 %v1573, 16
  %v1725 = vpop.permute.xlu0 %1724
  %1726 = vrot.lane.b32.xlu0 %v1576, 16
  %v1727 = vpop.permute.xlu0 %1726
  %1728 = vrot.lane.b32.xlu0 %v1578, 16
  %v1729 = vpop.permute.xlu0 %1728
  %1730 = vrot.lane.b32.xlu0 %v1581, 16
  %v1731 = vpop.permute.xlu0 %1730
  %1732 = vrot.lane.b32.xlu0 %v1583, 16
  %v1733 = vpop.permute.xlu0 %1732
  %1734 = vrot.lane.b32.xlu0 %v1586, 16
  %v1735 = vpop.permute.xlu0 %1734
  %1736 = vrot.lane.b32.xlu0 %v1588, 16
  %v1737 = vpop.permute.xlu0 %1736
  %1738 = vrot.lane.b32.xlu0 %v1591, 16
  %v1739 = vpop.permute.xlu0 %1738
  %1740 = vrot.lane.b32.xlu0 %v1593, 16
  %v1741 = vpop.permute.xlu0 %1740
  %1742 = vrot.lane.b32.xlu0 %v1596, 16
  %v1743 = vpop.permute.xlu0 %1742
  %1744 = vrot.lane.b32.xlu0 %v1598, 16
  %v1745 = vpop.permute.xlu0 %1744
  %1746 = vrot.lane.b32.xlu0 %v1601, 16
  %v1747 = vpop.permute.xlu0 %1746
  %1748 = vrot.lane.b32.xlu0 %v1603, 16
  %v1749 = vpop.permute.xlu0 %1748
  %1750 = vrot.lane.b32.xlu0 %v1606, 16
  %v1751 = vpop.permute.xlu0 %1750
  %1752 = vrot.lane.b32.xlu0 %v1608, 16
  %v1753 = vpop.permute.xlu0 %1752
  %1754 = vrot.lane.b32.xlu0 %v1611, 16
  %v1755 = vpop.permute.xlu0 %1754
  %1756 = vrot.lane.b32.xlu0 %v1613, 16
  %v1757 = vpop.permute.xlu0 %1756
  %1758 = vrot.lane.b32.xlu0 %v1616, 16
  %v1759 = vpop.permute.xlu0 %1758
  %1760 = vrot.lane.b32.xlu0 %v1618, 16
  %v1761 = vpop.permute.xlu0 %1760
  %1762 = vrot.lane.b32.xlu0 %v1621, 16
  %v1763 = vpop.permute.xlu0 %1762
  %1764 = vrot.lane.b32.xlu0 %v1623, 16
  %v1765 = vpop.permute.xlu0 %1764
  %1766 = vrot.lane.b32.xlu0 %v1626, 16
  %v1767 = vpop.permute.xlu0 %1766
  %1768 = vrot.lane.b32.xlu0 %v1628, 16
  %v1769 = vpop.permute.xlu0 %1768
  %1770 = vrot.lane.b32.xlu0 %v1631, 16
  %v1771 = vpop.permute.xlu0 %1770
  %1772 = vrot.lane.b32.xlu0 %v1633, 16
  %v1773 = vpop.permute.xlu0 %1772
  %1774 = vrot.lane.b32.xlu0 %v1636, 16
  %v1775 = vpop.permute.xlu0 %1774
  %1776 = vrot.lane.b32.xlu0 %v1638, 16
  %v1777 = vpop.permute.xlu0 %1776
  %1778 = vrot.lane.b32.xlu0 %v1641, 16
  %v1779 = vpop.permute.xlu0 %1778
  %1780 = vrot.lane.b32.xlu0 %v1643, 16
  %v1781 = vpop.permute.xlu0 %1780
  %1782 = vrot.lane.b32.xlu0 %v1646, 16
  %v1783 = vpop.permute.xlu0 %1782
  %1784 = vrot.lane.b32.xlu0 %v1648, 16
  %v1785 = vpop.permute.xlu0 %1784
  %1786 = vrot.lane.b32.xlu0 %v1651, 16
  %v1787 = vpop.permute.xlu0 %1786
  %1788 = vrot.lane.b32.xlu0 %v1653, 16
  %v1789 = vpop.permute.xlu0 %1788
  %1790 = vrot.lane.b32.xlu0 %v1656, 16
  %v1791 = vpop.permute.xlu0 %1790
  %1792 = vrot.lane.b32.xlu0 %v1658, 16
  %v1793 = vpop.permute.xlu0 %1792
  %1794 = vrot.lane.b32.xlu0 %v1661, 16
  %v1795 = vpop.permute.xlu0 %1794
  %1796 = vrot.lane.b32.xlu0 %v1663, 16
  %v1797 = vpop.permute.xlu0 %1796
  %1798 = vrot.lane.b32.xlu0 %v1666, 16
  %v1799 = vpop.permute.xlu0 %1798
  %1800 = vrot.lane.b32.xlu0 %v1668, 16
  %v1801 = vpop.permute.xlu0 %1800
  %1802 = vrot.lane.b32.xlu0 %v1671, 16
  %v1803 = vpop.permute.xlu0 %1802
  %1804 = vrot.lane.b32.xlu0 %v1673, 16
  %v1805 = vpop.permute.xlu0 %1804
  %1806 = vrot.lane.b32.xlu0 %v1676, 16
  %v1807 = vpop.permute.xlu0 %1806
  %1808 = vrot.lane.b32.xlu0 %v1678, 16
  %v1809 = vpop.permute.xlu0 %1808
  %1810 = vrot.lane.b32.xlu0 %v1681, 16
  %v1811 = vpop.permute.xlu0 %1810
  %1812 = vrot.lane.b32.xlu0 %v1683, 16
  %v1813 = vpop.permute.xlu0 %1812
  %1814 = vrot.lane.b32.xlu0 %v1686, 16
  %v1815 = vpop.permute.xlu0 %1814
  %1816 = vrot.lane.b32.xlu0 %v1688, 16
  %v1817 = vpop.permute.xlu0 %1816
  %1818 = vrot.lane.b32.xlu0 %v1691, 16
  %v1819 = vpop.permute.xlu0 %1818
  %1820 = vrot.lane.b32.xlu0 %v1693, 16
  %v1821 = vpop.permute.xlu0 %1820
  %vm1886 = vcmask 1042432
  %v1887 = vrot.slane %v347, 5
  %v1888 = vrot.slane %v157, 5
  %v1889 = vsel %vm1886, %v1887, %v1888
  %v1890 = vrot.slane %v379, 5
  %v1891 = vsel %vm1886, %v1888, %v1890
  %v1892 = vrot.slane %v348, 5
  %v1893 = vrot.slane %v160, 5
  %v1894 = vsel %vm1886, %v1892, %v1893
  %v1895 = vrot.slane %v380, 5
  %v1896 = vsel %vm1886, %v1893, %v1895
  %v1897 = vrot.slane %v349, 5
  %v1898 = vrot.slane %v163, 5
  %v1899 = vsel %vm1886, %v1897, %v1898
  %v1900 = vrot.slane %v381, 5
  %v1901 = vsel %vm1886, %v1898, %v1900
  %v1902 = vrot.slane %v350, 5
  %v1903 = vrot.slane %v166, 5
  %v1904 = vsel %vm1886, %v1902, %v1903
  %v1905 = vrot.slane %v382, 5
  %v1906 = vsel %vm1886, %v1903, %v1905
  %v1907 = vrot.slane %v351, 5
  %v1908 = vrot.slane %v169, 5
  %v1909 = vsel %vm1886, %v1907, %v1908
  %v1910 = vrot.slane %v383, 5
  %v1911 = vsel %vm1886, %v1908, %v1910
  %v1912 = vrot.slane %v352, 5
  %v1913 = vrot.slane %v172, 5
  %v1914 = vsel %vm1886, %v1912, %v1913
  %v1915 = vrot.slane %v384, 5
  %v1916 = vsel %vm1886, %v1913, %v1915
  %v1917 = vrot.slane %v353, 5
  %v1918 = vrot.slane %v175, 5
  %v1919 = vsel %vm1886, %v1917, %v1918
  %v1920 = vrot.slane %v385, 5
  %v1921 = vsel %vm1886, %v1918, %v1920
  %v1922 = vrot.slane %v354, 5
  %v1923 = vrot.slane %v178, 5
  %v1924 = vsel %vm1886, %v1922, %v1923
  %v1925 = vrot.slane %v386, 5
  %v1926 = vsel %vm1886, %v1923, %v1925
  %v1927 = vrot.slane %v355, 5
  %v1928 = vrot.slane %v181, 5
  %v1929 = vsel %vm1886, %v1927, %v1928
  %v1930 = vrot.slane %v387, 5
  %v1931 = vsel %vm1886, %v1928, %v1930
  %v1932 = vrot.slane %v356, 5
  %v1933 = vrot.slane %v184, 5
  %v1934 = vsel %vm1886, %v1932, %v1933
  %v1935 = vrot.slane %v388, 5
  %v1936 = vsel %vm1886, %v1933, %v1935
  %v1937 = vrot.slane %v357, 5
  %v1938 = vrot.slane %v187, 5
  %v1939 = vsel %vm1886, %v1937, %v1938
  %v1940 = vrot.slane %v389, 5
  %v1941 = vsel %vm1886, %v1938, %v1940
  %v1942 = vrot.slane %v358, 5
  %v1943 = vrot.slane %v190, 5
  %v1944 = vsel %vm1886, %v1942, %v1943
  %v1945 = vrot.slane %v390, 5
  %v1946 = vsel %vm1886, %v1943, %v1945
  %v1947 = vrot.slane %v359, 5
  %v1948 = vrot.slane %v193, 5
  %v1949 = vsel %vm1886, %v1947, %v1948
  %v1950 = vrot.slane %v391, 5
  %v1951 = vsel %vm1886, %v1948, %v1950
  %v1952 = vrot.slane %v360, 5
  %v1953 = vrot.slane %v196, 5
  %v1954 = vsel %vm1886, %v1952, %v1953
  %v1955 = vrot.slane %v392, 5
  %v1956 = vsel %vm1886, %v1953, %v1955
  %v1957 = vrot.slane %v361, 5
  %v1958 = vrot.slane %v199, 5
  %v1959 = vsel %vm1886, %v1957, %v1958
  %v1960 = vrot.slane %v393, 5
  %v1961 = vsel %vm1886, %v1958, %v1960
  %v1962 = vrot.slane %v362, 5
  %v1963 = vrot.slane %v202, 5
  %v1964 = vsel %vm1886, %v1962, %v1963
  %v1965 = vrot.slane %v394, 5
  %v1966 = vsel %vm1886, %v1963, %v1965
  %v1967 = vrot.slane %v363, 5
  %v1968 = vrot.slane %v205, 5
  %v1969 = vsel %vm1886, %v1967, %v1968
  %v1970 = vrot.slane %v395, 5
  %v1971 = vsel %vm1886, %v1968, %v1970
  %v1972 = vrot.slane %v364, 5
  %v1973 = vrot.slane %v208, 5
  %v1974 = vsel %vm1886, %v1972, %v1973
  %v1975 = vrot.slane %v396, 5
  %v1976 = vsel %vm1886, %v1973, %v1975
  %v1977 = vrot.slane %v365, 5
  %v1978 = vrot.slane %v211, 5
  %v1979 = vsel %vm1886, %v1977, %v1978
  %v1980 = vrot.slane %v397, 5
  %v1981 = vsel %vm1886, %v1978, %v1980
  %v1982 = vrot.slane %v366, 5
  %v1983 = vrot.slane %v214, 5
  %v1984 = vsel %vm1886, %v1982, %v1983
  %v1985 = vrot.slane %v398, 5
  %v1986 = vsel %vm1886, %v1983, %v1985
  %v1987 = vrot.slane %v367, 5
  %v1988 = vrot.slane %v217, 5
  %v1989 = vsel %vm1886, %v1987, %v1988
  %v1990 = vrot.slane %v399, 5
  %v1991 = vsel %vm1886, %v1988, %v1990
  %v1992 = vrot.slane %v368, 5
  %v1993 = vrot.slane %v220, 5
  %v1994 = vsel %vm1886, %v1992, %v1993
  %v1995 = vrot.slane %v400, 5
  %v1996 = vsel %vm1886, %v1993, %v1995
  %v1997 = vrot.slane %v369, 5
  %v1998 = vrot.slane %v223, 5
  %v1999 = vsel %vm1886, %v1997, %v1998
  %v2000 = vrot.slane %v401, 5
  %v2001 = vsel %vm1886, %v1998, %v2000
  %v2002 = vrot.slane %v370, 5
  %v2003 = vrot.slane %v226, 5
  %v2004 = vsel %vm1886, %v2002, %v2003
  %v2005 = vrot.slane %v402, 5
  %v2006 = vsel %vm1886, %v2003, %v2005
  %v2007 = vrot.slane %v371, 5
  %v2008 = vrot.slane %v229, 5
  %v2009 = vsel %vm1886, %v2007, %v2008
  %v2010 = vrot.slane %v403, 5
  %v2011 = vsel %vm1886, %v2008, %v2010
  %v2012 = vrot.slane %v372, 5
  %v2013 = vrot.slane %v232, 5
  %v2014 = vsel %vm1886, %v2012, %v2013
  %v2015 = vrot.slane %v404, 5
  %v2016 = vsel %vm1886, %v2013, %v2015
  %v2017 = vrot.slane %v373, 5
  %v2018 = vrot.slane %v235, 5
  %v2019 = vsel %vm1886, %v2017, %v2018
  %v2020 = vrot.slane %v405, 5
  %v2021 = vsel %vm1886, %v2018, %v2020
  %v2022 = vrot.slane %v374, 5
  %v2023 = vrot.slane %v238, 5
  %v2024 = vsel %vm1886, %v2022, %v2023
  %v2025 = vrot.slane %v406, 5
  %v2026 = vsel %vm1886, %v2023, %v2025
  %v2027 = vrot.slane %v375, 5
  %v2028 = vrot.slane %v241, 5
  %v2029 = vsel %vm1886, %v2027, %v2028
  %v2030 = vrot.slane %v407, 5
  %v2031 = vsel %vm1886, %v2028, %v2030
  %v2032 = vrot.slane %v376, 5
  %v2033 = vrot.slane %v244, 5
  %v2034 = vsel %vm1886, %v2032, %v2033
  %v2035 = vrot.slane %v408, 5
  %v2036 = vsel %vm1886, %v2033, %v2035
  %v2037 = vrot.slane %v377, 5
  %v2038 = vrot.slane %v247, 5
  %v2039 = vsel %vm1886, %v2037, %v2038
  %v2040 = vrot.slane %v409, 5
  %v2041 = vsel %vm1886, %v2038, %v2040
  %v2042 = vrot.slane %v378, 5
  %v2043 = vrot.slane %v250, 5
  %v2044 = vsel %vm1886, %v2042, %v2043
  %v2045 = vrot.slane %v410, 5
  %v2046 = vsel %vm1886, %v2043, %v2045
  %2047 = vrot.lane.b32.xlu0 %v1889, 20
  %v2048 = vpop.permute.xlu0 %2047
  %2049 = vrot.lane.b32.xlu0 %v1891, 20
  %v2050 = vpop.permute.xlu0 %2049
  %2051 = vrot.lane.b32.xlu0 %v1894, 20
  %v2052 = vpop.permute.xlu0 %2051
  %2053 = vrot.lane.b32.xlu0 %v1896, 20
  %v2054 = vpop.permute.xlu0 %2053
  %2055 = vrot.lane.b32.xlu0 %v1899, 20
  %v2056 = vpop.permute.xlu0 %2055
  %2057 = vrot.lane.b32.xlu0 %v1901, 20
  %v2058 = vpop.permute.xlu0 %2057
  %2059 = vrot.lane.b32.xlu0 %v1904, 20
  %v2060 = vpop.permute.xlu0 %2059
  %2061 = vrot.lane.b32.xlu0 %v1906, 20
  %v2062 = vpop.permute.xlu0 %2061
  %2063 = vrot.lane.b32.xlu0 %v1909, 20
  %v2064 = vpop.permute.xlu0 %2063
  %2065 = vrot.lane.b32.xlu0 %v1911, 20
  %v2066 = vpop.permute.xlu0 %2065
  %2067 = vrot.lane.b32.xlu0 %v1914, 20
  %v2068 = vpop.permute.xlu0 %2067
  %2069 = vrot.lane.b32.xlu0 %v1916, 20
  %v2070 = vpop.permute.xlu0 %2069
  %2071 = vrot.lane.b32.xlu0 %v1919, 20
  %v2072 = vpop.permute.xlu0 %2071
  %2073 = vrot.lane.b32.xlu0 %v1921, 20
  %v2074 = vpop.permute.xlu0 %2073
  %2075 = vrot.lane.b32.xlu0 %v1924, 20
  %v2076 = vpop.permute.xlu0 %2075
  %2077 = vrot.lane.b32.xlu0 %v1926, 20
  %v2078 = vpop.permute.xlu0 %2077
  %2079 = vrot.lane.b32.xlu0 %v1929, 20
  %v2080 = vpop.permute.xlu0 %2079
  %2081 = vrot.lane.b32.xlu0 %v1931, 20
  %v2082 = vpop.permute.xlu0 %2081
  %2083 = vrot.lane.b32.xlu0 %v1934, 20
  %v2084 = vpop.permute.xlu0 %2083
  %2085 = vrot.lane.b32.xlu0 %v1936, 20
  %v2086 = vpop.permute.xlu0 %2085
  %2087 = vrot.lane.b32.xlu0 %v1939, 20
  %v2088 = vpop.permute.xlu0 %2087
  %2089 = vrot.lane.b32.xlu0 %v1941, 20
  %v2090 = vpop.permute.xlu0 %2089
  %2091 = vrot.lane.b32.xlu0 %v1944, 20
  %v2092 = vpop.permute.xlu0 %2091
  %2093 = vrot.lane.b32.xlu0 %v1946, 20
  %v2094 = vpop.permute.xlu0 %2093
  %2095 = vrot.lane.b32.xlu0 %v1949, 20
  %v2096 = vpop.permute.xlu0 %2095
  %2097 = vrot.lane.b32.xlu0 %v1951, 20
  %v2098 = vpop.permute.xlu0 %2097
  %2099 = vrot.lane.b32.xlu0 %v1954, 20
  %v2100 = vpop.permute.xlu0 %2099
  %2101 = vrot.lane.b32.xlu0 %v1956, 20
  %v2102 = vpop.permute.xlu0 %2101
  %2103 = vrot.lane.b32.xlu0 %v1959, 20
  %v2104 = vpop.permute.xlu0 %2103
  %2105 = vrot.lane.b32.xlu0 %v1961, 20
  %v2106 = vpop.permute.xlu0 %2105
  %2107 = vrot.lane.b32.xlu0 %v1964, 20
  %v2108 = vpop.permute.xlu0 %2107
  %2109 = vrot.lane.b32.xlu0 %v1966, 20
  %v2110 = vpop.permute.xlu0 %2109
  %2111 = vrot.lane.b32.xlu0 %v1969, 20
  %v2112 = vpop.permute.xlu0 %2111
  %2113 = vrot.lane.b32.xlu0 %v1971, 20
  %v2114 = vpop.permute.xlu0 %2113
  %2115 = vrot.lane.b32.xlu0 %v1974, 20
  %v2116 = vpop.permute.xlu0 %2115
  %2117 = vrot.lane.b32.xlu0 %v1976, 20
  %v2118 = vpop.permute.xlu0 %2117
  %2119 = vrot.lane.b32.xlu0 %v1979, 20
  %v2120 = vpop.permute.xlu0 %2119
  %2121 = vrot.lane.b32.xlu0 %v1981, 20
  %v2122 = vpop.permute.xlu0 %2121
  %2123 = vrot.lane.b32.xlu0 %v1984, 20
  %v2124 = vpop.permute.xlu0 %2123
  %2125 = vrot.lane.b32.xlu0 %v1986, 20
  %v2126 = vpop.permute.xlu0 %2125
  %2127 = vrot.lane.b32.xlu0 %v1989, 20
  %v2128 = vpop.permute.xlu0 %2127
  %2129 = vrot.lane.b32.xlu0 %v1991, 20
  %v2130 = vpop.permute.xlu0 %2129
  %2131 = vrot.lane.b32.xlu0 %v1994, 20
  %v2132 = vpop.permute.xlu0 %2131
  %2133 = vrot.lane.b32.xlu0 %v1996, 20
  %v2134 = vpop.permute.xlu0 %2133
  %2135 = vrot.lane.b32.xlu0 %v1999, 20
  %v2136 = vpop.permute.xlu0 %2135
  %2137 = vrot.lane.b32.xlu0 %v2001, 20
  %v2138 = vpop.permute.xlu0 %2137
  %2139 = vrot.lane.b32.xlu0 %v2004, 20
  %v2140 = vpop.permute.xlu0 %2139
  %2141 = vrot.lane.b32.xlu0 %v2006, 20
  %v2142 = vpop.permute.xlu0 %2141
  %2143 = vrot.lane.b32.xlu0 %v2009, 20
  %v2144 = vpop.permute.xlu0 %2143
  %2145 = vrot.lane.b32.xlu0 %v2011, 20
  %v2146 = vpop.permute.xlu0 %2145
  %2147 = vrot.lane.b32.xlu0 %v2014, 20
  %v2148 = vpop.permute.xlu0 %2147
  %2149 = vrot.lane.b32.xlu0 %v2016, 20
  %v2150 = vpop.permute.xlu0 %2149
  %2151 = vrot.lane.b32.xlu0 %v2019, 20
  %v2152 = vpop.permute.xlu0 %2151
  %2153 = vrot.lane.b32.xlu0 %v2021, 20
  %v2154 = vpop.permute.xlu0 %2153
  %2155 = vrot.lane.b32.xlu0 %v2024, 20
  %v2156 = vpop.permute.xlu0 %2155
  %2157 = vrot.lane.b32.xlu0 %v2026, 20
  %v2158 = vpop.permute.xlu0 %2157
  %2159 = vrot.lane.b32.xlu0 %v2029, 20
  %v2160 = vpop.permute.xlu0 %2159
  %2161 = vrot.lane.b32.xlu0 %v2031, 20
  %v2162 = vpop.permute.xlu0 %2161
  %2163 = vrot.lane.b32.xlu0 %v2034, 20
  %v2164 = vpop.permute.xlu0 %2163
  %2165 = vrot.lane.b32.xlu0 %v2036, 20
  %v2166 = vpop.permute.xlu0 %2165
  %2167 = vrot.lane.b32.xlu0 %v2039, 20
  %v2168 = vpop.permute.xlu0 %2167
  %2169 = vrot.lane.b32.xlu0 %v2041, 20
  %v2170 = vpop.permute.xlu0 %2169
  %2171 = vrot.lane.b32.xlu0 %v2044, 20
  %v2172 = vpop.permute.xlu0 %2171
  %2173 = vrot.lane.b32.xlu0 %v2046, 20
  %v2174 = vpop.permute.xlu0 %2173
  %vm2239 = vcmask 1041408
  %v2240 = vrot.slane %v347, 6
  %v2241 = vrot.slane %v157, 6
  %v2242 = vsel %vm2239, %v2240, %v2241
  %v2243 = vrot.slane %v379, 6
  %v2244 = vsel %vm2239, %v2241, %v2243
  %v2245 = vrot.slane %v348, 6
  %v2246 = vrot.slane %v160, 6
  %v2247 = vsel %vm2239, %v2245, %v2246
  %v2248 = vrot.slane %v380, 6
  %v2249 = vsel %vm2239, %v2246, %v2248
  %v2250 = vrot.slane %v349, 6
  %v2251 = vrot.slane %v163, 6
  %v2252 = vsel %vm2239, %v2250, %v2251
  %v2253 = vrot.slane %v381, 6
  %v2254 = vsel %vm2239, %v2251, %v2253
  %v2255 = vrot.slane %v350, 6
  %v2256 = vrot.slane %v166, 6
  %v2257 = vsel %vm2239, %v2255, %v2256
  %v2258 = vrot.slane %v382, 6
  %v2259 = vsel %vm2239, %v2256, %v2258
  %v2260 = vrot.slane %v351, 6
  %v2261 = vrot.slane %v169, 6
  %v2262 = vsel %vm2239, %v2260, %v2261
  %v2263 = vrot.slane %v383, 6
  %v2264 = vsel %vm2239, %v2261, %v2263
  %v2265 = vrot.slane %v352, 6
  %v2266 = vrot.slane %v172, 6
  %v2267 = vsel %vm2239, %v2265, %v2266
  %v2268 = vrot.slane %v384, 6
  %v2269 = vsel %vm2239, %v2266, %v2268
  %v2270 = vrot.slane %v353, 6
  %v2271 = vrot.slane %v175, 6
  %v2272 = vsel %vm2239, %v2270, %v2271
  %v2273 = vrot.slane %v385, 6
  %v2274 = vsel %vm2239, %v2271, %v2273
  %v2275 = vrot.slane %v354, 6
  %v2276 = vrot.slane %v178, 6
  %v2277 = vsel %vm2239, %v2275, %v2276
  %v2278 = vrot.slane %v386, 6
  %v2279 = vsel %vm2239, %v2276, %v2278
  %v2280 = vrot.slane %v355, 6
  %v2281 = vrot.slane %v181, 6
  %v2282 = vsel %vm2239, %v2280, %v2281
  %v2283 = vrot.slane %v387, 6
  %v2284 = vsel %vm2239, %v2281, %v2283
  %v2285 = vrot.slane %v356, 6
  %v2286 = vrot.slane %v184, 6
  %v2287 = vsel %vm2239, %v2285, %v2286
  %v2288 = vrot.slane %v388, 6
  %v2289 = vsel %vm2239, %v2286, %v2288
  %v2290 = vrot.slane %v357, 6
  %v2291 = vrot.slane %v187, 6
  %v2292 = vsel %vm2239, %v2290, %v2291
  %v2293 = vrot.slane %v389, 6
  %v2294 = vsel %vm2239, %v2291, %v2293
  %v2295 = vrot.slane %v358, 6
  %v2296 = vrot.slane %v190, 6
  %v2297 = vsel %vm2239, %v2295, %v2296
  %v2298 = vrot.slane %v390, 6
  %v2299 = vsel %vm2239, %v2296, %v2298
  %v2300 = vrot.slane %v359, 6
  %v2301 = vrot.slane %v193, 6
  %v2302 = vsel %vm2239, %v2300, %v2301
  %v2303 = vrot.slane %v391, 6
  %v2304 = vsel %vm2239, %v2301, %v2303
  %v2305 = vrot.slane %v360, 6
  %v2306 = vrot.slane %v196, 6
  %v2307 = vsel %vm2239, %v2305, %v2306
  %v2308 = vrot.slane %v392, 6
  %v2309 = vsel %vm2239, %v2306, %v2308
  %v2310 = vrot.slane %v361, 6
  %v2311 = vrot.slane %v199, 6
  %v2312 = vsel %vm2239, %v2310, %v2311
  %v2313 = vrot.slane %v393, 6
  %v2314 = vsel %vm2239, %v2311, %v2313
  %v2315 = vrot.slane %v362, 6
  %v2316 = vrot.slane %v202, 6
  %v2317 = vsel %vm2239, %v2315, %v2316
  %v2318 = vrot.slane %v394, 6
  %v2319 = vsel %vm2239, %v2316, %v2318
  %v2320 = vrot.slane %v363, 6
  %v2321 = vrot.slane %v205, 6
  %v2322 = vsel %vm2239, %v2320, %v2321
  %v2323 = vrot.slane %v395, 6
  %v2324 = vsel %vm2239, %v2321, %v2323
  %v2325 = vrot.slane %v364, 6
  %v2326 = vrot.slane %v208, 6
  %v2327 = vsel %vm2239, %v2325, %v2326
  %v2328 = vrot.slane %v396, 6
  %v2329 = vsel %vm2239, %v2326, %v2328
  %v2330 = vrot.slane %v365, 6
  %v2331 = vrot.slane %v211, 6
  %v2332 = vsel %vm2239, %v2330, %v2331
  %v2333 = vrot.slane %v397, 6
  %v2334 = vsel %vm2239, %v2331, %v2333
  %v2335 = vrot.slane %v366, 6
  %v2336 = vrot.slane %v214, 6
  %v2337 = vsel %vm2239, %v2335, %v2336
  %v2338 = vrot.slane %v398, 6
  %v2339 = vsel %vm2239, %v2336, %v2338
  %v2340 = vrot.slane %v367, 6
  %v2341 = vrot.slane %v217, 6
  %v2342 = vsel %vm2239, %v2340, %v2341
  %v2343 = vrot.slane %v399, 6
  %v2344 = vsel %vm2239, %v2341, %v2343
  %v2345 = vrot.slane %v368, 6
  %v2346 = vrot.slane %v220, 6
  %v2347 = vsel %vm2239, %v2345, %v2346
  %v2348 = vrot.slane %v400, 6
  %v2349 = vsel %vm2239, %v2346, %v2348
  %v2350 = vrot.slane %v369, 6
  %v2351 = vrot.slane %v223, 6
  %v2352 = vsel %vm2239, %v2350, %v2351
  %v2353 = vrot.slane %v401, 6
  %v2354 = vsel %vm2239, %v2351, %v2353
  %v2355 = vrot.slane %v370, 6
  %v2356 = vrot.slane %v226, 6
  %v2357 = vsel %vm2239, %v2355, %v2356
  %v2358 = vrot.slane %v402, 6
  %v2359 = vsel %vm2239, %v2356, %v2358
  %v2360 = vrot.slane %v371, 6
  %v2361 = vrot.slane %v229, 6
  %v2362 = vsel %vm2239, %v2360, %v2361
  %v2363 = vrot.slane %v403, 6
  %v2364 = vsel %vm2239, %v2361, %v2363
  %v2365 = vrot.slane %v372, 6
  %v2366 = vrot.slane %v232, 6
  %v2367 = vsel %vm2239, %v2365, %v2366
  %v2368 = vrot.slane %v404, 6
  %v2369 = vsel %vm2239, %v2366, %v2368
  %v2370 = vrot.slane %v373, 6
  %v2371 = vrot.slane %v235, 6
  %v2372 = vsel %vm2239, %v2370, %v2371
  %v2373 = vrot.slane %v405, 6
  %v2374 = vsel %vm2239, %v2371, %v2373
  %v2375 = vrot.slane %v374, 6
  %v2376 = vrot.slane %v238, 6
  %v2377 = vsel %vm2239, %v2375, %v2376
  %v2378 = vrot.slane %v406, 6
  %v2379 = vsel %vm2239, %v2376, %v2378
  %v2380 = vrot.slane %v375, 6
  %v2381 = vrot.slane %v241, 6
  %v2382 = vsel %vm2239, %v2380, %v2381
  %v2383 = vrot.slane %v407, 6
  %v2384 = vsel %vm2239, %v2381, %v2383
  %v2385 = vrot.slane %v376, 6
  %v2386 = vrot.slane %v244, 6
  %v2387 = vsel %vm2239, %v2385, %v2386
  %v2388 = vrot.slane %v408, 6
  %v2389 = vsel %vm2239, %v2386, %v2388
  %v2390 = vrot.slane %v377, 6
  %v2391 = vrot.slane %v247, 6
  %v2392 = vsel %vm2239, %v2390, %v2391
  %v2393 = vrot.slane %v409, 6
  %v2394 = vsel %vm2239, %v2391, %v2393
  %v2395 = vrot.slane %v378, 6
  %v2396 = vrot.slane %v250, 6
  %v2397 = vsel %vm2239, %v2395, %v2396
  %v2398 = vrot.slane %v410, 6
  %v2399 = vsel %vm2239, %v2396, %v2398
  %2400 = vrot.lane.b32.xlu0 %v2242, 24
  %v2401 = vpop.permute.xlu0 %2400
  %2402 = vrot.lane.b32.xlu0 %v2244, 24
  %v2403 = vpop.permute.xlu0 %2402
  %2404 = vrot.lane.b32.xlu0 %v2247, 24
  %v2405 = vpop.permute.xlu0 %2404
  %2406 = vrot.lane.b32.xlu0 %v2249, 24
  %v2407 = vpop.permute.xlu0 %2406
  %2408 = vrot.lane.b32.xlu0 %v2252, 24
  %v2409 = vpop.permute.xlu0 %2408
  %2410 = vrot.lane.b32.xlu0 %v2254, 24
  %v2411 = vpop.permute.xlu0 %2410
  %2412 = vrot.lane.b32.xlu0 %v2257, 24
  %v2413 = vpop.permute.xlu0 %2412
  %2414 = vrot.lane.b32.xlu0 %v2259, 24
  %v2415 = vpop.permute.xlu0 %2414
  %2416 = vrot.lane.b32.xlu0 %v2262, 24
  %v2417 = vpop.permute.xlu0 %2416
  %2418 = vrot.lane.b32.xlu0 %v2264, 24
  %v2419 = vpop.permute.xlu0 %2418
  %2420 = vrot.lane.b32.xlu0 %v2267, 24
  %v2421 = vpop.permute.xlu0 %2420
  %2422 = vrot.lane.b32.xlu0 %v2269, 24
  %v2423 = vpop.permute.xlu0 %2422
  %2424 = vrot.lane.b32.xlu0 %v2272, 24
  %v2425 = vpop.permute.xlu0 %2424
  %2426 = vrot.lane.b32.xlu0 %v2274, 24
  %v2427 = vpop.permute.xlu0 %2426
  %2428 = vrot.lane.b32.xlu0 %v2277, 24
  %v2429 = vpop.permute.xlu0 %2428
  %2430 = vrot.lane.b32.xlu0 %v2279, 24
  %v2431 = vpop.permute.xlu0 %2430
  %2432 = vrot.lane.b32.xlu0 %v2282, 24
  %v2433 = vpop.permute.xlu0 %2432
  %2434 = vrot.lane.b32.xlu0 %v2284, 24
  %v2435 = vpop.permute.xlu0 %2434
  %2436 = vrot.lane.b32.xlu0 %v2287, 24
  %v2437 = vpop.permute.xlu0 %2436
  %2438 = vrot.lane.b32.xlu0 %v2289, 24
  %v2439 = vpop.permute.xlu0 %2438
  %2440 = vrot.lane.b32.xlu0 %v2292, 24
  %v2441 = vpop.permute.xlu0 %2440
  %2442 = vrot.lane.b32.xlu0 %v2294, 24
  %v2443 = vpop.permute.xlu0 %2442
  %2444 = vrot.lane.b32.xlu0 %v2297, 24
  %v2445 = vpop.permute.xlu0 %2444
  %2446 = vrot.lane.b32.xlu0 %v2299, 24
  %v2447 = vpop.permute.xlu0 %2446
  %2448 = vrot.lane.b32.xlu0 %v2302, 24
  %v2449 = vpop.permute.xlu0 %2448
  %2450 = vrot.lane.b32.xlu0 %v2304, 24
  %v2451 = vpop.permute.xlu0 %2450
  %2452 = vrot.lane.b32.xlu0 %v2307, 24
  %v2453 = vpop.permute.xlu0 %2452
  %2454 = vrot.lane.b32.xlu0 %v2309, 24
  %v2455 = vpop.permute.xlu0 %2454
  %2456 = vrot.lane.b32.xlu0 %v2312, 24
  %v2457 = vpop.permute.xlu0 %2456
  %2458 = vrot.lane.b32.xlu0 %v2314, 24
  %v2459 = vpop.permute.xlu0 %2458
  %2460 = vrot.lane.b32.xlu0 %v2317, 24
  %v2461 = vpop.permute.xlu0 %2460
  %2462 = vrot.lane.b32.xlu0 %v2319, 24
  %v2463 = vpop.permute.xlu0 %2462
  %2464 = vrot.lane.b32.xlu0 %v2322, 24
  %v2465 = vpop.permute.xlu0 %2464
  %2466 = vrot.lane.b32.xlu0 %v2324, 24
  %v2467 = vpop.permute.xlu0 %2466
  %2468 = vrot.lane.b32.xlu0 %v2327, 24
  %v2469 = vpop.permute.xlu0 %2468
  %2470 = vrot.lane.b32.xlu0 %v2329, 24
  %v2471 = vpop.permute.xlu0 %2470
  %2472 = vrot.lane.b32.xlu0 %v2332, 24
  %v2473 = vpop.permute.xlu0 %2472
  %2474 = vrot.lane.b32.xlu0 %v2334, 24
  %v2475 = vpop.permute.xlu0 %2474
  %2476 = vrot.lane.b32.xlu0 %v2337, 24
  %v2477 = vpop.permute.xlu0 %2476
  %2478 = vrot.lane.b32.xlu0 %v2339, 24
  %v2479 = vpop.permute.xlu0 %2478
  %2480 = vrot.lane.b32.xlu0 %v2342, 24
  %v2481 = vpop.permute.xlu0 %2480
  %2482 = vrot.lane.b32.xlu0 %v2344, 24
  %v2483 = vpop.permute.xlu0 %2482
  %2484 = vrot.lane.b32.xlu0 %v2347, 24
  %v2485 = vpop.permute.xlu0 %2484
  %2486 = vrot.lane.b32.xlu0 %v2349, 24
  %v2487 = vpop.permute.xlu0 %2486
  %2488 = vrot.lane.b32.xlu0 %v2352, 24
  %v2489 = vpop.permute.xlu0 %2488
  %2490 = vrot.lane.b32.xlu0 %v2354, 24
  %v2491 = vpop.permute.xlu0 %2490
  %2492 = vrot.lane.b32.xlu0 %v2357, 24
  %v2493 = vpop.permute.xlu0 %2492
  %2494 = vrot.lane.b32.xlu0 %v2359, 24
  %v2495 = vpop.permute.xlu0 %2494
  %2496 = vrot.lane.b32.xlu0 %v2362, 24
  %v2497 = vpop.permute.xlu0 %2496
  %2498 = vrot.lane.b32.xlu0 %v2364, 24
  %v2499 = vpop.permute.xlu0 %2498
  %2500 = vrot.lane.b32.xlu0 %v2367, 24
  %v2501 = vpop.permute.xlu0 %2500
  %2502 = vrot.lane.b32.xlu0 %v2369, 24
  %v2503 = vpop.permute.xlu0 %2502
  %2504 = vrot.lane.b32.xlu0 %v2372, 24
  %v2505 = vpop.permute.xlu0 %2504
  %2506 = vrot.lane.b32.xlu0 %v2374, 24
  %v2507 = vpop.permute.xlu0 %2506
  %2508 = vrot.lane.b32.xlu0 %v2377, 24
  %v2509 = vpop.permute.xlu0 %2508
  %2510 = vrot.lane.b32.xlu0 %v2379, 24
  %v2511 = vpop.permute.xlu0 %2510
  %2512 = vrot.lane.b32.xlu0 %v2382, 24
  %v2513 = vpop.permute.xlu0 %2512
  %2514 = vrot.lane.b32.xlu0 %v2384, 24
  %v2515 = vpop.permute.xlu0 %2514
  %2516 = vrot.lane.b32.xlu0 %v2387, 24
  %v2517 = vpop.permute.xlu0 %2516
  %2518 = vrot.lane.b32.xlu0 %v2389, 24
  %v2519 = vpop.permute.xlu0 %2518
  %2520 = vrot.lane.b32.xlu0 %v2392, 24
  %v2521 = vpop.permute.xlu0 %2520
  %2522 = vrot.lane.b32.xlu0 %v2394, 24
  %v2523 = vpop.permute.xlu0 %2522
  %2524 = vrot.lane.b32.xlu0 %v2397, 24
  %v2525 = vpop.permute.xlu0 %2524
  %2526 = vrot.lane.b32.xlu0 %v2399, 24
  %v2527 = vpop.permute.xlu0 %2526
  %vm2592 = vcmask 1040384
  %v2593 = vrot.slane %v347, 7
  %v2594 = vrot.slane %v157, 7
  %v2595 = vsel %vm2592, %v2593, %v2594
  %v2596 = vrot.slane %v379, 7
  %v2597 = vsel %vm2592, %v2594, %v2596
  %v2598 = vrot.slane %v348, 7
  %v2599 = vrot.slane %v160, 7
  %v2600 = vsel %vm2592, %v2598, %v2599
  %v2601 = vrot.slane %v380, 7
  %v2602 = vsel %vm2592, %v2599, %v2601
  %v2603 = vrot.slane %v349, 7
  %v2604 = vrot.slane %v163, 7
  %v2605 = vsel %vm2592, %v2603, %v2604
  %v2606 = vrot.slane %v381, 7
  %v2607 = vsel %vm2592, %v2604, %v2606
  %v2608 = vrot.slane %v350, 7
  %v2609 = vrot.slane %v166, 7
  %v2610 = vsel %vm2592, %v2608, %v2609
  %v2611 = vrot.slane %v382, 7
  %v2612 = vsel %vm2592, %v2609, %v2611
  %v2613 = vrot.slane %v351, 7
  %v2614 = vrot.slane %v169, 7
  %v2615 = vsel %vm2592, %v2613, %v2614
  %v2616 = vrot.slane %v383, 7
  %v2617 = vsel %vm2592, %v2614, %v2616
  %v2618 = vrot.slane %v352, 7
  %v2619 = vrot.slane %v172, 7
  %v2620 = vsel %vm2592, %v2618, %v2619
  %v2621 = vrot.slane %v384, 7
  %v2622 = vsel %vm2592, %v2619, %v2621
  %v2623 = vrot.slane %v353, 7
  %v2624 = vrot.slane %v175, 7
  %v2625 = vsel %vm2592, %v2623, %v2624
  %v2626 = vrot.slane %v385, 7
  %v2627 = vsel %vm2592, %v2624, %v2626
  %v2628 = vrot.slane %v354, 7
  %v2629 = vrot.slane %v178, 7
  %v2630 = vsel %vm2592, %v2628, %v2629
  %v2631 = vrot.slane %v386, 7
  %v2632 = vsel %vm2592, %v2629, %v2631
  %v2633 = vrot.slane %v355, 7
  %v2634 = vrot.slane %v181, 7
  %v2635 = vsel %vm2592, %v2633, %v2634
  %v2636 = vrot.slane %v387, 7
  %v2637 = vsel %vm2592, %v2634, %v2636
  %v2638 = vrot.slane %v356, 7
  %v2639 = vrot.slane %v184, 7
  %v2640 = vsel %vm2592, %v2638, %v2639
  %v2641 = vrot.slane %v388, 7
  %v2642 = vsel %vm2592, %v2639, %v2641
  %v2643 = vrot.slane %v357, 7
  %v2644 = vrot.slane %v187, 7
  %v2645 = vsel %vm2592, %v2643, %v2644
  %v2646 = vrot.slane %v389, 7
  %v2647 = vsel %vm2592, %v2644, %v2646
  %v2648 = vrot.slane %v358, 7
  %v2649 = vrot.slane %v190, 7
  %v2650 = vsel %vm2592, %v2648, %v2649
  %v2651 = vrot.slane %v390, 7
  %v2652 = vsel %vm2592, %v2649, %v2651
  %v2653 = vrot.slane %v359, 7
  %v2654 = vrot.slane %v193, 7
  %v2655 = vsel %vm2592, %v2653, %v2654
  %v2656 = vrot.slane %v391, 7
  %v2657 = vsel %vm2592, %v2654, %v2656
  %v2658 = vrot.slane %v360, 7
  %v2659 = vrot.slane %v196, 7
  %v2660 = vsel %vm2592, %v2658, %v2659
  %v2661 = vrot.slane %v392, 7
  %v2662 = vsel %vm2592, %v2659, %v2661
  %v2663 = vrot.slane %v361, 7
  %v2664 = vrot.slane %v199, 7
  %v2665 = vsel %vm2592, %v2663, %v2664
  %v2666 = vrot.slane %v393, 7
  %v2667 = vsel %vm2592, %v2664, %v2666
  %v2668 = vrot.slane %v362, 7
  %v2669 = vrot.slane %v202, 7
  %v2670 = vsel %vm2592, %v2668, %v2669
  %v2671 = vrot.slane %v394, 7
  %v2672 = vsel %vm2592, %v2669, %v2671
  %v2673 = vrot.slane %v363, 7
  %v2674 = vrot.slane %v205, 7
  %v2675 = vsel %vm2592, %v2673, %v2674
  %v2676 = vrot.slane %v395, 7
  %v2677 = vsel %vm2592, %v2674, %v2676
  %v2678 = vrot.slane %v364, 7
  %v2679 = vrot.slane %v208, 7
  %v2680 = vsel %vm2592, %v2678, %v2679
  %v2681 = vrot.slane %v396, 7
  %v2682 = vsel %vm2592, %v2679, %v2681
  %v2683 = vrot.slane %v365, 7
  %v2684 = vrot.slane %v211, 7
  %v2685 = vsel %vm2592, %v2683, %v2684
  %v2686 = vrot.slane %v397, 7
  %v2687 = vsel %vm2592, %v2684, %v2686
  %v2688 = vrot.slane %v366, 7
  %v2689 = vrot.slane %v214, 7
  %v2690 = vsel %vm2592, %v2688, %v2689
  %v2691 = vrot.slane %v398, 7
  %v2692 = vsel %vm2592, %v2689, %v2691
  %v2693 = vrot.slane %v367, 7
  %v2694 = vrot.slane %v217, 7
  %v2695 = vsel %vm2592, %v2693, %v2694
  %v2696 = vrot.slane %v399, 7
  %v2697 = vsel %vm2592, %v2694, %v2696
  %v2698 = vrot.slane %v368, 7
  %v2699 = vrot.slane %v220, 7
  %v2700 = vsel %vm2592, %v2698, %v2699
  %v2701 = vrot.slane %v400, 7
  %v2702 = vsel %vm2592, %v2699, %v2701
  %v2703 = vrot.slane %v369, 7
  %v2704 = vrot.slane %v223, 7
  %v2705 = vsel %vm2592, %v2703, %v2704
  %v2706 = vrot.slane %v401, 7
  %v2707 = vsel %vm2592, %v2704, %v2706
  %v2708 = vrot.slane %v370, 7
  %v2709 = vrot.slane %v226, 7
  %v2710 = vsel %vm2592, %v2708, %v2709
  %v2711 = vrot.slane %v402, 7
  %v2712 = vsel %vm2592, %v2709, %v2711
  %v2713 = vrot.slane %v371, 7
  %v2714 = vrot.slane %v229, 7
  %v2715 = vsel %vm2592, %v2713, %v2714
  %v2716 = vrot.slane %v403, 7
  %v2717 = vsel %vm2592, %v2714, %v2716
  %v2718 = vrot.slane %v372, 7
  %v2719 = vrot.slane %v232, 7
  %v2720 = vsel %vm2592, %v2718, %v2719
  %v2721 = vrot.slane %v404, 7
  %v2722 = vsel %vm2592, %v2719, %v2721
  %v2723 = vrot.slane %v373, 7
  %v2724 = vrot.slane %v235, 7
  %v2725 = vsel %vm2592, %v2723, %v2724
  %v2726 = vrot.slane %v405, 7
  %v2727 = vsel %vm2592, %v2724, %v2726
  %v2728 = vrot.slane %v374, 7
  %v2729 = vrot.slane %v238, 7
  %v2730 = vsel %vm2592, %v2728, %v2729
  %v2731 = vrot.slane %v406, 7
  %v2732 = vsel %vm2592, %v2729, %v2731
  %v2733 = vrot.slane %v375, 7
  %v2734 = vrot.slane %v241, 7
  %v2735 = vsel %vm2592, %v2733, %v2734
  %v2736 = vrot.slane %v407, 7
  %v2737 = vsel %vm2592, %v2734, %v2736
  %v2738 = vrot.slane %v376, 7
  %v2739 = vrot.slane %v244, 7
  %v2740 = vsel %vm2592, %v2738, %v2739
  %v2741 = vrot.slane %v408, 7
  %v2742 = vsel %vm2592, %v2739, %v2741
  %v2743 = vrot.slane %v377, 7
  %v2744 = vrot.slane %v247, 7
  %v2745 = vsel %vm2592, %v2743, %v2744
  %v2746 = vrot.slane %v409, 7
  %v2747 = vsel %vm2592, %v2744, %v2746
  %v2748 = vrot.slane %v378, 7
  %v2749 = vrot.slane %v250, 7
  %v2750 = vsel %vm2592, %v2748, %v2749
  %v2751 = vrot.slane %v410, 7
  %v2752 = vsel %vm2592, %v2749, %v2751
  %2753 = vrot.lane.b32.xlu0 %v2595, 28
  %v2754 = vpop.permute.xlu0 %2753
  %2755 = vrot.lane.b32.xlu0 %v2597, 28
  %v2756 = vpop.permute.xlu0 %2755
  %2757 = vrot.lane.b32.xlu0 %v2600, 28
  %v2758 = vpop.permute.xlu0 %2757
  %2759 = vrot.lane.b32.xlu0 %v2602, 28
  %v2760 = vpop.permute.xlu0 %2759
  %2761 = vrot.lane.b32.xlu0 %v2605, 28
  %v2762 = vpop.permute.xlu0 %2761
  %2763 = vrot.lane.b32.xlu0 %v2607, 28
  %v2764 = vpop.permute.xlu0 %2763
  %2765 = vrot.lane.b32.xlu0 %v2610, 28
  %v2766 = vpop.permute.xlu0 %2765
  %2767 = vrot.lane.b32.xlu0 %v2612, 28
  %v2768 = vpop.permute.xlu0 %2767
  %2769 = vrot.lane.b32.xlu0 %v2615, 28
  %v2770 = vpop.permute.xlu0 %2769
  %2771 = vrot.lane.b32.xlu0 %v2617, 28
  %v2772 = vpop.permute.xlu0 %2771
  %2773 = vrot.lane.b32.xlu0 %v2620, 28
  %v2774 = vpop.permute.xlu0 %2773
  %2775 = vrot.lane.b32.xlu0 %v2622, 28
  %v2776 = vpop.permute.xlu0 %2775
  %2777 = vrot.lane.b32.xlu0 %v2625, 28
  %v2778 = vpop.permute.xlu0 %2777
  %2779 = vrot.lane.b32.xlu0 %v2627, 28
  %v2780 = vpop.permute.xlu0 %2779
  %2781 = vrot.lane.b32.xlu0 %v2630, 28
  %v2782 = vpop.permute.xlu0 %2781
  %2783 = vrot.lane.b32.xlu0 %v2632, 28
  %v2784 = vpop.permute.xlu0 %2783
  %2785 = vrot.lane.b32.xlu0 %v2635, 28
  %v2786 = vpop.permute.xlu0 %2785
  %2787 = vrot.lane.b32.xlu0 %v2637, 28
  %v2788 = vpop.permute.xlu0 %2787
  %2789 = vrot.lane.b32.xlu0 %v2640, 28
  %v2790 = vpop.permute.xlu0 %2789
  %2791 = vrot.lane.b32.xlu0 %v2642, 28
  %v2792 = vpop.permute.xlu0 %2791
  %2793 = vrot.lane.b32.xlu0 %v2645, 28
  %v2794 = vpop.permute.xlu0 %2793
  %2795 = vrot.lane.b32.xlu0 %v2647, 28
  %v2796 = vpop.permute.xlu0 %2795
  %2797 = vrot.lane.b32.xlu0 %v2650, 28
  %v2798 = vpop.permute.xlu0 %2797
  %2799 = vrot.lane.b32.xlu0 %v2652, 28
  %v2800 = vpop.permute.xlu0 %2799
  %2801 = vrot.lane.b32.xlu0 %v2655, 28
  %v2802 = vpop.permute.xlu0 %2801
  %2803 = vrot.lane.b32.xlu0 %v2657, 28
  %v2804 = vpop.permute.xlu0 %2803
  %2805 = vrot.lane.b32.xlu0 %v2660, 28
  %v2806 = vpop.permute.xlu0 %2805
  %2807 = vrot.lane.b32.xlu0 %v2662, 28
  %v2808 = vpop.permute.xlu0 %2807
  %2809 = vrot.lane.b32.xlu0 %v2665, 28
  %v2810 = vpop.permute.xlu0 %2809
  %2811 = vrot.lane.b32.xlu0 %v2667, 28
  %v2812 = vpop.permute.xlu0 %2811
  %2813 = vrot.lane.b32.xlu0 %v2670, 28
  %v2814 = vpop.permute.xlu0 %2813
  %2815 = vrot.lane.b32.xlu0 %v2672, 28
  %v2816 = vpop.permute.xlu0 %2815
  %2817 = vrot.lane.b32.xlu0 %v2675, 28
  %v2818 = vpop.permute.xlu0 %2817
  %2819 = vrot.lane.b32.xlu0 %v2677, 28
  %v2820 = vpop.permute.xlu0 %2819
  %2821 = vrot.lane.b32.xlu0 %v2680, 28
  %v2822 = vpop.permute.xlu0 %2821
  %2823 = vrot.lane.b32.xlu0 %v2682, 28
  %v2824 = vpop.permute.xlu0 %2823
  %2825 = vrot.lane.b32.xlu0 %v2685, 28
  %v2826 = vpop.permute.xlu0 %2825
  %2827 = vrot.lane.b32.xlu0 %v2687, 28
  %v2828 = vpop.permute.xlu0 %2827
  %2829 = vrot.lane.b32.xlu0 %v2690, 28
  %v2830 = vpop.permute.xlu0 %2829
  %2831 = vrot.lane.b32.xlu0 %v2692, 28
  %v2832 = vpop.permute.xlu0 %2831
  %2833 = vrot.lane.b32.xlu0 %v2695, 28
  %v2834 = vpop.permute.xlu0 %2833
  %2835 = vrot.lane.b32.xlu0 %v2697, 28
  %v2836 = vpop.permute.xlu0 %2835
  %2837 = vrot.lane.b32.xlu0 %v2700, 28
  %v2838 = vpop.permute.xlu0 %2837
  %2839 = vrot.lane.b32.xlu0 %v2702, 28
  %v2840 = vpop.permute.xlu0 %2839
  %2841 = vrot.lane.b32.xlu0 %v2705, 28
  %v2842 = vpop.permute.xlu0 %2841
  %2843 = vrot.lane.b32.xlu0 %v2707, 28
  %v2844 = vpop.permute.xlu0 %2843
  %2845 = vrot.lane.b32.xlu0 %v2710, 28
  %v2846 = vpop.permute.xlu0 %2845
  %2847 = vrot.lane.b32.xlu0 %v2712, 28
  %v2848 = vpop.permute.xlu0 %2847
  %2849 = vrot.lane.b32.xlu0 %v2715, 28
  %v2850 = vpop.permute.xlu0 %2849
  %2851 = vrot.lane.b32.xlu0 %v2717, 28
  %v2852 = vpop.permute.xlu0 %2851
  %2853 = vrot.lane.b32.xlu0 %v2720, 28
  %v2854 = vpop.permute.xlu0 %2853
  %2855 = vrot.lane.b32.xlu0 %v2722, 28
  %v2856 = vpop.permute.xlu0 %2855
  %2857 = vrot.lane.b32.xlu0 %v2725, 28
  %v2858 = vpop.permute.xlu0 %2857
  %2859 = vrot.lane.b32.xlu0 %v2727, 28
  %v2860 = vpop.permute.xlu0 %2859
  %2861 = vrot.lane.b32.xlu0 %v2730, 28
  %v2862 = vpop.permute.xlu0 %2861
  %2863 = vrot.lane.b32.xlu0 %v2732, 28
  %v2864 = vpop.permute.xlu0 %2863
  %2865 = vrot.lane.b32.xlu0 %v2735, 28
  %v2866 = vpop.permute.xlu0 %2865
  %2867 = vrot.lane.b32.xlu0 %v2737, 28
  %v2868 = vpop.permute.xlu0 %2867
  %2869 = vrot.lane.b32.xlu0 %v2740, 28
  %v2870 = vpop.permute.xlu0 %2869
  %2871 = vrot.lane.b32.xlu0 %v2742, 28
  %v2872 = vpop.permute.xlu0 %2871
  %2873 = vrot.lane.b32.xlu0 %v2745, 28
  %v2874 = vpop.permute.xlu0 %2873
  %2875 = vrot.lane.b32.xlu0 %v2747, 28
  %v2876 = vpop.permute.xlu0 %2875
  %2877 = vrot.lane.b32.xlu0 %v2750, 28
  %v2878 = vpop.permute.xlu0 %2877
  %2879 = vrot.lane.b32.xlu0 %v2752, 28
  %v2880 = vpop.permute.xlu0 %2879
  %2945 = vrot.lane.b32.xlu0 %v157, 32
  %v2946 = vpop.permute.xlu0 %2945
  %2947 = vrot.lane.b32.xlu0 %v379, 32
  %v2948 = vpop.permute.xlu0 %2947
  %2949 = vrot.lane.b32.xlu0 %v160, 32
  %v2950 = vpop.permute.xlu0 %2949
  %2951 = vrot.lane.b32.xlu0 %v380, 32
  %v2952 = vpop.permute.xlu0 %2951
  %2953 = vrot.lane.b32.xlu0 %v163, 32
  %v2954 = vpop.permute.xlu0 %2953
  %2955 = vrot.lane.b32.xlu0 %v381, 32
  %v2956 = vpop.permute.xlu0 %2955
  %2957 = vrot.lane.b32.xlu0 %v166, 32
  %v2958 = vpop.permute.xlu0 %2957
  %2959 = vrot.lane.b32.xlu0 %v382, 32
  %v2960 = vpop.permute.xlu0 %2959
  %2961 = vrot.lane.b32.xlu0 %v169, 32
  %v2962 = vpop.permute.xlu0 %2961
  %2963 = vrot.lane.b32.xlu0 %v383, 32
  %v2964 = vpop.permute.xlu0 %2963
  %2965 = vrot.lane.b32.xlu0 %v172, 32
  %v2966 = vpop.permute.xlu0 %2965
  %2967 = vrot.lane.b32.xlu0 %v384, 32
  %v2968 = vpop.permute.xlu0 %2967
  %2969 = vrot.lane.b32.xlu0 %v175, 32
  %v2970 = vpop.permute.xlu0 %2969
  %2971 = vrot.lane.b32.xlu0 %v385, 32
  %v2972 = vpop.permute.xlu0 %2971
  %2973 = vrot.lane.b32.xlu0 %v178, 32
  %v2974 = vpop.permute.xlu0 %2973
  %2975 = vrot.lane.b32.xlu0 %v386, 32
  %v2976 = vpop.permute.xlu0 %2975
  %2977 = vrot.lane.b32.xlu0 %v181, 32
  %v2978 = vpop.permute.xlu0 %2977
  %2979 = vrot.lane.b32.xlu0 %v387, 32
  %v2980 = vpop.permute.xlu0 %2979
  %2981 = vrot.lane.b32.xlu0 %v184, 32
  %v2982 = vpop.permute.xlu0 %2981
  %2983 = vrot.lane.b32.xlu0 %v388, 32
  %v2984 = vpop.permute.xlu0 %2983
  %2985 = vrot.lane.b32.xlu0 %v187, 32
  %v2986 = vpop.permute.xlu0 %2985
  %2987 = vrot.lane.b32.xlu0 %v389, 32
  %v2988 = vpop.permute.xlu0 %2987
  %2989 = vrot.lane.b32.xlu0 %v190, 32
  %v2990 = vpop.permute.xlu0 %2989
  %2991 = vrot.lane.b32.xlu0 %v390, 32
  %v2992 = vpop.permute.xlu0 %2991
  %2993 = vrot.lane.b32.xlu0 %v193, 32
  %v2994 = vpop.permute.xlu0 %2993
  %2995 = vrot.lane.b32.xlu0 %v391, 32
  %v2996 = vpop.permute.xlu0 %2995
  %2997 = vrot.lane.b32.xlu0 %v196, 32
  %v2998 = vpop.permute.xlu0 %2997
  %2999 = vrot.lane.b32.xlu0 %v392, 32
  %v3000 = vpop.permute.xlu0 %2999
  %3001 = vrot.lane.b32.xlu0 %v199, 32
  %v3002 = vpop.permute.xlu0 %3001
  %3003 = vrot.lane.b32.xlu0 %v393, 32
  %v3004 = vpop.permute.xlu0 %3003
  %3005 = vrot.lane.b32.xlu0 %v202, 32
  %v3006 = vpop.permute.xlu0 %3005
  %3007 = vrot.lane.b32.xlu0 %v394, 32
  %v3008 = vpop.permute.xlu0 %3007
  %3009 = vrot.lane.b32.xlu0 %v205, 32
  %v3010 = vpop.permute.xlu0 %3009
  %3011 = vrot.lane.b32.xlu0 %v395, 32
  %v3012 = vpop.permute.xlu0 %3011
  %3013 = vrot.lane.b32.xlu0 %v208, 32
  %v3014 = vpop.permute.xlu0 %3013
  %3015 = vrot.lane.b32.xlu0 %v396, 32
  %v3016 = vpop.permute.xlu0 %3015
  %3017 = vrot.lane.b32.xlu0 %v211, 32
  %v3018 = vpop.permute.xlu0 %3017
  %3019 = vrot.lane.b32.xlu0 %v397, 32
  %v3020 = vpop.permute.xlu0 %3019
  %3021 = vrot.lane.b32.xlu0 %v214, 32
  %v3022 = vpop.permute.xlu0 %3021
  %3023 = vrot.lane.b32.xlu0 %v398, 32
  %v3024 = vpop.permute.xlu0 %3023
  %3025 = vrot.lane.b32.xlu0 %v217, 32
  %v3026 = vpop.permute.xlu0 %3025
  %3027 = vrot.lane.b32.xlu0 %v399, 32
  %v3028 = vpop.permute.xlu0 %3027
  %3029 = vrot.lane.b32.xlu0 %v220, 32
  %v3030 = vpop.permute.xlu0 %3029
  %3031 = vrot.lane.b32.xlu0 %v400, 32
  %v3032 = vpop.permute.xlu0 %3031
  %3033 = vrot.lane.b32.xlu0 %v223, 32
  %v3034 = vpop.permute.xlu0 %3033
  %3035 = vrot.lane.b32.xlu0 %v401, 32
  %v3036 = vpop.permute.xlu0 %3035
  %3037 = vrot.lane.b32.xlu0 %v226, 32
  %v3038 = vpop.permute.xlu0 %3037
  %3039 = vrot.lane.b32.xlu0 %v402, 32
  %v3040 = vpop.permute.xlu0 %3039
  %3041 = vrot.lane.b32.xlu0 %v229, 32
  %v3042 = vpop.permute.xlu0 %3041
  %3043 = vrot.lane.b32.xlu0 %v403, 32
  %v3044 = vpop.permute.xlu0 %3043
  %3045 = vrot.lane.b32.xlu0 %v232, 32
  %v3046 = vpop.permute.xlu0 %3045
  %3047 = vrot.lane.b32.xlu0 %v404, 32
  %v3048 = vpop.permute.xlu0 %3047
  %3049 = vrot.lane.b32.xlu0 %v235, 32
  %v3050 = vpop.permute.xlu0 %3049
  %3051 = vrot.lane.b32.xlu0 %v405, 32
  %v3052 = vpop.permute.xlu0 %3051
  %3053 = vrot.lane.b32.xlu0 %v238, 32
  %v3054 = vpop.permute.xlu0 %3053
  %3055 = vrot.lane.b32.xlu0 %v406, 32
  %v3056 = vpop.permute.xlu0 %3055
  %3057 = vrot.lane.b32.xlu0 %v241, 32
  %v3058 = vpop.permute.xlu0 %3057
  %3059 = vrot.lane.b32.xlu0 %v407, 32
  %v3060 = vpop.permute.xlu0 %3059
  %3061 = vrot.lane.b32.xlu0 %v244, 32
  %v3062 = vpop.permute.xlu0 %3061
  %3063 = vrot.lane.b32.xlu0 %v408, 32
  %v3064 = vpop.permute.xlu0 %3063
  %3065 = vrot.lane.b32.xlu0 %v247, 32
  %v3066 = vpop.permute.xlu0 %3065
  %3067 = vrot.lane.b32.xlu0 %v409, 32
  %v3068 = vpop.permute.xlu0 %3067
  %3069 = vrot.lane.b32.xlu0 %v250, 32
  %v3070 = vpop.permute.xlu0 %3069
  %3071 = vrot.lane.b32.xlu0 %v410, 32
  %v3072 = vpop.permute.xlu0 %3071
  %v3138 = vrot.slane 0.0, 1
  %v3139 = vsel %vm154, %v478, %v3138
  %v3140 = vsel %vm154, %v483, %v3138
  %v3141 = vsel %vm154, %v488, %v3138
  %v3142 = vsel %vm154, %v493, %v3138
  %v3143 = vsel %vm154, %v498, %v3138
  %v3144 = vsel %vm154, %v503, %v3138
  %v3145 = vsel %vm154, %v508, %v3138
  %v3146 = vsel %vm154, %v513, %v3138
  %v3147 = vsel %vm154, %v518, %v3138
  %v3148 = vsel %vm154, %v523, %v3138
  %v3149 = vsel %vm154, %v528, %v3138
  %v3150 = vsel %vm154, %v533, %v3138
  %v3151 = vsel %vm154, %v538, %v3138
  %v3152 = vsel %vm154, %v543, %v3138
  %v3153 = vsel %vm154, %v548, %v3138
  %v3154 = vsel %vm154, %v553, %v3138
  %v3155 = vsel %vm154, %v558, %v3138
  %v3156 = vsel %vm154, %v563, %v3138
  %v3157 = vsel %vm154, %v568, %v3138
  %v3158 = vsel %vm154, %v573, %v3138
  %v3159 = vsel %vm154, %v578, %v3138
  %v3160 = vsel %vm154, %v583, %v3138
  %v3161 = vsel %vm154, %v588, %v3138
  %v3162 = vsel %vm154, %v593, %v3138
  %v3163 = vsel %vm154, %v598, %v3138
  %v3164 = vsel %vm154, %v603, %v3138
  %v3165 = vsel %vm154, %v608, %v3138
  %v3166 = vsel %vm154, %v613, %v3138
  %v3167 = vsel %vm154, %v618, %v3138
  %v3168 = vsel %vm154, %v623, %v3138
  %v3169 = vsel %vm154, %v628, %v3138
  %v3170 = vsel %vm154, %v633, %v3138
  %3171 = vrot.lane.b32.xlu0 %v479, 36
  %v3172 = vpop.permute.xlu0 %3171
  %3173 = vrot.lane.b32.xlu0 %v3139, 36
  %v3174 = vpop.permute.xlu0 %3173
  %3175 = vrot.lane.b32.xlu0 %v484, 36
  %v3176 = vpop.permute.xlu0 %3175
  %3177 = vrot.lane.b32.xlu0 %v3140, 36
  %v3178 = vpop.permute.xlu0 %3177
  %3179 = vrot.lane.b32.xlu0 %v489, 36
  %v3180 = vpop.permute.xlu0 %3179
  %3181 = vrot.lane.b32.xlu0 %v3141, 36
  %v3182 = vpop.permute.xlu0 %3181
  %3183 = vrot.lane.b32.xlu0 %v494, 36
  %v3184 = vpop.permute.xlu0 %3183
  %3185 = vrot.lane.b32.xlu0 %v3142, 36
  %v3186 = vpop.permute.xlu0 %3185
  %3187 = vrot.lane.b32.xlu0 %v499, 36
  %v3188 = vpop.permute.xlu0 %3187
  %3189 = vrot.lane.b32.xlu0 %v3143, 36
  %v3190 = vpop.permute.xlu0 %3189
  %3191 = vrot.lane.b32.xlu0 %v504, 36
  %v3192 = vpop.permute.xlu0 %3191
  %3193 = vrot.lane.b32.xlu0 %v3144, 36
  %v3194 = vpop.permute.xlu0 %3193
  %3195 = vrot.lane.b32.xlu0 %v509, 36
  %v3196 = vpop.permute.xlu0 %3195
  %3197 = vrot.lane.b32.xlu0 %v3145, 36
  %v3198 = vpop.permute.xlu0 %3197
  %3199 = vrot.lane.b32.xlu0 %v514, 36
  %v3200 = vpop.permute.xlu0 %3199
  %3201 = vrot.lane.b32.xlu0 %v3146, 36
  %v3202 = vpop.permute.xlu0 %3201
  %3203 = vrot.lane.b32.xlu0 %v519, 36
  %v3204 = vpop.permute.xlu0 %3203
  %3205 = vrot.lane.b32.xlu0 %v3147, 36
  %v3206 = vpop.permute.xlu0 %3205
  %3207 = vrot.lane.b32.xlu0 %v524, 36
  %v3208 = vpop.permute.xlu0 %3207
  %3209 = vrot.lane.b32.xlu0 %v3148, 36
  %v3210 = vpop.permute.xlu0 %3209
  %3211 = vrot.lane.b32.xlu0 %v529, 36
  %v3212 = vpop.permute.xlu0 %3211
  %3213 = vrot.lane.b32.xlu0 %v3149, 36
  %v3214 = vpop.permute.xlu0 %3213
  %3215 = vrot.lane.b32.xlu0 %v534, 36
  %v3216 = vpop.permute.xlu0 %3215
  %3217 = vrot.lane.b32.xlu0 %v3150, 36
  %v3218 = vpop.permute.xlu0 %3217
  %3219 = vrot.lane.b32.xlu0 %v539, 36
  %v3220 = vpop.permute.xlu0 %3219
  %3221 = vrot.lane.b32.xlu0 %v3151, 36
  %v3222 = vpop.permute.xlu0 %3221
  %3223 = vrot.lane.b32.xlu0 %v544, 36
  %v3224 = vpop.permute.xlu0 %3223
  %3225 = vrot.lane.b32.xlu0 %v3152, 36
  %v3226 = vpop.permute.xlu0 %3225
  %3227 = vrot.lane.b32.xlu0 %v549, 36
  %v3228 = vpop.permute.xlu0 %3227
  %3229 = vrot.lane.b32.xlu0 %v3153, 36
  %v3230 = vpop.permute.xlu0 %3229
  %3231 = vrot.lane.b32.xlu0 %v554, 36
  %v3232 = vpop.permute.xlu0 %3231
  %3233 = vrot.lane.b32.xlu0 %v3154, 36
  %v3234 = vpop.permute.xlu0 %3233
  %3235 = vrot.lane.b32.xlu0 %v559, 36
  %v3236 = vpop.permute.xlu0 %3235
  %3237 = vrot.lane.b32.xlu0 %v3155, 36
  %v3238 = vpop.permute.xlu0 %3237
  %3239 = vrot.lane.b32.xlu0 %v564, 36
  %v3240 = vpop.permute.xlu0 %3239
  %3241 = vrot.lane.b32.xlu0 %v3156, 36
  %v3242 = vpop.permute.xlu0 %3241
  %3243 = vrot.lane.b32.xlu0 %v569, 36
  %v3244 = vpop.permute.xlu0 %3243
  %3245 = vrot.lane.b32.xlu0 %v3157, 36
  %v3246 = vpop.permute.xlu0 %3245
  %3247 = vrot.lane.b32.xlu0 %v574, 36
  %v3248 = vpop.permute.xlu0 %3247
  %3249 = vrot.lane.b32.xlu0 %v3158, 36
  %v3250 = vpop.permute.xlu0 %3249
  %3251 = vrot.lane.b32.xlu0 %v579, 36
  %v3252 = vpop.permute.xlu0 %3251
  %3253 = vrot.lane.b32.xlu0 %v3159, 36
  %v3254 = vpop.permute.xlu0 %3253
  %3255 = vrot.lane.b32.xlu0 %v584, 36
  %v3256 = vpop.permute.xlu0 %3255
  %3257 = vrot.lane.b32.xlu0 %v3160, 36
  %v3258 = vpop.permute.xlu0 %3257
  %3259 = vrot.lane.b32.xlu0 %v589, 36
  %v3260 = vpop.permute.xlu0 %3259
  %3261 = vrot.lane.b32.xlu0 %v3161, 36
  %v3262 = vpop.permute.xlu0 %3261
  %3263 = vrot.lane.b32.xlu0 %v594, 36
  %v3264 = vpop.permute.xlu0 %3263
  %3265 = vrot.lane.b32.xlu0 %v3162, 36
  %v3266 = vpop.permute.xlu0 %3265
  %3267 = vrot.lane.b32.xlu0 %v599, 36
  %v3268 = vpop.permute.xlu0 %3267
  %3269 = vrot.lane.b32.xlu0 %v3163, 36
  %v3270 = vpop.permute.xlu0 %3269
  %3271 = vrot.lane.b32.xlu0 %v604, 36
  %v3272 = vpop.permute.xlu0 %3271
  %3273 = vrot.lane.b32.xlu0 %v3164, 36
  %v3274 = vpop.permute.xlu0 %3273
  %3275 = vrot.lane.b32.xlu0 %v609, 36
  %v3276 = vpop.permute.xlu0 %3275
  %3277 = vrot.lane.b32.xlu0 %v3165, 36
  %v3278 = vpop.permute.xlu0 %3277
  %3279 = vrot.lane.b32.xlu0 %v614, 36
  %v3280 = vpop.permute.xlu0 %3279
  %3281 = vrot.lane.b32.xlu0 %v3166, 36
  %v3282 = vpop.permute.xlu0 %3281
  %3283 = vrot.lane.b32.xlu0 %v619, 36
  %v3284 = vpop.permute.xlu0 %3283
  %3285 = vrot.lane.b32.xlu0 %v3167, 36
  %v3286 = vpop.permute.xlu0 %3285
  %3287 = vrot.lane.b32.xlu0 %v624, 36
  %v3288 = vpop.permute.xlu0 %3287
  %3289 = vrot.lane.b32.xlu0 %v3168, 36
  %v3290 = vpop.permute.xlu0 %3289
  %3291 = vrot.lane.b32.xlu0 %v629, 36
  %v3292 = vpop.permute.xlu0 %3291
  %3293 = vrot.lane.b32.xlu0 %v3169, 36
  %v3294 = vpop.permute.xlu0 %3293
  %3295 = vrot.lane.b32.xlu0 %v634, 36
  %v3296 = vpop.permute.xlu0 %3295
  %3297 = vrot.lane.b32.xlu0 %v3170, 36
  %v3298 = vpop.permute.xlu0 %3297
  %v3363 = vrot.slane 0.0, 2
  %v3364 = vsel %vm827, %v831, %v3363
  %v3365 = vsel %vm827, %v836, %v3363
  %v3366 = vsel %vm827, %v841, %v3363
  %v3367 = vsel %vm827, %v846, %v3363
  %v3368 = vsel %vm827, %v851, %v3363
  %v3369 = vsel %vm827, %v856, %v3363
  %v3370 = vsel %vm827, %v861, %v3363
  %v3371 = vsel %vm827, %v866, %v3363
  %v3372 = vsel %vm827, %v871, %v3363
  %v3373 = vsel %vm827, %v876, %v3363
  %v3374 = vsel %vm827, %v881, %v3363
  %v3375 = vsel %vm827, %v886, %v3363
  %v3376 = vsel %vm827, %v891, %v3363
  %v3377 = vsel %vm827, %v896, %v3363
  %v3378 = vsel %vm827, %v901, %v3363
  %v3379 = vsel %vm827, %v906, %v3363
  %v3380 = vsel %vm827, %v911, %v3363
  %v3381 = vsel %vm827, %v916, %v3363
  %v3382 = vsel %vm827, %v921, %v3363
  %v3383 = vsel %vm827, %v926, %v3363
  %v3384 = vsel %vm827, %v931, %v3363
  %v3385 = vsel %vm827, %v936, %v3363
  %v3386 = vsel %vm827, %v941, %v3363
  %v3387 = vsel %vm827, %v946, %v3363
  %v3388 = vsel %vm827, %v951, %v3363
  %v3389 = vsel %vm827, %v956, %v3363
  %v3390 = vsel %vm827, %v961, %v3363
  %v3391 = vsel %vm827, %v966, %v3363
  %v3392 = vsel %vm827, %v971, %v3363
  %v3393 = vsel %vm827, %v976, %v3363
  %v3394 = vsel %vm827, %v981, %v3363
  %v3395 = vsel %vm827, %v986, %v3363
  %3396 = vrot.lane.b32.xlu0 %v832, 40
  %v3397 = vpop.permute.xlu0 %3396
  %3398 = vrot.lane.b32.xlu0 %v3364, 40
  %v3399 = vpop.permute.xlu0 %3398
  %3400 = vrot.lane.b32.xlu0 %v837, 40
  %v3401 = vpop.permute.xlu0 %3400
  %3402 = vrot.lane.b32.xlu0 %v3365, 40
  %v3403 = vpop.permute.xlu0 %3402
  %3404 = vrot.lane.b32.xlu0 %v842, 40
  %v3405 = vpop.permute.xlu0 %3404
  %3406 = vrot.lane.b32.xlu0 %v3366, 40
  %v3407 = vpop.permute.xlu0 %3406
  %3408 = vrot.lane.b32.xlu0 %v847, 40
  %v3409 = vpop.permute.xlu0 %3408
  %3410 = vrot.lane.b32.xlu0 %v3367, 40
  %v3411 = vpop.permute.xlu0 %3410
  %3412 = vrot.lane.b32.xlu0 %v852, 40
  %v3413 = vpop.permute.xlu0 %3412
  %3414 = vrot.lane.b32.xlu0 %v3368, 40
  %v3415 = vpop.permute.xlu0 %3414
  %3416 = vrot.lane.b32.xlu0 %v857, 40
  %v3417 = vpop.permute.xlu0 %3416
  %3418 = vrot.lane.b32.xlu0 %v3369, 40
  %v3419 = vpop.permute.xlu0 %3418
  %3420 = vrot.lane.b32.xlu0 %v862, 40
  %v3421 = vpop.permute.xlu0 %3420
  %3422 = vrot.lane.b32.xlu0 %v3370, 40
  %v3423 = vpop.permute.xlu0 %3422
  %3424 = vrot.lane.b32.xlu0 %v867, 40
  %v3425 = vpop.permute.xlu0 %3424
  %3426 = vrot.lane.b32.xlu0 %v3371, 40
  %v3427 = vpop.permute.xlu0 %3426
  %3428 = vrot.lane.b32.xlu0 %v872, 40
  %v3429 = vpop.permute.xlu0 %3428
  %3430 = vrot.lane.b32.xlu0 %v3372, 40
  %v3431 = vpop.permute.xlu0 %3430
  %3432 = vrot.lane.b32.xlu0 %v877, 40
  %v3433 = vpop.permute.xlu0 %3432
  %3434 = vrot.lane.b32.xlu0 %v3373, 40
  %v3435 = vpop.permute.xlu0 %3434
  %3436 = vrot.lane.b32.xlu0 %v882, 40
  %v3437 = vpop.permute.xlu0 %3436
  %3438 = vrot.lane.b32.xlu0 %v3374, 40
  %v3439 = vpop.permute.xlu0 %3438
  %3440 = vrot.lane.b32.xlu0 %v887, 40
  %v3441 = vpop.permute.xlu0 %3440
  %3442 = vrot.lane.b32.xlu0 %v3375, 40
  %v3443 = vpop.permute.xlu0 %3442
  %3444 = vrot.lane.b32.xlu0 %v892, 40
  %v3445 = vpop.permute.xlu0 %3444
  %3446 = vrot.lane.b32.xlu0 %v3376, 40
  %v3447 = vpop.permute.xlu0 %3446
  %3448 = vrot.lane.b32.xlu0 %v897, 40
  %v3449 = vpop.permute.xlu0 %3448
  %3450 = vrot.lane.b32.xlu0 %v3377, 40
  %v3451 = vpop.permute.xlu0 %3450
  %3452 = vrot.lane.b32.xlu0 %v902, 40
  %v3453 = vpop.permute.xlu0 %3452
  %3454 = vrot.lane.b32.xlu0 %v3378, 40
  %v3455 = vpop.permute.xlu0 %3454
  %3456 = vrot.lane.b32.xlu0 %v907, 40
  %v3457 = vpop.permute.xlu0 %3456
  %3458 = vrot.lane.b32.xlu0 %v3379, 40
  %v3459 = vpop.permute.xlu0 %3458
  %3460 = vrot.lane.b32.xlu0 %v912, 40
  %v3461 = vpop.permute.xlu0 %3460
  %3462 = vrot.lane.b32.xlu0 %v3380, 40
  %v3463 = vpop.permute.xlu0 %3462
  %3464 = vrot.lane.b32.xlu0 %v917, 40
  %v3465 = vpop.permute.xlu0 %3464
  %3466 = vrot.lane.b32.xlu0 %v3381, 40
  %v3467 = vpop.permute.xlu0 %3466
  %3468 = vrot.lane.b32.xlu0 %v922, 40
  %v3469 = vpop.permute.xlu0 %3468
  %3470 = vrot.lane.b32.xlu0 %v3382, 40
  %v3471 = vpop.permute.xlu0 %3470
  %3472 = vrot.lane.b32.xlu0 %v927, 40
  %v3473 = vpop.permute.xlu0 %3472
  %3474 = vrot.lane.b32.xlu0 %v3383, 40
  %v3475 = vpop.permute.xlu0 %3474
  %3476 = vrot.lane.b32.xlu0 %v932, 40
  %v3477 = vpop.permute.xlu0 %3476
  %3478 = vrot.lane.b32.xlu0 %v3384, 40
  %v3479 = vpop.permute.xlu0 %3478
  %3480 = vrot.lane.b32.xlu0 %v937, 40
  %v3481 = vpop.permute.xlu0 %3480
  %3482 = vrot.lane.b32.xlu0 %v3385, 40
  %v3483 = vpop.permute.xlu0 %3482
  %3484 = vrot.lane.b32.xlu0 %v942, 40
  %v3485 = vpop.permute.xlu0 %3484
  %3486 = vrot.lane.b32.xlu0 %v3386, 40
  %v3487 = vpop.permute.xlu0 %3486
  %3488 = vrot.lane.b32.xlu0 %v947, 40
  %v3489 = vpop.permute.xlu0 %3488
  %3490 = vrot.lane.b32.xlu0 %v3387, 40
  %v3491 = vpop.permute.xlu0 %3490
  %3492 = vrot.lane.b32.xlu0 %v952, 40
  %v3493 = vpop.permute.xlu0 %3492
  %3494 = vrot.lane.b32.xlu0 %v3388, 40
  %v3495 = vpop.permute.xlu0 %3494
  %3496 = vrot.lane.b32.xlu0 %v957, 40
  %v3497 = vpop.permute.xlu0 %3496
  %3498 = vrot.lane.b32.xlu0 %v3389, 40
  %v3499 = vpop.permute.xlu0 %3498
  %3500 = vrot.lane.b32.xlu0 %v962, 40
  %v3501 = vpop.permute.xlu0 %3500
  %3502 = vrot.lane.b32.xlu0 %v3390, 40
  %v3503 = vpop.permute.xlu0 %3502
  %3504 = vrot.lane.b32.xlu0 %v967, 40
  %v3505 = vpop.permute.xlu0 %3504
  %3506 = vrot.lane.b32.xlu0 %v3391, 40
  %v3507 = vpop.permute.xlu0 %3506
  %3508 = vrot.lane.b32.xlu0 %v972, 40
  %v3509 = vpop.permute.xlu0 %3508
  %3510 = vrot.lane.b32.xlu0 %v3392, 40
  %v3511 = vpop.permute.xlu0 %3510
  %3512 = vrot.lane.b32.xlu0 %v977, 40
  %v3513 = vpop.permute.xlu0 %3512
  %3514 = vrot.lane.b32.xlu0 %v3393, 40
  %v3515 = vpop.permute.xlu0 %3514
  %3516 = vrot.lane.b32.xlu0 %v982, 40
  %v3517 = vpop.permute.xlu0 %3516
  %3518 = vrot.lane.b32.xlu0 %v3394, 40
  %v3519 = vpop.permute.xlu0 %3518
  %3520 = vrot.lane.b32.xlu0 %v987, 40
  %v3521 = vpop.permute.xlu0 %3520
  %3522 = vrot.lane.b32.xlu0 %v3395, 40
  %v3523 = vpop.permute.xlu0 %3522
  %v3588 = vrot.slane 0.0, 3
  %v3589 = vsel %vm1180, %v1184, %v3588
  %v3590 = vsel %vm1180, %v1189, %v3588
  %v3591 = vsel %vm1180, %v1194, %v3588
  %v3592 = vsel %vm1180, %v1199, %v3588
  %v3593 = vsel %vm1180, %v1204, %v3588
  %v3594 = vsel %vm1180, %v1209, %v3588
  %v3595 = vsel %vm1180, %v1214, %v3588
  %v3596 = vsel %vm1180, %v1219, %v3588
  %v3597 = vsel %vm1180, %v1224, %v3588
  %v3598 = vsel %vm1180, %v1229, %v3588
  %v3599 = vsel %vm1180, %v1234, %v3588
  %v3600 = vsel %vm1180, %v1239, %v3588
  %v3601 = vsel %vm1180, %v1244, %v3588
  %v3602 = vsel %vm1180, %v1249, %v3588
  %v3603 = vsel %vm1180, %v1254, %v3588
  %v3604 = vsel %vm1180, %v1259, %v3588
  %v3605 = vsel %vm1180, %v1264, %v3588
  %v3606 = vsel %vm1180, %v1269, %v3588
  %v3607 = vsel %vm1180, %v1274, %v3588
  %v3608 = vsel %vm1180, %v1279, %v3588
  %v3609 = vsel %vm1180, %v1284, %v3588
  %v3610 = vsel %vm1180, %v1289, %v3588
  %v3611 = vsel %vm1180, %v1294, %v3588
  %v3612 = vsel %vm1180, %v1299, %v3588
  %v3613 = vsel %vm1180, %v1304, %v3588
  %v3614 = vsel %vm1180, %v1309, %v3588
  %v3615 = vsel %vm1180, %v1314, %v3588
  %v3616 = vsel %vm1180, %v1319, %v3588
  %v3617 = vsel %vm1180, %v1324, %v3588
  %v3618 = vsel %vm1180, %v1329, %v3588
  %v3619 = vsel %vm1180, %v1334, %v3588
  %v3620 = vsel %vm1180, %v1339, %v3588
  %3621 = vrot.lane.b32.xlu0 %v1185, 44
  %v3622 = vpop.permute.xlu0 %3621
  %3623 = vrot.lane.b32.xlu0 %v3589, 44
  %v3624 = vpop.permute.xlu0 %3623
  %3625 = vrot.lane.b32.xlu0 %v1190, 44
  %v3626 = vpop.permute.xlu0 %3625
  %3627 = vrot.lane.b32.xlu0 %v3590, 44
  %v3628 = vpop.permute.xlu0 %3627
  %3629 = vrot.lane.b32.xlu0 %v1195, 44
  %v3630 = vpop.permute.xlu0 %3629
  %3631 = vrot.lane.b32.xlu0 %v3591, 44
  %v3632 = vpop.permute.xlu0 %3631
  %3633 = vrot.lane.b32.xlu0 %v1200, 44
  %v3634 = vpop.permute.xlu0 %3633
  %3635 = vrot.lane.b32.xlu0 %v3592, 44
  %v3636 = vpop.permute.xlu0 %3635
  %3637 = vrot.lane.b32.xlu0 %v1205, 44
  %v3638 = vpop.permute.xlu0 %3637
  %3639 = vrot.lane.b32.xlu0 %v3593, 44
  %v3640 = vpop.permute.xlu0 %3639
  %3641 = vrot.lane.b32.xlu0 %v1210, 44
  %v3642 = vpop.permute.xlu0 %3641
  %3643 = vrot.lane.b32.xlu0 %v3594, 44
  %v3644 = vpop.permute.xlu0 %3643
  %3645 = vrot.lane.b32.xlu0 %v1215, 44
  %v3646 = vpop.permute.xlu0 %3645
  %3647 = vrot.lane.b32.xlu0 %v3595, 44
  %v3648 = vpop.permute.xlu0 %3647
  %3649 = vrot.lane.b32.xlu0 %v1220, 44
  %v3650 = vpop.permute.xlu0 %3649
  %3651 = vrot.lane.b32.xlu0 %v3596, 44
  %v3652 = vpop.permute.xlu0 %3651
  %3653 = vrot.lane.b32.xlu0 %v1225, 44
  %v3654 = vpop.permute.xlu0 %3653
  %3655 = vrot.lane.b32.xlu0 %v3597, 44
  %v3656 = vpop.permute.xlu0 %3655
  %3657 = vrot.lane.b32.xlu0 %v1230, 44
  %v3658 = vpop.permute.xlu0 %3657
  %3659 = vrot.lane.b32.xlu0 %v3598, 44
  %v3660 = vpop.permute.xlu0 %3659
  %3661 = vrot.lane.b32.xlu0 %v1235, 44
  %v3662 = vpop.permute.xlu0 %3661
  %3663 = vrot.lane.b32.xlu0 %v3599, 44
  %v3664 = vpop.permute.xlu0 %3663
  %3665 = vrot.lane.b32.xlu0 %v1240, 44
  %v3666 = vpop.permute.xlu0 %3665
  %3667 = vrot.lane.b32.xlu0 %v3600, 44
  %v3668 = vpop.permute.xlu0 %3667
  %3669 = vrot.lane.b32.xlu0 %v1245, 44
  %v3670 = vpop.permute.xlu0 %3669
  %3671 = vrot.lane.b32.xlu0 %v3601, 44
  %v3672 = vpop.permute.xlu0 %3671
  %3673 = vrot.lane.b32.xlu0 %v1250, 44
  %v3674 = vpop.permute.xlu0 %3673
  %3675 = vrot.lane.b32.xlu0 %v3602, 44
  %v3676 = vpop.permute.xlu0 %3675
  %3677 = vrot.lane.b32.xlu0 %v1255, 44
  %v3678 = vpop.permute.xlu0 %3677
  %3679 = vrot.lane.b32.xlu0 %v3603, 44
  %v3680 = vpop.permute.xlu0 %3679
  %3681 = vrot.lane.b32.xlu0 %v1260, 44
  %v3682 = vpop.permute.xlu0 %3681
  %3683 = vrot.lane.b32.xlu0 %v3604, 44
  %v3684 = vpop.permute.xlu0 %3683
  %3685 = vrot.lane.b32.xlu0 %v1265, 44
  %v3686 = vpop.permute.xlu0 %3685
  %3687 = vrot.lane.b32.xlu0 %v3605, 44
  %v3688 = vpop.permute.xlu0 %3687
  %3689 = vrot.lane.b32.xlu0 %v1270, 44
  %v3690 = vpop.permute.xlu0 %3689
  %3691 = vrot.lane.b32.xlu0 %v3606, 44
  %v3692 = vpop.permute.xlu0 %3691
  %3693 = vrot.lane.b32.xlu0 %v1275, 44
  %v3694 = vpop.permute.xlu0 %3693
  %3695 = vrot.lane.b32.xlu0 %v3607, 44
  %v3696 = vpop.permute.xlu0 %3695
  %3697 = vrot.lane.b32.xlu0 %v1280, 44
  %v3698 = vpop.permute.xlu0 %3697
  %3699 = vrot.lane.b32.xlu0 %v3608, 44
  %v3700 = vpop.permute.xlu0 %3699
  %3701 = vrot.lane.b32.xlu0 %v1285, 44
  %v3702 = vpop.permute.xlu0 %3701
  %3703 = vrot.lane.b32.xlu0 %v3609, 44
  %v3704 = vpop.permute.xlu0 %3703
  %3705 = vrot.lane.b32.xlu0 %v1290, 44
  %v3706 = vpop.permute.xlu0 %3705
  %3707 = vrot.lane.b32.xlu0 %v3610, 44
  %v3708 = vpop.permute.xlu0 %3707
  %3709 = vrot.lane.b32.xlu0 %v1295, 44
  %v3710 = vpop.permute.xlu0 %3709
  %3711 = vrot.lane.b32.xlu0 %v3611, 44
  %v3712 = vpop.permute.xlu0 %3711
  %3713 = vrot.lane.b32.xlu0 %v1300, 44
  %v3714 = vpop.permute.xlu0 %3713
  %3715 = vrot.lane.b32.xlu0 %v3612, 44
  %v3716 = vpop.permute.xlu0 %3715
  %3717 = vrot.lane.b32.xlu0 %v1305, 44
  %v3718 = vpop.permute.xlu0 %3717
  %3719 = vrot.lane.b32.xlu0 %v3613, 44
  %v3720 = vpop.permute.xlu0 %3719
  %3721 = vrot.lane.b32.xlu0 %v1310, 44
  %v3722 = vpop.permute.xlu0 %3721
  %3723 = vrot.lane.b32.xlu0 %v3614, 44
  %v3724 = vpop.permute.xlu0 %3723
  %3725 = vrot.lane.b32.xlu0 %v1315, 44
  %v3726 = vpop.permute.xlu0 %3725
  %3727 = vrot.lane.b32.xlu0 %v3615, 44
  %v3728 = vpop.permute.xlu0 %3727
  %3729 = vrot.lane.b32.xlu0 %v1320, 44
  %v3730 = vpop.permute.xlu0 %3729
  %3731 = vrot.lane.b32.xlu0 %v3616, 44
  %v3732 = vpop.permute.xlu0 %3731
  %3733 = vrot.lane.b32.xlu0 %v1325, 44
  %v3734 = vpop.permute.xlu0 %3733
  %3735 = vrot.lane.b32.xlu0 %v3617, 44
  %v3736 = vpop.permute.xlu0 %3735
  %3737 = vrot.lane.b32.xlu0 %v1330, 44
  %v3738 = vpop.permute.xlu0 %3737
  %3739 = vrot.lane.b32.xlu0 %v3618, 44
  %v3740 = vpop.permute.xlu0 %3739
  %3741 = vrot.lane.b32.xlu0 %v1335, 44
  %v3742 = vpop.permute.xlu0 %3741
  %3743 = vrot.lane.b32.xlu0 %v3619, 44
  %v3744 = vpop.permute.xlu0 %3743
  %3745 = vrot.lane.b32.xlu0 %v1340, 44
  %v3746 = vpop.permute.xlu0 %3745
  %3747 = vrot.lane.b32.xlu0 %v3620, 44
  %v3748 = vpop.permute.xlu0 %3747
  %v3813 = vrot.slane 0.0, 4
  %v3814 = vsel %vm1533, %v1537, %v3813
  %v3815 = vsel %vm1533, %v1542, %v3813
  %v3816 = vsel %vm1533, %v1547, %v3813
  %v3817 = vsel %vm1533, %v1552, %v3813
  %v3818 = vsel %vm1533, %v1557, %v3813
  %v3819 = vsel %vm1533, %v1562, %v3813
  %v3820 = vsel %vm1533, %v1567, %v3813
  %v3821 = vsel %vm1533, %v1572, %v3813
  %v3822 = vsel %vm1533, %v1577, %v3813
  %v3823 = vsel %vm1533, %v1582, %v3813
  %v3824 = vsel %vm1533, %v1587, %v3813
  %v3825 = vsel %vm1533, %v1592, %v3813
  %v3826 = vsel %vm1533, %v1597, %v3813
  %v3827 = vsel %vm1533, %v1602, %v3813
  %v3828 = vsel %vm1533, %v1607, %v3813
  %v3829 = vsel %vm1533, %v1612, %v3813
  %v3830 = vsel %vm1533, %v1617, %v3813
  %v3831 = vsel %vm1533, %v1622, %v3813
  %v3832 = vsel %vm1533, %v1627, %v3813
  %v3833 = vsel %vm1533, %v1632, %v3813
  %v3834 = vsel %vm1533, %v1637, %v3813
  %v3835 = vsel %vm1533, %v1642, %v3813
  %v3836 = vsel %vm1533, %v1647, %v3813
  %v3837 = vsel %vm1533, %v1652, %v3813
  %v3838 = vsel %vm1533, %v1657, %v3813
  %v3839 = vsel %vm1533, %v1662, %v3813
  %v3840 = vsel %vm1533, %v1667, %v3813
  %v3841 = vsel %vm1533, %v1672, %v3813
  %v3842 = vsel %vm1533, %v1677, %v3813
  %v3843 = vsel %vm1533, %v1682, %v3813
  %v3844 = vsel %vm1533, %v1687, %v3813
  %v3845 = vsel %vm1533, %v1692, %v3813
  %3846 = vrot.lane.b32.xlu0 %v1538, 48
  %v3847 = vpop.permute.xlu0 %3846
  %3848 = vrot.lane.b32.xlu0 %v3814, 48
  %v3849 = vpop.permute.xlu0 %3848
  %3850 = vrot.lane.b32.xlu0 %v1543, 48
  %v3851 = vpop.permute.xlu0 %3850
  %3852 = vrot.lane.b32.xlu0 %v3815, 48
  %v3853 = vpop.permute.xlu0 %3852
  %3854 = vrot.lane.b32.xlu0 %v1548, 48
  %v3855 = vpop.permute.xlu0 %3854
  %3856 = vrot.lane.b32.xlu0 %v3816, 48
  %v3857 = vpop.permute.xlu0 %3856
  %3858 = vrot.lane.b32.xlu0 %v1553, 48
  %v3859 = vpop.permute.xlu0 %3858
  %3860 = vrot.lane.b32.xlu0 %v3817, 48
  %v3861 = vpop.permute.xlu0 %3860
  %3862 = vrot.lane.b32.xlu0 %v1558, 48
  %v3863 = vpop.permute.xlu0 %3862
  %3864 = vrot.lane.b32.xlu0 %v3818, 48
  %v3865 = vpop.permute.xlu0 %3864
  %3866 = vrot.lane.b32.xlu0 %v1563, 48
  %v3867 = vpop.permute.xlu0 %3866
  %3868 = vrot.lane.b32.xlu0 %v3819, 48
  %v3869 = vpop.permute.xlu0 %3868
  %3870 = vrot.lane.b32.xlu0 %v1568, 48
  %v3871 = vpop.permute.xlu0 %3870
  %3872 = vrot.lane.b32.xlu0 %v3820, 48
  %v3873 = vpop.permute.xlu0 %3872
  %3874 = vrot.lane.b32.xlu0 %v1573, 48
  %v3875 = vpop.permute.xlu0 %3874
  %3876 = vrot.lane.b32.xlu0 %v3821, 48
  %v3877 = vpop.permute.xlu0 %3876
  %3878 = vrot.lane.b32.xlu0 %v1578, 48
  %v3879 = vpop.permute.xlu0 %3878
  %3880 = vrot.lane.b32.xlu0 %v3822, 48
  %v3881 = vpop.permute.xlu0 %3880
  %3882 = vrot.lane.b32.xlu0 %v1583, 48
  %v3883 = vpop.permute.xlu0 %3882
  %3884 = vrot.lane.b32.xlu0 %v3823, 48
  %v3885 = vpop.permute.xlu0 %3884
  %3886 = vrot.lane.b32.xlu0 %v1588, 48
  %v3887 = vpop.permute.xlu0 %3886
  %3888 = vrot.lane.b32.xlu0 %v3824, 48
  %v3889 = vpop.permute.xlu0 %3888
  %3890 = vrot.lane.b32.xlu0 %v1593, 48
  %v3891 = vpop.permute.xlu0 %3890
  %3892 = vrot.lane.b32.xlu0 %v3825, 48
  %v3893 = vpop.permute.xlu0 %3892
  %3894 = vrot.lane.b32.xlu0 %v1598, 48
  %v3895 = vpop.permute.xlu0 %3894
  %3896 = vrot.lane.b32.xlu0 %v3826, 48
  %v3897 = vpop.permute.xlu0 %3896
  %3898 = vrot.lane.b32.xlu0 %v1603, 48
  %v3899 = vpop.permute.xlu0 %3898
  %3900 = vrot.lane.b32.xlu0 %v3827, 48
  %v3901 = vpop.permute.xlu0 %3900
  %3902 = vrot.lane.b32.xlu0 %v1608, 48
  %v3903 = vpop.permute.xlu0 %3902
  %3904 = vrot.lane.b32.xlu0 %v3828, 48
  %v3905 = vpop.permute.xlu0 %3904
  %3906 = vrot.lane.b32.xlu0 %v1613, 48
  %v3907 = vpop.permute.xlu0 %3906
  %3908 = vrot.lane.b32.xlu0 %v3829, 48
  %v3909 = vpop.permute.xlu0 %3908
  %3910 = vrot.lane.b32.xlu0 %v1618, 48
  %v3911 = vpop.permute.xlu0 %3910
  %3912 = vrot.lane.b32.xlu0 %v3830, 48
  %v3913 = vpop.permute.xlu0 %3912
  %3914 = vrot.lane.b32.xlu0 %v1623, 48
  %v3915 = vpop.permute.xlu0 %3914
  %3916 = vrot.lane.b32.xlu0 %v3831, 48
  %v3917 = vpop.permute.xlu0 %3916
  %3918 = vrot.lane.b32.xlu0 %v1628, 48
  %v3919 = vpop.permute.xlu0 %3918
  %3920 = vrot.lane.b32.xlu0 %v3832, 48
  %v3921 = vpop.permute.xlu0 %3920
  %3922 = vrot.lane.b32.xlu0 %v1633, 48
  %v3923 = vpop.permute.xlu0 %3922
  %3924 = vrot.lane.b32.xlu0 %v3833, 48
  %v3925 = vpop.permute.xlu0 %3924
  %3926 = vrot.lane.b32.xlu0 %v1638, 48
  %v3927 = vpop.permute.xlu0 %3926
  %3928 = vrot.lane.b32.xlu0 %v3834, 48
  %v3929 = vpop.permute.xlu0 %3928
  %3930 = vrot.lane.b32.xlu0 %v1643, 48
  %v3931 = vpop.permute.xlu0 %3930
  %3932 = vrot.lane.b32.xlu0 %v3835, 48
  %v3933 = vpop.permute.xlu0 %3932
  %3934 = vrot.lane.b32.xlu0 %v1648, 48
  %v3935 = vpop.permute.xlu0 %3934
  %3936 = vrot.lane.b32.xlu0 %v3836, 48
  %v3937 = vpop.permute.xlu0 %3936
  %3938 = vrot.lane.b32.xlu0 %v1653, 48
  %v3939 = vpop.permute.xlu0 %3938
  %3940 = vrot.lane.b32.xlu0 %v3837, 48
  %v3941 = vpop.permute.xlu0 %3940
  %3942 = vrot.lane.b32.xlu0 %v1658, 48
  %v3943 = vpop.permute.xlu0 %3942
  %3944 = vrot.lane.b32.xlu0 %v3838, 48
  %v3945 = vpop.permute.xlu0 %3944
  %3946 = vrot.lane.b32.xlu0 %v1663, 48
  %v3947 = vpop.permute.xlu0 %3946
  %3948 = vrot.lane.b32.xlu0 %v3839, 48
  %v3949 = vpop.permute.xlu0 %3948
  %3950 = vrot.lane.b32.xlu0 %v1668, 48
  %v3951 = vpop.permute.xlu0 %3950
  %3952 = vrot.lane.b32.xlu0 %v3840, 48
  %v3953 = vpop.permute.xlu0 %3952
  %3954 = vrot.lane.b32.xlu0 %v1673, 48
  %v3955 = vpop.permute.xlu0 %3954
  %3956 = vrot.lane.b32.xlu0 %v3841, 48
  %v3957 = vpop.permute.xlu0 %3956
  %3958 = vrot.lane.b32.xlu0 %v1678, 48
  %v3959 = vpop.permute.xlu0 %3958
  %3960 = vrot.lane.b32.xlu0 %v3842, 48
  %v3961 = vpop.permute.xlu0 %3960
  %3962 = vrot.lane.b32.xlu0 %v1683, 48
  %v3963 = vpop.permute.xlu0 %3962
  %3964 = vrot.lane.b32.xlu0 %v3843, 48
  %v3965 = vpop.permute.xlu0 %3964
  %3966 = vrot.lane.b32.xlu0 %v1688, 48
  %v3967 = vpop.permute.xlu0 %3966
  %3968 = vrot.lane.b32.xlu0 %v3844, 48
  %v3969 = vpop.permute.xlu0 %3968
  %3970 = vrot.lane.b32.xlu0 %v1693, 48
  %v3971 = vpop.permute.xlu0 %3970
  %3972 = vrot.lane.b32.xlu0 %v3845, 48
  %v3973 = vpop.permute.xlu0 %3972
  %v4038 = vrot.slane 0.0, 5
  %v4039 = vsel %vm1886, %v1890, %v4038
  %v4040 = vsel %vm1886, %v1895, %v4038
  %v4041 = vsel %vm1886, %v1900, %v4038
  %v4042 = vsel %vm1886, %v1905, %v4038
  %v4043 = vsel %vm1886, %v1910, %v4038
  %v4044 = vsel %vm1886, %v1915, %v4038
  %v4045 = vsel %vm1886, %v1920, %v4038
  %v4046 = vsel %vm1886, %v1925, %v4038
  %v4047 = vsel %vm1886, %v1930, %v4038
  %v4048 = vsel %vm1886, %v1935, %v4038
  %v4049 = vsel %vm1886, %v1940, %v4038
  %v4050 = vsel %vm1886, %v1945, %v4038
  %v4051 = vsel %vm1886, %v1950, %v4038
  %v4052 = vsel %vm1886, %v1955, %v4038
  %v4053 = vsel %vm1886, %v1960, %v4038
  %v4054 = vsel %vm1886, %v1965, %v4038
  %v4055 = vsel %vm1886, %v1970, %v4038
  %v4056 = vsel %vm1886, %v1975, %v4038
  %v4057 = vsel %vm1886, %v1980, %v4038
  %v4058 = vsel %vm1886, %v1985, %v4038
  %v4059 = vsel %vm1886, %v1990, %v4038
  %v4060 = vsel %vm1886, %v1995, %v4038
  %v4061 = vsel %vm1886, %v2000, %v4038
  %v4062 = vsel %vm1886, %v2005, %v4038
  %v4063 = vsel %vm1886, %v2010, %v4038
  %v4064 = vsel %vm1886, %v2015, %v4038
  %v4065 = vsel %vm1886, %v2020, %v4038
  %v4066 = vsel %vm1886, %v2025, %v4038
  %v4067 = vsel %vm1886, %v2030, %v4038
  %v4068 = vsel %vm1886, %v2035, %v4038
  %v4069 = vsel %vm1886, %v2040, %v4038
  %v4070 = vsel %vm1886, %v2045, %v4038
  %4071 = vrot.lane.b32.xlu0 %v1891, 52
  %v4072 = vpop.permute.xlu0 %4071
  %4073 = vrot.lane.b32.xlu0 %v4039, 52
  %v4074 = vpop.permute.xlu0 %4073
  %4075 = vrot.lane.b32.xlu0 %v1896, 52
  %v4076 = vpop.permute.xlu0 %4075
  %4077 = vrot.lane.b32.xlu0 %v4040, 52
  %v4078 = vpop.permute.xlu0 %4077
  %4079 = vrot.lane.b32.xlu0 %v1901, 52
  %v4080 = vpop.permute.xlu0 %4079
  %4081 = vrot.lane.b32.xlu0 %v4041, 52
  %v4082 = vpop.permute.xlu0 %4081
  %4083 = vrot.lane.b32.xlu0 %v1906, 52
  %v4084 = vpop.permute.xlu0 %4083
  %4085 = vrot.lane.b32.xlu0 %v4042, 52
  %v4086 = vpop.permute.xlu0 %4085
  %4087 = vrot.lane.b32.xlu0 %v1911, 52
  %v4088 = vpop.permute.xlu0 %4087
  %4089 = vrot.lane.b32.xlu0 %v4043, 52
  %v4090 = vpop.permute.xlu0 %4089
  %4091 = vrot.lane.b32.xlu0 %v1916, 52
  %v4092 = vpop.permute.xlu0 %4091
  %4093 = vrot.lane.b32.xlu0 %v4044, 52
  %v4094 = vpop.permute.xlu0 %4093
  %4095 = vrot.lane.b32.xlu0 %v1921, 52
  %v4096 = vpop.permute.xlu0 %4095
  %4097 = vrot.lane.b32.xlu0 %v4045, 52
  %v4098 = vpop.permute.xlu0 %4097
  %4099 = vrot.lane.b32.xlu0 %v1926, 52
  %v4100 = vpop.permute.xlu0 %4099
  %4101 = vrot.lane.b32.xlu0 %v4046, 52
  %v4102 = vpop.permute.xlu0 %4101
  %4103 = vrot.lane.b32.xlu0 %v1931, 52
  %v4104 = vpop.permute.xlu0 %4103
  %4105 = vrot.lane.b32.xlu0 %v4047, 52
  %v4106 = vpop.permute.xlu0 %4105
  %4107 = vrot.lane.b32.xlu0 %v1936, 52
  %v4108 = vpop.permute.xlu0 %4107
  %4109 = vrot.lane.b32.xlu0 %v4048, 52
  %v4110 = vpop.permute.xlu0 %4109
  %4111 = vrot.lane.b32.xlu0 %v1941, 52
  %v4112 = vpop.permute.xlu0 %4111
  %4113 = vrot.lane.b32.xlu0 %v4049, 52
  %v4114 = vpop.permute.xlu0 %4113
  %4115 = vrot.lane.b32.xlu0 %v1946, 52
  %v4116 = vpop.permute.xlu0 %4115
  %4117 = vrot.lane.b32.xlu0 %v4050, 52
  %v4118 = vpop.permute.xlu0 %4117
  %4119 = vrot.lane.b32.xlu0 %v1951, 52
  %v4120 = vpop.permute.xlu0 %4119
  %4121 = vrot.lane.b32.xlu0 %v4051, 52
  %v4122 = vpop.permute.xlu0 %4121
  %4123 = vrot.lane.b32.xlu0 %v1956, 52
  %v4124 = vpop.permute.xlu0 %4123
  %4125 = vrot.lane.b32.xlu0 %v4052, 52
  %v4126 = vpop.permute.xlu0 %4125
  %4127 = vrot.lane.b32.xlu0 %v1961, 52
  %v4128 = vpop.permute.xlu0 %4127
  %4129 = vrot.lane.b32.xlu0 %v4053, 52
  %v4130 = vpop.permute.xlu0 %4129
  %4131 = vrot.lane.b32.xlu0 %v1966, 52
  %v4132 = vpop.permute.xlu0 %4131
  %4133 = vrot.lane.b32.xlu0 %v4054, 52
  %v4134 = vpop.permute.xlu0 %4133
  %4135 = vrot.lane.b32.xlu0 %v1971, 52
  %v4136 = vpop.permute.xlu0 %4135
  %4137 = vrot.lane.b32.xlu0 %v4055, 52
  %v4138 = vpop.permute.xlu0 %4137
  %4139 = vrot.lane.b32.xlu0 %v1976, 52
  %v4140 = vpop.permute.xlu0 %4139
  %4141 = vrot.lane.b32.xlu0 %v4056, 52
  %v4142 = vpop.permute.xlu0 %4141
  %4143 = vrot.lane.b32.xlu0 %v1981, 52
  %v4144 = vpop.permute.xlu0 %4143
  %4145 = vrot.lane.b32.xlu0 %v4057, 52
  %v4146 = vpop.permute.xlu0 %4145
  %4147 = vrot.lane.b32.xlu0 %v1986, 52
  %v4148 = vpop.permute.xlu0 %4147
  %4149 = vrot.lane.b32.xlu0 %v4058, 52
  %v4150 = vpop.permute.xlu0 %4149
  %4151 = vrot.lane.b32.xlu0 %v1991, 52
  %v4152 = vpop.permute.xlu0 %4151
  %4153 = vrot.lane.b32.xlu0 %v4059, 52
  %v4154 = vpop.permute.xlu0 %4153
  %4155 = vrot.lane.b32.xlu0 %v1996, 52
  %v4156 = vpop.permute.xlu0 %4155
  %4157 = vrot.lane.b32.xlu0 %v4060, 52
  %v4158 = vpop.permute.xlu0 %4157
  %4159 = vrot.lane.b32.xlu0 %v2001, 52
  %v4160 = vpop.permute.xlu0 %4159
  %4161 = vrot.lane.b32.xlu0 %v4061, 52
  %v4162 = vpop.permute.xlu0 %4161
  %4163 = vrot.lane.b32.xlu0 %v2006, 52
  %v4164 = vpop.permute.xlu0 %4163
  %4165 = vrot.lane.b32.xlu0 %v4062, 52
  %v4166 = vpop.permute.xlu0 %4165
  %4167 = vrot.lane.b32.xlu0 %v2011, 52
  %v4168 = vpop.permute.xlu0 %4167
  %4169 = vrot.lane.b32.xlu0 %v4063, 52
  %v4170 = vpop.permute.xlu0 %4169
  %4171 = vrot.lane.b32.xlu0 %v2016, 52
  %v4172 = vpop.permute.xlu0 %4171
  %4173 = vrot.lane.b32.xlu0 %v4064, 52
  %v4174 = vpop.permute.xlu0 %4173
  %4175 = vrot.lane.b32.xlu0 %v2021, 52
  %v4176 = vpop.permute.xlu0 %4175
  %4177 = vrot.lane.b32.xlu0 %v4065, 52
  %v4178 = vpop.permute.xlu0 %4177
  %4179 = vrot.lane.b32.xlu0 %v2026, 52
  %v4180 = vpop.permute.xlu0 %4179
  %4181 = vrot.lane.b32.xlu0 %v4066, 52
  %v4182 = vpop.permute.xlu0 %4181
  %4183 = vrot.lane.b32.xlu0 %v2031, 52
  %v4184 = vpop.permute.xlu0 %4183
  %4185 = vrot.lane.b32.xlu0 %v4067, 52
  %v4186 = vpop.permute.xlu0 %4185
  %4187 = vrot.lane.b32.xlu0 %v2036, 52
  %v4188 = vpop.permute.xlu0 %4187
  %4189 = vrot.lane.b32.xlu0 %v4068, 52
  %v4190 = vpop.permute.xlu0 %4189
  %4191 = vrot.lane.b32.xlu0 %v2041, 52
  %v4192 = vpop.permute.xlu0 %4191
  %4193 = vrot.lane.b32.xlu0 %v4069, 52
  %v4194 = vpop.permute.xlu0 %4193
  %4195 = vrot.lane.b32.xlu0 %v2046, 52
  %v4196 = vpop.permute.xlu0 %4195
  %4197 = vrot.lane.b32.xlu0 %v4070, 52
  %v4198 = vpop.permute.xlu0 %4197
  %v4263 = vrot.slane 0.0, 6
  %v4264 = vsel %vm2239, %v2243, %v4263
  %v4265 = vsel %vm2239, %v2248, %v4263
  %v4266 = vsel %vm2239, %v2253, %v4263
  %v4267 = vsel %vm2239, %v2258, %v4263
  %v4268 = vsel %vm2239, %v2263, %v4263
  %v4269 = vsel %vm2239, %v2268, %v4263
  %v4270 = vsel %vm2239, %v2273, %v4263
  %v4271 = vsel %vm2239, %v2278, %v4263
  %v4272 = vsel %vm2239, %v2283, %v4263
  %v4273 = vsel %vm2239, %v2288, %v4263
  %v4274 = vsel %vm2239, %v2293, %v4263
  %v4275 = vsel %vm2239, %v2298, %v4263
  %v4276 = vsel %vm2239, %v2303, %v4263
  %v4277 = vsel %vm2239, %v2308, %v4263
  %v4278 = vsel %vm2239, %v2313, %v4263
  %v4279 = vsel %vm2239, %v2318, %v4263
  %v4280 = vsel %vm2239, %v2323, %v4263
  %v4281 = vsel %vm2239, %v2328, %v4263
  %v4282 = vsel %vm2239, %v2333, %v4263
  %v4283 = vsel %vm2239, %v2338, %v4263
  %v4284 = vsel %vm2239, %v2343, %v4263
  %v4285 = vsel %vm2239, %v2348, %v4263
  %v4286 = vsel %vm2239, %v2353, %v4263
  %v4287 = vsel %vm2239, %v2358, %v4263
  %v4288 = vsel %vm2239, %v2363, %v4263
  %v4289 = vsel %vm2239, %v2368, %v4263
  %v4290 = vsel %vm2239, %v2373, %v4263
  %v4291 = vsel %vm2239, %v2378, %v4263
  %v4292 = vsel %vm2239, %v2383, %v4263
  %v4293 = vsel %vm2239, %v2388, %v4263
  %v4294 = vsel %vm2239, %v2393, %v4263
  %v4295 = vsel %vm2239, %v2398, %v4263
  %4296 = vrot.lane.b32.xlu0 %v2244, 56
  %v4297 = vpop.permute.xlu0 %4296
  %4298 = vrot.lane.b32.xlu0 %v4264, 56
  %v4299 = vpop.permute.xlu0 %4298
  %4300 = vrot.lane.b32.xlu0 %v2249, 56
  %v4301 = vpop.permute.xlu0 %4300
  %4302 = vrot.lane.b32.xlu0 %v4265, 56
  %v4303 = vpop.permute.xlu0 %4302
  %4304 = vrot.lane.b32.xlu0 %v2254, 56
  %v4305 = vpop.permute.xlu0 %4304
  %4306 = vrot.lane.b32.xlu0 %v4266, 56
  %v4307 = vpop.permute.xlu0 %4306
  %4308 = vrot.lane.b32.xlu0 %v2259, 56
  %v4309 = vpop.permute.xlu0 %4308
  %4310 = vrot.lane.b32.xlu0 %v4267, 56
  %v4311 = vpop.permute.xlu0 %4310
  %4312 = vrot.lane.b32.xlu0 %v2264, 56
  %v4313 = vpop.permute.xlu0 %4312
  %4314 = vrot.lane.b32.xlu0 %v4268, 56
  %v4315 = vpop.permute.xlu0 %4314
  %4316 = vrot.lane.b32.xlu0 %v2269, 56
  %v4317 = vpop.permute.xlu0 %4316
  %4318 = vrot.lane.b32.xlu0 %v4269, 56
  %v4319 = vpop.permute.xlu0 %4318
  %4320 = vrot.lane.b32.xlu0 %v2274, 56
  %v4321 = vpop.permute.xlu0 %4320
  %4322 = vrot.lane.b32.xlu0 %v4270, 56
  %v4323 = vpop.permute.xlu0 %4322
  %4324 = vrot.lane.b32.xlu0 %v2279, 56
  %v4325 = vpop.permute.xlu0 %4324
  %4326 = vrot.lane.b32.xlu0 %v4271, 56
  %v4327 = vpop.permute.xlu0 %4326
  %4328 = vrot.lane.b32.xlu0 %v2284, 56
  %v4329 = vpop.permute.xlu0 %4328
  %4330 = vrot.lane.b32.xlu0 %v4272, 56
  %v4331 = vpop.permute.xlu0 %4330
  %4332 = vrot.lane.b32.xlu0 %v2289, 56
  %v4333 = vpop.permute.xlu0 %4332
  %4334 = vrot.lane.b32.xlu0 %v4273, 56
  %v4335 = vpop.permute.xlu0 %4334
  %4336 = vrot.lane.b32.xlu0 %v2294, 56
  %v4337 = vpop.permute.xlu0 %4336
  %4338 = vrot.lane.b32.xlu0 %v4274, 56
  %v4339 = vpop.permute.xlu0 %4338
  %4340 = vrot.lane.b32.xlu0 %v2299, 56
  %v4341 = vpop.permute.xlu0 %4340
  %4342 = vrot.lane.b32.xlu0 %v4275, 56
  %v4343 = vpop.permute.xlu0 %4342
  %4344 = vrot.lane.b32.xlu0 %v2304, 56
  %v4345 = vpop.permute.xlu0 %4344
  %4346 = vrot.lane.b32.xlu0 %v4276, 56
  %v4347 = vpop.permute.xlu0 %4346
  %4348 = vrot.lane.b32.xlu0 %v2309, 56
  %v4349 = vpop.permute.xlu0 %4348
  %4350 = vrot.lane.b32.xlu0 %v4277, 56
  %v4351 = vpop.permute.xlu0 %4350
  %4352 = vrot.lane.b32.xlu0 %v2314, 56
  %v4353 = vpop.permute.xlu0 %4352
  %4354 = vrot.lane.b32.xlu0 %v4278, 56
  %v4355 = vpop.permute.xlu0 %4354
  %4356 = vrot.lane.b32.xlu0 %v2319, 56
  %v4357 = vpop.permute.xlu0 %4356
  %4358 = vrot.lane.b32.xlu0 %v4279, 56
  %v4359 = vpop.permute.xlu0 %4358
  %4360 = vrot.lane.b32.xlu0 %v2324, 56
  %v4361 = vpop.permute.xlu0 %4360
  %4362 = vrot.lane.b32.xlu0 %v4280, 56
  %v4363 = vpop.permute.xlu0 %4362
  %4364 = vrot.lane.b32.xlu0 %v2329, 56
  %v4365 = vpop.permute.xlu0 %4364
  %4366 = vrot.lane.b32.xlu0 %v4281, 56
  %v4367 = vpop.permute.xlu0 %4366
  %4368 = vrot.lane.b32.xlu0 %v2334, 56
  %v4369 = vpop.permute.xlu0 %4368
  %4370 = vrot.lane.b32.xlu0 %v4282, 56
  %v4371 = vpop.permute.xlu0 %4370
  %4372 = vrot.lane.b32.xlu0 %v2339, 56
  %v4373 = vpop.permute.xlu0 %4372
  %4374 = vrot.lane.b32.xlu0 %v4283, 56
  %v4375 = vpop.permute.xlu0 %4374
  %4376 = vrot.lane.b32.xlu0 %v2344, 56
  %v4377 = vpop.permute.xlu0 %4376
  %4378 = vrot.lane.b32.xlu0 %v4284, 56
  %v4379 = vpop.permute.xlu0 %4378
  %4380 = vrot.lane.b32.xlu0 %v2349, 56
  %v4381 = vpop.permute.xlu0 %4380
  %4382 = vrot.lane.b32.xlu0 %v4285, 56
  %v4383 = vpop.permute.xlu0 %4382
  %4384 = vrot.lane.b32.xlu0 %v2354, 56
  %v4385 = vpop.permute.xlu0 %4384
  %4386 = vrot.lane.b32.xlu0 %v4286, 56
  %v4387 = vpop.permute.xlu0 %4386
  %4388 = vrot.lane.b32.xlu0 %v2359, 56
  %v4389 = vpop.permute.xlu0 %4388
  %4390 = vrot.lane.b32.xlu0 %v4287, 56
  %v4391 = vpop.permute.xlu0 %4390
  %4392 = vrot.lane.b32.xlu0 %v2364, 56
  %v4393 = vpop.permute.xlu0 %4392
  %4394 = vrot.lane.b32.xlu0 %v4288, 56
  %v4395 = vpop.permute.xlu0 %4394
  %4396 = vrot.lane.b32.xlu0 %v2369, 56
  %v4397 = vpop.permute.xlu0 %4396
  %4398 = vrot.lane.b32.xlu0 %v4289, 56
  %v4399 = vpop.permute.xlu0 %4398
  %4400 = vrot.lane.b32.xlu0 %v2374, 56
  %v4401 = vpop.permute.xlu0 %4400
  %4402 = vrot.lane.b32.xlu0 %v4290, 56
  %v4403 = vpop.permute.xlu0 %4402
  %4404 = vrot.lane.b32.xlu0 %v2379, 56
  %v4405 = vpop.permute.xlu0 %4404
  %4406 = vrot.lane.b32.xlu0 %v4291, 56
  %v4407 = vpop.permute.xlu0 %4406
  %4408 = vrot.lane.b32.xlu0 %v2384, 56
  %v4409 = vpop.permute.xlu0 %4408
  %4410 = vrot.lane.b32.xlu0 %v4292, 56
  %v4411 = vpop.permute.xlu0 %4410
  %4412 = vrot.lane.b32.xlu0 %v2389, 56
  %v4413 = vpop.permute.xlu0 %4412
  %4414 = vrot.lane.b32.xlu0 %v4293, 56
  %v4415 = vpop.permute.xlu0 %4414
  %4416 = vrot.lane.b32.xlu0 %v2394, 56
  %v4417 = vpop.permute.xlu0 %4416
  %4418 = vrot.lane.b32.xlu0 %v4294, 56
  %v4419 = vpop.permute.xlu0 %4418
  %4420 = vrot.lane.b32.xlu0 %v2399, 56
  %v4421 = vpop.permute.xlu0 %4420
  %4422 = vrot.lane.b32.xlu0 %v4295, 56
  %v4423 = vpop.permute.xlu0 %4422
  %vm4488 = vcmask 31744
  %v4489 = vsel %vm4488, %v347, %v636
  %v4490 = vsel %vm4488, %v157, %v638
  %v4491 = vsel %vm4488, %v348, %v640
  %v4492 = vsel %vm4488, %v160, %v642
  %v4493 = vsel %vm4488, %v349, %v644
  %v4494 = vsel %vm4488, %v163, %v646
  %v4495 = vsel %vm4488, %v350, %v648
  %v4496 = vsel %vm4488, %v166, %v650
  %v4497 = vsel %vm4488, %v351, %v652
  %v4498 = vsel %vm4488, %v169, %v654
  %v4499 = vsel %vm4488, %v352, %v656
  %v4500 = vsel %vm4488, %v172, %v658
  %v4501 = vsel %vm4488, %v353, %v660
  %v4502 = vsel %vm4488, %v175, %v662
  %v4503 = vsel %vm4488, %v354, %v664
  %v4504 = vsel %vm4488, %v178, %v666
  %v4505 = vsel %vm4488, %v355, %v668
  %v4506 = vsel %vm4488, %v181, %v670
  %v4507 = vsel %vm4488, %v356, %v672
  %v4508 = vsel %vm4488, %v184, %v674
  %v4509 = vsel %vm4488, %v357, %v676
  %v4510 = vsel %vm4488, %v187, %v678
  %v4511 = vsel %vm4488, %v358, %v680
  %v4512 = vsel %vm4488, %v190, %v682
  %v4513 = vsel %vm4488, %v359, %v684
  %v4514 = vsel %vm4488, %v193, %v686
  %v4515 = vsel %vm4488, %v360, %v688
  %v4516 = vsel %vm4488, %v196, %v690
  %v4517 = vsel %vm4488, %v361, %v692
  %v4518 = vsel %vm4488, %v199, %v694
  %v4519 = vsel %vm4488, %v362, %v696
  %v4520 = vsel %vm4488, %v202, %v698
  %v4521 = vsel %vm4488, %v363, %v700
  %v4522 = vsel %vm4488, %v205, %v702
  %v4523 = vsel %vm4488, %v364, %v704
  %v4524 = vsel %vm4488, %v208, %v706
  %v4525 = vsel %vm4488, %v365, %v708
  %v4526 = vsel %vm4488, %v211, %v710
  %v4527 = vsel %vm4488, %v366, %v712
  %v4528 = vsel %vm4488, %v214, %v714
  %v4529 = vsel %vm4488, %v367, %v716
  %v4530 = vsel %vm4488, %v217, %v718
  %v4531 = vsel %vm4488, %v368, %v720
  %v4532 = vsel %vm4488, %v220, %v722
  %v4533 = vsel %vm4488, %v369, %v724
  %v4534 = vsel %vm4488, %v223, %v726
  %v4535 = vsel %vm4488, %v370, %v728
  %v4536 = vsel %vm4488, %v226, %v730
  %v4537 = vsel %vm4488, %v371, %v732
  %v4538 = vsel %vm4488, %v229, %v734
  %v4539 = vsel %vm4488, %v372, %v736
  %v4540 = vsel %vm4488, %v232, %v738
  %v4541 = vsel %vm4488, %v373, %v740
  %v4542 = vsel %vm4488, %v235, %v742
  %v4543 = vsel %vm4488, %v374, %v744
  %v4544 = vsel %vm4488, %v238, %v746
  %v4545 = vsel %vm4488, %v375, %v748
  %v4546 = vsel %vm4488, %v241, %v750
  %v4547 = vsel %vm4488, %v376, %v752
  %v4548 = vsel %vm4488, %v244, %v754
  %v4549 = vsel %vm4488, %v377, %v756
  %v4550 = vsel %vm4488, %v247, %v758
  %v4551 = vsel %vm4488, %v378, %v760
  %v4552 = vsel %vm4488, %v250, %v762
  %vm4553 = vcmask 64512
  %v4554 = vsel %vm4553, %v4489, %v989
  %v4555 = vsel %vm4553, %v4490, %v991
  %v4556 = vsel %vm4553, %v4491, %v993
  %v4557 = vsel %vm4553, %v4492, %v995
  %v4558 = vsel %vm4553, %v4493, %v997
  %v4559 = vsel %vm4553, %v4494, %v999
  %v4560 = vsel %vm4553, %v4495, %v1001
  %v4561 = vsel %vm4553, %v4496, %v1003
  %v4562 = vsel %vm4553, %v4497, %v1005
  %v4563 = vsel %vm4553, %v4498, %v1007
  %v4564 = vsel %vm4553, %v4499, %v1009
  %v4565 = vsel %vm4553, %v4500, %v1011
  %v4566 = vsel %vm4553, %v4501, %v1013
  %v4567 = vsel %vm4553, %v4502, %v1015
  %v4568 = vsel %vm4553, %v4503, %v1017
  %v4569 = vsel %vm4553, %v4504, %v1019
  %v4570 = vsel %vm4553, %v4505, %v1021
  %v4571 = vsel %vm4553, %v4506, %v1023
  %v4572 = vsel %vm4553, %v4507, %v1025
  %v4573 = vsel %vm4553, %v4508, %v1027
  %v4574 = vsel %vm4553, %v4509, %v1029
  %v4575 = vsel %vm4553, %v4510, %v1031
  %v4576 = vsel %vm4553, %v4511, %v1033
  %v4577 = vsel %vm4553, %v4512, %v1035
  %v4578 = vsel %vm4553, %v4513, %v1037
  %v4579 = vsel %vm4553, %v4514, %v1039
  %v4580 = vsel %vm4553, %v4515, %v1041
  %v4581 = vsel %vm4553, %v4516, %v1043
  %v4582 = vsel %vm4553, %v4517, %v1045
  %v4583 = vsel %vm4553, %v4518, %v1047
  %v4584 = vsel %vm4553, %v4519, %v1049
  %v4585 = vsel %vm4553, %v4520, %v1051
  %v4586 = vsel %vm4553, %v4521, %v1053
  %v4587 = vsel %vm4553, %v4522, %v1055
  %v4588 = vsel %vm4553, %v4523, %v1057
  %v4589 = vsel %vm4553, %v4524, %v1059
  %v4590 = vsel %vm4553, %v4525, %v1061
  %v4591 = vsel %vm4553, %v4526, %v1063
  %v4592 = vsel %vm4553, %v4527, %v1065
  %v4593 = vsel %vm4553, %v4528, %v1067
  %v4594 = vsel %vm4553, %v4529, %v1069
  %v4595 = vsel %vm4553, %v4530, %v1071
  %v4596 = vsel %vm4553, %v4531, %v1073
  %v4597 = vsel %vm4553, %v4532, %v1075
  %v4598 = vsel %vm4553, %v4533, %v1077
  %v4599 = vsel %vm4553, %v4534, %v1079
  %v4600 = vsel %vm4553, %v4535, %v1081
  %v4601 = vsel %vm4553, %v4536, %v1083
  %v4602 = vsel %vm4553, %v4537, %v1085
  %v4603 = vsel %vm4553, %v4538, %v1087
  %v4604 = vsel %vm4553, %v4539, %v1089
  %v4605 = vsel %vm4553, %v4540, %v1091
  %v4606 = vsel %vm4553, %v4541, %v1093
  %v4607 = vsel %vm4553, %v4542, %v1095
  %v4608 = vsel %vm4553, %v4543, %v1097
  %v4609 = vsel %vm4553, %v4544, %v1099
  %v4610 = vsel %vm4553, %v4545, %v1101
  %v4611 = vsel %vm4553, %v4546, %v1103
  %v4612 = vsel %vm4553, %v4547, %v1105
  %v4613 = vsel %vm4553, %v4548, %v1107
  %v4614 = vsel %vm4553, %v4549, %v1109
  %v4615 = vsel %vm4553, %v4550, %v1111
  %v4616 = vsel %vm4553, %v4551, %v1113
  %v4617 = vsel %vm4553, %v4552, %v1115
  %vm4618 = vcmask 97280
  %v4619 = vsel %vm4618, %v4554, %v1342
  %v4620 = vsel %vm4618, %v4555, %v1344
  %v4621 = vsel %vm4618, %v4556, %v1346
  %v4622 = vsel %vm4618, %v4557, %v1348
  %v4623 = vsel %vm4618, %v4558, %v1350
  %v4624 = vsel %vm4618, %v4559, %v1352
  %v4625 = vsel %vm4618, %v4560, %v1354
  %v4626 = vsel %vm4618, %v4561, %v1356
  %v4627 = vsel %vm4618, %v4562, %v1358
  %v4628 = vsel %vm4618, %v4563, %v1360
  %v4629 = vsel %vm4618, %v4564, %v1362
  %v4630 = vsel %vm4618, %v4565, %v1364
  %v4631 = vsel %vm4618, %v4566, %v1366
  %v4632 = vsel %vm4618, %v4567, %v1368
  %v4633 = vsel %vm4618, %v4568, %v1370
  %v4634 = vsel %vm4618, %v4569, %v1372
  %v4635 = vsel %vm4618, %v4570, %v1374
  %v4636 = vsel %vm4618, %v4571, %v1376
  %v4637 = vsel %vm4618, %v4572, %v1378
  %v4638 = vsel %vm4618, %v4573, %v1380
  %v4639 = vsel %vm4618, %v4574, %v1382
  %v4640 = vsel %vm4618, %v4575, %v1384
  %v4641 = vsel %vm4618, %v4576, %v1386
  %v4642 = vsel %vm4618, %v4577, %v1388
  %v4643 = vsel %vm4618, %v4578, %v1390
  %v4644 = vsel %vm4618, %v4579, %v1392
  %v4645 = vsel %vm4618, %v4580, %v1394
  %v4646 = vsel %vm4618, %v4581, %v1396
  %v4647 = vsel %vm4618, %v4582, %v1398
  %v4648 = vsel %vm4618, %v4583, %v1400
  %v4649 = vsel %vm4618, %v4584, %v1402
  %v4650 = vsel %vm4618, %v4585, %v1404
  %v4651 = vsel %vm4618, %v4586, %v1406
  %v4652 = vsel %vm4618, %v4587, %v1408
  %v4653 = vsel %vm4618, %v4588, %v1410
  %v4654 = vsel %vm4618, %v4589, %v1412
  %v4655 = vsel %vm4618, %v4590, %v1414
  %v4656 = vsel %vm4618, %v4591, %v1416
  %v4657 = vsel %vm4618, %v4592, %v1418
  %v4658 = vsel %vm4618, %v4593, %v1420
  %v4659 = vsel %vm4618, %v4594, %v1422
  %v4660 = vsel %vm4618, %v4595, %v1424
  %v4661 = vsel %vm4618, %v4596, %v1426
  %v4662 = vsel %vm4618, %v4597, %v1428
  %v4663 = vsel %vm4618, %v4598, %v1430
  %v4664 = vsel %vm4618, %v4599, %v1432
  %v4665 = vsel %vm4618, %v4600, %v1434
  %v4666 = vsel %vm4618, %v4601, %v1436
  %v4667 = vsel %vm4618, %v4602, %v1438
  %v4668 = vsel %vm4618, %v4603, %v1440
  %v4669 = vsel %vm4618, %v4604, %v1442
  %v4670 = vsel %vm4618, %v4605, %v1444
  %v4671 = vsel %vm4618, %v4606, %v1446
  %v4672 = vsel %vm4618, %v4607, %v1448
  %v4673 = vsel %vm4618, %v4608, %v1450
  %v4674 = vsel %vm4618, %v4609, %v1452
  %v4675 = vsel %vm4618, %v4610, %v1454
  %v4676 = vsel %vm4618, %v4611, %v1456
  %v4677 = vsel %vm4618, %v4612, %v1458
  %v4678 = vsel %vm4618, %v4613, %v1460
  %v4679 = vsel %vm4618, %v4614, %v1462
  %v4680 = vsel %vm4618, %v4615, %v1464
  %v4681 = vsel %vm4618, %v4616, %v1466
  %v4682 = vsel %vm4618, %v4617, %v1468
  %vm4683 = vcmask 130048
  %v4684 = vsel %vm4683, %v4619, %v1695
  %v4685 = vsel %vm4683, %v4620, %v1697
  %v4686 = vsel %vm4683, %v4621, %v1699
  %v4687 = vsel %vm4683, %v4622, %v1701
  %v4688 = vsel %vm4683, %v4623, %v1703
  %v4689 = vsel %vm4683, %v4624, %v1705
  %v4690 = vsel %vm4683, %v4625, %v1707
  %v4691 = vsel %vm4683, %v4626, %v1709
  %v4692 = vsel %vm4683, %v4627, %v1711
  %v4693 = vsel %vm4683, %v4628, %v1713
  %v4694 = vsel %vm4683, %v4629, %v1715
  %v4695 = vsel %vm4683, %v4630, %v1717
  %v4696 = vsel %vm4683, %v4631, %v1719
  %v4697 = vsel %vm4683, %v4632, %v1721
  %v4698 = vsel %vm4683, %v4633, %v1723
  %v4699 = vsel %vm4683, %v4634, %v1725
  %v4700 = vsel %vm4683, %v4635, %v1727
  %v4701 = vsel %vm4683, %v4636, %v1729
  %v4702 = vsel %vm4683, %v4637, %v1731
  %v4703 = vsel %vm4683, %v4638, %v1733
  %v4704 = vsel %vm4683, %v4639, %v1735
  %v4705 = vsel %vm4683, %v4640, %v1737
  %v4706 = vsel %vm4683, %v4641, %v1739
  %v4707 = vsel %vm4683, %v4642, %v1741
  %v4708 = vsel %vm4683, %v4643, %v1743
  %v4709 = vsel %vm4683, %v4644, %v1745
  %v4710 = vsel %vm4683, %v4645, %v1747
  %v4711 = vsel %vm4683, %v4646, %v1749
  %v4712 = vsel %vm4683, %v4647, %v1751
  %v4713 = vsel %vm4683, %v4648, %v1753
  %v4714 = vsel %vm4683, %v4649, %v1755
  %v4715 = vsel %vm4683, %v4650, %v1757
  %v4716 = vsel %vm4683, %v4651, %v1759
  %v4717 = vsel %vm4683, %v4652, %v1761
  %v4718 = vsel %vm4683, %v4653, %v1763
  %v4719 = vsel %vm4683, %v4654, %v1765
  %v4720 = vsel %vm4683, %v4655, %v1767
  %v4721 = vsel %vm4683, %v4656, %v1769
  %v4722 = vsel %vm4683, %v4657, %v1771
  %v4723 = vsel %vm4683, %v4658, %v1773
  %v4724 = vsel %vm4683, %v4659, %v1775
  %v4725 = vsel %vm4683, %v4660, %v1777
  %v4726 = vsel %vm4683, %v4661, %v1779
  %v4727 = vsel %vm4683, %v4662, %v1781
  %v4728 = vsel %vm4683, %v4663, %v1783
  %v4729 = vsel %vm4683, %v4664, %v1785
  %v4730 = vsel %vm4683, %v4665, %v1787
  %v4731 = vsel %vm4683, %v4666, %v1789
  %v4732 = vsel %vm4683, %v4667, %v1791
  %v4733 = vsel %vm4683, %v4668, %v1793
  %v4734 = vsel %vm4683, %v4669, %v1795
  %v4735 = vsel %vm4683, %v4670, %v1797
  %v4736 = vsel %vm4683, %v4671, %v1799
  %v4737 = vsel %vm4683, %v4672, %v1801
  %v4738 = vsel %vm4683, %v4673, %v1803
  %v4739 = vsel %vm4683, %v4674, %v1805
  %v4740 = vsel %vm4683, %v4675, %v1807
  %v4741 = vsel %vm4683, %v4676, %v1809
  %v4742 = vsel %vm4683, %v4677, %v1811
  %v4743 = vsel %vm4683, %v4678, %v1813
  %v4744 = vsel %vm4683, %v4679, %v1815
  %v4745 = vsel %vm4683, %v4680, %v1817
  %v4746 = vsel %vm4683, %v4681, %v1819
  %v4747 = vsel %vm4683, %v4682, %v1821
  %vm4748 = vcmask 162816
  %v4749 = vsel %vm4748, %v4684, %v2048
  %v4750 = vsel %vm4748, %v4685, %v2050
  %v4751 = vsel %vm4748, %v4686, %v2052
  %v4752 = vsel %vm4748, %v4687, %v2054
  %v4753 = vsel %vm4748, %v4688, %v2056
  %v4754 = vsel %vm4748, %v4689, %v2058
  %v4755 = vsel %vm4748, %v4690, %v2060
  %v4756 = vsel %vm4748, %v4691, %v2062
  %v4757 = vsel %vm4748, %v4692, %v2064
  %v4758 = vsel %vm4748, %v4693, %v2066
  %v4759 = vsel %vm4748, %v4694, %v2068
  %v4760 = vsel %vm4748, %v4695, %v2070
  %v4761 = vsel %vm4748, %v4696, %v2072
  %v4762 = vsel %vm4748, %v4697, %v2074
  %v4763 = vsel %vm4748, %v4698, %v2076
  %v4764 = vsel %vm4748, %v4699, %v2078
  %v4765 = vsel %vm4748, %v4700, %v2080
  %v4766 = vsel %vm4748, %v4701, %v2082
  %v4767 = vsel %vm4748, %v4702, %v2084
  %v4768 = vsel %vm4748, %v4703, %v2086
  %v4769 = vsel %vm4748, %v4704, %v2088
  %v4770 = vsel %vm4748, %v4705, %v2090
  %v4771 = vsel %vm4748, %v4706, %v2092
  %v4772 = vsel %vm4748, %v4707, %v2094
  %v4773 = vsel %vm4748, %v4708, %v2096
  %v4774 = vsel %vm4748, %v4709, %v2098
  %v4775 = vsel %vm4748, %v4710, %v2100
  %v4776 = vsel %vm4748, %v4711, %v2102
  %v4777 = vsel %vm4748, %v4712, %v2104
  %v4778 = vsel %vm4748, %v4713, %v2106
  %v4779 = vsel %vm4748, %v4714, %v2108
  %v4780 = vsel %vm4748, %v4715, %v2110
  %v4781 = vsel %vm4748, %v4716, %v2112
  %v4782 = vsel %vm4748, %v4717, %v2114
  %v4783 = vsel %vm4748, %v4718, %v2116
  %v4784 = vsel %vm4748, %v4719, %v2118
  %v4785 = vsel %vm4748, %v4720, %v2120
  %v4786 = vsel %vm4748, %v4721, %v2122
  %v4787 = vsel %vm4748, %v4722, %v2124
  %v4788 = vsel %vm4748, %v4723, %v2126
  %v4789 = vsel %vm4748, %v4724, %v2128
  %v4790 = vsel %vm4748, %v4725, %v2130
  %v4791 = vsel %vm4748, %v4726, %v2132
  %v4792 = vsel %vm4748, %v4727, %v2134
  %v4793 = vsel %vm4748, %v4728, %v2136
  %v4794 = vsel %vm4748, %v4729, %v2138
  %v4795 = vsel %vm4748, %v4730, %v2140
  %v4796 = vsel %vm4748, %v4731, %v2142
  %v4797 = vsel %vm4748, %v4732, %v2144
  %v4798 = vsel %vm4748, %v4733, %v2146
  %v4799 = vsel %vm4748, %v4734, %v2148
  %v4800 = vsel %vm4748, %v4735, %v2150
  %v4801 = vsel %vm4748, %v4736, %v2152
  %v4802 = vsel %vm4748, %v4737, %v2154
  %v4803 = vsel %vm4748, %v4738, %v2156
  %v4804 = vsel %vm4748, %v4739, %v2158
  %v4805 = vsel %vm4748, %v4740, %v2160
  %v4806 = vsel %vm4748, %v4741, %v2162
  %v4807 = vsel %vm4748, %v4742, %v2164
  %v4808 = vsel %vm4748, %v4743, %v2166
  %v4809 = vsel %vm4748, %v4744, %v2168
  %v4810 = vsel %vm4748, %v4745, %v2170
  %v4811 = vsel %vm4748, %v4746, %v2172
  %v4812 = vsel %vm4748, %v4747, %v2174
  %vm4813 = vcmask 195584
  %v4814 = vsel %vm4813, %v4749, %v2401
  %v4815 = vsel %vm4813, %v4750, %v2403
  %v4816 = vsel %vm4813, %v4751, %v2405
  %v4817 = vsel %vm4813, %v4752, %v2407
  %v4818 = vsel %vm4813, %v4753, %v2409
  %v4819 = vsel %vm4813, %v4754, %v2411
  %v4820 = vsel %vm4813, %v4755, %v2413
  %v4821 = vsel %vm4813, %v4756, %v2415
  %v4822 = vsel %vm4813, %v4757, %v2417
  %v4823 = vsel %vm4813, %v4758, %v2419
  %v4824 = vsel %vm4813, %v4759, %v2421
  %v4825 = vsel %vm4813, %v4760, %v2423
  %v4826 = vsel %vm4813, %v4761, %v2425
  %v4827 = vsel %vm4813, %v4762, %v2427
  %v4828 = vsel %vm4813, %v4763, %v2429
  %v4829 = vsel %vm4813, %v4764, %v2431
  %v4830 = vsel %vm4813, %v4765, %v2433
  %v4831 = vsel %vm4813, %v4766, %v2435
  %v4832 = vsel %vm4813, %v4767, %v2437
  %v4833 = vsel %vm4813, %v4768, %v2439
  %v4834 = vsel %vm4813, %v4769, %v2441
  %v4835 = vsel %vm4813, %v4770, %v2443
  %v4836 = vsel %vm4813, %v4771, %v2445
  %v4837 = vsel %vm4813, %v4772, %v2447
  %v4838 = vsel %vm4813, %v4773, %v2449
  %v4839 = vsel %vm4813, %v4774, %v2451
  %v4840 = vsel %vm4813, %v4775, %v2453
  %v4841 = vsel %vm4813, %v4776, %v2455
  %v4842 = vsel %vm4813, %v4777, %v2457
  %v4843 = vsel %vm4813, %v4778, %v2459
  %v4844 = vsel %vm4813, %v4779, %v2461
  %v4845 = vsel %vm4813, %v4780, %v2463
  %v4846 = vsel %vm4813, %v4781, %v2465
  %v4847 = vsel %vm4813, %v4782, %v2467
  %v4848 = vsel %vm4813, %v4783, %v2469
  %v4849 = vsel %vm4813, %v4784, %v2471
  %v4850 = vsel %vm4813, %v4785, %v2473
  %v4851 = vsel %vm4813, %v4786, %v2475
  %v4852 = vsel %vm4813, %v4787, %v2477
  %v4853 = vsel %vm4813, %v4788, %v2479
  %v4854 = vsel %vm4813, %v4789, %v2481
  %v4855 = vsel %vm4813, %v4790, %v2483
  %v4856 = vsel %vm4813, %v4791, %v2485
  %v4857 = vsel %vm4813, %v4792, %v2487
  %v4858 = vsel %vm4813, %v4793, %v2489
  %v4859 = vsel %vm4813, %v4794, %v2491
  %v4860 = vsel %vm4813, %v4795, %v2493
  %v4861 = vsel %vm4813, %v4796, %v2495
  %v4862 = vsel %vm4813, %v4797, %v2497
  %v4863 = vsel %vm4813, %v4798, %v2499
  %v4864 = vsel %vm4813, %v4799, %v2501
  %v4865 = vsel %vm4813, %v4800, %v2503
  %v4866 = vsel %vm4813, %v4801, %v2505
  %v4867 = vsel %vm4813, %v4802, %v2507
  %v4868 = vsel %vm4813, %v4803, %v2509
  %v4869 = vsel %vm4813, %v4804, %v2511
  %v4870 = vsel %vm4813, %v4805, %v2513
  %v4871 = vsel %vm4813, %v4806, %v2515
  %v4872 = vsel %vm4813, %v4807, %v2517
  %v4873 = vsel %vm4813, %v4808, %v2519
  %v4874 = vsel %vm4813, %v4809, %v2521
  %v4875 = vsel %vm4813, %v4810, %v2523
  %v4876 = vsel %vm4813, %v4811, %v2525
  %v4877 = vsel %vm4813, %v4812, %v2527
  %vm4878 = vcmask 228352
  %v4879 = vsel %vm4878, %v4814, %v2754
  %v4880 = vsel %vm4878, %v4815, %v2756
  %v4881 = vsel %vm4878, %v4816, %v2758
  %v4882 = vsel %vm4878, %v4817, %v2760
  %v4883 = vsel %vm4878, %v4818, %v2762
  %v4884 = vsel %vm4878, %v4819, %v2764
  %v4885 = vsel %vm4878, %v4820, %v2766
  %v4886 = vsel %vm4878, %v4821, %v2768
  %v4887 = vsel %vm4878, %v4822, %v2770
  %v4888 = vsel %vm4878, %v4823, %v2772
  %v4889 = vsel %vm4878, %v4824, %v2774
  %v4890 = vsel %vm4878, %v4825, %v2776
  %v4891 = vsel %vm4878, %v4826, %v2778
  %v4892 = vsel %vm4878, %v4827, %v2780
  %v4893 = vsel %vm4878, %v4828, %v2782
  %v4894 = vsel %vm4878, %v4829, %v2784
  %v4895 = vsel %vm4878, %v4830, %v2786
  %v4896 = vsel %vm4878, %v4831, %v2788
  %v4897 = vsel %vm4878, %v4832, %v2790
  %v4898 = vsel %vm4878, %v4833, %v2792
  %v4899 = vsel %vm4878, %v4834, %v2794
  %v4900 = vsel %vm4878, %v4835, %v2796
  %v4901 = vsel %vm4878, %v4836, %v2798
  %v4902 = vsel %vm4878, %v4837, %v2800
  %v4903 = vsel %vm4878, %v4838, %v2802
  %v4904 = vsel %vm4878, %v4839, %v2804
  %v4905 = vsel %vm4878, %v4840, %v2806
  %v4906 = vsel %vm4878, %v4841, %v2808
  %v4907 = vsel %vm4878, %v4842, %v2810
  %v4908 = vsel %vm4878, %v4843, %v2812
  %v4909 = vsel %vm4878, %v4844, %v2814
  %v4910 = vsel %vm4878, %v4845, %v2816
  %v4911 = vsel %vm4878, %v4846, %v2818
  %v4912 = vsel %vm4878, %v4847, %v2820
  %v4913 = vsel %vm4878, %v4848, %v2822
  %v4914 = vsel %vm4878, %v4849, %v2824
  %v4915 = vsel %vm4878, %v4850, %v2826
  %v4916 = vsel %vm4878, %v4851, %v2828
  %v4917 = vsel %vm4878, %v4852, %v2830
  %v4918 = vsel %vm4878, %v4853, %v2832
  %v4919 = vsel %vm4878, %v4854, %v2834
  %v4920 = vsel %vm4878, %v4855, %v2836
  %v4921 = vsel %vm4878, %v4856, %v2838
  %v4922 = vsel %vm4878, %v4857, %v2840
  %v4923 = vsel %vm4878, %v4858, %v2842
  %v4924 = vsel %vm4878, %v4859, %v2844
  %v4925 = vsel %vm4878, %v4860, %v2846
  %v4926 = vsel %vm4878, %v4861, %v2848
  %v4927 = vsel %vm4878, %v4862, %v2850
  %v4928 = vsel %vm4878, %v4863, %v2852
  %v4929 = vsel %vm4878, %v4864, %v2854
  %v4930 = vsel %vm4878, %v4865, %v2856
  %v4931 = vsel %vm4878, %v4866, %v2858
  %v4932 = vsel %vm4878, %v4867, %v2860
  %v4933 = vsel %vm4878, %v4868, %v2862
  %v4934 = vsel %vm4878, %v4869, %v2864
  %v4935 = vsel %vm4878, %v4870, %v2866
  %v4936 = vsel %vm4878, %v4871, %v2868
  %v4937 = vsel %vm4878, %v4872, %v2870
  %v4938 = vsel %vm4878, %v4873, %v2872
  %v4939 = vsel %vm4878, %v4874, %v2874
  %v4940 = vsel %vm4878, %v4875, %v2876
  %v4941 = vsel %vm4878, %v4876, %v2878
  %v4942 = vsel %vm4878, %v4877, %v2880
  %vm4943 = vcmask 261120
  %v4944 = vsel %vm4943, %v4879, %v2946
  %v4945 = vsel %vm4943, %v4880, %v2948
  %v4946 = vsel %vm4943, %v4881, %v2950
  %v4947 = vsel %vm4943, %v4882, %v2952
  %v4948 = vsel %vm4943, %v4883, %v2954
  %v4949 = vsel %vm4943, %v4884, %v2956
  %v4950 = vsel %vm4943, %v4885, %v2958
  %v4951 = vsel %vm4943, %v4886, %v2960
  %v4952 = vsel %vm4943, %v4887, %v2962
  %v4953 = vsel %vm4943, %v4888, %v2964
  %v4954 = vsel %vm4943, %v4889, %v2966
  %v4955 = vsel %vm4943, %v4890, %v2968
  %v4956 = vsel %vm4943, %v4891, %v2970
  %v4957 = vsel %vm4943, %v4892, %v2972
  %v4958 = vsel %vm4943, %v4893, %v2974
  %v4959 = vsel %vm4943, %v4894, %v2976
  %v4960 = vsel %vm4943, %v4895, %v2978
  %v4961 = vsel %vm4943, %v4896, %v2980
  %v4962 = vsel %vm4943, %v4897, %v2982
  %v4963 = vsel %vm4943, %v4898, %v2984
  %v4964 = vsel %vm4943, %v4899, %v2986
  %v4965 = vsel %vm4943, %v4900, %v2988
  %v4966 = vsel %vm4943, %v4901, %v2990
  %v4967 = vsel %vm4943, %v4902, %v2992
  %v4968 = vsel %vm4943, %v4903, %v2994
  %v4969 = vsel %vm4943, %v4904, %v2996
  %v4970 = vsel %vm4943, %v4905, %v2998
  %v4971 = vsel %vm4943, %v4906, %v3000
  %v4972 = vsel %vm4943, %v4907, %v3002
  %v4973 = vsel %vm4943, %v4908, %v3004
  %v4974 = vsel %vm4943, %v4909, %v3006
  %v4975 = vsel %vm4943, %v4910, %v3008
  %v4976 = vsel %vm4943, %v4911, %v3010
  %v4977 = vsel %vm4943, %v4912, %v3012
  %v4978 = vsel %vm4943, %v4913, %v3014
  %v4979 = vsel %vm4943, %v4914, %v3016
  %v4980 = vsel %vm4943, %v4915, %v3018
  %v4981 = vsel %vm4943, %v4916, %v3020
  %v4982 = vsel %vm4943, %v4917, %v3022
  %v4983 = vsel %vm4943, %v4918, %v3024
  %v4984 = vsel %vm4943, %v4919, %v3026
  %v4985 = vsel %vm4943, %v4920, %v3028
  %v4986 = vsel %vm4943, %v4921, %v3030
  %v4987 = vsel %vm4943, %v4922, %v3032
  %v4988 = vsel %vm4943, %v4923, %v3034
  %v4989 = vsel %vm4943, %v4924, %v3036
  %v4990 = vsel %vm4943, %v4925, %v3038
  %v4991 = vsel %vm4943, %v4926, %v3040
  %v4992 = vsel %vm4943, %v4927, %v3042
  %v4993 = vsel %vm4943, %v4928, %v3044
  %v4994 = vsel %vm4943, %v4929, %v3046
  %v4995 = vsel %vm4943, %v4930, %v3048
  %v4996 = vsel %vm4943, %v4931, %v3050
  %v4997 = vsel %vm4943, %v4932, %v3052
  %v4998 = vsel %vm4943, %v4933, %v3054
  %v4999 = vsel %vm4943, %v4934, %v3056
  %v5000 = vsel %vm4943, %v4935, %v3058
  %v5001 = vsel %vm4943, %v4936, %v3060
  %v5002 = vsel %vm4943, %v4937, %v3062
  %v5003 = vsel %vm4943, %v4938, %v3064
  %v5004 = vsel %vm4943, %v4939, %v3066
  %v5005 = vsel %vm4943, %v4940, %v3068
  %v5006 = vsel %vm4943, %v4941, %v3070
  %v5007 = vsel %vm4943, %v4942, %v3072
  %vm5008 = vcmask 293888
  %v5009 = vsel %vm5008, %v4944, %v3172
  %v5010 = vsel %vm5008, %v4945, %v3174
  %v5011 = vsel %vm5008, %v4946, %v3176
  %v5012 = vsel %vm5008, %v4947, %v3178
  %v5013 = vsel %vm5008, %v4948, %v3180
  %v5014 = vsel %vm5008, %v4949, %v3182
  %v5015 = vsel %vm5008, %v4950, %v3184
  %v5016 = vsel %vm5008, %v4951, %v3186
  %v5017 = vsel %vm5008, %v4952, %v3188
  %v5018 = vsel %vm5008, %v4953, %v3190
  %v5019 = vsel %vm5008, %v4954, %v3192
  %v5020 = vsel %vm5008, %v4955, %v3194
  %v5021 = vsel %vm5008, %v4956, %v3196
  %v5022 = vsel %vm5008, %v4957, %v3198
  %v5023 = vsel %vm5008, %v4958, %v3200
  %v5024 = vsel %vm5008, %v4959, %v3202
  %v5025 = vsel %vm5008, %v4960, %v3204
  %v5026 = vsel %vm5008, %v4961, %v3206
  %v5027 = vsel %vm5008, %v4962, %v3208
  %v5028 = vsel %vm5008, %v4963, %v3210
  %v5029 = vsel %vm5008, %v4964, %v3212
  %v5030 = vsel %vm5008, %v4965, %v3214
  %v5031 = vsel %vm5008, %v4966, %v3216
  %v5032 = vsel %vm5008, %v4967, %v3218
  %v5033 = vsel %vm5008, %v4968, %v3220
  %v5034 = vsel %vm5008, %v4969, %v3222
  %v5035 = vsel %vm5008, %v4970, %v3224
  %v5036 = vsel %vm5008, %v4971, %v3226
  %v5037 = vsel %vm5008, %v4972, %v3228
  %v5038 = vsel %vm5008, %v4973, %v3230
  %v5039 = vsel %vm5008, %v4974, %v3232
  %v5040 = vsel %vm5008, %v4975, %v3234
  %v5041 = vsel %vm5008, %v4976, %v3236
  %v5042 = vsel %vm5008, %v4977, %v3238
  %v5043 = vsel %vm5008, %v4978, %v3240
  %v5044 = vsel %vm5008, %v4979, %v3242
  %v5045 = vsel %vm5008, %v4980, %v3244
  %v5046 = vsel %vm5008, %v4981, %v3246
  %v5047 = vsel %vm5008, %v4982, %v3248
  %v5048 = vsel %vm5008, %v4983, %v3250
  %v5049 = vsel %vm5008, %v4984, %v3252
  %v5050 = vsel %vm5008, %v4985, %v3254
  %v5051 = vsel %vm5008, %v4986, %v3256
  %v5052 = vsel %vm5008, %v4987, %v3258
  %v5053 = vsel %vm5008, %v4988, %v3260
  %v5054 = vsel %vm5008, %v4989, %v3262
  %v5055 = vsel %vm5008, %v4990, %v3264
  %v5056 = vsel %vm5008, %v4991, %v3266
  %v5057 = vsel %vm5008, %v4992, %v3268
  %v5058 = vsel %vm5008, %v4993, %v3270
  %v5059 = vsel %vm5008, %v4994, %v3272
  %v5060 = vsel %vm5008, %v4995, %v3274
  %v5061 = vsel %vm5008, %v4996, %v3276
  %v5062 = vsel %vm5008, %v4997, %v3278
  %v5063 = vsel %vm5008, %v4998, %v3280
  %v5064 = vsel %vm5008, %v4999, %v3282
  %v5065 = vsel %vm5008, %v5000, %v3284
  %v5066 = vsel %vm5008, %v5001, %v3286
  %v5067 = vsel %vm5008, %v5002, %v3288
  %v5068 = vsel %vm5008, %v5003, %v3290
  %v5069 = vsel %vm5008, %v5004, %v3292
  %v5070 = vsel %vm5008, %v5005, %v3294
  %v5071 = vsel %vm5008, %v5006, %v3296
  %v5072 = vsel %vm5008, %v5007, %v3298
  %vm5073 = vcmask 326656
  %v5074 = vsel %vm5073, %v5009, %v3397
  %v5075 = vsel %vm5073, %v5010, %v3399
  %v5076 = vsel %vm5073, %v5011, %v3401
  %v5077 = vsel %vm5073, %v5012, %v3403
  %v5078 = vsel %vm5073, %v5013, %v3405
  %v5079 = vsel %vm5073, %v5014, %v3407
  %v5080 = vsel %vm5073, %v5015, %v3409
  %v5081 = vsel %vm5073, %v5016, %v3411
  %v5082 = vsel %vm5073, %v5017, %v3413
  %v5083 = vsel %vm5073, %v5018, %v3415
  %v5084 = vsel %vm5073, %v5019, %v3417
  %v5085 = vsel %vm5073, %v5020, %v3419
  %v5086 = vsel %vm5073, %v5021, %v3421
  %v5087 = vsel %vm5073, %v5022, %v3423
  %v5088 = vsel %vm5073, %v5023, %v3425
  %v5089 = vsel %vm5073, %v5024, %v3427
  %v5090 = vsel %vm5073, %v5025, %v3429
  %v5091 = vsel %vm5073, %v5026, %v3431
  %v5092 = vsel %vm5073, %v5027, %v3433
  %v5093 = vsel %vm5073, %v5028, %v3435
  %v5094 = vsel %vm5073, %v5029, %v3437
  %v5095 = vsel %vm5073, %v5030, %v3439
  %v5096 = vsel %vm5073, %v5031, %v3441
  %v5097 = vsel %vm5073, %v5032, %v3443
  %v5098 = vsel %vm5073, %v5033, %v3445
  %v5099 = vsel %vm5073, %v5034, %v3447
  %v5100 = vsel %vm5073, %v5035, %v3449
  %v5101 = vsel %vm5073, %v5036, %v3451
  %v5102 = vsel %vm5073, %v5037, %v3453
  %v5103 = vsel %vm5073, %v5038, %v3455
  %v5104 = vsel %vm5073, %v5039, %v3457
  %v5105 = vsel %vm5073, %v5040, %v3459
  %v5106 = vsel %vm5073, %v5041, %v3461
  %v5107 = vsel %vm5073, %v5042, %v3463
  %v5108 = vsel %vm5073, %v5043, %v3465
  %v5109 = vsel %vm5073, %v5044, %v3467
  %v5110 = vsel %vm5073, %v5045, %v3469
  %v5111 = vsel %vm5073, %v5046, %v3471
  %v5112 = vsel %vm5073, %v5047, %v3473
  %v5113 = vsel %vm5073, %v5048, %v3475
  %v5114 = vsel %vm5073, %v5049, %v3477
  %v5115 = vsel %vm5073, %v5050, %v3479
  %v5116 = vsel %vm5073, %v5051, %v3481
  %v5117 = vsel %vm5073, %v5052, %v3483
  %v5118 = vsel %vm5073, %v5053, %v3485
  %v5119 = vsel %vm5073, %v5054, %v3487
  %v5120 = vsel %vm5073, %v5055, %v3489
  %v5121 = vsel %vm5073, %v5056, %v3491
  %v5122 = vsel %vm5073, %v5057, %v3493
  %v5123 = vsel %vm5073, %v5058, %v3495
  %v5124 = vsel %vm5073, %v5059, %v3497
  %v5125 = vsel %vm5073, %v5060, %v3499
  %v5126 = vsel %vm5073, %v5061, %v3501
  %v5127 = vsel %vm5073, %v5062, %v3503
  %v5128 = vsel %vm5073, %v5063, %v3505
  %v5129 = vsel %vm5073, %v5064, %v3507
  %v5130 = vsel %vm5073, %v5065, %v3509
  %v5131 = vsel %vm5073, %v5066, %v3511
  %v5132 = vsel %vm5073, %v5067, %v3513
  %v5133 = vsel %vm5073, %v5068, %v3515
  %v5134 = vsel %vm5073, %v5069, %v3517
  %v5135 = vsel %vm5073, %v5070, %v3519
  %v5136 = vsel %vm5073, %v5071, %v3521
  %v5137 = vsel %vm5073, %v5072, %v3523
  %vm5138 = vcmask 359424
  %v5139 = vsel %vm5138, %v5074, %v3622
  %v5140 = vsel %vm5138, %v5075, %v3624
  %v5141 = vsel %vm5138, %v5076, %v3626
  %v5142 = vsel %vm5138, %v5077, %v3628
  %v5143 = vsel %vm5138, %v5078, %v3630
  %v5144 = vsel %vm5138, %v5079, %v3632
  %v5145 = vsel %vm5138, %v5080, %v3634
  %v5146 = vsel %vm5138, %v5081, %v3636
  %v5147 = vsel %vm5138, %v5082, %v3638
  %v5148 = vsel %vm5138, %v5083, %v3640
  %v5149 = vsel %vm5138, %v5084, %v3642
  %v5150 = vsel %vm5138, %v5085, %v3644
  %v5151 = vsel %vm5138, %v5086, %v3646
  %v5152 = vsel %vm5138, %v5087, %v3648
  %v5153 = vsel %vm5138, %v5088, %v3650
  %v5154 = vsel %vm5138, %v5089, %v3652
  %v5155 = vsel %vm5138, %v5090, %v3654
  %v5156 = vsel %vm5138, %v5091, %v3656
  %v5157 = vsel %vm5138, %v5092, %v3658
  %v5158 = vsel %vm5138, %v5093, %v3660
  %v5159 = vsel %vm5138, %v5094, %v3662
  %v5160 = vsel %vm5138, %v5095, %v3664
  %v5161 = vsel %vm5138, %v5096, %v3666
  %v5162 = vsel %vm5138, %v5097, %v3668
  %v5163 = vsel %vm5138, %v5098, %v3670
  %v5164 = vsel %vm5138, %v5099, %v3672
  %v5165 = vsel %vm5138, %v5100, %v3674
  %v5166 = vsel %vm5138, %v5101, %v3676
  %v5167 = vsel %vm5138, %v5102, %v3678
  %v5168 = vsel %vm5138, %v5103, %v3680
  %v5169 = vsel %vm5138, %v5104, %v3682
  %v5170 = vsel %vm5138, %v5105, %v3684
  %v5171 = vsel %vm5138, %v5106, %v3686
  %v5172 = vsel %vm5138, %v5107, %v3688
  %v5173 = vsel %vm5138, %v5108, %v3690
  %v5174 = vsel %vm5138, %v5109, %v3692
  %v5175 = vsel %vm5138, %v5110, %v3694
  %v5176 = vsel %vm5138, %v5111, %v3696
  %v5177 = vsel %vm5138, %v5112, %v3698
  %v5178 = vsel %vm5138, %v5113, %v3700
  %v5179 = vsel %vm5138, %v5114, %v3702
  %v5180 = vsel %vm5138, %v5115, %v3704
  %v5181 = vsel %vm5138, %v5116, %v3706
  %v5182 = vsel %vm5138, %v5117, %v3708
  %v5183 = vsel %vm5138, %v5118, %v3710
  %v5184 = vsel %vm5138, %v5119, %v3712
  %v5185 = vsel %vm5138, %v5120, %v3714
  %v5186 = vsel %vm5138, %v5121, %v3716
  %v5187 = vsel %vm5138, %v5122, %v3718
  %v5188 = vsel %vm5138, %v5123, %v3720
  %v5189 = vsel %vm5138, %v5124, %v3722
  %v5190 = vsel %vm5138, %v5125, %v3724
  %v5191 = vsel %vm5138, %v5126, %v3726
  %v5192 = vsel %vm5138, %v5127, %v3728
  %v5193 = vsel %vm5138, %v5128, %v3730
  %v5194 = vsel %vm5138, %v5129, %v3732
  %v5195 = vsel %vm5138, %v5130, %v3734
  %v5196 = vsel %vm5138, %v5131, %v3736
  %v5197 = vsel %vm5138, %v5132, %v3738
  %v5198 = vsel %vm5138, %v5133, %v3740
  %v5199 = vsel %vm5138, %v5134, %v3742
  %v5200 = vsel %vm5138, %v5135, %v3744
  %v5201 = vsel %vm5138, %v5136, %v3746
  %v5202 = vsel %vm5138, %v5137, %v3748
  %vm5203 = vcmask 392192
  %v5204 = vsel %vm5203, %v5139, %v3847
  %v5205 = vsel %vm5203, %v5140, %v3849
  %v5206 = vsel %vm5203, %v5141, %v3851
  %v5207 = vsel %vm5203, %v5142, %v3853
  %v5208 = vsel %vm5203, %v5143, %v3855
  %v5209 = vsel %vm5203, %v5144, %v3857
  %v5210 = vsel %vm5203, %v5145, %v3859
  %v5211 = vsel %vm5203, %v5146, %v3861
  %v5212 = vsel %vm5203, %v5147, %v3863
  %v5213 = vsel %vm5203, %v5148, %v3865
  %v5214 = vsel %vm5203, %v5149, %v3867
  %v5215 = vsel %vm5203, %v5150, %v3869
  %v5216 = vsel %vm5203, %v5151, %v3871
  %v5217 = vsel %vm5203, %v5152, %v3873
  %v5218 = vsel %vm5203, %v5153, %v3875
  %v5219 = vsel %vm5203, %v5154, %v3877
  %v5220 = vsel %vm5203, %v5155, %v3879
  %v5221 = vsel %vm5203, %v5156, %v3881
  %v5222 = vsel %vm5203, %v5157, %v3883
  %v5223 = vsel %vm5203, %v5158, %v3885
  %v5224 = vsel %vm5203, %v5159, %v3887
  %v5225 = vsel %vm5203, %v5160, %v3889
  %v5226 = vsel %vm5203, %v5161, %v3891
  %v5227 = vsel %vm5203, %v5162, %v3893
  %v5228 = vsel %vm5203, %v5163, %v3895
  %v5229 = vsel %vm5203, %v5164, %v3897
  %v5230 = vsel %vm5203, %v5165, %v3899
  %v5231 = vsel %vm5203, %v5166, %v3901
  %v5232 = vsel %vm5203, %v5167, %v3903
  %v5233 = vsel %vm5203, %v5168, %v3905
  %v5234 = vsel %vm5203, %v5169, %v3907
  %v5235 = vsel %vm5203, %v5170, %v3909
  %v5236 = vsel %vm5203, %v5171, %v3911
  %v5237 = vsel %vm5203, %v5172, %v3913
  %v5238 = vsel %vm5203, %v5173, %v3915
  %v5239 = vsel %vm5203, %v5174, %v3917
  %v5240 = vsel %vm5203, %v5175, %v3919
  %v5241 = vsel %vm5203, %v5176, %v3921
  %v5242 = vsel %vm5203, %v5177, %v3923
  %v5243 = vsel %vm5203, %v5178, %v3925
  %v5244 = vsel %vm5203, %v5179, %v3927
  %v5245 = vsel %vm5203, %v5180, %v3929
  %v5246 = vsel %vm5203, %v5181, %v3931
  %v5247 = vsel %vm5203, %v5182, %v3933
  %v5248 = vsel %vm5203, %v5183, %v3935
  %v5249 = vsel %vm5203, %v5184, %v3937
  %v5250 = vsel %vm5203, %v5185, %v3939
  %v5251 = vsel %vm5203, %v5186, %v3941
  %v5252 = vsel %vm5203, %v5187, %v3943
  %v5253 = vsel %vm5203, %v5188, %v3945
  %v5254 = vsel %vm5203, %v5189, %v3947
  %v5255 = vsel %vm5203, %v5190, %v3949
  %v5256 = vsel %vm5203, %v5191, %v3951
  %v5257 = vsel %vm5203, %v5192, %v3953
  %v5258 = vsel %vm5203, %v5193, %v3955
  %v5259 = vsel %vm5203, %v5194, %v3957
  %v5260 = vsel %vm5203, %v5195, %v3959
  %v5261 = vsel %vm5203, %v5196, %v3961
  %v5262 = vsel %vm5203, %v5197, %v3963
  %v5263 = vsel %vm5203, %v5198, %v3965
  %v5264 = vsel %vm5203, %v5199, %v3967
  %v5265 = vsel %vm5203, %v5200, %v3969
  %v5266 = vsel %vm5203, %v5201, %v3971
  %v5267 = vsel %vm5203, %v5202, %v3973
  %vm5268 = vcmask 424960
  %v5269 = vsel %vm5268, %v5204, %v4072
  %v5270 = vsel %vm5268, %v5205, %v4074
  %v5271 = vsel %vm5268, %v5206, %v4076
  %v5272 = vsel %vm5268, %v5207, %v4078
  %v5273 = vsel %vm5268, %v5208, %v4080
  %v5274 = vsel %vm5268, %v5209, %v4082
  %v5275 = vsel %vm5268, %v5210, %v4084
  %v5276 = vsel %vm5268, %v5211, %v4086
  %v5277 = vsel %vm5268, %v5212, %v4088
  %v5278 = vsel %vm5268, %v5213, %v4090
  %v5279 = vsel %vm5268, %v5214, %v4092
  %v5280 = vsel %vm5268, %v5215, %v4094
  %v5281 = vsel %vm5268, %v5216, %v4096
  %v5282 = vsel %vm5268, %v5217, %v4098
  %v5283 = vsel %vm5268, %v5218, %v4100
  %v5284 = vsel %vm5268, %v5219, %v4102
  %v5285 = vsel %vm5268, %v5220, %v4104
  %v5286 = vsel %vm5268, %v5221, %v4106
  %v5287 = vsel %vm5268, %v5222, %v4108
  %v5288 = vsel %vm5268, %v5223, %v4110
  %v5289 = vsel %vm5268, %v5224, %v4112
  %v5290 = vsel %vm5268, %v5225, %v4114
  %v5291 = vsel %vm5268, %v5226, %v4116
  %v5292 = vsel %vm5268, %v5227, %v4118
  %v5293 = vsel %vm5268, %v5228, %v4120
  %v5294 = vsel %vm5268, %v5229, %v4122
  %v5295 = vsel %vm5268, %v5230, %v4124
  %v5296 = vsel %vm5268, %v5231, %v4126
  %v5297 = vsel %vm5268, %v5232, %v4128
  %v5298 = vsel %vm5268, %v5233, %v4130
  %v5299 = vsel %vm5268, %v5234, %v4132
  %v5300 = vsel %vm5268, %v5235, %v4134
  %v5301 = vsel %vm5268, %v5236, %v4136
  %v5302 = vsel %vm5268, %v5237, %v4138
  %v5303 = vsel %vm5268, %v5238, %v4140
  %v5304 = vsel %vm5268, %v5239, %v4142
  %v5305 = vsel %vm5268, %v5240, %v4144
  %v5306 = vsel %vm5268, %v5241, %v4146
  %v5307 = vsel %vm5268, %v5242, %v4148
  %v5308 = vsel %vm5268, %v5243, %v4150
  %v5309 = vsel %vm5268, %v5244, %v4152
  %v5310 = vsel %vm5268, %v5245, %v4154
  %v5311 = vsel %vm5268, %v5246, %v4156
  %v5312 = vsel %vm5268, %v5247, %v4158
  %v5313 = vsel %vm5268, %v5248, %v4160
  %v5314 = vsel %vm5268, %v5249, %v4162
  %v5315 = vsel %vm5268, %v5250, %v4164
  %v5316 = vsel %vm5268, %v5251, %v4166
  %v5317 = vsel %vm5268, %v5252, %v4168
  %v5318 = vsel %vm5268, %v5253, %v4170
  %v5319 = vsel %vm5268, %v5254, %v4172
  %v5320 = vsel %vm5268, %v5255, %v4174
  %v5321 = vsel %vm5268, %v5256, %v4176
  %v5322 = vsel %vm5268, %v5257, %v4178
  %v5323 = vsel %vm5268, %v5258, %v4180
  %v5324 = vsel %vm5268, %v5259, %v4182
  %v5325 = vsel %vm5268, %v5260, %v4184
  %v5326 = vsel %vm5268, %v5261, %v4186
  %v5327 = vsel %vm5268, %v5262, %v4188
  %v5328 = vsel %vm5268, %v5263, %v4190
  %v5329 = vsel %vm5268, %v5264, %v4192
  %v5330 = vsel %vm5268, %v5265, %v4194
  %v5331 = vsel %vm5268, %v5266, %v4196
  %v5332 = vsel %vm5268, %v5267, %v4198
  %vm5333 = vcmask 457728
  %v5334 = vsel %vm5333, %v5269, %v4297
  %v5335 = vsel %vm5333, %v5270, %v4299
  %v5336 = vsel %vm5333, %v5271, %v4301
  %v5337 = vsel %vm5333, %v5272, %v4303
  %v5338 = vsel %vm5333, %v5273, %v4305
  %v5339 = vsel %vm5333, %v5274, %v4307
  %v5340 = vsel %vm5333, %v5275, %v4309
  %v5341 = vsel %vm5333, %v5276, %v4311
  %v5342 = vsel %vm5333, %v5277, %v4313
  %v5343 = vsel %vm5333, %v5278, %v4315
  %v5344 = vsel %vm5333, %v5279, %v4317
  %v5345 = vsel %vm5333, %v5280, %v4319
  %v5346 = vsel %vm5333, %v5281, %v4321
  %v5347 = vsel %vm5333, %v5282, %v4323
  %v5348 = vsel %vm5333, %v5283, %v4325
  %v5349 = vsel %vm5333, %v5284, %v4327
  %v5350 = vsel %vm5333, %v5285, %v4329
  %v5351 = vsel %vm5333, %v5286, %v4331
  %v5352 = vsel %vm5333, %v5287, %v4333
  %v5353 = vsel %vm5333, %v5288, %v4335
  %v5354 = vsel %vm5333, %v5289, %v4337
  %v5355 = vsel %vm5333, %v5290, %v4339
  %v5356 = vsel %vm5333, %v5291, %v4341
  %v5357 = vsel %vm5333, %v5292, %v4343
  %v5358 = vsel %vm5333, %v5293, %v4345
  %v5359 = vsel %vm5333, %v5294, %v4347
  %v5360 = vsel %vm5333, %v5295, %v4349
  %v5361 = vsel %vm5333, %v5296, %v4351
  %v5362 = vsel %vm5333, %v5297, %v4353
  %v5363 = vsel %vm5333, %v5298, %v4355
  %v5364 = vsel %vm5333, %v5299, %v4357
  %v5365 = vsel %vm5333, %v5300, %v4359
  %v5366 = vsel %vm5333, %v5301, %v4361
  %v5367 = vsel %vm5333, %v5302, %v4363
  %v5368 = vsel %vm5333, %v5303, %v4365
  %v5369 = vsel %vm5333, %v5304, %v4367
  %v5370 = vsel %vm5333, %v5305, %v4369
  %v5371 = vsel %vm5333, %v5306, %v4371
  %v5372 = vsel %vm5333, %v5307, %v4373
  %v5373 = vsel %vm5333, %v5308, %v4375
  %v5374 = vsel %vm5333, %v5309, %v4377
  %v5375 = vsel %vm5333, %v5310, %v4379
  %v5376 = vsel %vm5333, %v5311, %v4381
  %v5377 = vsel %vm5333, %v5312, %v4383
  %v5378 = vsel %vm5333, %v5313, %v4385
  %v5379 = vsel %vm5333, %v5314, %v4387
  %v5380 = vsel %vm5333, %v5315, %v4389
  %v5381 = vsel %vm5333, %v5316, %v4391
  %v5382 = vsel %vm5333, %v5317, %v4393
  %v5383 = vsel %vm5333, %v5318, %v4395
  %v5384 = vsel %vm5333, %v5319, %v4397
  %v5385 = vsel %vm5333, %v5320, %v4399
  %v5386 = vsel %vm5333, %v5321, %v4401
  %v5387 = vsel %vm5333, %v5322, %v4403
  %v5388 = vsel %vm5333, %v5323, %v4405
  %v5389 = vsel %vm5333, %v5324, %v4407
  %v5390 = vsel %vm5333, %v5325, %v4409
  %v5391 = vsel %vm5333, %v5326, %v4411
  %v5392 = vsel %vm5333, %v5327, %v4413
  %v5393 = vsel %vm5333, %v5328, %v4415
  %v5394 = vsel %vm5333, %v5329, %v4417
  %v5395 = vsel %vm5333, %v5330, %v4419
  %v5396 = vsel %vm5333, %v5331, %v4421
  %v5397 = vsel %vm5333, %v5332, %v4423
  %v5398 = vld [vmem:[%s1] sm:$0xff]
  %v5399 = vld [vmem:[%s1 + $0x8] sm:$0xff]
  %v5400 = vld [vmem:[%s1 + $0x10] sm:$0xff]
  %v5401 = vld [vmem:[%s1 + $0x18] sm:$0xff]
  %v5402 = vld [vmem:[%s1 + $0x20] sm:$0xff]
  %v5403 = vld [vmem:[%s1 + $0x28] sm:$0xff]
  %v5404 = vld [vmem:[%s1 + $0x30] sm:$0xff]
  %v5405 = vld [vmem:[%s1 + $0x38] sm:$0xf]
  %vm5406 = vcmask 490496
  %v5408 = vsel %vm5406, %v5334, 0
  %v5411 = vsel %vm5406, %v5335, 0
  %v5414 = vsel %vm5406, %v5336, 0
  %v5417 = vsel %vm5406, %v5337, 0
  %v5420 = vsel %vm5406, %v5338, 0
  %v5423 = vsel %vm5406, %v5339, 0
  %v5426 = vsel %vm5406, %v5340, 0
  %v5429 = vsel %vm5406, %v5341, 0
  %v5432 = vsel %vm5406, %v5342, 0
  %v5435 = vsel %vm5406, %v5343, 0
  %v5438 = vsel %vm5406, %v5344, 0
  %v5441 = vsel %vm5406, %v5345, 0
  %v5444 = vsel %vm5406, %v5346, 0
  %v5447 = vsel %vm5406, %v5347, 0
  %v5450 = vsel %vm5406, %v5348, 0
  %v5453 = vsel %vm5406, %v5349, 0
  %v5456 = vsel %vm5406, %v5350, 0
  %v5459 = vsel %vm5406, %v5351, 0
  %v5462 = vsel %vm5406, %v5352, 0
  %v5465 = vsel %vm5406, %v5353, 0
  %v5468 = vsel %vm5406, %v5354, 0
  %v5471 = vsel %vm5406, %v5355, 0
  %v5474 = vsel %vm5406, %v5356, 0
  %v5477 = vsel %vm5406, %v5357, 0
  %v5480 = vsel %vm5406, %v5358, 0
  %v5483 = vsel %vm5406, %v5359, 0
  %v5486 = vsel %vm5406, %v5360, 0
  %v5489 = vsel %vm5406, %v5361, 0
  %v5492 = vsel %vm5406, %v5362, 0
  %v5495 = vsel %vm5406, %v5363, 0
  %v5498 = vsel %vm5406, %v5364, 0
  %v5501 = vsel %vm5406, %v5365, 0
  %v5504 = vsel %vm5406, %v5366, 0
  %v5507 = vsel %vm5406, %v5367, 0
  %v5510 = vsel %vm5406, %v5368, 0
  %v5513 = vsel %vm5406, %v5369, 0
  %v5516 = vsel %vm5406, %v5370, 0
  %v5519 = vsel %vm5406, %v5371, 0
  %v5522 = vsel %vm5406, %v5372, 0
  %v5525 = vsel %vm5406, %v5373, 0
  %v5528 = vsel %vm5406, %v5374, 0
  %v5531 = vsel %vm5406, %v5375, 0
  %v5534 = vsel %vm5406, %v5376, 0
  %v5537 = vsel %vm5406, %v5377, 0
  %v5540 = vsel %vm5406, %v5378, 0
  %v5543 = vsel %vm5406, %v5379, 0
  %v5546 = vsel %vm5406, %v5380, 0
  %v5549 = vsel %vm5406, %v5381, 0
  %v5552 = vsel %vm5406, %v5382, 0
  %v5555 = vsel %vm5406, %v5383, 0
  %v5558 = vsel %vm5406, %v5384, 0
  %v5561 = vsel %vm5406, %v5385, 0
  %v5564 = vsel %vm5406, %v5386, 0
  %v5567 = vsel %vm5406, %v5387, 0
  %v5570 = vsel %vm5406, %v5388, 0
  %v5573 = vsel %vm5406, %v5389, 0
  %v5576 = vsel %vm5406, %v5390, 0
  %v5579 = vsel %vm5406, %v5391, 0
  %v5582 = vsel %vm5406, %v5392, 0
  %v5585 = vsel %vm5406, %v5393, 0
  %v5588 = vsel %vm5406, %v5394, 0
  %v5591 = vsel %vm5406, %v5395, 0
  %v5594 = vsel %vm5406, %v5396, 0
  %v5597 = vsel %vm5406, %v5397, 0
  %v5600 = vsel %vm1533, %v5405, 0
  %5602 = vmatpush.msra.mxu0 0.0
  %5603 = vmatpush.msra.mxu0 0.0
  %5604 = vmatpush.msra.mxu0 0.0
  %5605 = vmatpush.msra.mxu0 0.0
  %5606 = vmatpush.msra.mxu0 0.0
  %5607 = vmatpush.msra.mxu0 0.0
  %5608 = vmatpush.msra.mxu0 0.0
  %5609 = vmatpush.msra.mxu0 0.0
  %5610 = vmatpush.msra.mxu0 %v5600
  %5611 = vmatpush.msra.mxu0 %v5404
  %5612 = vmatpush.msra.mxu0 %v5403
  %5613 = vmatpush.msra.mxu0 %v5402
  %5614 = vmatpush.msra.mxu0 %v5401
  %5615 = vmatpush.msra.mxu0 %v5400
  %5616 = vmatpush.msra.mxu0 %v5399
  %5617 = vmatpush.msra.mxu0 %v5398
  %5618 = vmatmul.f32.gmra.mxu0 %v5408
  %v5619 = vpop.f32.mrf.mxu0
  %v5620 = vadd.f32 0.0, %v5619
  %5621 = vmatmul.f32.gmra.mxu0 %v5411
  %v5622 = vpop.f32.mrf.mxu0
  %v5623 = vadd.f32 0.0, %v5622
  %5624 = vmatmul.f32.gmra.mxu0 %v5414
  %v5625 = vpop.f32.mrf.mxu0
  %v5626 = vadd.f32 0.0, %v5625
  %5627 = vmatmul.f32.gmra.mxu0 %v5417
  %v5628 = vpop.f32.mrf.mxu0
  %v5629 = vadd.f32 0.0, %v5628
  %5630 = vmatmul.f32.gmra.mxu0 %v5420
  %v5631 = vpop.f32.mrf.mxu0
  %v5632 = vadd.f32 0.0, %v5631
  %5633 = vmatmul.f32.gmra.mxu0 %v5423
  %v5634 = vpop.f32.mrf.mxu0
  %v5635 = vadd.f32 0.0, %v5634
  %5636 = vmatmul.f32.gmra.mxu0 %v5426
  %v5637 = vpop.f32.mrf.mxu0
  %v5638 = vadd.f32 0.0, %v5637
  %5639 = vmatmul.f32.gmra.mxu0 %v5429
  %v5640 = vpop.f32.mrf.mxu0
  %v5641 = vadd.f32 0.0, %v5640
  %5642 = vmatmul.f32.gmra.mxu0 %v5432
  %v5643 = vpop.f32.mrf.mxu0
  %v5644 = vadd.f32 0.0, %v5643
  %5645 = vmatmul.f32.gmra.mxu0 %v5435
  %v5646 = vpop.f32.mrf.mxu0
  %v5647 = vadd.f32 0.0, %v5646
  %5648 = vmatmul.f32.gmra.mxu0 %v5438
  %v5649 = vpop.f32.mrf.mxu0
  %v5650 = vadd.f32 0.0, %v5649
  %5651 = vmatmul.f32.gmra.mxu0 %v5441
  %v5652 = vpop.f32.mrf.mxu0
  %v5653 = vadd.f32 0.0, %v5652
  %5654 = vmatmul.f32.gmra.mxu0 %v5444
  %v5655 = vpop.f32.mrf.mxu0
  %v5656 = vadd.f32 0.0, %v5655
  %5657 = vmatmul.f32.gmra.mxu0 %v5447
  %v5658 = vpop.f32.mrf.mxu0
  %v5659 = vadd.f32 0.0, %v5658
  %5660 = vmatmul.f32.gmra.mxu0 %v5450
  %v5661 = vpop.f32.mrf.mxu0
  %v5662 = vadd.f32 0.0, %v5661
  %5663 = vmatmul.f32.gmra.mxu0 %v5453
  %v5664 = vpop.f32.mrf.mxu0
  %v5665 = vadd.f32 0.0, %v5664
  %5666 = vmatmul.f32.gmra.mxu0 %v5456
  %v5667 = vpop.f32.mrf.mxu0
  %v5668 = vadd.f32 0.0, %v5667
  %5669 = vmatmul.f32.gmra.mxu0 %v5459
  %v5670 = vpop.f32.mrf.mxu0
  %v5671 = vadd.f32 0.0, %v5670
  %5672 = vmatmul.f32.gmra.mxu0 %v5462
  %v5673 = vpop.f32.mrf.mxu0
  %v5674 = vadd.f32 0.0, %v5673
  %5675 = vmatmul.f32.gmra.mxu0 %v5465
  %v5676 = vpop.f32.mrf.mxu0
  %v5677 = vadd.f32 0.0, %v5676
  %5678 = vmatmul.f32.gmra.mxu0 %v5468
  %v5679 = vpop.f32.mrf.mxu0
  %v5680 = vadd.f32 0.0, %v5679
  %5681 = vmatmul.f32.gmra.mxu0 %v5471
  %v5682 = vpop.f32.mrf.mxu0
  %v5683 = vadd.f32 0.0, %v5682
  %5684 = vmatmul.f32.gmra.mxu0 %v5474
  %v5685 = vpop.f32.mrf.mxu0
  %v5686 = vadd.f32 0.0, %v5685
  %5687 = vmatmul.f32.gmra.mxu0 %v5477
  %v5688 = vpop.f32.mrf.mxu0
  %v5689 = vadd.f32 0.0, %v5688
  %5690 = vmatmul.f32.gmra.mxu0 %v5480
  %v5691 = vpop.f32.mrf.mxu0
  %v5692 = vadd.f32 0.0, %v5691
  %5693 = vmatmul.f32.gmra.mxu0 %v5483
  %v5694 = vpop.f32.mrf.mxu0
  %v5695 = vadd.f32 0.0, %v5694
  %5696 = vmatmul.f32.gmra.mxu0 %v5486
  %v5697 = vpop.f32.mrf.mxu0
  %v5698 = vadd.f32 0.0, %v5697
  %5699 = vmatmul.f32.gmra.mxu0 %v5489
  %v5700 = vpop.f32.mrf.mxu0
  %v5701 = vadd.f32 0.0, %v5700
  %5702 = vmatmul.f32.gmra.mxu0 %v5492
  %v5703 = vpop.f32.mrf.mxu0
  %v5704 = vadd.f32 0.0, %v5703
  %5705 = vmatmul.f32.gmra.mxu0 %v5495
  %v5706 = vpop.f32.mrf.mxu0
  %v5707 = vadd.f32 0.0, %v5706
  %5708 = vmatmul.f32.gmra.mxu0 %v5498
  %v5709 = vpop.f32.mrf.mxu0
  %v5710 = vadd.f32 0.0, %v5709
  %5711 = vmatmul.f32.gmra.mxu0 %v5501
  %v5712 = vpop.f32.mrf.mxu0
  %v5713 = vadd.f32 0.0, %v5712
  %5714 = vmatmul.f32.gmra.mxu0 %v5504
  %v5715 = vpop.f32.mrf.mxu0
  %v5716 = vadd.f32 0.0, %v5715
  %5717 = vmatmul.f32.gmra.mxu0 %v5507
  %v5718 = vpop.f32.mrf.mxu0
  %v5719 = vadd.f32 0.0, %v5718
  %5720 = vmatmul.f32.gmra.mxu0 %v5510
  %v5721 = vpop.f32.mrf.mxu0
  %v5722 = vadd.f32 0.0, %v5721
  %5723 = vmatmul.f32.gmra.mxu0 %v5513
  %v5724 = vpop.f32.mrf.mxu0
  %v5725 = vadd.f32 0.0, %v5724
  %5726 = vmatmul.f32.gmra.mxu0 %v5516
  %v5727 = vpop.f32.mrf.mxu0
  %v5728 = vadd.f32 0.0, %v5727
  %5729 = vmatmul.f32.gmra.mxu0 %v5519
  %v5730 = vpop.f32.mrf.mxu0
  %v5731 = vadd.f32 0.0, %v5730
  %5732 = vmatmul.f32.gmra.mxu0 %v5522
  %v5733 = vpop.f32.mrf.mxu0
  %v5734 = vadd.f32 0.0, %v5733
  %5735 = vmatmul.f32.gmra.mxu0 %v5525
  %v5736 = vpop.f32.mrf.mxu0
  %v5737 = vadd.f32 0.0, %v5736
  %5738 = vmatmul.f32.gmra.mxu0 %v5528
  %v5739 = vpop.f32.mrf.mxu0
  %v5740 = vadd.f32 0.0, %v5739
  %5741 = vmatmul.f32.gmra.mxu0 %v5531
  %v5742 = vpop.f32.mrf.mxu0
  %v5743 = vadd.f32 0.0, %v5742
  %5744 = vmatmul.f32.gmra.mxu0 %v5534
  %v5745 = vpop.f32.mrf.mxu0
  %v5746 = vadd.f32 0.0, %v5745
  %5747 = vmatmul.f32.gmra.mxu0 %v5537
  %v5748 = vpop.f32.mrf.mxu0
  %v5749 = vadd.f32 0.0, %v5748
  %5750 = vmatmul.f32.gmra.mxu0 %v5540
  %v5751 = vpop.f32.mrf.mxu0
  %v5752 = vadd.f32 0.0, %v5751
  %5753 = vmatmul.f32.gmra.mxu0 %v5543
  %v5754 = vpop.f32.mrf.mxu0
  %v5755 = vadd.f32 0.0, %v5754
  %5756 = vmatmul.f32.gmra.mxu0 %v5546
  %v5757 = vpop.f32.mrf.mxu0
  %v5758 = vadd.f32 0.0, %v5757
  %5759 = vmatmul.f32.gmra.mxu0 %v5549
  %v5760 = vpop.f32.mrf.mxu0
  %v5761 = vadd.f32 0.0, %v5760
  %5762 = vmatmul.f32.gmra.mxu0 %v5552
  %v5763 = vpop.f32.mrf.mxu0
  %v5764 = vadd.f32 0.0, %v5763
  %5765 = vmatmul.f32.gmra.mxu0 %v5555
  %v5766 = vpop.f32.mrf.mxu0
  %v5767 = vadd.f32 0.0, %v5766
  %5768 = vmatmul.f32.gmra.mxu0 %v5558
  %v5769 = vpop.f32.mrf.mxu0
  %v5770 = vadd.f32 0.0, %v5769
  %5771 = vmatmul.f32.gmra.mxu0 %v5561
  %v5772 = vpop.f32.mrf.mxu0
  %v5773 = vadd.f32 0.0, %v5772
  %5774 = vmatmul.f32.gmra.mxu0 %v5564
  %v5775 = vpop.f32.mrf.mxu0
  %v5776 = vadd.f32 0.0, %v5775
  %5777 = vmatmul.f32.gmra.mxu0 %v5567
  %v5778 = vpop.f32.mrf.mxu0
  %v5779 = vadd.f32 0.0, %v5778
  %5780 = vmatmul.f32.gmra.mxu0 %v5570
  %v5781 = vpop.f32.mrf.mxu0
  %v5782 = vadd.f32 0.0, %v5781
  %5783 = vmatmul.f32.gmra.mxu0 %v5573
  %v5784 = vpop.f32.mrf.mxu0
  %v5785 = vadd.f32 0.0, %v5784
  %5786 = vmatmul.f32.gmra.mxu0 %v5576
  %v5787 = vpop.f32.mrf.mxu0
  %v5788 = vadd.f32 0.0, %v5787
  %5789 = vmatmul.f32.gmra.mxu0 %v5579
  %v5790 = vpop.f32.mrf.mxu0
  %v5791 = vadd.f32 0.0, %v5790
  %5792 = vmatmul.f32.gmra.mxu0 %v5582
  %v5793 = vpop.f32.mrf.mxu0
  %v5794 = vadd.f32 0.0, %v5793
  %5795 = vmatmul.f32.gmra.mxu0 %v5585
  %v5796 = vpop.f32.mrf.mxu0
  %v5797 = vadd.f32 0.0, %v5796
  %5798 = vmatmul.f32.gmra.mxu0 %v5588
  %v5799 = vpop.f32.mrf.mxu0
  %v5800 = vadd.f32 0.0, %v5799
  %5801 = vmatmul.f32.gmra.mxu0 %v5591
  %v5802 = vpop.f32.mrf.mxu0
  %v5803 = vadd.f32 0.0, %v5802
  %5804 = vmatmul.f32.gmra.mxu0 %v5594
  %v5805 = vpop.f32.mrf.mxu0
  %v5806 = vadd.f32 0.0, %v5805
  %5807 = vmatmul.f32.gmra.mxu0 %v5597
  %v5808 = vpop.f32.mrf.mxu0
  %v5809 = vadd.f32 0.0, %v5808
  %5810 = vdwg.mxu0
  %v5811 = vld [vmem:[%s3] sm:$0x1]
  %v5813 = vperm.slane %v5811, 0
  %v5815 = vmul.f32 %v5620, %v5813
  %v5816 = vmul.f32 %v5623, %v5813
  %v5817 = vmul.f32 %v5626, %v5813
  %v5818 = vmul.f32 %v5629, %v5813
  %v5819 = vmul.f32 %v5632, %v5813
  %v5820 = vmul.f32 %v5635, %v5813
  %v5821 = vmul.f32 %v5638, %v5813
  %v5822 = vmul.f32 %v5641, %v5813
  %v5823 = vmul.f32 %v5644, %v5813
  %v5824 = vmul.f32 %v5647, %v5813
  %v5825 = vmul.f32 %v5650, %v5813
  %v5826 = vmul.f32 %v5653, %v5813
  %v5827 = vmul.f32 %v5656, %v5813
  %v5828 = vmul.f32 %v5659, %v5813
  %v5829 = vmul.f32 %v5662, %v5813
  %v5830 = vmul.f32 %v5665, %v5813
  %v5831 = vmul.f32 %v5668, %v5813
  %v5832 = vmul.f32 %v5671, %v5813
  %v5833 = vmul.f32 %v5674, %v5813
  %v5834 = vmul.f32 %v5677, %v5813
  %v5835 = vmul.f32 %v5680, %v5813
  %v5836 = vmul.f32 %v5683, %v5813
  %v5837 = vmul.f32 %v5686, %v5813
  %v5838 = vmul.f32 %v5689, %v5813
  %v5839 = vmul.f32 %v5692, %v5813
  %v5840 = vmul.f32 %v5695, %v5813
  %v5841 = vmul.f32 %v5698, %v5813
  %v5842 = vmul.f32 %v5701, %v5813
  %v5843 = vmul.f32 %v5704, %v5813
  %v5844 = vmul.f32 %v5707, %v5813
  %v5845 = vmul.f32 %v5710, %v5813
  %v5846 = vmul.f32 %v5713, %v5813
  %v5847 = vmul.f32 %v5716, %v5813
  %v5848 = vmul.f32 %v5719, %v5813
  %v5849 = vmul.f32 %v5722, %v5813
  %v5850 = vmul.f32 %v5725, %v5813
  %v5851 = vmul.f32 %v5728, %v5813
  %v5852 = vmul.f32 %v5731, %v5813
  %v5853 = vmul.f32 %v5734, %v5813
  %v5854 = vmul.f32 %v5737, %v5813
  %v5855 = vmul.f32 %v5740, %v5813
  %v5856 = vmul.f32 %v5743, %v5813
  %v5857 = vmul.f32 %v5746, %v5813
  %v5858 = vmul.f32 %v5749, %v5813
  %v5859 = vmul.f32 %v5752, %v5813
  %v5860 = vmul.f32 %v5755, %v5813
  %v5861 = vmul.f32 %v5758, %v5813
  %v5862 = vmul.f32 %v5761, %v5813
  %v5863 = vmul.f32 %v5764, %v5813
  %v5864 = vmul.f32 %v5767, %v5813
  %v5865 = vmul.f32 %v5770, %v5813
  %v5866 = vmul.f32 %v5773, %v5813
  %v5867 = vmul.f32 %v5776, %v5813
  %v5868 = vmul.f32 %v5779, %v5813
  %v5869 = vmul.f32 %v5782, %v5813
  %v5870 = vmul.f32 %v5785, %v5813
  %v5871 = vmul.f32 %v5788, %v5813
  %v5872 = vmul.f32 %v5791, %v5813
  %v5873 = vmul.f32 %v5794, %v5813
  %v5874 = vmul.f32 %v5797, %v5813
  %v5875 = vmul.f32 %v5800, %v5813
  %v5876 = vmul.f32 %v5803, %v5813
  %v5877 = vmul.f32 %v5806, %v5813
  %v5878 = vmul.f32 %v5809, %v5813
  %v5879 = vld [vmem:[%s4] sm:$0x1]
  %v5881 = vperm.slane %v5879, 0
  %v5883 = vadd.f32 %v5815, %v5881
  %v5884 = vadd.f32 %v5816, %v5881
  %v5885 = vadd.f32 %v5817, %v5881
  %v5886 = vadd.f32 %v5818, %v5881
  %v5887 = vadd.f32 %v5819, %v5881
  %v5888 = vadd.f32 %v5820, %v5881
  %v5889 = vadd.f32 %v5821, %v5881
  %v5890 = vadd.f32 %v5822, %v5881
  %v5891 = vadd.f32 %v5823, %v5881
  %v5892 = vadd.f32 %v5824, %v5881
  %v5893 = vadd.f32 %v5825, %v5881
  %v5894 = vadd.f32 %v5826, %v5881
  %v5895 = vadd.f32 %v5827, %v5881
  %v5896 = vadd.f32 %v5828, %v5881
  %v5897 = vadd.f32 %v5829, %v5881
  %v5898 = vadd.f32 %v5830, %v5881
  %v5899 = vadd.f32 %v5831, %v5881
  %v5900 = vadd.f32 %v5832, %v5881
  %v5901 = vadd.f32 %v5833, %v5881
  %v5902 = vadd.f32 %v5834, %v5881
  %v5903 = vadd.f32 %v5835, %v5881
  %v5904 = vadd.f32 %v5836, %v5881
  %v5905 = vadd.f32 %v5837, %v5881
  %v5906 = vadd.f32 %v5838, %v5881
  %v5907 = vadd.f32 %v5839, %v5881
  %v5908 = vadd.f32 %v5840, %v5881
  %v5909 = vadd.f32 %v5841, %v5881
  %v5910 = vadd.f32 %v5842, %v5881
  %v5911 = vadd.f32 %v5843, %v5881
  %v5912 = vadd.f32 %v5844, %v5881
  %v5913 = vadd.f32 %v5845, %v5881
  %v5914 = vadd.f32 %v5846, %v5881
  %v5915 = vadd.f32 %v5847, %v5881
  %v5916 = vadd.f32 %v5848, %v5881
  %v5917 = vadd.f32 %v5849, %v5881
  %v5918 = vadd.f32 %v5850, %v5881
  %v5919 = vadd.f32 %v5851, %v5881
  %v5920 = vadd.f32 %v5852, %v5881
  %v5921 = vadd.f32 %v5853, %v5881
  %v5922 = vadd.f32 %v5854, %v5881
  %v5923 = vadd.f32 %v5855, %v5881
  %v5924 = vadd.f32 %v5856, %v5881
  %v5925 = vadd.f32 %v5857, %v5881
  %v5926 = vadd.f32 %v5858, %v5881
  %v5927 = vadd.f32 %v5859, %v5881
  %v5928 = vadd.f32 %v5860, %v5881
  %v5929 = vadd.f32 %v5861, %v5881
  %v5930 = vadd.f32 %v5862, %v5881
  %v5931 = vadd.f32 %v5863, %v5881
  %v5932 = vadd.f32 %v5864, %v5881
  %v5933 = vadd.f32 %v5865, %v5881
  %v5934 = vadd.f32 %v5866, %v5881
  %v5935 = vadd.f32 %v5867, %v5881
  %v5936 = vadd.f32 %v5868, %v5881
  %v5937 = vadd.f32 %v5869, %v5881
  %v5938 = vadd.f32 %v5870, %v5881
  %v5939 = vadd.f32 %v5871, %v5881
  %v5940 = vadd.f32 %v5872, %v5881
  %v5941 = vadd.f32 %v5873, %v5881
  %v5942 = vadd.f32 %v5874, %v5881
  %v5943 = vadd.f32 %v5875, %v5881
  %v5944 = vadd.f32 %v5876, %v5881
  %v5945 = vadd.f32 %v5877, %v5881
  %v5946 = vadd.f32 %v5878, %v5881
  %v5947 = vmax.f32 %v5883, 0.0
  %v5948 = vmax.f32 %v5884, 0.0
  %v5949 = vmax.f32 %v5885, 0.0
  %v5950 = vmax.f32 %v5886, 0.0
  %v5951 = vmax.f32 %v5887, 0.0
  %v5952 = vmax.f32 %v5888, 0.0
  %v5953 = vmax.f32 %v5889, 0.0
  %v5954 = vmax.f32 %v5890, 0.0
  %v5955 = vmax.f32 %v5891, 0.0
  %v5956 = vmax.f32 %v5892, 0.0
  %v5957 = vmax.f32 %v5893, 0.0
  %v5958 = vmax.f32 %v5894, 0.0
  %v5959 = vmax.f32 %v5895, 0.0
  %v5960 = vmax.f32 %v5896, 0.0
  %v5961 = vmax.f32 %v5897, 0.0
  %v5962 = vmax.f32 %v5898, 0.0
  %v5963 = vmax.f32 %v5899, 0.0
  %v5964 = vmax.f32 %v5900, 0.0
  %v5965 = vmax.f32 %v5901, 0.0
  %v5966 = vmax.f32 %v5902, 0.0
  %v5967 = vmax.f32 %v5903, 0.0
  %v5968 = vmax.f32 %v5904, 0.0
  %v5969 = vmax.f32 %v5905, 0.0
  %v5970 = vmax.f32 %v5906, 0.0
  %v5971 = vmax.f32 %v5907, 0.0
  %v5972 = vmax.f32 %v5908, 0.0
  %v5973 = vmax.f32 %v5909, 0.0
  %v5974 = vmax.f32 %v5910, 0.0
  %v5975 = vmax.f32 %v5911, 0.0
  %v5976 = vmax.f32 %v5912, 0.0
  %v5977 = vmax.f32 %v5913, 0.0
  %v5978 = vmax.f32 %v5914, 0.0
  %v5979 = vmax.f32 %v5915, 0.0
  %v5980 = vmax.f32 %v5916, 0.0
  %v5981 = vmax.f32 %v5917, 0.0
  %v5982 = vmax.f32 %v5918, 0.0
  %v5983 = vmax.f32 %v5919, 0.0
  %v5984 = vmax.f32 %v5920, 0.0
  %v5985 = vmax.f32 %v5921, 0.0
  %v5986 = vmax.f32 %v5922, 0.0
  %v5987 = vmax.f32 %v5923, 0.0
  %v5988 = vmax.f32 %v5924, 0.0
  %v5989 = vmax.f32 %v5925, 0.0
  %v5990 = vmax.f32 %v5926, 0.0
  %v5991 = vmax.f32 %v5927, 0.0
  %v5992 = vmax.f32 %v5928, 0.0
  %v5993 = vmax.f32 %v5929, 0.0
  %v5994 = vmax.f32 %v5930, 0.0
  %v5995 = vmax.f32 %v5931, 0.0
  %v5996 = vmax.f32 %v5932, 0.0
  %v5997 = vmax.f32 %v5933, 0.0
  %v5998 = vmax.f32 %v5934, 0.0
  %v5999 = vmax.f32 %v5935, 0.0
  %v6000 = vmax.f32 %v5936, 0.0
  %v6001 = vmax.f32 %v5937, 0.0
  %v6002 = vmax.f32 %v5938, 0.0
  %v6003 = vmax.f32 %v5939, 0.0
  %v6004 = vmax.f32 %v5940, 0.0
  %v6005 = vmax.f32 %v5941, 0.0
  %v6006 = vmax.f32 %v5942, 0.0
  %v6007 = vmax.f32 %v5943, 0.0
  %v6008 = vmax.f32 %v5944, 0.0
  %v6009 = vmax.f32 %v5945, 0.0
  %v6010 = vmax.f32 %v5946, 0.0
  %v6075 = vrot.slane %v5947, 1
  %v6076 = vrot.slane %v5948, 1
  %v6077 = vsel %vm154, %v6075, %v6076
  %v6078 = vrot.slane %v5949, 1
  %v6079 = vrot.slane %v5950, 1
  %v6080 = vsel %vm154, %v6078, %v6079
  %v6081 = vrot.slane %v5951, 1
  %v6082 = vrot.slane %v5952, 1
  %v6083 = vsel %vm154, %v6081, %v6082
  %v6084 = vrot.slane %v5953, 1
  %v6085 = vrot.slane %v5954, 1
  %v6086 = vsel %vm154, %v6084, %v6085
  %v6087 = vrot.slane %v5955, 1
  %v6088 = vrot.slane %v5956, 1
  %v6089 = vsel %vm154, %v6087, %v6088
  %v6090 = vrot.slane %v5957, 1
  %v6091 = vrot.slane %v5958, 1
  %v6092 = vsel %vm154, %v6090, %v6091
  %v6093 = vrot.slane %v5959, 1
  %v6094 = vrot.slane %v5960, 1
  %v6095 = vsel %vm154, %v6093, %v6094
  %v6096 = vrot.slane %v5961, 1
  %v6097 = vrot.slane %v5962, 1
  %v6098 = vsel %vm154, %v6096, %v6097
  %v6099 = vrot.slane %v5963, 1
  %v6100 = vrot.slane %v5964, 1
  %v6101 = vsel %vm154, %v6099, %v6100
  %v6102 = vrot.slane %v5965, 1
  %v6103 = vrot.slane %v5966, 1
  %v6104 = vsel %vm154, %v6102, %v6103
  %v6105 = vrot.slane %v5967, 1
  %v6106 = vrot.slane %v5968, 1
  %v6107 = vsel %vm154, %v6105, %v6106
  %v6108 = vrot.slane %v5969, 1
  %v6109 = vrot.slane %v5970, 1
  %v6110 = vsel %vm154, %v6108, %v6109
  %v6111 = vrot.slane %v5971, 1
  %v6112 = vrot.slane %v5972, 1
  %v6113 = vsel %vm154, %v6111, %v6112
  %v6114 = vrot.slane %v5973, 1
  %v6115 = vrot.slane %v5974, 1
  %v6116 = vsel %vm154, %v6114, %v6115
  %v6117 = vrot.slane %v5975, 1
  %v6118 = vrot.slane %v5976, 1
  %v6119 = vsel %vm154, %v6117, %v6118
  %v6120 = vrot.slane %v5977, 1
  %v6121 = vrot.slane %v5978, 1
  %v6122 = vsel %vm154, %v6120, %v6121
  %v6123 = vrot.slane %v5979, 1
  %v6124 = vrot.slane %v5980, 1
  %v6125 = vsel %vm154, %v6123, %v6124
  %v6126 = vrot.slane %v5981, 1
  %v6127 = vrot.slane %v5982, 1
  %v6128 = vsel %vm154, %v6126, %v6127
  %v6129 = vrot.slane %v5983, 1
  %v6130 = vrot.slane %v5984, 1
  %v6131 = vsel %vm154, %v6129, %v6130
  %v6132 = vrot.slane %v5985, 1
  %v6133 = vrot.slane %v5986, 1
  %v6134 = vsel %vm154, %v6132, %v6133
  %v6135 = vrot.slane %v5987, 1
  %v6136 = vrot.slane %v5988, 1
  %v6137 = vsel %vm154, %v6135, %v6136
  %v6138 = vrot.slane %v5989, 1
  %v6139 = vrot.slane %v5990, 1
  %v6140 = vsel %vm154, %v6138, %v6139
  %v6141 = vrot.slane %v5991, 1
  %v6142 = vrot.slane %v5992, 1
  %v6143 = vsel %vm154, %v6141, %v6142
  %v6144 = vrot.slane %v5993, 1
  %v6145 = vrot.slane %v5994, 1
  %v6146 = vsel %vm154, %v6144, %v6145
  %v6147 = vrot.slane %v5995, 1
  %v6148 = vrot.slane %v5996, 1
  %v6149 = vsel %vm154, %v6147, %v6148
  %v6150 = vrot.slane %v5997, 1
  %v6151 = vrot.slane %v5998, 1
  %v6152 = vsel %vm154, %v6150, %v6151
  %v6153 = vrot.slane %v5999, 1
  %v6154 = vrot.slane %v6000, 1
  %v6155 = vsel %vm154, %v6153, %v6154
  %v6156 = vrot.slane %v6001, 1
  %v6157 = vrot.slane %v6002, 1
  %v6158 = vsel %vm154, %v6156, %v6157
  %v6159 = vrot.slane %v6003, 1
  %v6160 = vrot.slane %v6004, 1
  %v6161 = vsel %vm154, %v6159, %v6160
  %v6162 = vrot.slane %v6005, 1
  %v6163 = vrot.slane %v6006, 1
  %v6164 = vsel %vm154, %v6162, %v6163
  %v6165 = vrot.slane %v6007, 1
  %v6166 = vrot.slane %v6008, 1
  %v6167 = vsel %vm154, %v6165, %v6166
  %v6168 = vrot.slane %v6009, 1
  %v6169 = vrot.slane %v6010, 1
  %v6170 = vsel %vm154, %v6168, %v6169
  %v6267 = vsel %vm154, 0.0, %v6075
  %v6268 = vsel %vm154, 0.0, %v6078
  %v6269 = vsel %vm154, 0.0, %v6081
  %v6270 = vsel %vm154, 0.0, %v6084
  %v6271 = vsel %vm154, 0.0, %v6087
  %v6272 = vsel %vm154, 0.0, %v6090
  %v6273 = vsel %vm154, 0.0, %v6093
  %v6274 = vsel %vm154, 0.0, %v6096
  %v6275 = vsel %vm154, 0.0, %v6099
  %v6276 = vsel %vm154, 0.0, %v6102
  %v6277 = vsel %vm154, 0.0, %v6105
  %v6278 = vsel %vm154, 0.0, %v6108
  %v6279 = vsel %vm154, 0.0, %v6111
  %v6280 = vsel %vm154, 0.0, %v6114
  %v6281 = vsel %vm154, 0.0, %v6117
  %v6282 = vsel %vm154, 0.0, %v6120
  %v6283 = vsel %vm154, 0.0, %v6123
  %v6284 = vsel %vm154, 0.0, %v6126
  %v6285 = vsel %vm154, 0.0, %v6129
  %v6286 = vsel %vm154, 0.0, %v6132
  %v6287 = vsel %vm154, 0.0, %v6135
  %v6288 = vsel %vm154, 0.0, %v6138
  %v6289 = vsel %vm154, 0.0, %v6141
  %v6290 = vsel %vm154, 0.0, %v6144
  %v6291 = vsel %vm154, 0.0, %v6147
  %v6292 = vsel %vm154, 0.0, %v6150
  %v6293 = vsel %vm154, 0.0, %v6153
  %v6294 = vsel %vm154, 0.0, %v6156
  %v6295 = vsel %vm154, 0.0, %v6159
  %v6296 = vsel %vm154, 0.0, %v6162
  %v6297 = vsel %vm154, 0.0, %v6165
  %v6298 = vsel %vm154, 0.0, %v6168
  %v6299 = vsel %vm154, %v6076, 0.0
  %v6300 = vsel %vm154, %v6079, 0.0
  %v6301 = vsel %vm154, %v6082, 0.0
  %v6302 = vsel %vm154, %v6085, 0.0
  %v6303 = vsel %vm154, %v6088, 0.0
  %v6304 = vsel %vm154, %v6091, 0.0
  %v6305 = vsel %vm154, %v6094, 0.0
  %v6306 = vsel %vm154, %v6097, 0.0
  %v6307 = vsel %vm154, %v6100, 0.0
  %v6308 = vsel %vm154, %v6103, 0.0
  %v6309 = vsel %vm154, %v6106, 0.0
  %v6310 = vsel %vm154, %v6109, 0.0
  %v6311 = vsel %vm154, %v6112, 0.0
  %v6312 = vsel %vm154, %v6115, 0.0
  %v6313 = vsel %vm154, %v6118, 0.0
  %v6314 = vsel %vm154, %v6121, 0.0
  %v6315 = vsel %vm154, %v6124, 0.0
  %v6316 = vsel %vm154, %v6127, 0.0
  %v6317 = vsel %vm154, %v6130, 0.0
  %v6318 = vsel %vm154, %v6133, 0.0
  %v6319 = vsel %vm154, %v6136, 0.0
  %v6320 = vsel %vm154, %v6139, 0.0
  %v6321 = vsel %vm154, %v6142, 0.0
  %v6322 = vsel %vm154, %v6145, 0.0
  %v6323 = vsel %vm154, %v6148, 0.0
  %v6324 = vsel %vm154, %v6151, 0.0
  %v6325 = vsel %vm154, %v6154, 0.0
  %v6326 = vsel %vm154, %v6157, 0.0
  %v6327 = vsel %vm154, %v6160, 0.0
  %v6328 = vsel %vm154, %v6163, 0.0
  %v6329 = vsel %vm154, %v6166, 0.0
  %v6330 = vsel %vm154, %v6169, 0.0
  %v6395 = vrot.slane %v6267, 1
  %v6396 = vrot.slane %v6077, 1
  %v6397 = vsel %vm154, %v6395, %v6396
  %v6398 = vrot.slane %v6299, 1
  %v6399 = vsel %vm154, %v6396, %v6398
  %v6400 = vrot.slane %v6268, 1
  %v6401 = vrot.slane %v6080, 1
  %v6402 = vsel %vm154, %v6400, %v6401
  %v6403 = vrot.slane %v6300, 1
  %v6404 = vsel %vm154, %v6401, %v6403
  %v6405 = vrot.slane %v6269, 1
  %v6406 = vrot.slane %v6083, 1
  %v6407 = vsel %vm154, %v6405, %v6406
  %v6408 = vrot.slane %v6301, 1
  %v6409 = vsel %vm154, %v6406, %v6408
  %v6410 = vrot.slane %v6270, 1
  %v6411 = vrot.slane %v6086, 1
  %v6412 = vsel %vm154, %v6410, %v6411
  %v6413 = vrot.slane %v6302, 1
  %v6414 = vsel %vm154, %v6411, %v6413
  %v6415 = vrot.slane %v6271, 1
  %v6416 = vrot.slane %v6089, 1
  %v6417 = vsel %vm154, %v6415, %v6416
  %v6418 = vrot.slane %v6303, 1
  %v6419 = vsel %vm154, %v6416, %v6418
  %v6420 = vrot.slane %v6272, 1
  %v6421 = vrot.slane %v6092, 1
  %v6422 = vsel %vm154, %v6420, %v6421
  %v6423 = vrot.slane %v6304, 1
  %v6424 = vsel %vm154, %v6421, %v6423
  %v6425 = vrot.slane %v6273, 1
  %v6426 = vrot.slane %v6095, 1
  %v6427 = vsel %vm154, %v6425, %v6426
  %v6428 = vrot.slane %v6305, 1
  %v6429 = vsel %vm154, %v6426, %v6428
  %v6430 = vrot.slane %v6274, 1
  %v6431 = vrot.slane %v6098, 1
  %v6432 = vsel %vm154, %v6430, %v6431
  %v6433 = vrot.slane %v6306, 1
  %v6434 = vsel %vm154, %v6431, %v6433
  %v6435 = vrot.slane %v6275, 1
  %v6436 = vrot.slane %v6101, 1
  %v6437 = vsel %vm154, %v6435, %v6436
  %v6438 = vrot.slane %v6307, 1
  %v6439 = vsel %vm154, %v6436, %v6438
  %v6440 = vrot.slane %v6276, 1
  %v6441 = vrot.slane %v6104, 1
  %v6442 = vsel %vm154, %v6440, %v6441
  %v6443 = vrot.slane %v6308, 1
  %v6444 = vsel %vm154, %v6441, %v6443
  %v6445 = vrot.slane %v6277, 1
  %v6446 = vrot.slane %v6107, 1
  %v6447 = vsel %vm154, %v6445, %v6446
  %v6448 = vrot.slane %v6309, 1
  %v6449 = vsel %vm154, %v6446, %v6448
  %v6450 = vrot.slane %v6278, 1
  %v6451 = vrot.slane %v6110, 1
  %v6452 = vsel %vm154, %v6450, %v6451
  %v6453 = vrot.slane %v6310, 1
  %v6454 = vsel %vm154, %v6451, %v6453
  %v6455 = vrot.slane %v6279, 1
  %v6456 = vrot.slane %v6113, 1
  %v6457 = vsel %vm154, %v6455, %v6456
  %v6458 = vrot.slane %v6311, 1
  %v6459 = vsel %vm154, %v6456, %v6458
  %v6460 = vrot.slane %v6280, 1
  %v6461 = vrot.slane %v6116, 1
  %v6462 = vsel %vm154, %v6460, %v6461
  %v6463 = vrot.slane %v6312, 1
  %v6464 = vsel %vm154, %v6461, %v6463
  %v6465 = vrot.slane %v6281, 1
  %v6466 = vrot.slane %v6119, 1
  %v6467 = vsel %vm154, %v6465, %v6466
  %v6468 = vrot.slane %v6313, 1
  %v6469 = vsel %vm154, %v6466, %v6468
  %v6470 = vrot.slane %v6282, 1
  %v6471 = vrot.slane %v6122, 1
  %v6472 = vsel %vm154, %v6470, %v6471
  %v6473 = vrot.slane %v6314, 1
  %v6474 = vsel %vm154, %v6471, %v6473
  %v6475 = vrot.slane %v6283, 1
  %v6476 = vrot.slane %v6125, 1
  %v6477 = vsel %vm154, %v6475, %v6476
  %v6478 = vrot.slane %v6315, 1
  %v6479 = vsel %vm154, %v6476, %v6478
  %v6480 = vrot.slane %v6284, 1
  %v6481 = vrot.slane %v6128, 1
  %v6482 = vsel %vm154, %v6480, %v6481
  %v6483 = vrot.slane %v6316, 1
  %v6484 = vsel %vm154, %v6481, %v6483
  %v6485 = vrot.slane %v6285, 1
  %v6486 = vrot.slane %v6131, 1
  %v6487 = vsel %vm154, %v6485, %v6486
  %v6488 = vrot.slane %v6317, 1
  %v6489 = vsel %vm154, %v6486, %v6488
  %v6490 = vrot.slane %v6286, 1
  %v6491 = vrot.slane %v6134, 1
  %v6492 = vsel %vm154, %v6490, %v6491
  %v6493 = vrot.slane %v6318, 1
  %v6494 = vsel %vm154, %v6491, %v6493
  %v6495 = vrot.slane %v6287, 1
  %v6496 = vrot.slane %v6137, 1
  %v6497 = vsel %vm154, %v6495, %v6496
  %v6498 = vrot.slane %v6319, 1
  %v6499 = vsel %vm154, %v6496, %v6498
  %v6500 = vrot.slane %v6288, 1
  %v6501 = vrot.slane %v6140, 1
  %v6502 = vsel %vm154, %v6500, %v6501
  %v6503 = vrot.slane %v6320, 1
  %v6504 = vsel %vm154, %v6501, %v6503
  %v6505 = vrot.slane %v6289, 1
  %v6506 = vrot.slane %v6143, 1
  %v6507 = vsel %vm154, %v6505, %v6506
  %v6508 = vrot.slane %v6321, 1
  %v6509 = vsel %vm154, %v6506, %v6508
  %v6510 = vrot.slane %v6290, 1
  %v6511 = vrot.slane %v6146, 1
  %v6512 = vsel %vm154, %v6510, %v6511
  %v6513 = vrot.slane %v6322, 1
  %v6514 = vsel %vm154, %v6511, %v6513
  %v6515 = vrot.slane %v6291, 1
  %v6516 = vrot.slane %v6149, 1
  %v6517 = vsel %vm154, %v6515, %v6516
  %v6518 = vrot.slane %v6323, 1
  %v6519 = vsel %vm154, %v6516, %v6518
  %v6520 = vrot.slane %v6292, 1
  %v6521 = vrot.slane %v6152, 1
  %v6522 = vsel %vm154, %v6520, %v6521
  %v6523 = vrot.slane %v6324, 1
  %v6524 = vsel %vm154, %v6521, %v6523
  %v6525 = vrot.slane %v6293, 1
  %v6526 = vrot.slane %v6155, 1
  %v6527 = vsel %vm154, %v6525, %v6526
  %v6528 = vrot.slane %v6325, 1
  %v6529 = vsel %vm154, %v6526, %v6528
  %v6530 = vrot.slane %v6294, 1
  %v6531 = vrot.slane %v6158, 1
  %v6532 = vsel %vm154, %v6530, %v6531
  %v6533 = vrot.slane %v6326, 1
  %v6534 = vsel %vm154, %v6531, %v6533
  %v6535 = vrot.slane %v6295, 1
  %v6536 = vrot.slane %v6161, 1
  %v6537 = vsel %vm154, %v6535, %v6536
  %v6538 = vrot.slane %v6327, 1
  %v6539 = vsel %vm154, %v6536, %v6538
  %v6540 = vrot.slane %v6296, 1
  %v6541 = vrot.slane %v6164, 1
  %v6542 = vsel %vm154, %v6540, %v6541
  %v6543 = vrot.slane %v6328, 1
  %v6544 = vsel %vm154, %v6541, %v6543
  %v6545 = vrot.slane %v6297, 1
  %v6546 = vrot.slane %v6167, 1
  %v6547 = vsel %vm154, %v6545, %v6546
  %v6548 = vrot.slane %v6329, 1
  %v6549 = vsel %vm154, %v6546, %v6548
  %v6550 = vrot.slane %v6298, 1
  %v6551 = vrot.slane %v6170, 1
  %v6552 = vsel %vm154, %v6550, %v6551
  %v6553 = vrot.slane %v6330, 1
  %v6554 = vsel %vm154, %v6551, %v6553
  %6555 = vrot.lane.b32.xlu0 %v6397, 4
  %v6556 = vpop.permute.xlu0 %6555
  %6557 = vrot.lane.b32.xlu0 %v6399, 4
  %v6558 = vpop.permute.xlu0 %6557
  %6559 = vrot.lane.b32.xlu0 %v6402, 4
  %v6560 = vpop.permute.xlu0 %6559
  %6561 = vrot.lane.b32.xlu0 %v6404, 4
  %v6562 = vpop.permute.xlu0 %6561
  %6563 = vrot.lane.b32.xlu0 %v6407, 4
  %v6564 = vpop.permute.xlu0 %6563
  %6565 = vrot.lane.b32.xlu0 %v6409, 4
  %v6566 = vpop.permute.xlu0 %6565
  %6567 = vrot.lane.b32.xlu0 %v6412, 4
  %v6568 = vpop.permute.xlu0 %6567
  %6569 = vrot.lane.b32.xlu0 %v6414, 4
  %v6570 = vpop.permute.xlu0 %6569
  %6571 = vrot.lane.b32.xlu0 %v6417, 4
  %v6572 = vpop.permute.xlu0 %6571
  %6573 = vrot.lane.b32.xlu0 %v6419, 4
  %v6574 = vpop.permute.xlu0 %6573
  %6575 = vrot.lane.b32.xlu0 %v6422, 4
  %v6576 = vpop.permute.xlu0 %6575
  %6577 = vrot.lane.b32.xlu0 %v6424, 4
  %v6578 = vpop.permute.xlu0 %6577
  %6579 = vrot.lane.b32.xlu0 %v6427, 4
  %v6580 = vpop.permute.xlu0 %6579
  %6581 = vrot.lane.b32.xlu0 %v6429, 4
  %v6582 = vpop.permute.xlu0 %6581
  %6583 = vrot.lane.b32.xlu0 %v6432, 4
  %v6584 = vpop.permute.xlu0 %6583
  %6585 = vrot.lane.b32.xlu0 %v6434, 4
  %v6586 = vpop.permute.xlu0 %6585
  %6587 = vrot.lane.b32.xlu0 %v6437, 4
  %v6588 = vpop.permute.xlu0 %6587
  %6589 = vrot.lane.b32.xlu0 %v6439, 4
  %v6590 = vpop.permute.xlu0 %6589
  %6591 = vrot.lane.b32.xlu0 %v6442, 4
  %v6592 = vpop.permute.xlu0 %6591
  %6593 = vrot.lane.b32.xlu0 %v6444, 4
  %v6594 = vpop.permute.xlu0 %6593
  %6595 = vrot.lane.b32.xlu0 %v6447, 4
  %v6596 = vpop.permute.xlu0 %6595
  %6597 = vrot.lane.b32.xlu0 %v6449, 4
  %v6598 = vpop.permute.xlu0 %6597
  %6599 = vrot.lane.b32.xlu0 %v6452, 4
  %v6600 = vpop.permute.xlu0 %6599
  %6601 = vrot.lane.b32.xlu0 %v6454, 4
  %v6602 = vpop.permute.xlu0 %6601
  %6603 = vrot.lane.b32.xlu0 %v6457, 4
  %v6604 = vpop.permute.xlu0 %6603
  %6605 = vrot.lane.b32.xlu0 %v6459, 4
  %v6606 = vpop.permute.xlu0 %6605
  %6607 = vrot.lane.b32.xlu0 %v6462, 4
  %v6608 = vpop.permute.xlu0 %6607
  %6609 = vrot.lane.b32.xlu0 %v6464, 4
  %v6610 = vpop.permute.xlu0 %6609
  %6611 = vrot.lane.b32.xlu0 %v6467, 4
  %v6612 = vpop.permute.xlu0 %6611
  %6613 = vrot.lane.b32.xlu0 %v6469, 4
  %v6614 = vpop.permute.xlu0 %6613
  %6615 = vrot.lane.b32.xlu0 %v6472, 4
  %v6616 = vpop.permute.xlu0 %6615
  %6617 = vrot.lane.b32.xlu0 %v6474, 4
  %v6618 = vpop.permute.xlu0 %6617
  %6619 = vrot.lane.b32.xlu0 %v6477, 4
  %v6620 = vpop.permute.xlu0 %6619
  %6621 = vrot.lane.b32.xlu0 %v6479, 4
  %v6622 = vpop.permute.xlu0 %6621
  %6623 = vrot.lane.b32.xlu0 %v6482, 4
  %v6624 = vpop.permute.xlu0 %6623
  %6625 = vrot.lane.b32.xlu0 %v6484, 4
  %v6626 = vpop.permute.xlu0 %6625
  %6627 = vrot.lane.b32.xlu0 %v6487, 4
  %v6628 = vpop.permute.xlu0 %6627
  %6629 = vrot.lane.b32.xlu0 %v6489, 4
  %v6630 = vpop.permute.xlu0 %6629
  %6631 = vrot.lane.b32.xlu0 %v6492, 4
  %v6632 = vpop.permute.xlu0 %6631
  %6633 = vrot.lane.b32.xlu0 %v6494, 4
  %v6634 = vpop.permute.xlu0 %6633
  %6635 = vrot.lane.b32.xlu0 %v6497, 4
  %v6636 = vpop.permute.xlu0 %6635
  %6637 = vrot.lane.b32.xlu0 %v6499, 4
  %v6638 = vpop.permute.xlu0 %6637
  %6639 = vrot.lane.b32.xlu0 %v6502, 4
  %v6640 = vpop.permute.xlu0 %6639
  %6641 = vrot.lane.b32.xlu0 %v6504, 4
  %v6642 = vpop.permute.xlu0 %6641
  %6643 = vrot.lane.b32.xlu0 %v6507, 4
  %v6644 = vpop.permute.xlu0 %6643
  %6645 = vrot.lane.b32.xlu0 %v6509, 4
  %v6646 = vpop.permute.xlu0 %6645
  %6647 = vrot.lane.b32.xlu0 %v6512, 4
  %v6648 = vpop.permute.xlu0 %6647
  %6649 = vrot.lane.b32.xlu0 %v6514, 4
  %v6650 = vpop.permute.xlu0 %6649
  %6651 = vrot.lane.b32.xlu0 %v6517, 4
  %v6652 = vpop.permute.xlu0 %6651
  %6653 = vrot.lane.b32.xlu0 %v6519, 4
  %v6654 = vpop.permute.xlu0 %6653
  %6655 = vrot.lane.b32.xlu0 %v6522, 4
  %v6656 = vpop.permute.xlu0 %6655
  %6657 = vrot.lane.b32.xlu0 %v6524, 4
  %v6658 = vpop.permute.xlu0 %6657
  %6659 = vrot.lane.b32.xlu0 %v6527, 4
  %v6660 = vpop.permute.xlu0 %6659
  %6661 = vrot.lane.b32.xlu0 %v6529, 4
  %v6662 = vpop.permute.xlu0 %6661
  %6663 = vrot.lane.b32.xlu0 %v6532, 4
  %v6664 = vpop.permute.xlu0 %6663
  %6665 = vrot.lane.b32.xlu0 %v6534, 4
  %v6666 = vpop.permute.xlu0 %6665
  %6667 = vrot.lane.b32.xlu0 %v6537, 4
  %v6668 = vpop.permute.xlu0 %6667
  %6669 = vrot.lane.b32.xlu0 %v6539, 4
  %v6670 = vpop.permute.xlu0 %6669
  %6671 = vrot.lane.b32.xlu0 %v6542, 4
  %v6672 = vpop.permute.xlu0 %6671
  %6673 = vrot.lane.b32.xlu0 %v6544, 4
  %v6674 = vpop.permute.xlu0 %6673
  %6675 = vrot.lane.b32.xlu0 %v6547, 4
  %v6676 = vpop.permute.xlu0 %6675
  %6677 = vrot.lane.b32.xlu0 %v6549, 4
  %v6678 = vpop.permute.xlu0 %6677
  %6679 = vrot.lane.b32.xlu0 %v6552, 4
  %v6680 = vpop.permute.xlu0 %6679
  %6681 = vrot.lane.b32.xlu0 %v6554, 4
  %v6682 = vpop.permute.xlu0 %6681
  %v6747 = vrot.slane %v6267, 2
  %v6748 = vrot.slane %v6077, 2
  %v6749 = vsel %vm827, %v6747, %v6748
  %v6750 = vrot.slane %v6299, 2
  %v6751 = vsel %vm827, %v6748, %v6750
  %v6752 = vrot.slane %v6268, 2
  %v6753 = vrot.slane %v6080, 2
  %v6754 = vsel %vm827, %v6752, %v6753
  %v6755 = vrot.slane %v6300, 2
  %v6756 = vsel %vm827, %v6753, %v6755
  %v6757 = vrot.slane %v6269, 2
  %v6758 = vrot.slane %v6083, 2
  %v6759 = vsel %vm827, %v6757, %v6758
  %v6760 = vrot.slane %v6301, 2
  %v6761 = vsel %vm827, %v6758, %v6760
  %v6762 = vrot.slane %v6270, 2
  %v6763 = vrot.slane %v6086, 2
  %v6764 = vsel %vm827, %v6762, %v6763
  %v6765 = vrot.slane %v6302, 2
  %v6766 = vsel %vm827, %v6763, %v6765
  %v6767 = vrot.slane %v6271, 2
  %v6768 = vrot.slane %v6089, 2
  %v6769 = vsel %vm827, %v6767, %v6768
  %v6770 = vrot.slane %v6303, 2
  %v6771 = vsel %vm827, %v6768, %v6770
  %v6772 = vrot.slane %v6272, 2
  %v6773 = vrot.slane %v6092, 2
  %v6774 = vsel %vm827, %v6772, %v6773
  %v6775 = vrot.slane %v6304, 2
  %v6776 = vsel %vm827, %v6773, %v6775
  %v6777 = vrot.slane %v6273, 2
  %v6778 = vrot.slane %v6095, 2
  %v6779 = vsel %vm827, %v6777, %v6778
  %v6780 = vrot.slane %v6305, 2
  %v6781 = vsel %vm827, %v6778, %v6780
  %v6782 = vrot.slane %v6274, 2
  %v6783 = vrot.slane %v6098, 2
  %v6784 = vsel %vm827, %v6782, %v6783
  %v6785 = vrot.slane %v6306, 2
  %v6786 = vsel %vm827, %v6783, %v6785
  %v6787 = vrot.slane %v6275, 2
  %v6788 = vrot.slane %v6101, 2
  %v6789 = vsel %vm827, %v6787, %v6788
  %v6790 = vrot.slane %v6307, 2
  %v6791 = vsel %vm827, %v6788, %v6790
  %v6792 = vrot.slane %v6276, 2
  %v6793 = vrot.slane %v6104, 2
  %v6794 = vsel %vm827, %v6792, %v6793
  %v6795 = vrot.slane %v6308, 2
  %v6796 = vsel %vm827, %v6793, %v6795
  %v6797 = vrot.slane %v6277, 2
  %v6798 = vrot.slane %v6107, 2
  %v6799 = vsel %vm827, %v6797, %v6798
  %v6800 = vrot.slane %v6309, 2
  %v6801 = vsel %vm827, %v6798, %v6800
  %v6802 = vrot.slane %v6278, 2
  %v6803 = vrot.slane %v6110, 2
  %v6804 = vsel %vm827, %v6802, %v6803
  %v6805 = vrot.slane %v6310, 2
  %v6806 = vsel %vm827, %v6803, %v6805
  %v6807 = vrot.slane %v6279, 2
  %v6808 = vrot.slane %v6113, 2
  %v6809 = vsel %vm827, %v6807, %v6808
  %v6810 = vrot.slane %v6311, 2
  %v6811 = vsel %vm827, %v6808, %v6810
  %v6812 = vrot.slane %v6280, 2
  %v6813 = vrot.slane %v6116, 2
  %v6814 = vsel %vm827, %v6812, %v6813
  %v6815 = vrot.slane %v6312, 2
  %v6816 = vsel %vm827, %v6813, %v6815
  %v6817 = vrot.slane %v6281, 2
  %v6818 = vrot.slane %v6119, 2
  %v6819 = vsel %vm827, %v6817, %v6818
  %v6820 = vrot.slane %v6313, 2
  %v6821 = vsel %vm827, %v6818, %v6820
  %v6822 = vrot.slane %v6282, 2
  %v6823 = vrot.slane %v6122, 2
  %v6824 = vsel %vm827, %v6822, %v6823
  %v6825 = vrot.slane %v6314, 2
  %v6826 = vsel %vm827, %v6823, %v6825
  %v6827 = vrot.slane %v6283, 2
  %v6828 = vrot.slane %v6125, 2
  %v6829 = vsel %vm827, %v6827, %v6828
  %v6830 = vrot.slane %v6315, 2
  %v6831 = vsel %vm827, %v6828, %v6830
  %v6832 = vrot.slane %v6284, 2
  %v6833 = vrot.slane %v6128, 2
  %v6834 = vsel %vm827, %v6832, %v6833
  %v6835 = vrot.slane %v6316, 2
  %v6836 = vsel %vm827, %v6833, %v6835
  %v6837 = vrot.slane %v6285, 2
  %v6838 = vrot.slane %v6131, 2
  %v6839 = vsel %vm827, %v6837, %v6838
  %v6840 = vrot.slane %v6317, 2
  %v6841 = vsel %vm827, %v6838, %v6840
  %v6842 = vrot.slane %v6286, 2
  %v6843 = vrot.slane %v6134, 2
  %v6844 = vsel %vm827, %v6842, %v6843
  %v6845 = vrot.slane %v6318, 2
  %v6846 = vsel %vm827, %v6843, %v6845
  %v6847 = vrot.slane %v6287, 2
  %v6848 = vrot.slane %v6137, 2
  %v6849 = vsel %vm827, %v6847, %v6848
  %v6850 = vrot.slane %v6319, 2
  %v6851 = vsel %vm827, %v6848, %v6850
  %v6852 = vrot.slane %v6288, 2
  %v6853 = vrot.slane %v6140, 2
  %v6854 = vsel %vm827, %v6852, %v6853
  %v6855 = vrot.slane %v6320, 2
  %v6856 = vsel %vm827, %v6853, %v6855
  %v6857 = vrot.slane %v6289, 2
  %v6858 = vrot.slane %v6143, 2
  %v6859 = vsel %vm827, %v6857, %v6858
  %v6860 = vrot.slane %v6321, 2
  %v6861 = vsel %vm827, %v6858, %v6860
  %v6862 = vrot.slane %v6290, 2
  %v6863 = vrot.slane %v6146, 2
  %v6864 = vsel %vm827, %v6862, %v6863
  %v6865 = vrot.slane %v6322, 2
  %v6866 = vsel %vm827, %v6863, %v6865
  %v6867 = vrot.slane %v6291, 2
  %v6868 = vrot.slane %v6149, 2
  %v6869 = vsel %vm827, %v6867, %v6868
  %v6870 = vrot.slane %v6323, 2
  %v6871 = vsel %vm827, %v6868, %v6870
  %v6872 = vrot.slane %v6292, 2
  %v6873 = vrot.slane %v6152, 2
  %v6874 = vsel %vm827, %v6872, %v6873
  %v6875 = vrot.slane %v6324, 2
  %v6876 = vsel %vm827, %v6873, %v6875
  %v6877 = vrot.slane %v6293, 2
  %v6878 = vrot.slane %v6155, 2
  %v6879 = vsel %vm827, %v6877, %v6878
  %v6880 = vrot.slane %v6325, 2
  %v6881 = vsel %vm827, %v6878, %v6880
  %v6882 = vrot.slane %v6294, 2
  %v6883 = vrot.slane %v6158, 2
  %v6884 = vsel %vm827, %v6882, %v6883
  %v6885 = vrot.slane %v6326, 2
  %v6886 = vsel %vm827, %v6883, %v6885
  %v6887 = vrot.slane %v6295, 2
  %v6888 = vrot.slane %v6161, 2
  %v6889 = vsel %vm827, %v6887, %v6888
  %v6890 = vrot.slane %v6327, 2
  %v6891 = vsel %vm827, %v6888, %v6890
  %v6892 = vrot.slane %v6296, 2
  %v6893 = vrot.slane %v6164, 2
  %v6894 = vsel %vm827, %v6892, %v6893
  %v6895 = vrot.slane %v6328, 2
  %v6896 = vsel %vm827, %v6893, %v6895
  %v6897 = vrot.slane %v6297, 2
  %v6898 = vrot.slane %v6167, 2
  %v6899 = vsel %vm827, %v6897, %v6898
  %v6900 = vrot.slane %v6329, 2
  %v6901 = vsel %vm827, %v6898, %v6900
  %v6902 = vrot.slane %v6298, 2
  %v6903 = vrot.slane %v6170, 2
  %v6904 = vsel %vm827, %v6902, %v6903
  %v6905 = vrot.slane %v6330, 2
  %v6906 = vsel %vm827, %v6903, %v6905
  %6907 = vrot.lane.b32.xlu0 %v6749, 8
  %v6908 = vpop.permute.xlu0 %6907
  %6909 = vrot.lane.b32.xlu0 %v6751, 8
  %v6910 = vpop.permute.xlu0 %6909
  %6911 = vrot.lane.b32.xlu0 %v6754, 8
  %v6912 = vpop.permute.xlu0 %6911
  %6913 = vrot.lane.b32.xlu0 %v6756, 8
  %v6914 = vpop.permute.xlu0 %6913
  %6915 = vrot.lane.b32.xlu0 %v6759, 8
  %v6916 = vpop.permute.xlu0 %6915
  %6917 = vrot.lane.b32.xlu0 %v6761, 8
  %v6918 = vpop.permute.xlu0 %6917
  %6919 = vrot.lane.b32.xlu0 %v6764, 8
  %v6920 = vpop.permute.xlu0 %6919
  %6921 = vrot.lane.b32.xlu0 %v6766, 8
  %v6922 = vpop.permute.xlu0 %6921
  %6923 = vrot.lane.b32.xlu0 %v6769, 8
  %v6924 = vpop.permute.xlu0 %6923
  %6925 = vrot.lane.b32.xlu0 %v6771, 8
  %v6926 = vpop.permute.xlu0 %6925
  %6927 = vrot.lane.b32.xlu0 %v6774, 8
  %v6928 = vpop.permute.xlu0 %6927
  %6929 = vrot.lane.b32.xlu0 %v6776, 8
  %v6930 = vpop.permute.xlu0 %6929
  %6931 = vrot.lane.b32.xlu0 %v6779, 8
  %v6932 = vpop.permute.xlu0 %6931
  %6933 = vrot.lane.b32.xlu0 %v6781, 8
  %v6934 = vpop.permute.xlu0 %6933
  %6935 = vrot.lane.b32.xlu0 %v6784, 8
  %v6936 = vpop.permute.xlu0 %6935
  %6937 = vrot.lane.b32.xlu0 %v6786, 8
  %v6938 = vpop.permute.xlu0 %6937
  %6939 = vrot.lane.b32.xlu0 %v6789, 8
  %v6940 = vpop.permute.xlu0 %6939
  %6941 = vrot.lane.b32.xlu0 %v6791, 8
  %v6942 = vpop.permute.xlu0 %6941
  %6943 = vrot.lane.b32.xlu0 %v6794, 8
  %v6944 = vpop.permute.xlu0 %6943
  %6945 = vrot.lane.b32.xlu0 %v6796, 8
  %v6946 = vpop.permute.xlu0 %6945
  %6947 = vrot.lane.b32.xlu0 %v6799, 8
  %v6948 = vpop.permute.xlu0 %6947
  %6949 = vrot.lane.b32.xlu0 %v6801, 8
  %v6950 = vpop.permute.xlu0 %6949
  %6951 = vrot.lane.b32.xlu0 %v6804, 8
  %v6952 = vpop.permute.xlu0 %6951
  %6953 = vrot.lane.b32.xlu0 %v6806, 8
  %v6954 = vpop.permute.xlu0 %6953
  %6955 = vrot.lane.b32.xlu0 %v6809, 8
  %v6956 = vpop.permute.xlu0 %6955
  %6957 = vrot.lane.b32.xlu0 %v6811, 8
  %v6958 = vpop.permute.xlu0 %6957
  %6959 = vrot.lane.b32.xlu0 %v6814, 8
  %v6960 = vpop.permute.xlu0 %6959
  %6961 = vrot.lane.b32.xlu0 %v6816, 8
  %v6962 = vpop.permute.xlu0 %6961
  %6963 = vrot.lane.b32.xlu0 %v6819, 8
  %v6964 = vpop.permute.xlu0 %6963
  %6965 = vrot.lane.b32.xlu0 %v6821, 8
  %v6966 = vpop.permute.xlu0 %6965
  %6967 = vrot.lane.b32.xlu0 %v6824, 8
  %v6968 = vpop.permute.xlu0 %6967
  %6969 = vrot.lane.b32.xlu0 %v6826, 8
  %v6970 = vpop.permute.xlu0 %6969
  %6971 = vrot.lane.b32.xlu0 %v6829, 8
  %v6972 = vpop.permute.xlu0 %6971
  %6973 = vrot.lane.b32.xlu0 %v6831, 8
  %v6974 = vpop.permute.xlu0 %6973
  %6975 = vrot.lane.b32.xlu0 %v6834, 8
  %v6976 = vpop.permute.xlu0 %6975
  %6977 = vrot.lane.b32.xlu0 %v6836, 8
  %v6978 = vpop.permute.xlu0 %6977
  %6979 = vrot.lane.b32.xlu0 %v6839, 8
  %v6980 = vpop.permute.xlu0 %6979
  %6981 = vrot.lane.b32.xlu0 %v6841, 8
  %v6982 = vpop.permute.xlu0 %6981
  %6983 = vrot.lane.b32.xlu0 %v6844, 8
  %v6984 = vpop.permute.xlu0 %6983
  %6985 = vrot.lane.b32.xlu0 %v6846, 8
  %v6986 = vpop.permute.xlu0 %6985
  %6987 = vrot.lane.b32.xlu0 %v6849, 8
  %v6988 = vpop.permute.xlu0 %6987
  %6989 = vrot.lane.b32.xlu0 %v6851, 8
  %v6990 = vpop.permute.xlu0 %6989
  %6991 = vrot.lane.b32.xlu0 %v6854, 8
  %v6992 = vpop.permute.xlu0 %6991
  %6993 = vrot.lane.b32.xlu0 %v6856, 8
  %v6994 = vpop.permute.xlu0 %6993
  %6995 = vrot.lane.b32.xlu0 %v6859, 8
  %v6996 = vpop.permute.xlu0 %6995
  %6997 = vrot.lane.b32.xlu0 %v6861, 8
  %v6998 = vpop.permute.xlu0 %6997
  %6999 = vrot.lane.b32.xlu0 %v6864, 8
  %v7000 = vpop.permute.xlu0 %6999
  %7001 = vrot.lane.b32.xlu0 %v6866, 8
  %v7002 = vpop.permute.xlu0 %7001
  %7003 = vrot.lane.b32.xlu0 %v6869, 8
  %v7004 = vpop.permute.xlu0 %7003
  %7005 = vrot.lane.b32.xlu0 %v6871, 8
  %v7006 = vpop.permute.xlu0 %7005
  %7007 = vrot.lane.b32.xlu0 %v6874, 8
  %v7008 = vpop.permute.xlu0 %7007
  %7009 = vrot.lane.b32.xlu0 %v6876, 8
  %v7010 = vpop.permute.xlu0 %7009
  %7011 = vrot.lane.b32.xlu0 %v6879, 8
  %v7012 = vpop.permute.xlu0 %7011
  %7013 = vrot.lane.b32.xlu0 %v6881, 8
  %v7014 = vpop.permute.xlu0 %7013
  %7015 = vrot.lane.b32.xlu0 %v6884, 8
  %v7016 = vpop.permute.xlu0 %7015
  %7017 = vrot.lane.b32.xlu0 %v6886, 8
  %v7018 = vpop.permute.xlu0 %7017
  %7019 = vrot.lane.b32.xlu0 %v6889, 8
  %v7020 = vpop.permute.xlu0 %7019
  %7021 = vrot.lane.b32.xlu0 %v6891, 8
  %v7022 = vpop.permute.xlu0 %7021
  %7023 = vrot.lane.b32.xlu0 %v6894, 8
  %v7024 = vpop.permute.xlu0 %7023
  %7025 = vrot.lane.b32.xlu0 %v6896, 8
  %v7026 = vpop.permute.xlu0 %7025
  %7027 = vrot.lane.b32.xlu0 %v6899, 8
  %v7028 = vpop.permute.xlu0 %7027
  %7029 = vrot.lane.b32.xlu0 %v6901, 8
  %v7030 = vpop.permute.xlu0 %7029
  %7031 = vrot.lane.b32.xlu0 %v6904, 8
  %v7032 = vpop.permute.xlu0 %7031
  %7033 = vrot.lane.b32.xlu0 %v6906, 8
  %v7034 = vpop.permute.xlu0 %7033
  %v7099 = vrot.slane %v6267, 3
  %v7100 = vrot.slane %v6077, 3
  %v7101 = vsel %vm1180, %v7099, %v7100
  %v7102 = vrot.slane %v6299, 3
  %v7103 = vsel %vm1180, %v7100, %v7102
  %v7104 = vrot.slane %v6268, 3
  %v7105 = vrot.slane %v6080, 3
  %v7106 = vsel %vm1180, %v7104, %v7105
  %v7107 = vrot.slane %v6300, 3
  %v7108 = vsel %vm1180, %v7105, %v7107
  %v7109 = vrot.slane %v6269, 3
  %v7110 = vrot.slane %v6083, 3
  %v7111 = vsel %vm1180, %v7109, %v7110
  %v7112 = vrot.slane %v6301, 3
  %v7113 = vsel %vm1180, %v7110, %v7112
  %v7114 = vrot.slane %v6270, 3
  %v7115 = vrot.slane %v6086, 3
  %v7116 = vsel %vm1180, %v7114, %v7115
  %v7117 = vrot.slane %v6302, 3
  %v7118 = vsel %vm1180, %v7115, %v7117
  %v7119 = vrot.slane %v6271, 3
  %v7120 = vrot.slane %v6089, 3
  %v7121 = vsel %vm1180, %v7119, %v7120
  %v7122 = vrot.slane %v6303, 3
  %v7123 = vsel %vm1180, %v7120, %v7122
  %v7124 = vrot.slane %v6272, 3
  %v7125 = vrot.slane %v6092, 3
  %v7126 = vsel %vm1180, %v7124, %v7125
  %v7127 = vrot.slane %v6304, 3
  %v7128 = vsel %vm1180, %v7125, %v7127
  %v7129 = vrot.slane %v6273, 3
  %v7130 = vrot.slane %v6095, 3
  %v7131 = vsel %vm1180, %v7129, %v7130
  %v7132 = vrot.slane %v6305, 3
  %v7133 = vsel %vm1180, %v7130, %v7132
  %v7134 = vrot.slane %v6274, 3
  %v7135 = vrot.slane %v6098, 3
  %v7136 = vsel %vm1180, %v7134, %v7135
  %v7137 = vrot.slane %v6306, 3
  %v7138 = vsel %vm1180, %v7135, %v7137
  %v7139 = vrot.slane %v6275, 3
  %v7140 = vrot.slane %v6101, 3
  %v7141 = vsel %vm1180, %v7139, %v7140
  %v7142 = vrot.slane %v6307, 3
  %v7143 = vsel %vm1180, %v7140, %v7142
  %v7144 = vrot.slane %v6276, 3
  %v7145 = vrot.slane %v6104, 3
  %v7146 = vsel %vm1180, %v7144, %v7145
  %v7147 = vrot.slane %v6308, 3
  %v7148 = vsel %vm1180, %v7145, %v7147
  %v7149 = vrot.slane %v6277, 3
  %v7150 = vrot.slane %v6107, 3
  %v7151 = vsel %vm1180, %v7149, %v7150
  %v7152 = vrot.slane %v6309, 3
  %v7153 = vsel %vm1180, %v7150, %v7152
  %v7154 = vrot.slane %v6278, 3
  %v7155 = vrot.slane %v6110, 3
  %v7156 = vsel %vm1180, %v7154, %v7155
  %v7157 = vrot.slane %v6310, 3
  %v7158 = vsel %vm1180, %v7155, %v7157
  %v7159 = vrot.slane %v6279, 3
  %v7160 = vrot.slane %v6113, 3
  %v7161 = vsel %vm1180, %v7159, %v7160
  %v7162 = vrot.slane %v6311, 3
  %v7163 = vsel %vm1180, %v7160, %v7162
  %v7164 = vrot.slane %v6280, 3
  %v7165 = vrot.slane %v6116, 3
  %v7166 = vsel %vm1180, %v7164, %v7165
  %v7167 = vrot.slane %v6312, 3
  %v7168 = vsel %vm1180, %v7165, %v7167
  %v7169 = vrot.slane %v6281, 3
  %v7170 = vrot.slane %v6119, 3
  %v7171 = vsel %vm1180, %v7169, %v7170
  %v7172 = vrot.slane %v6313, 3
  %v7173 = vsel %vm1180, %v7170, %v7172
  %v7174 = vrot.slane %v6282, 3
  %v7175 = vrot.slane %v6122, 3
  %v7176 = vsel %vm1180, %v7174, %v7175
  %v7177 = vrot.slane %v6314, 3
  %v7178 = vsel %vm1180, %v7175, %v7177
  %v7179 = vrot.slane %v6283, 3
  %v7180 = vrot.slane %v6125, 3
  %v7181 = vsel %vm1180, %v7179, %v7180
  %v7182 = vrot.slane %v6315, 3
  %v7183 = vsel %vm1180, %v7180, %v7182
  %v7184 = vrot.slane %v6284, 3
  %v7185 = vrot.slane %v6128, 3
  %v7186 = vsel %vm1180, %v7184, %v7185
  %v7187 = vrot.slane %v6316, 3
  %v7188 = vsel %vm1180, %v7185, %v7187
  %v7189 = vrot.slane %v6285, 3
  %v7190 = vrot.slane %v6131, 3
  %v7191 = vsel %vm1180, %v7189, %v7190
  %v7192 = vrot.slane %v6317, 3
  %v7193 = vsel %vm1180, %v7190, %v7192
  %v7194 = vrot.slane %v6286, 3
  %v7195 = vrot.slane %v6134, 3
  %v7196 = vsel %vm1180, %v7194, %v7195
  %v7197 = vrot.slane %v6318, 3
  %v7198 = vsel %vm1180, %v7195, %v7197
  %v7199 = vrot.slane %v6287, 3
  %v7200 = vrot.slane %v6137, 3
  %v7201 = vsel %vm1180, %v7199, %v7200
  %v7202 = vrot.slane %v6319, 3
  %v7203 = vsel %vm1180, %v7200, %v7202
  %v7204 = vrot.slane %v6288, 3
  %v7205 = vrot.slane %v6140, 3
  %v7206 = vsel %vm1180, %v7204, %v7205
  %v7207 = vrot.slane %v6320, 3
  %v7208 = vsel %vm1180, %v7205, %v7207
  %v7209 = vrot.slane %v6289, 3
  %v7210 = vrot.slane %v6143, 3
  %v7211 = vsel %vm1180, %v7209, %v7210
  %v7212 = vrot.slane %v6321, 3
  %v7213 = vsel %vm1180, %v7210, %v7212
  %v7214 = vrot.slane %v6290, 3
  %v7215 = vrot.slane %v6146, 3
  %v7216 = vsel %vm1180, %v7214, %v7215
  %v7217 = vrot.slane %v6322, 3
  %v7218 = vsel %vm1180, %v7215, %v7217
  %v7219 = vrot.slane %v6291, 3
  %v7220 = vrot.slane %v6149, 3
  %v7221 = vsel %vm1180, %v7219, %v7220
  %v7222 = vrot.slane %v6323, 3
  %v7223 = vsel %vm1180, %v7220, %v7222
  %v7224 = vrot.slane %v6292, 3
  %v7225 = vrot.slane %v6152, 3
  %v7226 = vsel %vm1180, %v7224, %v7225
  %v7227 = vrot.slane %v6324, 3
  %v7228 = vsel %vm1180, %v7225, %v7227
  %v7229 = vrot.slane %v6293, 3
  %v7230 = vrot.slane %v6155, 3
  %v7231 = vsel %vm1180, %v7229, %v7230
  %v7232 = vrot.slane %v6325, 3
  %v7233 = vsel %vm1180, %v7230, %v7232
  %v7234 = vrot.slane %v6294, 3
  %v7235 = vrot.slane %v6158, 3
  %v7236 = vsel %vm1180, %v7234, %v7235
  %v7237 = vrot.slane %v6326, 3
  %v7238 = vsel %vm1180, %v7235, %v7237
  %v7239 = vrot.slane %v6295, 3
  %v7240 = vrot.slane %v6161, 3
  %v7241 = vsel %vm1180, %v7239, %v7240
  %v7242 = vrot.slane %v6327, 3
  %v7243 = vsel %vm1180, %v7240, %v7242
  %v7244 = vrot.slane %v6296, 3
  %v7245 = vrot.slane %v6164, 3
  %v7246 = vsel %vm1180, %v7244, %v7245
  %v7247 = vrot.slane %v6328, 3
  %v7248 = vsel %vm1180, %v7245, %v7247
  %v7249 = vrot.slane %v6297, 3
  %v7250 = vrot.slane %v6167, 3
  %v7251 = vsel %vm1180, %v7249, %v7250
  %v7252 = vrot.slane %v6329, 3
  %v7253 = vsel %vm1180, %v7250, %v7252
  %v7254 = vrot.slane %v6298, 3
  %v7255 = vrot.slane %v6170, 3
  %v7256 = vsel %vm1180, %v7254, %v7255
  %v7257 = vrot.slane %v6330, 3
  %v7258 = vsel %vm1180, %v7255, %v7257
  %7259 = vrot.lane.b32.xlu0 %v7101, 12
  %v7260 = vpop.permute.xlu0 %7259
  %7261 = vrot.lane.b32.xlu0 %v7103, 12
  %v7262 = vpop.permute.xlu0 %7261
  %7263 = vrot.lane.b32.xlu0 %v7106, 12
  %v7264 = vpop.permute.xlu0 %7263
  %7265 = vrot.lane.b32.xlu0 %v7108, 12
  %v7266 = vpop.permute.xlu0 %7265
  %7267 = vrot.lane.b32.xlu0 %v7111, 12
  %v7268 = vpop.permute.xlu0 %7267
  %7269 = vrot.lane.b32.xlu0 %v7113, 12
  %v7270 = vpop.permute.xlu0 %7269
  %7271 = vrot.lane.b32.xlu0 %v7116, 12
  %v7272 = vpop.permute.xlu0 %7271
  %7273 = vrot.lane.b32.xlu0 %v7118, 12
  %v7274 = vpop.permute.xlu0 %7273
  %7275 = vrot.lane.b32.xlu0 %v7121, 12
  %v7276 = vpop.permute.xlu0 %7275
  %7277 = vrot.lane.b32.xlu0 %v7123, 12
  %v7278 = vpop.permute.xlu0 %7277
  %7279 = vrot.lane.b32.xlu0 %v7126, 12
  %v7280 = vpop.permute.xlu0 %7279
  %7281 = vrot.lane.b32.xlu0 %v7128, 12
  %v7282 = vpop.permute.xlu0 %7281
  %7283 = vrot.lane.b32.xlu0 %v7131, 12
  %v7284 = vpop.permute.xlu0 %7283
  %7285 = vrot.lane.b32.xlu0 %v7133, 12
  %v7286 = vpop.permute.xlu0 %7285
  %7287 = vrot.lane.b32.xlu0 %v7136, 12
  %v7288 = vpop.permute.xlu0 %7287
  %7289 = vrot.lane.b32.xlu0 %v7138, 12
  %v7290 = vpop.permute.xlu0 %7289
  %7291 = vrot.lane.b32.xlu0 %v7141, 12
  %v7292 = vpop.permute.xlu0 %7291
  %7293 = vrot.lane.b32.xlu0 %v7143, 12
  %v7294 = vpop.permute.xlu0 %7293
  %7295 = vrot.lane.b32.xlu0 %v7146, 12
  %v7296 = vpop.permute.xlu0 %7295
  %7297 = vrot.lane.b32.xlu0 %v7148, 12
  %v7298 = vpop.permute.xlu0 %7297
  %7299 = vrot.lane.b32.xlu0 %v7151, 12
  %v7300 = vpop.permute.xlu0 %7299
  %7301 = vrot.lane.b32.xlu0 %v7153, 12
  %v7302 = vpop.permute.xlu0 %7301
  %7303 = vrot.lane.b32.xlu0 %v7156, 12
  %v7304 = vpop.permute.xlu0 %7303
  %7305 = vrot.lane.b32.xlu0 %v7158, 12
  %v7306 = vpop.permute.xlu0 %7305
  %7307 = vrot.lane.b32.xlu0 %v7161, 12
  %v7308 = vpop.permute.xlu0 %7307
  %7309 = vrot.lane.b32.xlu0 %v7163, 12
  %v7310 = vpop.permute.xlu0 %7309
  %7311 = vrot.lane.b32.xlu0 %v7166, 12
  %v7312 = vpop.permute.xlu0 %7311
  %7313 = vrot.lane.b32.xlu0 %v7168, 12
  %v7314 = vpop.permute.xlu0 %7313
  %7315 = vrot.lane.b32.xlu0 %v7171, 12
  %v7316 = vpop.permute.xlu0 %7315
  %7317 = vrot.lane.b32.xlu0 %v7173, 12
  %v7318 = vpop.permute.xlu0 %7317
  %7319 = vrot.lane.b32.xlu0 %v7176, 12
  %v7320 = vpop.permute.xlu0 %7319
  %7321 = vrot.lane.b32.xlu0 %v7178, 12
  %v7322 = vpop.permute.xlu0 %7321
  %7323 = vrot.lane.b32.xlu0 %v7181, 12
  %v7324 = vpop.permute.xlu0 %7323
  %7325 = vrot.lane.b32.xlu0 %v7183, 12
  %v7326 = vpop.permute.xlu0 %7325
  %7327 = vrot.lane.b32.xlu0 %v7186, 12
  %v7328 = vpop.permute.xlu0 %7327
  %7329 = vrot.lane.b32.xlu0 %v7188, 12
  %v7330 = vpop.permute.xlu0 %7329
  %7331 = vrot.lane.b32.xlu0 %v7191, 12
  %v7332 = vpop.permute.xlu0 %7331
  %7333 = vrot.lane.b32.xlu0 %v7193, 12
  %v7334 = vpop.permute.xlu0 %7333
  %7335 = vrot.lane.b32.xlu0 %v7196, 12
  %v7336 = vpop.permute.xlu0 %7335
  %7337 = vrot.lane.b32.xlu0 %v7198, 12
  %v7338 = vpop.permute.xlu0 %7337
  %7339 = vrot.lane.b32.xlu0 %v7201, 12
  %v7340 = vpop.permute.xlu0 %7339
  %7341 = vrot.lane.b32.xlu0 %v7203, 12
  %v7342 = vpop.permute.xlu0 %7341
  %7343 = vrot.lane.b32.xlu0 %v7206, 12
  %v7344 = vpop.permute.xlu0 %7343
  %7345 = vrot.lane.b32.xlu0 %v7208, 12
  %v7346 = vpop.permute.xlu0 %7345
  %7347 = vrot.lane.b32.xlu0 %v7211, 12
  %v7348 = vpop.permute.xlu0 %7347
  %7349 = vrot.lane.b32.xlu0 %v7213, 12
  %v7350 = vpop.permute.xlu0 %7349
  %7351 = vrot.lane.b32.xlu0 %v7216, 12
  %v7352 = vpop.permute.xlu0 %7351
  %7353 = vrot.lane.b32.xlu0 %v7218, 12
  %v7354 = vpop.permute.xlu0 %7353
  %7355 = vrot.lane.b32.xlu0 %v7221, 12
  %v7356 = vpop.permute.xlu0 %7355
  %7357 = vrot.lane.b32.xlu0 %v7223, 12
  %v7358 = vpop.permute.xlu0 %7357
  %7359 = vrot.lane.b32.xlu0 %v7226, 12
  %v7360 = vpop.permute.xlu0 %7359
  %7361 = vrot.lane.b32.xlu0 %v7228, 12
  %v7362 = vpop.permute.xlu0 %7361
  %7363 = vrot.lane.b32.xlu0 %v7231, 12
  %v7364 = vpop.permute.xlu0 %7363
  %7365 = vrot.lane.b32.xlu0 %v7233, 12
  %v7366 = vpop.permute.xlu0 %7365
  %7367 = vrot.lane.b32.xlu0 %v7236, 12
  %v7368 = vpop.permute.xlu0 %7367
  %7369 = vrot.lane.b32.xlu0 %v7238, 12
  %v7370 = vpop.permute.xlu0 %7369
  %7371 = vrot.lane.b32.xlu0 %v7241, 12
  %v7372 = vpop.permute.xlu0 %7371
  %7373 = vrot.lane.b32.xlu0 %v7243, 12
  %v7374 = vpop.permute.xlu0 %7373
  %7375 = vrot.lane.b32.xlu0 %v7246, 12
  %v7376 = vpop.permute.xlu0 %7375
  %7377 = vrot.lane.b32.xlu0 %v7248, 12
  %v7378 = vpop.permute.xlu0 %7377
  %7379 = vrot.lane.b32.xlu0 %v7251, 12
  %v7380 = vpop.permute.xlu0 %7379
  %7381 = vrot.lane.b32.xlu0 %v7253, 12
  %v7382 = vpop.permute.xlu0 %7381
  %7383 = vrot.lane.b32.xlu0 %v7256, 12
  %v7384 = vpop.permute.xlu0 %7383
  %7385 = vrot.lane.b32.xlu0 %v7258, 12
  %v7386 = vpop.permute.xlu0 %7385
  %v7451 = vrot.slane %v6267, 4
  %v7452 = vrot.slane %v6077, 4
  %v7453 = vsel %vm1533, %v7451, %v7452
  %v7454 = vrot.slane %v6299, 4
  %v7455 = vsel %vm1533, %v7452, %v7454
  %v7456 = vrot.slane %v6268, 4
  %v7457 = vrot.slane %v6080, 4
  %v7458 = vsel %vm1533, %v7456, %v7457
  %v7459 = vrot.slane %v6300, 4
  %v7460 = vsel %vm1533, %v7457, %v7459
  %v7461 = vrot.slane %v6269, 4
  %v7462 = vrot.slane %v6083, 4
  %v7463 = vsel %vm1533, %v7461, %v7462
  %v7464 = vrot.slane %v6301, 4
  %v7465 = vsel %vm1533, %v7462, %v7464
  %v7466 = vrot.slane %v6270, 4
  %v7467 = vrot.slane %v6086, 4
  %v7468 = vsel %vm1533, %v7466, %v7467
  %v7469 = vrot.slane %v6302, 4
  %v7470 = vsel %vm1533, %v7467, %v7469
  %v7471 = vrot.slane %v6271, 4
  %v7472 = vrot.slane %v6089, 4
  %v7473 = vsel %vm1533, %v7471, %v7472
  %v7474 = vrot.slane %v6303, 4
  %v7475 = vsel %vm1533, %v7472, %v7474
  %v7476 = vrot.slane %v6272, 4
  %v7477 = vrot.slane %v6092, 4
  %v7478 = vsel %vm1533, %v7476, %v7477
  %v7479 = vrot.slane %v6304, 4
  %v7480 = vsel %vm1533, %v7477, %v7479
  %v7481 = vrot.slane %v6273, 4
  %v7482 = vrot.slane %v6095, 4
  %v7483 = vsel %vm1533, %v7481, %v7482
  %v7484 = vrot.slane %v6305, 4
  %v7485 = vsel %vm1533, %v7482, %v7484
  %v7486 = vrot.slane %v6274, 4
  %v7487 = vrot.slane %v6098, 4
  %v7488 = vsel %vm1533, %v7486, %v7487
  %v7489 = vrot.slane %v6306, 4
  %v7490 = vsel %vm1533, %v7487, %v7489
  %v7491 = vrot.slane %v6275, 4
  %v7492 = vrot.slane %v6101, 4
  %v7493 = vsel %vm1533, %v7491, %v7492
  %v7494 = vrot.slane %v6307, 4
  %v7495 = vsel %vm1533, %v7492, %v7494
  %v7496 = vrot.slane %v6276, 4
  %v7497 = vrot.slane %v6104, 4
  %v7498 = vsel %vm1533, %v7496, %v7497
  %v7499 = vrot.slane %v6308, 4
  %v7500 = vsel %vm1533, %v7497, %v7499
  %v7501 = vrot.slane %v6277, 4
  %v7502 = vrot.slane %v6107, 4
  %v7503 = vsel %vm1533, %v7501, %v7502
  %v7504 = vrot.slane %v6309, 4
  %v7505 = vsel %vm1533, %v7502, %v7504
  %v7506 = vrot.slane %v6278, 4
  %v7507 = vrot.slane %v6110, 4
  %v7508 = vsel %vm1533, %v7506, %v7507
  %v7509 = vrot.slane %v6310, 4
  %v7510 = vsel %vm1533, %v7507, %v7509
  %v7511 = vrot.slane %v6279, 4
  %v7512 = vrot.slane %v6113, 4
  %v7513 = vsel %vm1533, %v7511, %v7512
  %v7514 = vrot.slane %v6311, 4
  %v7515 = vsel %vm1533, %v7512, %v7514
  %v7516 = vrot.slane %v6280, 4
  %v7517 = vrot.slane %v6116, 4
  %v7518 = vsel %vm1533, %v7516, %v7517
  %v7519 = vrot.slane %v6312, 4
  %v7520 = vsel %vm1533, %v7517, %v7519
  %v7521 = vrot.slane %v6281, 4
  %v7522 = vrot.slane %v6119, 4
  %v7523 = vsel %vm1533, %v7521, %v7522
  %v7524 = vrot.slane %v6313, 4
  %v7525 = vsel %vm1533, %v7522, %v7524
  %v7526 = vrot.slane %v6282, 4
  %v7527 = vrot.slane %v6122, 4
  %v7528 = vsel %vm1533, %v7526, %v7527
  %v7529 = vrot.slane %v6314, 4
  %v7530 = vsel %vm1533, %v7527, %v7529
  %v7531 = vrot.slane %v6283, 4
  %v7532 = vrot.slane %v6125, 4
  %v7533 = vsel %vm1533, %v7531, %v7532
  %v7534 = vrot.slane %v6315, 4
  %v7535 = vsel %vm1533, %v7532, %v7534
  %v7536 = vrot.slane %v6284, 4
  %v7537 = vrot.slane %v6128, 4
  %v7538 = vsel %vm1533, %v7536, %v7537
  %v7539 = vrot.slane %v6316, 4
  %v7540 = vsel %vm1533, %v7537, %v7539
  %v7541 = vrot.slane %v6285, 4
  %v7542 = vrot.slane %v6131, 4
  %v7543 = vsel %vm1533, %v7541, %v7542
  %v7544 = vrot.slane %v6317, 4
  %v7545 = vsel %vm1533, %v7542, %v7544
  %v7546 = vrot.slane %v6286, 4
  %v7547 = vrot.slane %v6134, 4
  %v7548 = vsel %vm1533, %v7546, %v7547
  %v7549 = vrot.slane %v6318, 4
  %v7550 = vsel %vm1533, %v7547, %v7549
  %v7551 = vrot.slane %v6287, 4
  %v7552 = vrot.slane %v6137, 4
  %v7553 = vsel %vm1533, %v7551, %v7552
  %v7554 = vrot.slane %v6319, 4
  %v7555 = vsel %vm1533, %v7552, %v7554
  %v7556 = vrot.slane %v6288, 4
  %v7557 = vrot.slane %v6140, 4
  %v7558 = vsel %vm1533, %v7556, %v7557
  %v7559 = vrot.slane %v6320, 4
  %v7560 = vsel %vm1533, %v7557, %v7559
  %v7561 = vrot.slane %v6289, 4
  %v7562 = vrot.slane %v6143, 4
  %v7563 = vsel %vm1533, %v7561, %v7562
  %v7564 = vrot.slane %v6321, 4
  %v7565 = vsel %vm1533, %v7562, %v7564
  %v7566 = vrot.slane %v6290, 4
  %v7567 = vrot.slane %v6146, 4
  %v7568 = vsel %vm1533, %v7566, %v7567
  %v7569 = vrot.slane %v6322, 4
  %v7570 = vsel %vm1533, %v7567, %v7569
  %v7571 = vrot.slane %v6291, 4
  %v7572 = vrot.slane %v6149, 4
  %v7573 = vsel %vm1533, %v7571, %v7572
  %v7574 = vrot.slane %v6323, 4
  %v7575 = vsel %vm1533, %v7572, %v7574
  %v7576 = vrot.slane %v6292, 4
  %v7577 = vrot.slane %v6152, 4
  %v7578 = vsel %vm1533, %v7576, %v7577
  %v7579 = vrot.slane %v6324, 4
  %v7580 = vsel %vm1533, %v7577, %v7579
  %v7581 = vrot.slane %v6293, 4
  %v7582 = vrot.slane %v6155, 4
  %v7583 = vsel %vm1533, %v7581, %v7582
  %v7584 = vrot.slane %v6325, 4
  %v7585 = vsel %vm1533, %v7582, %v7584
  %v7586 = vrot.slane %v6294, 4
  %v7587 = vrot.slane %v6158, 4
  %v7588 = vsel %vm1533, %v7586, %v7587
  %v7589 = vrot.slane %v6326, 4
  %v7590 = vsel %vm1533, %v7587, %v7589
  %v7591 = vrot.slane %v6295, 4
  %v7592 = vrot.slane %v6161, 4
  %v7593 = vsel %vm1533, %v7591, %v7592
  %v7594 = vrot.slane %v6327, 4
  %v7595 = vsel %vm1533, %v7592, %v7594
  %v7596 = vrot.slane %v6296, 4
  %v7597 = vrot.slane %v6164, 4
  %v7598 = vsel %vm1533, %v7596, %v7597
  %v7599 = vrot.slane %v6328, 4
  %v7600 = vsel %vm1533, %v7597, %v7599
  %v7601 = vrot.slane %v6297, 4
  %v7602 = vrot.slane %v6167, 4
  %v7603 = vsel %vm1533, %v7601, %v7602
  %v7604 = vrot.slane %v6329, 4
  %v7605 = vsel %vm1533, %v7602, %v7604
  %v7606 = vrot.slane %v6298, 4
  %v7607 = vrot.slane %v6170, 4
  %v7608 = vsel %vm1533, %v7606, %v7607
  %v7609 = vrot.slane %v6330, 4
  %v7610 = vsel %vm1533, %v7607, %v7609
  %7611 = vrot.lane.b32.xlu0 %v7453, 16
  %v7612 = vpop.permute.xlu0 %7611
  %7613 = vrot.lane.b32.xlu0 %v7455, 16
  %v7614 = vpop.permute.xlu0 %7613
  %7615 = vrot.lane.b32.xlu0 %v7458, 16
  %v7616 = vpop.permute.xlu0 %7615
  %7617 = vrot.lane.b32.xlu0 %v7460, 16
  %v7618 = vpop.permute.xlu0 %7617
  %7619 = vrot.lane.b32.xlu0 %v7463, 16
  %v7620 = vpop.permute.xlu0 %7619
  %7621 = vrot.lane.b32.xlu0 %v7465, 16
  %v7622 = vpop.permute.xlu0 %7621
  %7623 = vrot.lane.b32.xlu0 %v7468, 16
  %v7624 = vpop.permute.xlu0 %7623
  %7625 = vrot.lane.b32.xlu0 %v7470, 16
  %v7626 = vpop.permute.xlu0 %7625
  %7627 = vrot.lane.b32.xlu0 %v7473, 16
  %v7628 = vpop.permute.xlu0 %7627
  %7629 = vrot.lane.b32.xlu0 %v7475, 16
  %v7630 = vpop.permute.xlu0 %7629
  %7631 = vrot.lane.b32.xlu0 %v7478, 16
  %v7632 = vpop.permute.xlu0 %7631
  %7633 = vrot.lane.b32.xlu0 %v7480, 16
  %v7634 = vpop.permute.xlu0 %7633
  %7635 = vrot.lane.b32.xlu0 %v7483, 16
  %v7636 = vpop.permute.xlu0 %7635
  %7637 = vrot.lane.b32.xlu0 %v7485, 16
  %v7638 = vpop.permute.xlu0 %7637
  %7639 = vrot.lane.b32.xlu0 %v7488, 16
  %v7640 = vpop.permute.xlu0 %7639
  %7641 = vrot.lane.b32.xlu0 %v7490, 16
  %v7642 = vpop.permute.xlu0 %7641
  %7643 = vrot.lane.b32.xlu0 %v7493, 16
  %v7644 = vpop.permute.xlu0 %7643
  %7645 = vrot.lane.b32.xlu0 %v7495, 16
  %v7646 = vpop.permute.xlu0 %7645
  %7647 = vrot.lane.b32.xlu0 %v7498, 16
  %v7648 = vpop.permute.xlu0 %7647
  %7649 = vrot.lane.b32.xlu0 %v7500, 16
  %v7650 = vpop.permute.xlu0 %7649
  %7651 = vrot.lane.b32.xlu0 %v7503, 16
  %v7652 = vpop.permute.xlu0 %7651
  %7653 = vrot.lane.b32.xlu0 %v7505, 16
  %v7654 = vpop.permute.xlu0 %7653
  %7655 = vrot.lane.b32.xlu0 %v7508, 16
  %v7656 = vpop.permute.xlu0 %7655
  %7657 = vrot.lane.b32.xlu0 %v7510, 16
  %v7658 = vpop.permute.xlu0 %7657
  %7659 = vrot.lane.b32.xlu0 %v7513, 16
  %v7660 = vpop.permute.xlu0 %7659
  %7661 = vrot.lane.b32.xlu0 %v7515, 16
  %v7662 = vpop.permute.xlu0 %7661
  %7663 = vrot.lane.b32.xlu0 %v7518, 16
  %v7664 = vpop.permute.xlu0 %7663
  %7665 = vrot.lane.b32.xlu0 %v7520, 16
  %v7666 = vpop.permute.xlu0 %7665
  %7667 = vrot.lane.b32.xlu0 %v7523, 16
  %v7668 = vpop.permute.xlu0 %7667
  %7669 = vrot.lane.b32.xlu0 %v7525, 16
  %v7670 = vpop.permute.xlu0 %7669
  %7671 = vrot.lane.b32.xlu0 %v7528, 16
  %v7672 = vpop.permute.xlu0 %7671
  %7673 = vrot.lane.b32.xlu0 %v7530, 16
  %v7674 = vpop.permute.xlu0 %7673
  %7675 = vrot.lane.b32.xlu0 %v7533, 16
  %v7676 = vpop.permute.xlu0 %7675
  %7677 = vrot.lane.b32.xlu0 %v7535, 16
  %v7678 = vpop.permute.xlu0 %7677
  %7679 = vrot.lane.b32.xlu0 %v7538, 16
  %v7680 = vpop.permute.xlu0 %7679
  %7681 = vrot.lane.b32.xlu0 %v7540, 16
  %v7682 = vpop.permute.xlu0 %7681
  %7683 = vrot.lane.b32.xlu0 %v7543, 16
  %v7684 = vpop.permute.xlu0 %7683
  %7685 = vrot.lane.b32.xlu0 %v7545, 16
  %v7686 = vpop.permute.xlu0 %7685
  %7687 = vrot.lane.b32.xlu0 %v7548, 16
  %v7688 = vpop.permute.xlu0 %7687
  %7689 = vrot.lane.b32.xlu0 %v7550, 16
  %v7690 = vpop.permute.xlu0 %7689
  %7691 = vrot.lane.b32.xlu0 %v7553, 16
  %v7692 = vpop.permute.xlu0 %7691
  %7693 = vrot.lane.b32.xlu0 %v7555, 16
  %v7694 = vpop.permute.xlu0 %7693
  %7695 = vrot.lane.b32.xlu0 %v7558, 16
  %v7696 = vpop.permute.xlu0 %7695
  %7697 = vrot.lane.b32.xlu0 %v7560, 16
  %v7698 = vpop.permute.xlu0 %7697
  %7699 = vrot.lane.b32.xlu0 %v7563, 16
  %v7700 = vpop.permute.xlu0 %7699
  %7701 = vrot.lane.b32.xlu0 %v7565, 16
  %v7702 = vpop.permute.xlu0 %7701
  %7703 = vrot.lane.b32.xlu0 %v7568, 16
  %v7704 = vpop.permute.xlu0 %7703
  %7705 = vrot.lane.b32.xlu0 %v7570, 16
  %v7706 = vpop.permute.xlu0 %7705
  %7707 = vrot.lane.b32.xlu0 %v7573, 16
  %v7708 = vpop.permute.xlu0 %7707
  %7709 = vrot.lane.b32.xlu0 %v7575, 16
  %v7710 = vpop.permute.xlu0 %7709
  %7711 = vrot.lane.b32.xlu0 %v7578, 16
  %v7712 = vpop.permute.xlu0 %7711
  %7713 = vrot.lane.b32.xlu0 %v7580, 16
  %v7714 = vpop.permute.xlu0 %7713
  %7715 = vrot.lane.b32.xlu0 %v7583, 16
  %v7716 = vpop.permute.xlu0 %7715
  %7717 = vrot.lane.b32.xlu0 %v7585, 16
  %v7718 = vpop.permute.xlu0 %7717
  %7719 = vrot.lane.b32.xlu0 %v7588, 16
  %v7720 = vpop.permute.xlu0 %7719
  %7721 = vrot.lane.b32.xlu0 %v7590, 16
  %v7722 = vpop.permute.xlu0 %7721
  %7723 = vrot.lane.b32.xlu0 %v7593, 16
  %v7724 = vpop.permute.xlu0 %7723
  %7725 = vrot.lane.b32.xlu0 %v7595, 16
  %v7726 = vpop.permute.xlu0 %7725
  %7727 = vrot.lane.b32.xlu0 %v7598, 16
  %v7728 = vpop.permute.xlu0 %7727
  %7729 = vrot.lane.b32.xlu0 %v7600, 16
  %v7730 = vpop.permute.xlu0 %7729
  %7731 = vrot.lane.b32.xlu0 %v7603, 16
  %v7732 = vpop.permute.xlu0 %7731
  %7733 = vrot.lane.b32.xlu0 %v7605, 16
  %v7734 = vpop.permute.xlu0 %7733
  %7735 = vrot.lane.b32.xlu0 %v7608, 16
  %v7736 = vpop.permute.xlu0 %7735
  %7737 = vrot.lane.b32.xlu0 %v7610, 16
  %v7738 = vpop.permute.xlu0 %7737
  %v7803 = vrot.slane %v6267, 5
  %v7804 = vrot.slane %v6077, 5
  %v7805 = vsel %vm1886, %v7803, %v7804
  %v7806 = vrot.slane %v6299, 5
  %v7807 = vsel %vm1886, %v7804, %v7806
  %v7808 = vrot.slane %v6268, 5
  %v7809 = vrot.slane %v6080, 5
  %v7810 = vsel %vm1886, %v7808, %v7809
  %v7811 = vrot.slane %v6300, 5
  %v7812 = vsel %vm1886, %v7809, %v7811
  %v7813 = vrot.slane %v6269, 5
  %v7814 = vrot.slane %v6083, 5
  %v7815 = vsel %vm1886, %v7813, %v7814
  %v7816 = vrot.slane %v6301, 5
  %v7817 = vsel %vm1886, %v7814, %v7816
  %v7818 = vrot.slane %v6270, 5
  %v7819 = vrot.slane %v6086, 5
  %v7820 = vsel %vm1886, %v7818, %v7819
  %v7821 = vrot.slane %v6302, 5
  %v7822 = vsel %vm1886, %v7819, %v7821
  %v7823 = vrot.slane %v6271, 5
  %v7824 = vrot.slane %v6089, 5
  %v7825 = vsel %vm1886, %v7823, %v7824
  %v7826 = vrot.slane %v6303, 5
  %v7827 = vsel %vm1886, %v7824, %v7826
  %v7828 = vrot.slane %v6272, 5
  %v7829 = vrot.slane %v6092, 5
  %v7830 = vsel %vm1886, %v7828, %v7829
  %v7831 = vrot.slane %v6304, 5
  %v7832 = vsel %vm1886, %v7829, %v7831
  %v7833 = vrot.slane %v6273, 5
  %v7834 = vrot.slane %v6095, 5
  %v7835 = vsel %vm1886, %v7833, %v7834
  %v7836 = vrot.slane %v6305, 5
  %v7837 = vsel %vm1886, %v7834, %v7836
  %v7838 = vrot.slane %v6274, 5
  %v7839 = vrot.slane %v6098, 5
  %v7840 = vsel %vm1886, %v7838, %v7839
  %v7841 = vrot.slane %v6306, 5
  %v7842 = vsel %vm1886, %v7839, %v7841
  %v7843 = vrot.slane %v6275, 5
  %v7844 = vrot.slane %v6101, 5
  %v7845 = vsel %vm1886, %v7843, %v7844
  %v7846 = vrot.slane %v6307, 5
  %v7847 = vsel %vm1886, %v7844, %v7846
  %v7848 = vrot.slane %v6276, 5
  %v7849 = vrot.slane %v6104, 5
  %v7850 = vsel %vm1886, %v7848, %v7849
  %v7851 = vrot.slane %v6308, 5
  %v7852 = vsel %vm1886, %v7849, %v7851
  %v7853 = vrot.slane %v6277, 5
  %v7854 = vrot.slane %v6107, 5
  %v7855 = vsel %vm1886, %v7853, %v7854
  %v7856 = vrot.slane %v6309, 5
  %v7857 = vsel %vm1886, %v7854, %v7856
  %v7858 = vrot.slane %v6278, 5
  %v7859 = vrot.slane %v6110, 5
  %v7860 = vsel %vm1886, %v7858, %v7859
  %v7861 = vrot.slane %v6310, 5
  %v7862 = vsel %vm1886, %v7859, %v7861
  %v7863 = vrot.slane %v6279, 5
  %v7864 = vrot.slane %v6113, 5
  %v7865 = vsel %vm1886, %v7863, %v7864
  %v7866 = vrot.slane %v6311, 5
  %v7867 = vsel %vm1886, %v7864, %v7866
  %v7868 = vrot.slane %v6280, 5
  %v7869 = vrot.slane %v6116, 5
  %v7870 = vsel %vm1886, %v7868, %v7869
  %v7871 = vrot.slane %v6312, 5
  %v7872 = vsel %vm1886, %v7869, %v7871
  %v7873 = vrot.slane %v6281, 5
  %v7874 = vrot.slane %v6119, 5
  %v7875 = vsel %vm1886, %v7873, %v7874
  %v7876 = vrot.slane %v6313, 5
  %v7877 = vsel %vm1886, %v7874, %v7876
  %v7878 = vrot.slane %v6282, 5
  %v7879 = vrot.slane %v6122, 5
  %v7880 = vsel %vm1886, %v7878, %v7879
  %v7881 = vrot.slane %v6314, 5
  %v7882 = vsel %vm1886, %v7879, %v7881
  %v7883 = vrot.slane %v6283, 5
  %v7884 = vrot.slane %v6125, 5
  %v7885 = vsel %vm1886, %v7883, %v7884
  %v7886 = vrot.slane %v6315, 5
  %v7887 = vsel %vm1886, %v7884, %v7886
  %v7888 = vrot.slane %v6284, 5
  %v7889 = vrot.slane %v6128, 5
  %v7890 = vsel %vm1886, %v7888, %v7889
  %v7891 = vrot.slane %v6316, 5
  %v7892 = vsel %vm1886, %v7889, %v7891
  %v7893 = vrot.slane %v6285, 5
  %v7894 = vrot.slane %v6131, 5
  %v7895 = vsel %vm1886, %v7893, %v7894
  %v7896 = vrot.slane %v6317, 5
  %v7897 = vsel %vm1886, %v7894, %v7896
  %v7898 = vrot.slane %v6286, 5
  %v7899 = vrot.slane %v6134, 5
  %v7900 = vsel %vm1886, %v7898, %v7899
  %v7901 = vrot.slane %v6318, 5
  %v7902 = vsel %vm1886, %v7899, %v7901
  %v7903 = vrot.slane %v6287, 5
  %v7904 = vrot.slane %v6137, 5
  %v7905 = vsel %vm1886, %v7903, %v7904
  %v7906 = vrot.slane %v6319, 5
  %v7907 = vsel %vm1886, %v7904, %v7906
  %v7908 = vrot.slane %v6288, 5
  %v7909 = vrot.slane %v6140, 5
  %v7910 = vsel %vm1886, %v7908, %v7909
  %v7911 = vrot.slane %v6320, 5
  %v7912 = vsel %vm1886, %v7909, %v7911
  %v7913 = vrot.slane %v6289, 5
  %v7914 = vrot.slane %v6143, 5
  %v7915 = vsel %vm1886, %v7913, %v7914
  %v7916 = vrot.slane %v6321, 5
  %v7917 = vsel %vm1886, %v7914, %v7916
  %v7918 = vrot.slane %v6290, 5
  %v7919 = vrot.slane %v6146, 5
  %v7920 = vsel %vm1886, %v7918, %v7919
  %v7921 = vrot.slane %v6322, 5
  %v7922 = vsel %vm1886, %v7919, %v7921
  %v7923 = vrot.slane %v6291, 5
  %v7924 = vrot.slane %v6149, 5
  %v7925 = vsel %vm1886, %v7923, %v7924
  %v7926 = vrot.slane %v6323, 5
  %v7927 = vsel %vm1886, %v7924, %v7926
  %v7928 = vrot.slane %v6292, 5
  %v7929 = vrot.slane %v6152, 5
  %v7930 = vsel %vm1886, %v7928, %v7929
  %v7931 = vrot.slane %v6324, 5
  %v7932 = vsel %vm1886, %v7929, %v7931
  %v7933 = vrot.slane %v6293, 5
  %v7934 = vrot.slane %v6155, 5
  %v7935 = vsel %vm1886, %v7933, %v7934
  %v7936 = vrot.slane %v6325, 5
  %v7937 = vsel %vm1886, %v7934, %v7936
  %v7938 = vrot.slane %v6294, 5
  %v7939 = vrot.slane %v6158, 5
  %v7940 = vsel %vm1886, %v7938, %v7939
  %v7941 = vrot.slane %v6326, 5
  %v7942 = vsel %vm1886, %v7939, %v7941
  %v7943 = vrot.slane %v6295, 5
  %v7944 = vrot.slane %v6161, 5
  %v7945 = vsel %vm1886, %v7943, %v7944
  %v7946 = vrot.slane %v6327, 5
  %v7947 = vsel %vm1886, %v7944, %v7946
  %v7948 = vrot.slane %v6296, 5
  %v7949 = vrot.slane %v6164, 5
  %v7950 = vsel %vm1886, %v7948, %v7949
  %v7951 = vrot.slane %v6328, 5
  %v7952 = vsel %vm1886, %v7949, %v7951
  %v7953 = vrot.slane %v6297, 5
  %v7954 = vrot.slane %v6167, 5
  %v7955 = vsel %vm1886, %v7953, %v7954
  %v7956 = vrot.slane %v6329, 5
  %v7957 = vsel %vm1886, %v7954, %v7956
  %v7958 = vrot.slane %v6298, 5
  %v7959 = vrot.slane %v6170, 5
  %v7960 = vsel %vm1886, %v7958, %v7959
  %v7961 = vrot.slane %v6330, 5
  %v7962 = vsel %vm1886, %v7959, %v7961
  %7963 = vrot.lane.b32.xlu0 %v7805, 20
  %v7964 = vpop.permute.xlu0 %7963
  %7965 = vrot.lane.b32.xlu0 %v7807, 20
  %v7966 = vpop.permute.xlu0 %7965
  %7967 = vrot.lane.b32.xlu0 %v7810, 20
  %v7968 = vpop.permute.xlu0 %7967
  %7969 = vrot.lane.b32.xlu0 %v7812, 20
  %v7970 = vpop.permute.xlu0 %7969
  %7971 = vrot.lane.b32.xlu0 %v7815, 20
  %v7972 = vpop.permute.xlu0 %7971
  %7973 = vrot.lane.b32.xlu0 %v7817, 20
  %v7974 = vpop.permute.xlu0 %7973
  %7975 = vrot.lane.b32.xlu0 %v7820, 20
  %v7976 = vpop.permute.xlu0 %7975
  %7977 = vrot.lane.b32.xlu0 %v7822, 20
  %v7978 = vpop.permute.xlu0 %7977
  %7979 = vrot.lane.b32.xlu0 %v7825, 20
  %v7980 = vpop.permute.xlu0 %7979
  %7981 = vrot.lane.b32.xlu0 %v7827, 20
  %v7982 = vpop.permute.xlu0 %7981
  %7983 = vrot.lane.b32.xlu0 %v7830, 20
  %v7984 = vpop.permute.xlu0 %7983
  %7985 = vrot.lane.b32.xlu0 %v7832, 20
  %v7986 = vpop.permute.xlu0 %7985
  %7987 = vrot.lane.b32.xlu0 %v7835, 20
  %v7988 = vpop.permute.xlu0 %7987
  %7989 = vrot.lane.b32.xlu0 %v7837, 20
  %v7990 = vpop.permute.xlu0 %7989
  %7991 = vrot.lane.b32.xlu0 %v7840, 20
  %v7992 = vpop.permute.xlu0 %7991
  %7993 = vrot.lane.b32.xlu0 %v7842, 20
  %v7994 = vpop.permute.xlu0 %7993
  %7995 = vrot.lane.b32.xlu0 %v7845, 20
  %v7996 = vpop.permute.xlu0 %7995
  %7997 = vrot.lane.b32.xlu0 %v7847, 20
  %v7998 = vpop.permute.xlu0 %7997
  %7999 = vrot.lane.b32.xlu0 %v7850, 20
  %v8000 = vpop.permute.xlu0 %7999
  %8001 = vrot.lane.b32.xlu0 %v7852, 20
  %v8002 = vpop.permute.xlu0 %8001
  %8003 = vrot.lane.b32.xlu0 %v7855, 20
  %v8004 = vpop.permute.xlu0 %8003
  %8005 = vrot.lane.b32.xlu0 %v7857, 20
  %v8006 = vpop.permute.xlu0 %8005
  %8007 = vrot.lane.b32.xlu0 %v7860, 20
  %v8008 = vpop.permute.xlu0 %8007
  %8009 = vrot.lane.b32.xlu0 %v7862, 20
  %v8010 = vpop.permute.xlu0 %8009
  %8011 = vrot.lane.b32.xlu0 %v7865, 20
  %v8012 = vpop.permute.xlu0 %8011
  %8013 = vrot.lane.b32.xlu0 %v7867, 20
  %v8014 = vpop.permute.xlu0 %8013
  %8015 = vrot.lane.b32.xlu0 %v7870, 20
  %v8016 = vpop.permute.xlu0 %8015
  %8017 = vrot.lane.b32.xlu0 %v7872, 20
  %v8018 = vpop.permute.xlu0 %8017
  %8019 = vrot.lane.b32.xlu0 %v7875, 20
  %v8020 = vpop.permute.xlu0 %8019
  %8021 = vrot.lane.b32.xlu0 %v7877, 20
  %v8022 = vpop.permute.xlu0 %8021
  %8023 = vrot.lane.b32.xlu0 %v7880, 20
  %v8024 = vpop.permute.xlu0 %8023
  %8025 = vrot.lane.b32.xlu0 %v7882, 20
  %v8026 = vpop.permute.xlu0 %8025
  %8027 = vrot.lane.b32.xlu0 %v7885, 20
  %v8028 = vpop.permute.xlu0 %8027
  %8029 = vrot.lane.b32.xlu0 %v7887, 20
  %v8030 = vpop.permute.xlu0 %8029
  %8031 = vrot.lane.b32.xlu0 %v7890, 20
  %v8032 = vpop.permute.xlu0 %8031
  %8033 = vrot.lane.b32.xlu0 %v7892, 20
  %v8034 = vpop.permute.xlu0 %8033
  %8035 = vrot.lane.b32.xlu0 %v7895, 20
  %v8036 = vpop.permute.xlu0 %8035
  %8037 = vrot.lane.b32.xlu0 %v7897, 20
  %v8038 = vpop.permute.xlu0 %8037
  %8039 = vrot.lane.b32.xlu0 %v7900, 20
  %v8040 = vpop.permute.xlu0 %8039
  %8041 = vrot.lane.b32.xlu0 %v7902, 20
  %v8042 = vpop.permute.xlu0 %8041
  %8043 = vrot.lane.b32.xlu0 %v7905, 20
  %v8044 = vpop.permute.xlu0 %8043
  %8045 = vrot.lane.b32.xlu0 %v7907, 20
  %v8046 = vpop.permute.xlu0 %8045
  %8047 = vrot.lane.b32.xlu0 %v7910, 20
  %v8048 = vpop.permute.xlu0 %8047
  %8049 = vrot.lane.b32.xlu0 %v7912, 20
  %v8050 = vpop.permute.xlu0 %8049
  %8051 = vrot.lane.b32.xlu0 %v7915, 20
  %v8052 = vpop.permute.xlu0 %8051
  %8053 = vrot.lane.b32.xlu0 %v7917, 20
  %v8054 = vpop.permute.xlu0 %8053
  %8055 = vrot.lane.b32.xlu0 %v7920, 20
  %v8056 = vpop.permute.xlu0 %8055
  %8057 = vrot.lane.b32.xlu0 %v7922, 20
  %v8058 = vpop.permute.xlu0 %8057
  %8059 = vrot.lane.b32.xlu0 %v7925, 20
  %v8060 = vpop.permute.xlu0 %8059
  %8061 = vrot.lane.b32.xlu0 %v7927, 20
  %v8062 = vpop.permute.xlu0 %8061
  %8063 = vrot.lane.b32.xlu0 %v7930, 20
  %v8064 = vpop.permute.xlu0 %8063
  %8065 = vrot.lane.b32.xlu0 %v7932, 20
  %v8066 = vpop.permute.xlu0 %8065
  %8067 = vrot.lane.b32.xlu0 %v7935, 20
  %v8068 = vpop.permute.xlu0 %8067
  %8069 = vrot.lane.b32.xlu0 %v7937, 20
  %v8070 = vpop.permute.xlu0 %8069
  %8071 = vrot.lane.b32.xlu0 %v7940, 20
  %v8072 = vpop.permute.xlu0 %8071
  %8073 = vrot.lane.b32.xlu0 %v7942, 20
  %v8074 = vpop.permute.xlu0 %8073
  %8075 = vrot.lane.b32.xlu0 %v7945, 20
  %v8076 = vpop.permute.xlu0 %8075
  %8077 = vrot.lane.b32.xlu0 %v7947, 20
  %v8078 = vpop.permute.xlu0 %8077
  %8079 = vrot.lane.b32.xlu0 %v7950, 20
  %v8080 = vpop.permute.xlu0 %8079
  %8081 = vrot.lane.b32.xlu0 %v7952, 20
  %v8082 = vpop.permute.xlu0 %8081
  %8083 = vrot.lane.b32.xlu0 %v7955, 20
  %v8084 = vpop.permute.xlu0 %8083
  %8085 = vrot.lane.b32.xlu0 %v7957, 20
  %v8086 = vpop.permute.xlu0 %8085
  %8087 = vrot.lane.b32.xlu0 %v7960, 20
  %v8088 = vpop.permute.xlu0 %8087
  %8089 = vrot.lane.b32.xlu0 %v7962, 20
  %v8090 = vpop.permute.xlu0 %8089
  %v8155 = vrot.slane %v6267, 6
  %v8156 = vrot.slane %v6077, 6
  %v8157 = vsel %vm2239, %v8155, %v8156
  %v8158 = vrot.slane %v6299, 6
  %v8159 = vsel %vm2239, %v8156, %v8158
  %v8160 = vrot.slane %v6268, 6
  %v8161 = vrot.slane %v6080, 6
  %v8162 = vsel %vm2239, %v8160, %v8161
  %v8163 = vrot.slane %v6300, 6
  %v8164 = vsel %vm2239, %v8161, %v8163
  %v8165 = vrot.slane %v6269, 6
  %v8166 = vrot.slane %v6083, 6
  %v8167 = vsel %vm2239, %v8165, %v8166
  %v8168 = vrot.slane %v6301, 6
  %v8169 = vsel %vm2239, %v8166, %v8168
  %v8170 = vrot.slane %v6270, 6
  %v8171 = vrot.slane %v6086, 6
  %v8172 = vsel %vm2239, %v8170, %v8171
  %v8173 = vrot.slane %v6302, 6
  %v8174 = vsel %vm2239, %v8171, %v8173
  %v8175 = vrot.slane %v6271, 6
  %v8176 = vrot.slane %v6089, 6
  %v8177 = vsel %vm2239, %v8175, %v8176
  %v8178 = vrot.slane %v6303, 6
  %v8179 = vsel %vm2239, %v8176, %v8178
  %v8180 = vrot.slane %v6272, 6
  %v8181 = vrot.slane %v6092, 6
  %v8182 = vsel %vm2239, %v8180, %v8181
  %v8183 = vrot.slane %v6304, 6
  %v8184 = vsel %vm2239, %v8181, %v8183
  %v8185 = vrot.slane %v6273, 6
  %v8186 = vrot.slane %v6095, 6
  %v8187 = vsel %vm2239, %v8185, %v8186
  %v8188 = vrot.slane %v6305, 6
  %v8189 = vsel %vm2239, %v8186, %v8188
  %v8190 = vrot.slane %v6274, 6
  %v8191 = vrot.slane %v6098, 6
  %v8192 = vsel %vm2239, %v8190, %v8191
  %v8193 = vrot.slane %v6306, 6
  %v8194 = vsel %vm2239, %v8191, %v8193
  %v8195 = vrot.slane %v6275, 6
  %v8196 = vrot.slane %v6101, 6
  %v8197 = vsel %vm2239, %v8195, %v8196
  %v8198 = vrot.slane %v6307, 6
  %v8199 = vsel %vm2239, %v8196, %v8198
  %v8200 = vrot.slane %v6276, 6
  %v8201 = vrot.slane %v6104, 6
  %v8202 = vsel %vm2239, %v8200, %v8201
  %v8203 = vrot.slane %v6308, 6
  %v8204 = vsel %vm2239, %v8201, %v8203
  %v8205 = vrot.slane %v6277, 6
  %v8206 = vrot.slane %v6107, 6
  %v8207 = vsel %vm2239, %v8205, %v8206
  %v8208 = vrot.slane %v6309, 6
  %v8209 = vsel %vm2239, %v8206, %v8208
  %v8210 = vrot.slane %v6278, 6
  %v8211 = vrot.slane %v6110, 6
  %v8212 = vsel %vm2239, %v8210, %v8211
  %v8213 = vrot.slane %v6310, 6
  %v8214 = vsel %vm2239, %v8211, %v8213
  %v8215 = vrot.slane %v6279, 6
  %v8216 = vrot.slane %v6113, 6
  %v8217 = vsel %vm2239, %v8215, %v8216
  %v8218 = vrot.slane %v6311, 6
  %v8219 = vsel %vm2239, %v8216, %v8218
  %v8220 = vrot.slane %v6280, 6
  %v8221 = vrot.slane %v6116, 6
  %v8222 = vsel %vm2239, %v8220, %v8221
  %v8223 = vrot.slane %v6312, 6
  %v8224 = vsel %vm2239, %v8221, %v8223
  %v8225 = vrot.slane %v6281, 6
  %v8226 = vrot.slane %v6119, 6
  %v8227 = vsel %vm2239, %v8225, %v8226
  %v8228 = vrot.slane %v6313, 6
  %v8229 = vsel %vm2239, %v8226, %v8228
  %v8230 = vrot.slane %v6282, 6
  %v8231 = vrot.slane %v6122, 6
  %v8232 = vsel %vm2239, %v8230, %v8231
  %v8233 = vrot.slane %v6314, 6
  %v8234 = vsel %vm2239, %v8231, %v8233
  %v8235 = vrot.slane %v6283, 6
  %v8236 = vrot.slane %v6125, 6
  %v8237 = vsel %vm2239, %v8235, %v8236
  %v8238 = vrot.slane %v6315, 6
  %v8239 = vsel %vm2239, %v8236, %v8238
  %v8240 = vrot.slane %v6284, 6
  %v8241 = vrot.slane %v6128, 6
  %v8242 = vsel %vm2239, %v8240, %v8241
  %v8243 = vrot.slane %v6316, 6
  %v8244 = vsel %vm2239, %v8241, %v8243
  %v8245 = vrot.slane %v6285, 6
  %v8246 = vrot.slane %v6131, 6
  %v8247 = vsel %vm2239, %v8245, %v8246
  %v8248 = vrot.slane %v6317, 6
  %v8249 = vsel %vm2239, %v8246, %v8248
  %v8250 = vrot.slane %v6286, 6
  %v8251 = vrot.slane %v6134, 6
  %v8252 = vsel %vm2239, %v8250, %v8251
  %v8253 = vrot.slane %v6318, 6
  %v8254 = vsel %vm2239, %v8251, %v8253
  %v8255 = vrot.slane %v6287, 6
  %v8256 = vrot.slane %v6137, 6
  %v8257 = vsel %vm2239, %v8255, %v8256
  %v8258 = vrot.slane %v6319, 6
  %v8259 = vsel %vm2239, %v8256, %v8258
  %v8260 = vrot.slane %v6288, 6
  %v8261 = vrot.slane %v6140, 6
  %v8262 = vsel %vm2239, %v8260, %v8261
  %v8263 = vrot.slane %v6320, 6
  %v8264 = vsel %vm2239, %v8261, %v8263
  %v8265 = vrot.slane %v6289, 6
  %v8266 = vrot.slane %v6143, 6
  %v8267 = vsel %vm2239, %v8265, %v8266
  %v8268 = vrot.slane %v6321, 6
  %v8269 = vsel %vm2239, %v8266, %v8268
  %v8270 = vrot.slane %v6290, 6
  %v8271 = vrot.slane %v6146, 6
  %v8272 = vsel %vm2239, %v8270, %v8271
  %v8273 = vrot.slane %v6322, 6
  %v8274 = vsel %vm2239, %v8271, %v8273
  %v8275 = vrot.slane %v6291, 6
  %v8276 = vrot.slane %v6149, 6
  %v8277 = vsel %vm2239, %v8275, %v8276
  %v8278 = vrot.slane %v6323, 6
  %v8279 = vsel %vm2239, %v8276, %v8278
  %v8280 = vrot.slane %v6292, 6
  %v8281 = vrot.slane %v6152, 6
  %v8282 = vsel %vm2239, %v8280, %v8281
  %v8283 = vrot.slane %v6324, 6
  %v8284 = vsel %vm2239, %v8281, %v8283
  %v8285 = vrot.slane %v6293, 6
  %v8286 = vrot.slane %v6155, 6
  %v8287 = vsel %vm2239, %v8285, %v8286
  %v8288 = vrot.slane %v6325, 6
  %v8289 = vsel %vm2239, %v8286, %v8288
  %v8290 = vrot.slane %v6294, 6
  %v8291 = vrot.slane %v6158, 6
  %v8292 = vsel %vm2239, %v8290, %v8291
  %v8293 = vrot.slane %v6326, 6
  %v8294 = vsel %vm2239, %v8291, %v8293
  %v8295 = vrot.slane %v6295, 6
  %v8296 = vrot.slane %v6161, 6
  %v8297 = vsel %vm2239, %v8295, %v8296
  %v8298 = vrot.slane %v6327, 6
  %v8299 = vsel %vm2239, %v8296, %v8298
  %v8300 = vrot.slane %v6296, 6
  %v8301 = vrot.slane %v6164, 6
  %v8302 = vsel %vm2239, %v8300, %v8301
  %v8303 = vrot.slane %v6328, 6
  %v8304 = vsel %vm2239, %v8301, %v8303
  %v8305 = vrot.slane %v6297, 6
  %v8306 = vrot.slane %v6167, 6
  %v8307 = vsel %vm2239, %v8305, %v8306
  %v8308 = vrot.slane %v6329, 6
  %v8309 = vsel %vm2239, %v8306, %v8308
  %v8310 = vrot.slane %v6298, 6
  %v8311 = vrot.slane %v6170, 6
  %v8312 = vsel %vm2239, %v8310, %v8311
  %v8313 = vrot.slane %v6330, 6
  %v8314 = vsel %vm2239, %v8311, %v8313
  %8315 = vrot.lane.b32.xlu0 %v8157, 24
  %v8316 = vpop.permute.xlu0 %8315
  %8317 = vrot.lane.b32.xlu0 %v8159, 24
  %v8318 = vpop.permute.xlu0 %8317
  %8319 = vrot.lane.b32.xlu0 %v8162, 24
  %v8320 = vpop.permute.xlu0 %8319
  %8321 = vrot.lane.b32.xlu0 %v8164, 24
  %v8322 = vpop.permute.xlu0 %8321
  %8323 = vrot.lane.b32.xlu0 %v8167, 24
  %v8324 = vpop.permute.xlu0 %8323
  %8325 = vrot.lane.b32.xlu0 %v8169, 24
  %v8326 = vpop.permute.xlu0 %8325
  %8327 = vrot.lane.b32.xlu0 %v8172, 24
  %v8328 = vpop.permute.xlu0 %8327
  %8329 = vrot.lane.b32.xlu0 %v8174, 24
  %v8330 = vpop.permute.xlu0 %8329
  %8331 = vrot.lane.b32.xlu0 %v8177, 24
  %v8332 = vpop.permute.xlu0 %8331
  %8333 = vrot.lane.b32.xlu0 %v8179, 24
  %v8334 = vpop.permute.xlu0 %8333
  %8335 = vrot.lane.b32.xlu0 %v8182, 24
  %v8336 = vpop.permute.xlu0 %8335
  %8337 = vrot.lane.b32.xlu0 %v8184, 24
  %v8338 = vpop.permute.xlu0 %8337
  %8339 = vrot.lane.b32.xlu0 %v8187, 24
  %v8340 = vpop.permute.xlu0 %8339
  %8341 = vrot.lane.b32.xlu0 %v8189, 24
  %v8342 = vpop.permute.xlu0 %8341
  %8343 = vrot.lane.b32.xlu0 %v8192, 24
  %v8344 = vpop.permute.xlu0 %8343
  %8345 = vrot.lane.b32.xlu0 %v8194, 24
  %v8346 = vpop.permute.xlu0 %8345
  %8347 = vrot.lane.b32.xlu0 %v8197, 24
  %v8348 = vpop.permute.xlu0 %8347
  %8349 = vrot.lane.b32.xlu0 %v8199, 24
  %v8350 = vpop.permute.xlu0 %8349
  %8351 = vrot.lane.b32.xlu0 %v8202, 24
  %v8352 = vpop.permute.xlu0 %8351
  %8353 = vrot.lane.b32.xlu0 %v8204, 24
  %v8354 = vpop.permute.xlu0 %8353
  %8355 = vrot.lane.b32.xlu0 %v8207, 24
  %v8356 = vpop.permute.xlu0 %8355
  %8357 = vrot.lane.b32.xlu0 %v8209, 24
  %v8358 = vpop.permute.xlu0 %8357
  %8359 = vrot.lane.b32.xlu0 %v8212, 24
  %v8360 = vpop.permute.xlu0 %8359
  %8361 = vrot.lane.b32.xlu0 %v8214, 24
  %v8362 = vpop.permute.xlu0 %8361
  %8363 = vrot.lane.b32.xlu0 %v8217, 24
  %v8364 = vpop.permute.xlu0 %8363
  %8365 = vrot.lane.b32.xlu0 %v8219, 24
  %v8366 = vpop.permute.xlu0 %8365
  %8367 = vrot.lane.b32.xlu0 %v8222, 24
  %v8368 = vpop.permute.xlu0 %8367
  %8369 = vrot.lane.b32.xlu0 %v8224, 24
  %v8370 = vpop.permute.xlu0 %8369
  %8371 = vrot.lane.b32.xlu0 %v8227, 24
  %v8372 = vpop.permute.xlu0 %8371
  %8373 = vrot.lane.b32.xlu0 %v8229, 24
  %v8374 = vpop.permute.xlu0 %8373
  %8375 = vrot.lane.b32.xlu0 %v8232, 24
  %v8376 = vpop.permute.xlu0 %8375
  %8377 = vrot.lane.b32.xlu0 %v8234, 24
  %v8378 = vpop.permute.xlu0 %8377
  %8379 = vrot.lane.b32.xlu0 %v8237, 24
  %v8380 = vpop.permute.xlu0 %8379
  %8381 = vrot.lane.b32.xlu0 %v8239, 24
  %v8382 = vpop.permute.xlu0 %8381
  %8383 = vrot.lane.b32.xlu0 %v8242, 24
  %v8384 = vpop.permute.xlu0 %8383
  %8385 = vrot.lane.b32.xlu0 %v8244, 24
  %v8386 = vpop.permute.xlu0 %8385
  %8387 = vrot.lane.b32.xlu0 %v8247, 24
  %v8388 = vpop.permute.xlu0 %8387
  %8389 = vrot.lane.b32.xlu0 %v8249, 24
  %v8390 = vpop.permute.xlu0 %8389
  %8391 = vrot.lane.b32.xlu0 %v8252, 24
  %v8392 = vpop.permute.xlu0 %8391
  %8393 = vrot.lane.b32.xlu0 %v8254, 24
  %v8394 = vpop.permute.xlu0 %8393
  %8395 = vrot.lane.b32.xlu0 %v8257, 24
  %v8396 = vpop.permute.xlu0 %8395
  %8397 = vrot.lane.b32.xlu0 %v8259, 24
  %v8398 = vpop.permute.xlu0 %8397
  %8399 = vrot.lane.b32.xlu0 %v8262, 24
  %v8400 = vpop.permute.xlu0 %8399
  %8401 = vrot.lane.b32.xlu0 %v8264, 24
  %v8402 = vpop.permute.xlu0 %8401
  %8403 = vrot.lane.b32.xlu0 %v8267, 24
  %v8404 = vpop.permute.xlu0 %8403
  %8405 = vrot.lane.b32.xlu0 %v8269, 24
  %v8406 = vpop.permute.xlu0 %8405
  %8407 = vrot.lane.b32.xlu0 %v8272, 24
  %v8408 = vpop.permute.xlu0 %8407
  %8409 = vrot.lane.b32.xlu0 %v8274, 24
  %v8410 = vpop.permute.xlu0 %8409
  %8411 = vrot.lane.b32.xlu0 %v8277, 24
  %v8412 = vpop.permute.xlu0 %8411
  %8413 = vrot.lane.b32.xlu0 %v8279, 24
  %v8414 = vpop.permute.xlu0 %8413
  %8415 = vrot.lane.b32.xlu0 %v8282, 24
  %v8416 = vpop.permute.xlu0 %8415
  %8417 = vrot.lane.b32.xlu0 %v8284, 24
  %v8418 = vpop.permute.xlu0 %8417
  %8419 = vrot.lane.b32.xlu0 %v8287, 24
  %v8420 = vpop.permute.xlu0 %8419
  %8421 = vrot.lane.b32.xlu0 %v8289, 24
  %v8422 = vpop.permute.xlu0 %8421
  %8423 = vrot.lane.b32.xlu0 %v8292, 24
  %v8424 = vpop.permute.xlu0 %8423
  %8425 = vrot.lane.b32.xlu0 %v8294, 24
  %v8426 = vpop.permute.xlu0 %8425
  %8427 = vrot.lane.b32.xlu0 %v8297, 24
  %v8428 = vpop.permute.xlu0 %8427
  %8429 = vrot.lane.b32.xlu0 %v8299, 24
  %v8430 = vpop.permute.xlu0 %8429
  %8431 = vrot.lane.b32.xlu0 %v8302, 24
  %v8432 = vpop.permute.xlu0 %8431
  %8433 = vrot.lane.b32.xlu0 %v8304, 24
  %v8434 = vpop.permute.xlu0 %8433
  %8435 = vrot.lane.b32.xlu0 %v8307, 24
  %v8436 = vpop.permute.xlu0 %8435
  %8437 = vrot.lane.b32.xlu0 %v8309, 24
  %v8438 = vpop.permute.xlu0 %8437
  %8439 = vrot.lane.b32.xlu0 %v8312, 24
  %v8440 = vpop.permute.xlu0 %8439
  %8441 = vrot.lane.b32.xlu0 %v8314, 24
  %v8442 = vpop.permute.xlu0 %8441
  %v8507 = vrot.slane %v6267, 7
  %v8508 = vrot.slane %v6077, 7
  %v8509 = vsel %vm2592, %v8507, %v8508
  %v8510 = vrot.slane %v6299, 7
  %v8511 = vsel %vm2592, %v8508, %v8510
  %v8512 = vrot.slane %v6268, 7
  %v8513 = vrot.slane %v6080, 7
  %v8514 = vsel %vm2592, %v8512, %v8513
  %v8515 = vrot.slane %v6300, 7
  %v8516 = vsel %vm2592, %v8513, %v8515
  %v8517 = vrot.slane %v6269, 7
  %v8518 = vrot.slane %v6083, 7
  %v8519 = vsel %vm2592, %v8517, %v8518
  %v8520 = vrot.slane %v6301, 7
  %v8521 = vsel %vm2592, %v8518, %v8520
  %v8522 = vrot.slane %v6270, 7
  %v8523 = vrot.slane %v6086, 7
  %v8524 = vsel %vm2592, %v8522, %v8523
  %v8525 = vrot.slane %v6302, 7
  %v8526 = vsel %vm2592, %v8523, %v8525
  %v8527 = vrot.slane %v6271, 7
  %v8528 = vrot.slane %v6089, 7
  %v8529 = vsel %vm2592, %v8527, %v8528
  %v8530 = vrot.slane %v6303, 7
  %v8531 = vsel %vm2592, %v8528, %v8530
  %v8532 = vrot.slane %v6272, 7
  %v8533 = vrot.slane %v6092, 7
  %v8534 = vsel %vm2592, %v8532, %v8533
  %v8535 = vrot.slane %v6304, 7
  %v8536 = vsel %vm2592, %v8533, %v8535
  %v8537 = vrot.slane %v6273, 7
  %v8538 = vrot.slane %v6095, 7
  %v8539 = vsel %vm2592, %v8537, %v8538
  %v8540 = vrot.slane %v6305, 7
  %v8541 = vsel %vm2592, %v8538, %v8540
  %v8542 = vrot.slane %v6274, 7
  %v8543 = vrot.slane %v6098, 7
  %v8544 = vsel %vm2592, %v8542, %v8543
  %v8545 = vrot.slane %v6306, 7
  %v8546 = vsel %vm2592, %v8543, %v8545
  %v8547 = vrot.slane %v6275, 7
  %v8548 = vrot.slane %v6101, 7
  %v8549 = vsel %vm2592, %v8547, %v8548
  %v8550 = vrot.slane %v6307, 7
  %v8551 = vsel %vm2592, %v8548, %v8550
  %v8552 = vrot.slane %v6276, 7
  %v8553 = vrot.slane %v6104, 7
  %v8554 = vsel %vm2592, %v8552, %v8553
  %v8555 = vrot.slane %v6308, 7
  %v8556 = vsel %vm2592, %v8553, %v8555
  %v8557 = vrot.slane %v6277, 7
  %v8558 = vrot.slane %v6107, 7
  %v8559 = vsel %vm2592, %v8557, %v8558
  %v8560 = vrot.slane %v6309, 7
  %v8561 = vsel %vm2592, %v8558, %v8560
  %v8562 = vrot.slane %v6278, 7
  %v8563 = vrot.slane %v6110, 7
  %v8564 = vsel %vm2592, %v8562, %v8563
  %v8565 = vrot.slane %v6310, 7
  %v8566 = vsel %vm2592, %v8563, %v8565
  %v8567 = vrot.slane %v6279, 7
  %v8568 = vrot.slane %v6113, 7
  %v8569 = vsel %vm2592, %v8567, %v8568
  %v8570 = vrot.slane %v6311, 7
  %v8571 = vsel %vm2592, %v8568, %v8570
  %v8572 = vrot.slane %v6280, 7
  %v8573 = vrot.slane %v6116, 7
  %v8574 = vsel %vm2592, %v8572, %v8573
  %v8575 = vrot.slane %v6312, 7
  %v8576 = vsel %vm2592, %v8573, %v8575
  %v8577 = vrot.slane %v6281, 7
  %v8578 = vrot.slane %v6119, 7
  %v8579 = vsel %vm2592, %v8577, %v8578
  %v8580 = vrot.slane %v6313, 7
  %v8581 = vsel %vm2592, %v8578, %v8580
  %v8582 = vrot.slane %v6282, 7
  %v8583 = vrot.slane %v6122, 7
  %v8584 = vsel %vm2592, %v8582, %v8583
  %v8585 = vrot.slane %v6314, 7
  %v8586 = vsel %vm2592, %v8583, %v8585
  %v8587 = vrot.slane %v6283, 7
  %v8588 = vrot.slane %v6125, 7
  %v8589 = vsel %vm2592, %v8587, %v8588
  %v8590 = vrot.slane %v6315, 7
  %v8591 = vsel %vm2592, %v8588, %v8590
  %v8592 = vrot.slane %v6284, 7
  %v8593 = vrot.slane %v6128, 7
  %v8594 = vsel %vm2592, %v8592, %v8593
  %v8595 = vrot.slane %v6316, 7
  %v8596 = vsel %vm2592, %v8593, %v8595
  %v8597 = vrot.slane %v6285, 7
  %v8598 = vrot.slane %v6131, 7
  %v8599 = vsel %vm2592, %v8597, %v8598
  %v8600 = vrot.slane %v6317, 7
  %v8601 = vsel %vm2592, %v8598, %v8600
  %v8602 = vrot.slane %v6286, 7
  %v8603 = vrot.slane %v6134, 7
  %v8604 = vsel %vm2592, %v8602, %v8603
  %v8605 = vrot.slane %v6318, 7
  %v8606 = vsel %vm2592, %v8603, %v8605
  %v8607 = vrot.slane %v6287, 7
  %v8608 = vrot.slane %v6137, 7
  %v8609 = vsel %vm2592, %v8607, %v8608
  %v8610 = vrot.slane %v6319, 7
  %v8611 = vsel %vm2592, %v8608, %v8610
  %v8612 = vrot.slane %v6288, 7
  %v8613 = vrot.slane %v6140, 7
  %v8614 = vsel %vm2592, %v8612, %v8613
  %v8615 = vrot.slane %v6320, 7
  %v8616 = vsel %vm2592, %v8613, %v8615
  %v8617 = vrot.slane %v6289, 7
  %v8618 = vrot.slane %v6143, 7
  %v8619 = vsel %vm2592, %v8617, %v8618
  %v8620 = vrot.slane %v6321, 7
  %v8621 = vsel %vm2592, %v8618, %v8620
  %v8622 = vrot.slane %v6290, 7
  %v8623 = vrot.slane %v6146, 7
  %v8624 = vsel %vm2592, %v8622, %v8623
  %v8625 = vrot.slane %v6322, 7
  %v8626 = vsel %vm2592, %v8623, %v8625
  %v8627 = vrot.slane %v6291, 7
  %v8628 = vrot.slane %v6149, 7
  %v8629 = vsel %vm2592, %v8627, %v8628
  %v8630 = vrot.slane %v6323, 7
  %v8631 = vsel %vm2592, %v8628, %v8630
  %v8632 = vrot.slane %v6292, 7
  %v8633 = vrot.slane %v6152, 7
  %v8634 = vsel %vm2592, %v8632, %v8633
  %v8635 = vrot.slane %v6324, 7
  %v8636 = vsel %vm2592, %v8633, %v8635
  %v8637 = vrot.slane %v6293, 7
  %v8638 = vrot.slane %v6155, 7
  %v8639 = vsel %vm2592, %v8637, %v8638
  %v8640 = vrot.slane %v6325, 7
  %v8641 = vsel %vm2592, %v8638, %v8640
  %v8642 = vrot.slane %v6294, 7
  %v8643 = vrot.slane %v6158, 7
  %v8644 = vsel %vm2592, %v8642, %v8643
  %v8645 = vrot.slane %v6326, 7
  %v8646 = vsel %vm2592, %v8643, %v8645
  %v8647 = vrot.slane %v6295, 7
  %v8648 = vrot.slane %v6161, 7
  %v8649 = vsel %vm2592, %v8647, %v8648
  %v8650 = vrot.slane %v6327, 7
  %v8651 = vsel %vm2592, %v8648, %v8650
  %v8652 = vrot.slane %v6296, 7
  %v8653 = vrot.slane %v6164, 7
  %v8654 = vsel %vm2592, %v8652, %v8653
  %v8655 = vrot.slane %v6328, 7
  %v8656 = vsel %vm2592, %v8653, %v8655
  %v8657 = vrot.slane %v6297, 7
  %v8658 = vrot.slane %v6167, 7
  %v8659 = vsel %vm2592, %v8657, %v8658
  %v8660 = vrot.slane %v6329, 7
  %v8661 = vsel %vm2592, %v8658, %v8660
  %v8662 = vrot.slane %v6298, 7
  %v8663 = vrot.slane %v6170, 7
  %v8664 = vsel %vm2592, %v8662, %v8663
  %v8665 = vrot.slane %v6330, 7
  %v8666 = vsel %vm2592, %v8663, %v8665
  %8667 = vrot.lane.b32.xlu0 %v8509, 28
  %v8668 = vpop.permute.xlu0 %8667
  %8669 = vrot.lane.b32.xlu0 %v8511, 28
  %v8670 = vpop.permute.xlu0 %8669
  %8671 = vrot.lane.b32.xlu0 %v8514, 28
  %v8672 = vpop.permute.xlu0 %8671
  %8673 = vrot.lane.b32.xlu0 %v8516, 28
  %v8674 = vpop.permute.xlu0 %8673
  %8675 = vrot.lane.b32.xlu0 %v8519, 28
  %v8676 = vpop.permute.xlu0 %8675
  %8677 = vrot.lane.b32.xlu0 %v8521, 28
  %v8678 = vpop.permute.xlu0 %8677
  %8679 = vrot.lane.b32.xlu0 %v8524, 28
  %v8680 = vpop.permute.xlu0 %8679
  %8681 = vrot.lane.b32.xlu0 %v8526, 28
  %v8682 = vpop.permute.xlu0 %8681
  %8683 = vrot.lane.b32.xlu0 %v8529, 28
  %v8684 = vpop.permute.xlu0 %8683
  %8685 = vrot.lane.b32.xlu0 %v8531, 28
  %v8686 = vpop.permute.xlu0 %8685
  %8687 = vrot.lane.b32.xlu0 %v8534, 28
  %v8688 = vpop.permute.xlu0 %8687
  %8689 = vrot.lane.b32.xlu0 %v8536, 28
  %v8690 = vpop.permute.xlu0 %8689
  %8691 = vrot.lane.b32.xlu0 %v8539, 28
  %v8692 = vpop.permute.xlu0 %8691
  %8693 = vrot.lane.b32.xlu0 %v8541, 28
  %v8694 = vpop.permute.xlu0 %8693
  %8695 = vrot.lane.b32.xlu0 %v8544, 28
  %v8696 = vpop.permute.xlu0 %8695
  %8697 = vrot.lane.b32.xlu0 %v8546, 28
  %v8698 = vpop.permute.xlu0 %8697
  %8699 = vrot.lane.b32.xlu0 %v8549, 28
  %v8700 = vpop.permute.xlu0 %8699
  %8701 = vrot.lane.b32.xlu0 %v8551, 28
  %v8702 = vpop.permute.xlu0 %8701
  %8703 = vrot.lane.b32.xlu0 %v8554, 28
  %v8704 = vpop.permute.xlu0 %8703
  %8705 = vrot.lane.b32.xlu0 %v8556, 28
  %v8706 = vpop.permute.xlu0 %8705
  %8707 = vrot.lane.b32.xlu0 %v8559, 28
  %v8708 = vpop.permute.xlu0 %8707
  %8709 = vrot.lane.b32.xlu0 %v8561, 28
  %v8710 = vpop.permute.xlu0 %8709
  %8711 = vrot.lane.b32.xlu0 %v8564, 28
  %v8712 = vpop.permute.xlu0 %8711
  %8713 = vrot.lane.b32.xlu0 %v8566, 28
  %v8714 = vpop.permute.xlu0 %8713
  %8715 = vrot.lane.b32.xlu0 %v8569, 28
  %v8716 = vpop.permute.xlu0 %8715
  %8717 = vrot.lane.b32.xlu0 %v8571, 28
  %v8718 = vpop.permute.xlu0 %8717
  %8719 = vrot.lane.b32.xlu0 %v8574, 28
  %v8720 = vpop.permute.xlu0 %8719
  %8721 = vrot.lane.b32.xlu0 %v8576, 28
  %v8722 = vpop.permute.xlu0 %8721
  %8723 = vrot.lane.b32.xlu0 %v8579, 28
  %v8724 = vpop.permute.xlu0 %8723
  %8725 = vrot.lane.b32.xlu0 %v8581, 28
  %v8726 = vpop.permute.xlu0 %8725
  %8727 = vrot.lane.b32.xlu0 %v8584, 28
  %v8728 = vpop.permute.xlu0 %8727
  %8729 = vrot.lane.b32.xlu0 %v8586, 28
  %v8730 = vpop.permute.xlu0 %8729
  %8731 = vrot.lane.b32.xlu0 %v8589, 28
  %v8732 = vpop.permute.xlu0 %8731
  %8733 = vrot.lane.b32.xlu0 %v8591, 28
  %v8734 = vpop.permute.xlu0 %8733
  %8735 = vrot.lane.b32.xlu0 %v8594, 28
  %v8736 = vpop.permute.xlu0 %8735
  %8737 = vrot.lane.b32.xlu0 %v8596, 28
  %v8738 = vpop.permute.xlu0 %8737
  %8739 = vrot.lane.b32.xlu0 %v8599, 28
  %v8740 = vpop.permute.xlu0 %8739
  %8741 = vrot.lane.b32.xlu0 %v8601, 28
  %v8742 = vpop.permute.xlu0 %8741
  %8743 = vrot.lane.b32.xlu0 %v8604, 28
  %v8744 = vpop.permute.xlu0 %8743
  %8745 = vrot.lane.b32.xlu0 %v8606, 28
  %v8746 = vpop.permute.xlu0 %8745
  %8747 = vrot.lane.b32.xlu0 %v8609, 28
  %v8748 = vpop.permute.xlu0 %8747
  %8749 = vrot.lane.b32.xlu0 %v8611, 28
  %v8750 = vpop.permute.xlu0 %8749
  %8751 = vrot.lane.b32.xlu0 %v8614, 28
  %v8752 = vpop.permute.xlu0 %8751
  %8753 = vrot.lane.b32.xlu0 %v8616, 28
  %v8754 = vpop.permute.xlu0 %8753
  %8755 = vrot.lane.b32.xlu0 %v8619, 28
  %v8756 = vpop.permute.xlu0 %8755
  %8757 = vrot.lane.b32.xlu0 %v8621, 28
  %v8758 = vpop.permute.xlu0 %8757
  %8759 = vrot.lane.b32.xlu0 %v8624, 28
  %v8760 = vpop.permute.xlu0 %8759
  %8761 = vrot.lane.b32.xlu0 %v8626, 28
  %v8762 = vpop.permute.xlu0 %8761
  %8763 = vrot.lane.b32.xlu0 %v8629, 28
  %v8764 = vpop.permute.xlu0 %8763
  %8765 = vrot.lane.b32.xlu0 %v8631, 28
  %v8766 = vpop.permute.xlu0 %8765
  %8767 = vrot.lane.b32.xlu0 %v8634, 28
  %v8768 = vpop.permute.xlu0 %8767
  %8769 = vrot.lane.b32.xlu0 %v8636, 28
  %v8770 = vpop.permute.xlu0 %8769
  %8771 = vrot.lane.b32.xlu0 %v8639, 28
  %v8772 = vpop.permute.xlu0 %8771
  %8773 = vrot.lane.b32.xlu0 %v8641, 28
  %v8774 = vpop.permute.xlu0 %8773
  %8775 = vrot.lane.b32.xlu0 %v8644, 28
  %v8776 = vpop.permute.xlu0 %8775
  %8777 = vrot.lane.b32.xlu0 %v8646, 28
  %v8778 = vpop.permute.xlu0 %8777
  %8779 = vrot.lane.b32.xlu0 %v8649, 28
  %v8780 = vpop.permute.xlu0 %8779
  %8781 = vrot.lane.b32.xlu0 %v8651, 28
  %v8782 = vpop.permute.xlu0 %8781
  %8783 = vrot.lane.b32.xlu0 %v8654, 28
  %v8784 = vpop.permute.xlu0 %8783
  %8785 = vrot.lane.b32.xlu0 %v8656, 28
  %v8786 = vpop.permute.xlu0 %8785
  %8787 = vrot.lane.b32.xlu0 %v8659, 28
  %v8788 = vpop.permute.xlu0 %8787
  %8789 = vrot.lane.b32.xlu0 %v8661, 28
  %v8790 = vpop.permute.xlu0 %8789
  %8791 = vrot.lane.b32.xlu0 %v8664, 28
  %v8792 = vpop.permute.xlu0 %8791
  %8793 = vrot.lane.b32.xlu0 %v8666, 28
  %v8794 = vpop.permute.xlu0 %8793
  %8859 = vrot.lane.b32.xlu0 %v6077, 32
  %v8860 = vpop.permute.xlu0 %8859
  %8861 = vrot.lane.b32.xlu0 %v6299, 32
  %v8862 = vpop.permute.xlu0 %8861
  %8863 = vrot.lane.b32.xlu0 %v6080, 32
  %v8864 = vpop.permute.xlu0 %8863
  %8865 = vrot.lane.b32.xlu0 %v6300, 32
  %v8866 = vpop.permute.xlu0 %8865
  %8867 = vrot.lane.b32.xlu0 %v6083, 32
  %v8868 = vpop.permute.xlu0 %8867
  %8869 = vrot.lane.b32.xlu0 %v6301, 32
  %v8870 = vpop.permute.xlu0 %8869
  %8871 = vrot.lane.b32.xlu0 %v6086, 32
  %v8872 = vpop.permute.xlu0 %8871
  %8873 = vrot.lane.b32.xlu0 %v6302, 32
  %v8874 = vpop.permute.xlu0 %8873
  %8875 = vrot.lane.b32.xlu0 %v6089, 32
  %v8876 = vpop.permute.xlu0 %8875
  %8877 = vrot.lane.b32.xlu0 %v6303, 32
  %v8878 = vpop.permute.xlu0 %8877
  %8879 = vrot.lane.b32.xlu0 %v6092, 32
  %v8880 = vpop.permute.xlu0 %8879
  %8881 = vrot.lane.b32.xlu0 %v6304, 32
  %v8882 = vpop.permute.xlu0 %8881
  %8883 = vrot.lane.b32.xlu0 %v6095, 32
  %v8884 = vpop.permute.xlu0 %8883
  %8885 = vrot.lane.b32.xlu0 %v6305, 32
  %v8886 = vpop.permute.xlu0 %8885
  %8887 = vrot.lane.b32.xlu0 %v6098, 32
  %v8888 = vpop.permute.xlu0 %8887
  %8889 = vrot.lane.b32.xlu0 %v6306, 32
  %v8890 = vpop.permute.xlu0 %8889
  %8891 = vrot.lane.b32.xlu0 %v6101, 32
  %v8892 = vpop.permute.xlu0 %8891
  %8893 = vrot.lane.b32.xlu0 %v6307, 32
  %v8894 = vpop.permute.xlu0 %8893
  %8895 = vrot.lane.b32.xlu0 %v6104, 32
  %v8896 = vpop.permute.xlu0 %8895
  %8897 = vrot.lane.b32.xlu0 %v6308, 32
  %v8898 = vpop.permute.xlu0 %8897
  %8899 = vrot.lane.b32.xlu0 %v6107, 32
  %v8900 = vpop.permute.xlu0 %8899
  %8901 = vrot.lane.b32.xlu0 %v6309, 32
  %v8902 = vpop.permute.xlu0 %8901
  %8903 = vrot.lane.b32.xlu0 %v6110, 32
  %v8904 = vpop.permute.xlu0 %8903
  %8905 = vrot.lane.b32.xlu0 %v6310, 32
  %v8906 = vpop.permute.xlu0 %8905
  %8907 = vrot.lane.b32.xlu0 %v6113, 32
  %v8908 = vpop.permute.xlu0 %8907
  %8909 = vrot.lane.b32.xlu0 %v6311, 32
  %v8910 = vpop.permute.xlu0 %8909
  %8911 = vrot.lane.b32.xlu0 %v6116, 32
  %v8912 = vpop.permute.xlu0 %8911
  %8913 = vrot.lane.b32.xlu0 %v6312, 32
  %v8914 = vpop.permute.xlu0 %8913
  %8915 = vrot.lane.b32.xlu0 %v6119, 32
  %v8916 = vpop.permute.xlu0 %8915
  %8917 = vrot.lane.b32.xlu0 %v6313, 32
  %v8918 = vpop.permute.xlu0 %8917
  %8919 = vrot.lane.b32.xlu0 %v6122, 32
  %v8920 = vpop.permute.xlu0 %8919
  %8921 = vrot.lane.b32.xlu0 %v6314, 32
  %v8922 = vpop.permute.xlu0 %8921
  %8923 = vrot.lane.b32.xlu0 %v6125, 32
  %v8924 = vpop.permute.xlu0 %8923
  %8925 = vrot.lane.b32.xlu0 %v6315, 32
  %v8926 = vpop.permute.xlu0 %8925
  %8927 = vrot.lane.b32.xlu0 %v6128, 32
  %v8928 = vpop.permute.xlu0 %8927
  %8929 = vrot.lane.b32.xlu0 %v6316, 32
  %v8930 = vpop.permute.xlu0 %8929
  %8931 = vrot.lane.b32.xlu0 %v6131, 32
  %v8932 = vpop.permute.xlu0 %8931
  %8933 = vrot.lane.b32.xlu0 %v6317, 32
  %v8934 = vpop.permute.xlu0 %8933
  %8935 = vrot.lane.b32.xlu0 %v6134, 32
  %v8936 = vpop.permute.xlu0 %8935
  %8937 = vrot.lane.b32.xlu0 %v6318, 32
  %v8938 = vpop.permute.xlu0 %8937
  %8939 = vrot.lane.b32.xlu0 %v6137, 32
  %v8940 = vpop.permute.xlu0 %8939
  %8941 = vrot.lane.b32.xlu0 %v6319, 32
  %v8942 = vpop.permute.xlu0 %8941
  %8943 = vrot.lane.b32.xlu0 %v6140, 32
  %v8944 = vpop.permute.xlu0 %8943
  %8945 = vrot.lane.b32.xlu0 %v6320, 32
  %v8946 = vpop.permute.xlu0 %8945
  %8947 = vrot.lane.b32.xlu0 %v6143, 32
  %v8948 = vpop.permute.xlu0 %8947
  %8949 = vrot.lane.b32.xlu0 %v6321, 32
  %v8950 = vpop.permute.xlu0 %8949
  %8951 = vrot.lane.b32.xlu0 %v6146, 32
  %v8952 = vpop.permute.xlu0 %8951
  %8953 = vrot.lane.b32.xlu0 %v6322, 32
  %v8954 = vpop.permute.xlu0 %8953
  %8955 = vrot.lane.b32.xlu0 %v6149, 32
  %v8956 = vpop.permute.xlu0 %8955
  %8957 = vrot.lane.b32.xlu0 %v6323, 32
  %v8958 = vpop.permute.xlu0 %8957
  %8959 = vrot.lane.b32.xlu0 %v6152, 32
  %v8960 = vpop.permute.xlu0 %8959
  %8961 = vrot.lane.b32.xlu0 %v6324, 32
  %v8962 = vpop.permute.xlu0 %8961
  %8963 = vrot.lane.b32.xlu0 %v6155, 32
  %v8964 = vpop.permute.xlu0 %8963
  %8965 = vrot.lane.b32.xlu0 %v6325, 32
  %v8966 = vpop.permute.xlu0 %8965
  %8967 = vrot.lane.b32.xlu0 %v6158, 32
  %v8968 = vpop.permute.xlu0 %8967
  %8969 = vrot.lane.b32.xlu0 %v6326, 32
  %v8970 = vpop.permute.xlu0 %8969
  %8971 = vrot.lane.b32.xlu0 %v6161, 32
  %v8972 = vpop.permute.xlu0 %8971
  %8973 = vrot.lane.b32.xlu0 %v6327, 32
  %v8974 = vpop.permute.xlu0 %8973
  %8975 = vrot.lane.b32.xlu0 %v6164, 32
  %v8976 = vpop.permute.xlu0 %8975
  %8977 = vrot.lane.b32.xlu0 %v6328, 32
  %v8978 = vpop.permute.xlu0 %8977
  %8979 = vrot.lane.b32.xlu0 %v6167, 32
  %v8980 = vpop.permute.xlu0 %8979
  %8981 = vrot.lane.b32.xlu0 %v6329, 32
  %v8982 = vpop.permute.xlu0 %8981
  %8983 = vrot.lane.b32.xlu0 %v6170, 32
  %v8984 = vpop.permute.xlu0 %8983
  %8985 = vrot.lane.b32.xlu0 %v6330, 32
  %v8986 = vpop.permute.xlu0 %8985
  %v9051 = vsel %vm154, %v6398, %v3138
  %v9052 = vsel %vm154, %v6403, %v3138
  %v9053 = vsel %vm154, %v6408, %v3138
  %v9054 = vsel %vm154, %v6413, %v3138
  %v9055 = vsel %vm154, %v6418, %v3138
  %v9056 = vsel %vm154, %v6423, %v3138
  %v9057 = vsel %vm154, %v6428, %v3138
  %v9058 = vsel %vm154, %v6433, %v3138
  %v9059 = vsel %vm154, %v6438, %v3138
  %v9060 = vsel %vm154, %v6443, %v3138
  %v9061 = vsel %vm154, %v6448, %v3138
  %v9062 = vsel %vm154, %v6453, %v3138
  %v9063 = vsel %vm154, %v6458, %v3138
  %v9064 = vsel %vm154, %v6463, %v3138
  %v9065 = vsel %vm154, %v6468, %v3138
  %v9066 = vsel %vm154, %v6473, %v3138
  %v9067 = vsel %vm154, %v6478, %v3138
  %v9068 = vsel %vm154, %v6483, %v3138
  %v9069 = vsel %vm154, %v6488, %v3138
  %v9070 = vsel %vm154, %v6493, %v3138
  %v9071 = vsel %vm154, %v6498, %v3138
  %v9072 = vsel %vm154, %v6503, %v3138
  %v9073 = vsel %vm154, %v6508, %v3138
  %v9074 = vsel %vm154, %v6513, %v3138
  %v9075 = vsel %vm154, %v6518, %v3138
  %v9076 = vsel %vm154, %v6523, %v3138
  %v9077 = vsel %vm154, %v6528, %v3138
  %v9078 = vsel %vm154, %v6533, %v3138
  %v9079 = vsel %vm154, %v6538, %v3138
  %v9080 = vsel %vm154, %v6543, %v3138
  %v9081 = vsel %vm154, %v6548, %v3138
  %v9082 = vsel %vm154, %v6553, %v3138
  %9083 = vrot.lane.b32.xlu0 %v6399, 36
  %v9084 = vpop.permute.xlu0 %9083
  %9085 = vrot.lane.b32.xlu0 %v9051, 36
  %v9086 = vpop.permute.xlu0 %9085
  %9087 = vrot.lane.b32.xlu0 %v6404, 36
  %v9088 = vpop.permute.xlu0 %9087
  %9089 = vrot.lane.b32.xlu0 %v9052, 36
  %v9090 = vpop.permute.xlu0 %9089
  %9091 = vrot.lane.b32.xlu0 %v6409, 36
  %v9092 = vpop.permute.xlu0 %9091
  %9093 = vrot.lane.b32.xlu0 %v9053, 36
  %v9094 = vpop.permute.xlu0 %9093
  %9095 = vrot.lane.b32.xlu0 %v6414, 36
  %v9096 = vpop.permute.xlu0 %9095
  %9097 = vrot.lane.b32.xlu0 %v9054, 36
  %v9098 = vpop.permute.xlu0 %9097
  %9099 = vrot.lane.b32.xlu0 %v6419, 36
  %v9100 = vpop.permute.xlu0 %9099
  %9101 = vrot.lane.b32.xlu0 %v9055, 36
  %v9102 = vpop.permute.xlu0 %9101
  %9103 = vrot.lane.b32.xlu0 %v6424, 36
  %v9104 = vpop.permute.xlu0 %9103
  %9105 = vrot.lane.b32.xlu0 %v9056, 36
  %v9106 = vpop.permute.xlu0 %9105
  %9107 = vrot.lane.b32.xlu0 %v6429, 36
  %v9108 = vpop.permute.xlu0 %9107
  %9109 = vrot.lane.b32.xlu0 %v9057, 36
  %v9110 = vpop.permute.xlu0 %9109
  %9111 = vrot.lane.b32.xlu0 %v6434, 36
  %v9112 = vpop.permute.xlu0 %9111
  %9113 = vrot.lane.b32.xlu0 %v9058, 36
  %v9114 = vpop.permute.xlu0 %9113
  %9115 = vrot.lane.b32.xlu0 %v6439, 36
  %v9116 = vpop.permute.xlu0 %9115
  %9117 = vrot.lane.b32.xlu0 %v9059, 36
  %v9118 = vpop.permute.xlu0 %9117
  %9119 = vrot.lane.b32.xlu0 %v6444, 36
  %v9120 = vpop.permute.xlu0 %9119
  %9121 = vrot.lane.b32.xlu0 %v9060, 36
  %v9122 = vpop.permute.xlu0 %9121
  %9123 = vrot.lane.b32.xlu0 %v6449, 36
  %v9124 = vpop.permute.xlu0 %9123
  %9125 = vrot.lane.b32.xlu0 %v9061, 36
  %v9126 = vpop.permute.xlu0 %9125
  %9127 = vrot.lane.b32.xlu0 %v6454, 36
  %v9128 = vpop.permute.xlu0 %9127
  %9129 = vrot.lane.b32.xlu0 %v9062, 36
  %v9130 = vpop.permute.xlu0 %9129
  %9131 = vrot.lane.b32.xlu0 %v6459, 36
  %v9132 = vpop.permute.xlu0 %9131
  %9133 = vrot.lane.b32.xlu0 %v9063, 36
  %v9134 = vpop.permute.xlu0 %9133
  %9135 = vrot.lane.b32.xlu0 %v6464, 36
  %v9136 = vpop.permute.xlu0 %9135
  %9137 = vrot.lane.b32.xlu0 %v9064, 36
  %v9138 = vpop.permute.xlu0 %9137
  %9139 = vrot.lane.b32.xlu0 %v6469, 36
  %v9140 = vpop.permute.xlu0 %9139
  %9141 = vrot.lane.b32.xlu0 %v9065, 36
  %v9142 = vpop.permute.xlu0 %9141
  %9143 = vrot.lane.b32.xlu0 %v6474, 36
  %v9144 = vpop.permute.xlu0 %9143
  %9145 = vrot.lane.b32.xlu0 %v9066, 36
  %v9146 = vpop.permute.xlu0 %9145
  %9147 = vrot.lane.b32.xlu0 %v6479, 36
  %v9148 = vpop.permute.xlu0 %9147
  %9149 = vrot.lane.b32.xlu0 %v9067, 36
  %v9150 = vpop.permute.xlu0 %9149
  %9151 = vrot.lane.b32.xlu0 %v6484, 36
  %v9152 = vpop.permute.xlu0 %9151
  %9153 = vrot.lane.b32.xlu0 %v9068, 36
  %v9154 = vpop.permute.xlu0 %9153
  %9155 = vrot.lane.b32.xlu0 %v6489, 36
  %v9156 = vpop.permute.xlu0 %9155
  %9157 = vrot.lane.b32.xlu0 %v9069, 36
  %v9158 = vpop.permute.xlu0 %9157
  %9159 = vrot.lane.b32.xlu0 %v6494, 36
  %v9160 = vpop.permute.xlu0 %9159
  %9161 = vrot.lane.b32.xlu0 %v9070, 36
  %v9162 = vpop.permute.xlu0 %9161
  %9163 = vrot.lane.b32.xlu0 %v6499, 36
  %v9164 = vpop.permute.xlu0 %9163
  %9165 = vrot.lane.b32.xlu0 %v9071, 36
  %v9166 = vpop.permute.xlu0 %9165
  %9167 = vrot.lane.b32.xlu0 %v6504, 36
  %v9168 = vpop.permute.xlu0 %9167
  %9169 = vrot.lane.b32.xlu0 %v9072, 36
  %v9170 = vpop.permute.xlu0 %9169
  %9171 = vrot.lane.b32.xlu0 %v6509, 36
  %v9172 = vpop.permute.xlu0 %9171
  %9173 = vrot.lane.b32.xlu0 %v9073, 36
  %v9174 = vpop.permute.xlu0 %9173
  %9175 = vrot.lane.b32.xlu0 %v6514, 36
  %v9176 = vpop.permute.xlu0 %9175
  %9177 = vrot.lane.b32.xlu0 %v9074, 36
  %v9178 = vpop.permute.xlu0 %9177
  %9179 = vrot.lane.b32.xlu0 %v6519, 36
  %v9180 = vpop.permute.xlu0 %9179
  %9181 = vrot.lane.b32.xlu0 %v9075, 36
  %v9182 = vpop.permute.xlu0 %9181
  %9183 = vrot.lane.b32.xlu0 %v6524, 36
  %v9184 = vpop.permute.xlu0 %9183
  %9185 = vrot.lane.b32.xlu0 %v9076, 36
  %v9186 = vpop.permute.xlu0 %9185
  %9187 = vrot.lane.b32.xlu0 %v6529, 36
  %v9188 = vpop.permute.xlu0 %9187
  %9189 = vrot.lane.b32.xlu0 %v9077, 36
  %v9190 = vpop.permute.xlu0 %9189
  %9191 = vrot.lane.b32.xlu0 %v6534, 36
  %v9192 = vpop.permute.xlu0 %9191
  %9193 = vrot.lane.b32.xlu0 %v9078, 36
  %v9194 = vpop.permute.xlu0 %9193
  %9195 = vrot.lane.b32.xlu0 %v6539, 36
  %v9196 = vpop.permute.xlu0 %9195
  %9197 = vrot.lane.b32.xlu0 %v9079, 36
  %v9198 = vpop.permute.xlu0 %9197
  %9199 = vrot.lane.b32.xlu0 %v6544, 36
  %v9200 = vpop.permute.xlu0 %9199
  %9201 = vrot.lane.b32.xlu0 %v9080, 36
  %v9202 = vpop.permute.xlu0 %9201
  %9203 = vrot.lane.b32.xlu0 %v6549, 36
  %v9204 = vpop.permute.xlu0 %9203
  %9205 = vrot.lane.b32.xlu0 %v9081, 36
  %v9206 = vpop.permute.xlu0 %9205
  %9207 = vrot.lane.b32.xlu0 %v6554, 36
  %v9208 = vpop.permute.xlu0 %9207
  %9209 = vrot.lane.b32.xlu0 %v9082, 36
  %v9210 = vpop.permute.xlu0 %9209
  %v9275 = vsel %vm827, %v6750, %v3363
  %v9276 = vsel %vm827, %v6755, %v3363
  %v9277 = vsel %vm827, %v6760, %v3363
  %v9278 = vsel %vm827, %v6765, %v3363
  %v9279 = vsel %vm827, %v6770, %v3363
  %v9280 = vsel %vm827, %v6775, %v3363
  %v9281 = vsel %vm827, %v6780, %v3363
  %v9282 = vsel %vm827, %v6785, %v3363
  %v9283 = vsel %vm827, %v6790, %v3363
  %v9284 = vsel %vm827, %v6795, %v3363
  %v9285 = vsel %vm827, %v6800, %v3363
  %v9286 = vsel %vm827, %v6805, %v3363
  %v9287 = vsel %vm827, %v6810, %v3363
  %v9288 = vsel %vm827, %v6815, %v3363
  %v9289 = vsel %vm827, %v6820, %v3363
  %v9290 = vsel %vm827, %v6825, %v3363
  %v9291 = vsel %vm827, %v6830, %v3363
  %v9292 = vsel %vm827, %v6835, %v3363
  %v9293 = vsel %vm827, %v6840, %v3363
  %v9294 = vsel %vm827, %v6845, %v3363
  %v9295 = vsel %vm827, %v6850, %v3363
  %v9296 = vsel %vm827, %v6855, %v3363
  %v9297 = vsel %vm827, %v6860, %v3363
  %v9298 = vsel %vm827, %v6865, %v3363
  %v9299 = vsel %vm827, %v6870, %v3363
  %v9300 = vsel %vm827, %v6875, %v3363
  %v9301 = vsel %vm827, %v6880, %v3363
  %v9302 = vsel %vm827, %v6885, %v3363
  %v9303 = vsel %vm827, %v6890, %v3363
  %v9304 = vsel %vm827, %v6895, %v3363
  %v9305 = vsel %vm827, %v6900, %v3363
  %v9306 = vsel %vm827, %v6905, %v3363
  %9307 = vrot.lane.b32.xlu0 %v6751, 40
  %v9308 = vpop.permute.xlu0 %9307
  %9309 = vrot.lane.b32.xlu0 %v9275, 40
  %v9310 = vpop.permute.xlu0 %9309
  %9311 = vrot.lane.b32.xlu0 %v6756, 40
  %v9312 = vpop.permute.xlu0 %9311
  %9313 = vrot.lane.b32.xlu0 %v9276, 40
  %v9314 = vpop.permute.xlu0 %9313
  %9315 = vrot.lane.b32.xlu0 %v6761, 40
  %v9316 = vpop.permute.xlu0 %9315
  %9317 = vrot.lane.b32.xlu0 %v9277, 40
  %v9318 = vpop.permute.xlu0 %9317
  %9319 = vrot.lane.b32.xlu0 %v6766, 40
  %v9320 = vpop.permute.xlu0 %9319
  %9321 = vrot.lane.b32.xlu0 %v9278, 40
  %v9322 = vpop.permute.xlu0 %9321
  %9323 = vrot.lane.b32.xlu0 %v6771, 40
  %v9324 = vpop.permute.xlu0 %9323
  %9325 = vrot.lane.b32.xlu0 %v9279, 40
  %v9326 = vpop.permute.xlu0 %9325
  %9327 = vrot.lane.b32.xlu0 %v6776, 40
  %v9328 = vpop.permute.xlu0 %9327
  %9329 = vrot.lane.b32.xlu0 %v9280, 40
  %v9330 = vpop.permute.xlu0 %9329
  %9331 = vrot.lane.b32.xlu0 %v6781, 40
  %v9332 = vpop.permute.xlu0 %9331
  %9333 = vrot.lane.b32.xlu0 %v9281, 40
  %v9334 = vpop.permute.xlu0 %9333
  %9335 = vrot.lane.b32.xlu0 %v6786, 40
  %v9336 = vpop.permute.xlu0 %9335
  %9337 = vrot.lane.b32.xlu0 %v9282, 40
  %v9338 = vpop.permute.xlu0 %9337
  %9339 = vrot.lane.b32.xlu0 %v6791, 40
  %v9340 = vpop.permute.xlu0 %9339
  %9341 = vrot.lane.b32.xlu0 %v9283, 40
  %v9342 = vpop.permute.xlu0 %9341
  %9343 = vrot.lane.b32.xlu0 %v6796, 40
  %v9344 = vpop.permute.xlu0 %9343
  %9345 = vrot.lane.b32.xlu0 %v9284, 40
  %v9346 = vpop.permute.xlu0 %9345
  %9347 = vrot.lane.b32.xlu0 %v6801, 40
  %v9348 = vpop.permute.xlu0 %9347
  %9349 = vrot.lane.b32.xlu0 %v9285, 40
  %v9350 = vpop.permute.xlu0 %9349
  %9351 = vrot.lane.b32.xlu0 %v6806, 40
  %v9352 = vpop.permute.xlu0 %9351
  %9353 = vrot.lane.b32.xlu0 %v9286, 40
  %v9354 = vpop.permute.xlu0 %9353
  %9355 = vrot.lane.b32.xlu0 %v6811, 40
  %v9356 = vpop.permute.xlu0 %9355
  %9357 = vrot.lane.b32.xlu0 %v9287, 40
  %v9358 = vpop.permute.xlu0 %9357
  %9359 = vrot.lane.b32.xlu0 %v6816, 40
  %v9360 = vpop.permute.xlu0 %9359
  %9361 = vrot.lane.b32.xlu0 %v9288, 40
  %v9362 = vpop.permute.xlu0 %9361
  %9363 = vrot.lane.b32.xlu0 %v6821, 40
  %v9364 = vpop.permute.xlu0 %9363
  %9365 = vrot.lane.b32.xlu0 %v9289, 40
  %v9366 = vpop.permute.xlu0 %9365
  %9367 = vrot.lane.b32.xlu0 %v6826, 40
  %v9368 = vpop.permute.xlu0 %9367
  %9369 = vrot.lane.b32.xlu0 %v9290, 40
  %v9370 = vpop.permute.xlu0 %9369
  %9371 = vrot.lane.b32.xlu0 %v6831, 40
  %v9372 = vpop.permute.xlu0 %9371
  %9373 = vrot.lane.b32.xlu0 %v9291, 40
  %v9374 = vpop.permute.xlu0 %9373
  %9375 = vrot.lane.b32.xlu0 %v6836, 40
  %v9376 = vpop.permute.xlu0 %9375
  %9377 = vrot.lane.b32.xlu0 %v9292, 40
  %v9378 = vpop.permute.xlu0 %9377
  %9379 = vrot.lane.b32.xlu0 %v6841, 40
  %v9380 = vpop.permute.xlu0 %9379
  %9381 = vrot.lane.b32.xlu0 %v9293, 40
  %v9382 = vpop.permute.xlu0 %9381
  %9383 = vrot.lane.b32.xlu0 %v6846, 40
  %v9384 = vpop.permute.xlu0 %9383
  %9385 = vrot.lane.b32.xlu0 %v9294, 40
  %v9386 = vpop.permute.xlu0 %9385
  %9387 = vrot.lane.b32.xlu0 %v6851, 40
  %v9388 = vpop.permute.xlu0 %9387
  %9389 = vrot.lane.b32.xlu0 %v9295, 40
  %v9390 = vpop.permute.xlu0 %9389
  %9391 = vrot.lane.b32.xlu0 %v6856, 40
  %v9392 = vpop.permute.xlu0 %9391
  %9393 = vrot.lane.b32.xlu0 %v9296, 40
  %v9394 = vpop.permute.xlu0 %9393
  %9395 = vrot.lane.b32.xlu0 %v6861, 40
  %v9396 = vpop.permute.xlu0 %9395
  %9397 = vrot.lane.b32.xlu0 %v9297, 40
  %v9398 = vpop.permute.xlu0 %9397
  %9399 = vrot.lane.b32.xlu0 %v6866, 40
  %v9400 = vpop.permute.xlu0 %9399
  %9401 = vrot.lane.b32.xlu0 %v9298, 40
  %v9402 = vpop.permute.xlu0 %9401
  %9403 = vrot.lane.b32.xlu0 %v6871, 40
  %v9404 = vpop.permute.xlu0 %9403
  %9405 = vrot.lane.b32.xlu0 %v9299, 40
  %v9406 = vpop.permute.xlu0 %9405
  %9407 = vrot.lane.b32.xlu0 %v6876, 40
  %v9408 = vpop.permute.xlu0 %9407
  %9409 = vrot.lane.b32.xlu0 %v9300, 40
  %v9410 = vpop.permute.xlu0 %9409
  %9411 = vrot.lane.b32.xlu0 %v6881, 40
  %v9412 = vpop.permute.xlu0 %9411
  %9413 = vrot.lane.b32.xlu0 %v9301, 40
  %v9414 = vpop.permute.xlu0 %9413
  %9415 = vrot.lane.b32.xlu0 %v6886, 40
  %v9416 = vpop.permute.xlu0 %9415
  %9417 = vrot.lane.b32.xlu0 %v9302, 40
  %v9418 = vpop.permute.xlu0 %9417
  %9419 = vrot.lane.b32.xlu0 %v6891, 40
  %v9420 = vpop.permute.xlu0 %9419
  %9421 = vrot.lane.b32.xlu0 %v9303, 40
  %v9422 = vpop.permute.xlu0 %9421
  %9423 = vrot.lane.b32.xlu0 %v6896, 40
  %v9424 = vpop.permute.xlu0 %9423
  %9425 = vrot.lane.b32.xlu0 %v9304, 40
  %v9426 = vpop.permute.xlu0 %9425
  %9427 = vrot.lane.b32.xlu0 %v6901, 40
  %v9428 = vpop.permute.xlu0 %9427
  %9429 = vrot.lane.b32.xlu0 %v9305, 40
  %v9430 = vpop.permute.xlu0 %9429
  %9431 = vrot.lane.b32.xlu0 %v6906, 40
  %v9432 = vpop.permute.xlu0 %9431
  %9433 = vrot.lane.b32.xlu0 %v9306, 40
  %v9434 = vpop.permute.xlu0 %9433
  %v9499 = vsel %vm1180, %v7102, %v3588
  %v9500 = vsel %vm1180, %v7107, %v3588
  %v9501 = vsel %vm1180, %v7112, %v3588
  %v9502 = vsel %vm1180, %v7117, %v3588
  %v9503 = vsel %vm1180, %v7122, %v3588
  %v9504 = vsel %vm1180, %v7127, %v3588
  %v9505 = vsel %vm1180, %v7132, %v3588
  %v9506 = vsel %vm1180, %v7137, %v3588
  %v9507 = vsel %vm1180, %v7142, %v3588
  %v9508 = vsel %vm1180, %v7147, %v3588
  %v9509 = vsel %vm1180, %v7152, %v3588
  %v9510 = vsel %vm1180, %v7157, %v3588
  %v9511 = vsel %vm1180, %v7162, %v3588
  %v9512 = vsel %vm1180, %v7167, %v3588
  %v9513 = vsel %vm1180, %v7172, %v3588
  %v9514 = vsel %vm1180, %v7177, %v3588
  %v9515 = vsel %vm1180, %v7182, %v3588
  %v9516 = vsel %vm1180, %v7187, %v3588
  %v9517 = vsel %vm1180, %v7192, %v3588
  %v9518 = vsel %vm1180, %v7197, %v3588
  %v9519 = vsel %vm1180, %v7202, %v3588
  %v9520 = vsel %vm1180, %v7207, %v3588
  %v9521 = vsel %vm1180, %v7212, %v3588
  %v9522 = vsel %vm1180, %v7217, %v3588
  %v9523 = vsel %vm1180, %v7222, %v3588
  %v9524 = vsel %vm1180, %v7227, %v3588
  %v9525 = vsel %vm1180, %v7232, %v3588
  %v9526 = vsel %vm1180, %v7237, %v3588
  %v9527 = vsel %vm1180, %v7242, %v3588
  %v9528 = vsel %vm1180, %v7247, %v3588
  %v9529 = vsel %vm1180, %v7252, %v3588
  %v9530 = vsel %vm1180, %v7257, %v3588
  %9531 = vrot.lane.b32.xlu0 %v7103, 44
  %v9532 = vpop.permute.xlu0 %9531
  %9533 = vrot.lane.b32.xlu0 %v9499, 44
  %v9534 = vpop.permute.xlu0 %9533
  %9535 = vrot.lane.b32.xlu0 %v7108, 44
  %v9536 = vpop.permute.xlu0 %9535
  %9537 = vrot.lane.b32.xlu0 %v9500, 44
  %v9538 = vpop.permute.xlu0 %9537
  %9539 = vrot.lane.b32.xlu0 %v7113, 44
  %v9540 = vpop.permute.xlu0 %9539
  %9541 = vrot.lane.b32.xlu0 %v9501, 44
  %v9542 = vpop.permute.xlu0 %9541
  %9543 = vrot.lane.b32.xlu0 %v7118, 44
  %v9544 = vpop.permute.xlu0 %9543
  %9545 = vrot.lane.b32.xlu0 %v9502, 44
  %v9546 = vpop.permute.xlu0 %9545
  %9547 = vrot.lane.b32.xlu0 %v7123, 44
  %v9548 = vpop.permute.xlu0 %9547
  %9549 = vrot.lane.b32.xlu0 %v9503, 44
  %v9550 = vpop.permute.xlu0 %9549
  %9551 = vrot.lane.b32.xlu0 %v7128, 44
  %v9552 = vpop.permute.xlu0 %9551
  %9553 = vrot.lane.b32.xlu0 %v9504, 44
  %v9554 = vpop.permute.xlu0 %9553
  %9555 = vrot.lane.b32.xlu0 %v7133, 44
  %v9556 = vpop.permute.xlu0 %9555
  %9557 = vrot.lane.b32.xlu0 %v9505, 44
  %v9558 = vpop.permute.xlu0 %9557
  %9559 = vrot.lane.b32.xlu0 %v7138, 44
  %v9560 = vpop.permute.xlu0 %9559
  %9561 = vrot.lane.b32.xlu0 %v9506, 44
  %v9562 = vpop.permute.xlu0 %9561
  %9563 = vrot.lane.b32.xlu0 %v7143, 44
  %v9564 = vpop.permute.xlu0 %9563
  %9565 = vrot.lane.b32.xlu0 %v9507, 44
  %v9566 = vpop.permute.xlu0 %9565
  %9567 = vrot.lane.b32.xlu0 %v7148, 44
  %v9568 = vpop.permute.xlu0 %9567
  %9569 = vrot.lane.b32.xlu0 %v9508, 44
  %v9570 = vpop.permute.xlu0 %9569
  %9571 = vrot.lane.b32.xlu0 %v7153, 44
  %v9572 = vpop.permute.xlu0 %9571
  %9573 = vrot.lane.b32.xlu0 %v9509, 44
  %v9574 = vpop.permute.xlu0 %9573
  %9575 = vrot.lane.b32.xlu0 %v7158, 44
  %v9576 = vpop.permute.xlu0 %9575
  %9577 = vrot.lane.b32.xlu0 %v9510, 44
  %v9578 = vpop.permute.xlu0 %9577
  %9579 = vrot.lane.b32.xlu0 %v7163, 44
  %v9580 = vpop.permute.xlu0 %9579
  %9581 = vrot.lane.b32.xlu0 %v9511, 44
  %v9582 = vpop.permute.xlu0 %9581
  %9583 = vrot.lane.b32.xlu0 %v7168, 44
  %v9584 = vpop.permute.xlu0 %9583
  %9585 = vrot.lane.b32.xlu0 %v9512, 44
  %v9586 = vpop.permute.xlu0 %9585
  %9587 = vrot.lane.b32.xlu0 %v7173, 44
  %v9588 = vpop.permute.xlu0 %9587
  %9589 = vrot.lane.b32.xlu0 %v9513, 44
  %v9590 = vpop.permute.xlu0 %9589
  %9591 = vrot.lane.b32.xlu0 %v7178, 44
  %v9592 = vpop.permute.xlu0 %9591
  %9593 = vrot.lane.b32.xlu0 %v9514, 44
  %v9594 = vpop.permute.xlu0 %9593
  %9595 = vrot.lane.b32.xlu0 %v7183, 44
  %v9596 = vpop.permute.xlu0 %9595
  %9597 = vrot.lane.b32.xlu0 %v9515, 44
  %v9598 = vpop.permute.xlu0 %9597
  %9599 = vrot.lane.b32.xlu0 %v7188, 44
  %v9600 = vpop.permute.xlu0 %9599
  %9601 = vrot.lane.b32.xlu0 %v9516, 44
  %v9602 = vpop.permute.xlu0 %9601
  %9603 = vrot.lane.b32.xlu0 %v7193, 44
  %v9604 = vpop.permute.xlu0 %9603
  %9605 = vrot.lane.b32.xlu0 %v9517, 44
  %v9606 = vpop.permute.xlu0 %9605
  %9607 = vrot.lane.b32.xlu0 %v7198, 44
  %v9608 = vpop.permute.xlu0 %9607
  %9609 = vrot.lane.b32.xlu0 %v9518, 44
  %v9610 = vpop.permute.xlu0 %9609
  %9611 = vrot.lane.b32.xlu0 %v7203, 44
  %v9612 = vpop.permute.xlu0 %9611
  %9613 = vrot.lane.b32.xlu0 %v9519, 44
  %v9614 = vpop.permute.xlu0 %9613
  %9615 = vrot.lane.b32.xlu0 %v7208, 44
  %v9616 = vpop.permute.xlu0 %9615
  %9617 = vrot.lane.b32.xlu0 %v9520, 44
  %v9618 = vpop.permute.xlu0 %9617
  %9619 = vrot.lane.b32.xlu0 %v7213, 44
  %v9620 = vpop.permute.xlu0 %9619
  %9621 = vrot.lane.b32.xlu0 %v9521, 44
  %v9622 = vpop.permute.xlu0 %9621
  %9623 = vrot.lane.b32.xlu0 %v7218, 44
  %v9624 = vpop.permute.xlu0 %9623
  %9625 = vrot.lane.b32.xlu0 %v9522, 44
  %v9626 = vpop.permute.xlu0 %9625
  %9627 = vrot.lane.b32.xlu0 %v7223, 44
  %v9628 = vpop.permute.xlu0 %9627
  %9629 = vrot.lane.b32.xlu0 %v9523, 44
  %v9630 = vpop.permute.xlu0 %9629
  %9631 = vrot.lane.b32.xlu0 %v7228, 44
  %v9632 = vpop.permute.xlu0 %9631
  %9633 = vrot.lane.b32.xlu0 %v9524, 44
  %v9634 = vpop.permute.xlu0 %9633
  %9635 = vrot.lane.b32.xlu0 %v7233, 44
  %v9636 = vpop.permute.xlu0 %9635
  %9637 = vrot.lane.b32.xlu0 %v9525, 44
  %v9638 = vpop.permute.xlu0 %9637
  %9639 = vrot.lane.b32.xlu0 %v7238, 44
  %v9640 = vpop.permute.xlu0 %9639
  %9641 = vrot.lane.b32.xlu0 %v9526, 44
  %v9642 = vpop.permute.xlu0 %9641
  %9643 = vrot.lane.b32.xlu0 %v7243, 44
  %v9644 = vpop.permute.xlu0 %9643
  %9645 = vrot.lane.b32.xlu0 %v9527, 44
  %v9646 = vpop.permute.xlu0 %9645
  %9647 = vrot.lane.b32.xlu0 %v7248, 44
  %v9648 = vpop.permute.xlu0 %9647
  %9649 = vrot.lane.b32.xlu0 %v9528, 44
  %v9650 = vpop.permute.xlu0 %9649
  %9651 = vrot.lane.b32.xlu0 %v7253, 44
  %v9652 = vpop.permute.xlu0 %9651
  %9653 = vrot.lane.b32.xlu0 %v9529, 44
  %v9654 = vpop.permute.xlu0 %9653
  %9655 = vrot.lane.b32.xlu0 %v7258, 44
  %v9656 = vpop.permute.xlu0 %9655
  %9657 = vrot.lane.b32.xlu0 %v9530, 44
  %v9658 = vpop.permute.xlu0 %9657
  %v9723 = vsel %vm1533, %v7454, %v3813
  %v9724 = vsel %vm1533, %v7459, %v3813
  %v9725 = vsel %vm1533, %v7464, %v3813
  %v9726 = vsel %vm1533, %v7469, %v3813
  %v9727 = vsel %vm1533, %v7474, %v3813
  %v9728 = vsel %vm1533, %v7479, %v3813
  %v9729 = vsel %vm1533, %v7484, %v3813
  %v9730 = vsel %vm1533, %v7489, %v3813
  %v9731 = vsel %vm1533, %v7494, %v3813
  %v9732 = vsel %vm1533, %v7499, %v3813
  %v9733 = vsel %vm1533, %v7504, %v3813
  %v9734 = vsel %vm1533, %v7509, %v3813
  %v9735 = vsel %vm1533, %v7514, %v3813
  %v9736 = vsel %vm1533, %v7519, %v3813
  %v9737 = vsel %vm1533, %v7524, %v3813
  %v9738 = vsel %vm1533, %v7529, %v3813
  %v9739 = vsel %vm1533, %v7534, %v3813
  %v9740 = vsel %vm1533, %v7539, %v3813
  %v9741 = vsel %vm1533, %v7544, %v3813
  %v9742 = vsel %vm1533, %v7549, %v3813
  %v9743 = vsel %vm1533, %v7554, %v3813
  %v9744 = vsel %vm1533, %v7559, %v3813
  %v9745 = vsel %vm1533, %v7564, %v3813
  %v9746 = vsel %vm1533, %v7569, %v3813
  %v9747 = vsel %vm1533, %v7574, %v3813
  %v9748 = vsel %vm1533, %v7579, %v3813
  %v9749 = vsel %vm1533, %v7584, %v3813
  %v9750 = vsel %vm1533, %v7589, %v3813
  %v9751 = vsel %vm1533, %v7594, %v3813
  %v9752 = vsel %vm1533, %v7599, %v3813
  %v9753 = vsel %vm1533, %v7604, %v3813
  %v9754 = vsel %vm1533, %v7609, %v3813
  %9755 = vrot.lane.b32.xlu0 %v7455, 48
  %v9756 = vpop.permute.xlu0 %9755
  %9757 = vrot.lane.b32.xlu0 %v9723, 48
  %v9758 = vpop.permute.xlu0 %9757
  %9759 = vrot.lane.b32.xlu0 %v7460, 48
  %v9760 = vpop.permute.xlu0 %9759
  %9761 = vrot.lane.b32.xlu0 %v9724, 48
  %v9762 = vpop.permute.xlu0 %9761
  %9763 = vrot.lane.b32.xlu0 %v7465, 48
  %v9764 = vpop.permute.xlu0 %9763
  %9765 = vrot.lane.b32.xlu0 %v9725, 48
  %v9766 = vpop.permute.xlu0 %9765
  %9767 = vrot.lane.b32.xlu0 %v7470, 48
  %v9768 = vpop.permute.xlu0 %9767
  %9769 = vrot.lane.b32.xlu0 %v9726, 48
  %v9770 = vpop.permute.xlu0 %9769
  %9771 = vrot.lane.b32.xlu0 %v7475, 48
  %v9772 = vpop.permute.xlu0 %9771
  %9773 = vrot.lane.b32.xlu0 %v9727, 48
  %v9774 = vpop.permute.xlu0 %9773
  %9775 = vrot.lane.b32.xlu0 %v7480, 48
  %v9776 = vpop.permute.xlu0 %9775
  %9777 = vrot.lane.b32.xlu0 %v9728, 48
  %v9778 = vpop.permute.xlu0 %9777
  %9779 = vrot.lane.b32.xlu0 %v7485, 48
  %v9780 = vpop.permute.xlu0 %9779
  %9781 = vrot.lane.b32.xlu0 %v9729, 48
  %v9782 = vpop.permute.xlu0 %9781
  %9783 = vrot.lane.b32.xlu0 %v7490, 48
  %v9784 = vpop.permute.xlu0 %9783
  %9785 = vrot.lane.b32.xlu0 %v9730, 48
  %v9786 = vpop.permute.xlu0 %9785
  %9787 = vrot.lane.b32.xlu0 %v7495, 48
  %v9788 = vpop.permute.xlu0 %9787
  %9789 = vrot.lane.b32.xlu0 %v9731, 48
  %v9790 = vpop.permute.xlu0 %9789
  %9791 = vrot.lane.b32.xlu0 %v7500, 48
  %v9792 = vpop.permute.xlu0 %9791
  %9793 = vrot.lane.b32.xlu0 %v9732, 48
  %v9794 = vpop.permute.xlu0 %9793
  %9795 = vrot.lane.b32.xlu0 %v7505, 48
  %v9796 = vpop.permute.xlu0 %9795
  %9797 = vrot.lane.b32.xlu0 %v9733, 48
  %v9798 = vpop.permute.xlu0 %9797
  %9799 = vrot.lane.b32.xlu0 %v7510, 48
  %v9800 = vpop.permute.xlu0 %9799
  %9801 = vrot.lane.b32.xlu0 %v9734, 48
  %v9802 = vpop.permute.xlu0 %9801
  %9803 = vrot.lane.b32.xlu0 %v7515, 48
  %v9804 = vpop.permute.xlu0 %9803
  %9805 = vrot.lane.b32.xlu0 %v9735, 48
  %v9806 = vpop.permute.xlu0 %9805
  %9807 = vrot.lane.b32.xlu0 %v7520, 48
  %v9808 = vpop.permute.xlu0 %9807
  %9809 = vrot.lane.b32.xlu0 %v9736, 48
  %v9810 = vpop.permute.xlu0 %9809
  %9811 = vrot.lane.b32.xlu0 %v7525, 48
  %v9812 = vpop.permute.xlu0 %9811
  %9813 = vrot.lane.b32.xlu0 %v9737, 48
  %v9814 = vpop.permute.xlu0 %9813
  %9815 = vrot.lane.b32.xlu0 %v7530, 48
  %v9816 = vpop.permute.xlu0 %9815
  %9817 = vrot.lane.b32.xlu0 %v9738, 48
  %v9818 = vpop.permute.xlu0 %9817
  %9819 = vrot.lane.b32.xlu0 %v7535, 48
  %v9820 = vpop.permute.xlu0 %9819
  %9821 = vrot.lane.b32.xlu0 %v9739, 48
  %v9822 = vpop.permute.xlu0 %9821
  %9823 = vrot.lane.b32.xlu0 %v7540, 48
  %v9824 = vpop.permute.xlu0 %9823
  %9825 = vrot.lane.b32.xlu0 %v9740, 48
  %v9826 = vpop.permute.xlu0 %9825
  %9827 = vrot.lane.b32.xlu0 %v7545, 48
  %v9828 = vpop.permute.xlu0 %9827
  %9829 = vrot.lane.b32.xlu0 %v9741, 48
  %v9830 = vpop.permute.xlu0 %9829
  %9831 = vrot.lane.b32.xlu0 %v7550, 48
  %v9832 = vpop.permute.xlu0 %9831
  %9833 = vrot.lane.b32.xlu0 %v9742, 48
  %v9834 = vpop.permute.xlu0 %9833
  %9835 = vrot.lane.b32.xlu0 %v7555, 48
  %v9836 = vpop.permute.xlu0 %9835
  %9837 = vrot.lane.b32.xlu0 %v9743, 48
  %v9838 = vpop.permute.xlu0 %9837
  %9839 = vrot.lane.b32.xlu0 %v7560, 48
  %v9840 = vpop.permute.xlu0 %9839
  %9841 = vrot.lane.b32.xlu0 %v9744, 48
  %v9842 = vpop.permute.xlu0 %9841
  %9843 = vrot.lane.b32.xlu0 %v7565, 48
  %v9844 = vpop.permute.xlu0 %9843
  %9845 = vrot.lane.b32.xlu0 %v9745, 48
  %v9846 = vpop.permute.xlu0 %9845
  %9847 = vrot.lane.b32.xlu0 %v7570, 48
  %v9848 = vpop.permute.xlu0 %9847
  %9849 = vrot.lane.b32.xlu0 %v9746, 48
  %v9850 = vpop.permute.xlu0 %9849
  %9851 = vrot.lane.b32.xlu0 %v7575, 48
  %v9852 = vpop.permute.xlu0 %9851
  %9853 = vrot.lane.b32.xlu0 %v9747, 48
  %v9854 = vpop.permute.xlu0 %9853
  %9855 = vrot.lane.b32.xlu0 %v7580, 48
  %v9856 = vpop.permute.xlu0 %9855
  %9857 = vrot.lane.b32.xlu0 %v9748, 48
  %v9858 = vpop.permute.xlu0 %9857
  %9859 = vrot.lane.b32.xlu0 %v7585, 48
  %v9860 = vpop.permute.xlu0 %9859
  %9861 = vrot.lane.b32.xlu0 %v9749, 48
  %v9862 = vpop.permute.xlu0 %9861
  %9863 = vrot.lane.b32.xlu0 %v7590, 48
  %v9864 = vpop.permute.xlu0 %9863
  %9865 = vrot.lane.b32.xlu0 %v9750, 48
  %v9866 = vpop.permute.xlu0 %9865
  %9867 = vrot.lane.b32.xlu0 %v7595, 48
  %v9868 = vpop.permute.xlu0 %9867
  %9869 = vrot.lane.b32.xlu0 %v9751, 48
  %v9870 = vpop.permute.xlu0 %9869
  %9871 = vrot.lane.b32.xlu0 %v7600, 48
  %v9872 = vpop.permute.xlu0 %9871
  %9873 = vrot.lane.b32.xlu0 %v9752, 48
  %v9874 = vpop.permute.xlu0 %9873
  %9875 = vrot.lane.b32.xlu0 %v7605, 48
  %v9876 = vpop.permute.xlu0 %9875
  %9877 = vrot.lane.b32.xlu0 %v9753, 48
  %v9878 = vpop.permute.xlu0 %9877
  %9879 = vrot.lane.b32.xlu0 %v7610, 48
  %v9880 = vpop.permute.xlu0 %9879
  %9881 = vrot.lane.b32.xlu0 %v9754, 48
  %v9882 = vpop.permute.xlu0 %9881
  %v9947 = vsel %vm1886, %v7806, %v4038
  %v9948 = vsel %vm1886, %v7811, %v4038
  %v9949 = vsel %vm1886, %v7816, %v4038
  %v9950 = vsel %vm1886, %v7821, %v4038
  %v9951 = vsel %vm1886, %v7826, %v4038
  %v9952 = vsel %vm1886, %v7831, %v4038
  %v9953 = vsel %vm1886, %v7836, %v4038
  %v9954 = vsel %vm1886, %v7841, %v4038
  %v9955 = vsel %vm1886, %v7846, %v4038
  %v9956 = vsel %vm1886, %v7851, %v4038
  %v9957 = vsel %vm1886, %v7856, %v4038
  %v9958 = vsel %vm1886, %v7861, %v4038
  %v9959 = vsel %vm1886, %v7866, %v4038
  %v9960 = vsel %vm1886, %v7871, %v4038
  %v9961 = vsel %vm1886, %v7876, %v4038
  %v9962 = vsel %vm1886, %v7881, %v4038
  %v9963 = vsel %vm1886, %v7886, %v4038
  %v9964 = vsel %vm1886, %v7891, %v4038
  %v9965 = vsel %vm1886, %v7896, %v4038
  %v9966 = vsel %vm1886, %v7901, %v4038
  %v9967 = vsel %vm1886, %v7906, %v4038
  %v9968 = vsel %vm1886, %v7911, %v4038
  %v9969 = vsel %vm1886, %v7916, %v4038
  %v9970 = vsel %vm1886, %v7921, %v4038
  %v9971 = vsel %vm1886, %v7926, %v4038
  %v9972 = vsel %vm1886, %v7931, %v4038
  %v9973 = vsel %vm1886, %v7936, %v4038
  %v9974 = vsel %vm1886, %v7941, %v4038
  %v9975 = vsel %vm1886, %v7946, %v4038
  %v9976 = vsel %vm1886, %v7951, %v4038
  %v9977 = vsel %vm1886, %v7956, %v4038
  %v9978 = vsel %vm1886, %v7961, %v4038
  %9979 = vrot.lane.b32.xlu0 %v7807, 52
  %v9980 = vpop.permute.xlu0 %9979
  %9981 = vrot.lane.b32.xlu0 %v9947, 52
  %v9982 = vpop.permute.xlu0 %9981
  %9983 = vrot.lane.b32.xlu0 %v7812, 52
  %v9984 = vpop.permute.xlu0 %9983
  %9985 = vrot.lane.b32.xlu0 %v9948, 52
  %v9986 = vpop.permute.xlu0 %9985
  %9987 = vrot.lane.b32.xlu0 %v7817, 52
  %v9988 = vpop.permute.xlu0 %9987
  %9989 = vrot.lane.b32.xlu0 %v9949, 52
  %v9990 = vpop.permute.xlu0 %9989
  %9991 = vrot.lane.b32.xlu0 %v7822, 52
  %v9992 = vpop.permute.xlu0 %9991
  %9993 = vrot.lane.b32.xlu0 %v9950, 52
  %v9994 = vpop.permute.xlu0 %9993
  %9995 = vrot.lane.b32.xlu0 %v7827, 52
  %v9996 = vpop.permute.xlu0 %9995
  %9997 = vrot.lane.b32.xlu0 %v9951, 52
  %v9998 = vpop.permute.xlu0 %9997
  %9999 = vrot.lane.b32.xlu0 %v7832, 52
  %v10000 = vpop.permute.xlu0 %9999
  %10001 = vrot.lane.b32.xlu0 %v9952, 52
  %v10002 = vpop.permute.xlu0 %10001
  %10003 = vrot.lane.b32.xlu0 %v7837, 52
  %v10004 = vpop.permute.xlu0 %10003
  %10005 = vrot.lane.b32.xlu0 %v9953, 52
  %v10006 = vpop.permute.xlu0 %10005
  %10007 = vrot.lane.b32.xlu0 %v7842, 52
  %v10008 = vpop.permute.xlu0 %10007
  %10009 = vrot.lane.b32.xlu0 %v9954, 52
  %v10010 = vpop.permute.xlu0 %10009
  %10011 = vrot.lane.b32.xlu0 %v7847, 52
  %v10012 = vpop.permute.xlu0 %10011
  %10013 = vrot.lane.b32.xlu0 %v9955, 52
  %v10014 = vpop.permute.xlu0 %10013
  %10015 = vrot.lane.b32.xlu0 %v7852, 52
  %v10016 = vpop.permute.xlu0 %10015
  %10017 = vrot.lane.b32.xlu0 %v9956, 52
  %v10018 = vpop.permute.xlu0 %10017
  %10019 = vrot.lane.b32.xlu0 %v7857, 52
  %v10020 = vpop.permute.xlu0 %10019
  %10021 = vrot.lane.b32.xlu0 %v9957, 52
  %v10022 = vpop.permute.xlu0 %10021
  %10023 = vrot.lane.b32.xlu0 %v7862, 52
  %v10024 = vpop.permute.xlu0 %10023
  %10025 = vrot.lane.b32.xlu0 %v9958, 52
  %v10026 = vpop.permute.xlu0 %10025
  %10027 = vrot.lane.b32.xlu0 %v7867, 52
  %v10028 = vpop.permute.xlu0 %10027
  %10029 = vrot.lane.b32.xlu0 %v9959, 52
  %v10030 = vpop.permute.xlu0 %10029
  %10031 = vrot.lane.b32.xlu0 %v7872, 52
  %v10032 = vpop.permute.xlu0 %10031
  %10033 = vrot.lane.b32.xlu0 %v9960, 52
  %v10034 = vpop.permute.xlu0 %10033
  %10035 = vrot.lane.b32.xlu0 %v7877, 52
  %v10036 = vpop.permute.xlu0 %10035
  %10037 = vrot.lane.b32.xlu0 %v9961, 52
  %v10038 = vpop.permute.xlu0 %10037
  %10039 = vrot.lane.b32.xlu0 %v7882, 52
  %v10040 = vpop.permute.xlu0 %10039
  %10041 = vrot.lane.b32.xlu0 %v9962, 52
  %v10042 = vpop.permute.xlu0 %10041
  %10043 = vrot.lane.b32.xlu0 %v7887, 52
  %v10044 = vpop.permute.xlu0 %10043
  %10045 = vrot.lane.b32.xlu0 %v9963, 52
  %v10046 = vpop.permute.xlu0 %10045
  %10047 = vrot.lane.b32.xlu0 %v7892, 52
  %v10048 = vpop.permute.xlu0 %10047
  %10049 = vrot.lane.b32.xlu0 %v9964, 52
  %v10050 = vpop.permute.xlu0 %10049
  %10051 = vrot.lane.b32.xlu0 %v7897, 52
  %v10052 = vpop.permute.xlu0 %10051
  %10053 = vrot.lane.b32.xlu0 %v9965, 52
  %v10054 = vpop.permute.xlu0 %10053
  %10055 = vrot.lane.b32.xlu0 %v7902, 52
  %v10056 = vpop.permute.xlu0 %10055
  %10057 = vrot.lane.b32.xlu0 %v9966, 52
  %v10058 = vpop.permute.xlu0 %10057
  %10059 = vrot.lane.b32.xlu0 %v7907, 52
  %v10060 = vpop.permute.xlu0 %10059
  %10061 = vrot.lane.b32.xlu0 %v9967, 52
  %v10062 = vpop.permute.xlu0 %10061
  %10063 = vrot.lane.b32.xlu0 %v7912, 52
  %v10064 = vpop.permute.xlu0 %10063
  %10065 = vrot.lane.b32.xlu0 %v9968, 52
  %v10066 = vpop.permute.xlu0 %10065
  %10067 = vrot.lane.b32.xlu0 %v7917, 52
  %v10068 = vpop.permute.xlu0 %10067
  %10069 = vrot.lane.b32.xlu0 %v9969, 52
  %v10070 = vpop.permute.xlu0 %10069
  %10071 = vrot.lane.b32.xlu0 %v7922, 52
  %v10072 = vpop.permute.xlu0 %10071
  %10073 = vrot.lane.b32.xlu0 %v9970, 52
  %v10074 = vpop.permute.xlu0 %10073
  %10075 = vrot.lane.b32.xlu0 %v7927, 52
  %v10076 = vpop.permute.xlu0 %10075
  %10077 = vrot.lane.b32.xlu0 %v9971, 52
  %v10078 = vpop.permute.xlu0 %10077
  %10079 = vrot.lane.b32.xlu0 %v7932, 52
  %v10080 = vpop.permute.xlu0 %10079
  %10081 = vrot.lane.b32.xlu0 %v9972, 52
  %v10082 = vpop.permute.xlu0 %10081
  %10083 = vrot.lane.b32.xlu0 %v7937, 52
  %v10084 = vpop.permute.xlu0 %10083
  %10085 = vrot.lane.b32.xlu0 %v9973, 52
  %v10086 = vpop.permute.xlu0 %10085
  %10087 = vrot.lane.b32.xlu0 %v7942, 52
  %v10088 = vpop.permute.xlu0 %10087
  %10089 = vrot.lane.b32.xlu0 %v9974, 52
  %v10090 = vpop.permute.xlu0 %10089
  %10091 = vrot.lane.b32.xlu0 %v7947, 52
  %v10092 = vpop.permute.xlu0 %10091
  %10093 = vrot.lane.b32.xlu0 %v9975, 52
  %v10094 = vpop.permute.xlu0 %10093
  %10095 = vrot.lane.b32.xlu0 %v7952, 52
  %v10096 = vpop.permute.xlu0 %10095
  %10097 = vrot.lane.b32.xlu0 %v9976, 52
  %v10098 = vpop.permute.xlu0 %10097
  %10099 = vrot.lane.b32.xlu0 %v7957, 52
  %v10100 = vpop.permute.xlu0 %10099
  %10101 = vrot.lane.b32.xlu0 %v9977, 52
  %v10102 = vpop.permute.xlu0 %10101
  %10103 = vrot.lane.b32.xlu0 %v7962, 52
  %v10104 = vpop.permute.xlu0 %10103
  %10105 = vrot.lane.b32.xlu0 %v9978, 52
  %v10106 = vpop.permute.xlu0 %10105
  %v10171 = vsel %vm2239, %v8158, %v4263
  %v10172 = vsel %vm2239, %v8163, %v4263
  %v10173 = vsel %vm2239, %v8168, %v4263
  %v10174 = vsel %vm2239, %v8173, %v4263
  %v10175 = vsel %vm2239, %v8178, %v4263
  %v10176 = vsel %vm2239, %v8183, %v4263
  %v10177 = vsel %vm2239, %v8188, %v4263
  %v10178 = vsel %vm2239, %v8193, %v4263
  %v10179 = vsel %vm2239, %v8198, %v4263
  %v10180 = vsel %vm2239, %v8203, %v4263
  %v10181 = vsel %vm2239, %v8208, %v4263
  %v10182 = vsel %vm2239, %v8213, %v4263
  %v10183 = vsel %vm2239, %v8218, %v4263
  %v10184 = vsel %vm2239, %v8223, %v4263
  %v10185 = vsel %vm2239, %v8228, %v4263
  %v10186 = vsel %vm2239, %v8233, %v4263
  %v10187 = vsel %vm2239, %v8238, %v4263
  %v10188 = vsel %vm2239, %v8243, %v4263
  %v10189 = vsel %vm2239, %v8248, %v4263
  %v10190 = vsel %vm2239, %v8253, %v4263
  %v10191 = vsel %vm2239, %v8258, %v4263
  %v10192 = vsel %vm2239, %v8263, %v4263
  %v10193 = vsel %vm2239, %v8268, %v4263
  %v10194 = vsel %vm2239, %v8273, %v4263
  %v10195 = vsel %vm2239, %v8278, %v4263
  %v10196 = vsel %vm2239, %v8283, %v4263
  %v10197 = vsel %vm2239, %v8288, %v4263
  %v10198 = vsel %vm2239, %v8293, %v4263
  %v10199 = vsel %vm2239, %v8298, %v4263
  %v10200 = vsel %vm2239, %v8303, %v4263
  %v10201 = vsel %vm2239, %v8308, %v4263
  %v10202 = vsel %vm2239, %v8313, %v4263
  %10203 = vrot.lane.b32.xlu0 %v8159, 56
  %v10204 = vpop.permute.xlu0 %10203
  %10205 = vrot.lane.b32.xlu0 %v10171, 56
  %v10206 = vpop.permute.xlu0 %10205
  %10207 = vrot.lane.b32.xlu0 %v8164, 56
  %v10208 = vpop.permute.xlu0 %10207
  %10209 = vrot.lane.b32.xlu0 %v10172, 56
  %v10210 = vpop.permute.xlu0 %10209
  %10211 = vrot.lane.b32.xlu0 %v8169, 56
  %v10212 = vpop.permute.xlu0 %10211
  %10213 = vrot.lane.b32.xlu0 %v10173, 56
  %v10214 = vpop.permute.xlu0 %10213
  %10215 = vrot.lane.b32.xlu0 %v8174, 56
  %v10216 = vpop.permute.xlu0 %10215
  %10217 = vrot.lane.b32.xlu0 %v10174, 56
  %v10218 = vpop.permute.xlu0 %10217
  %10219 = vrot.lane.b32.xlu0 %v8179, 56
  %v10220 = vpop.permute.xlu0 %10219
  %10221 = vrot.lane.b32.xlu0 %v10175, 56
  %v10222 = vpop.permute.xlu0 %10221
  %10223 = vrot.lane.b32.xlu0 %v8184, 56
  %v10224 = vpop.permute.xlu0 %10223
  %10225 = vrot.lane.b32.xlu0 %v10176, 56
  %v10226 = vpop.permute.xlu0 %10225
  %10227 = vrot.lane.b32.xlu0 %v8189, 56
  %v10228 = vpop.permute.xlu0 %10227
  %10229 = vrot.lane.b32.xlu0 %v10177, 56
  %v10230 = vpop.permute.xlu0 %10229
  %10231 = vrot.lane.b32.xlu0 %v8194, 56
  %v10232 = vpop.permute.xlu0 %10231
  %10233 = vrot.lane.b32.xlu0 %v10178, 56
  %v10234 = vpop.permute.xlu0 %10233
  %10235 = vrot.lane.b32.xlu0 %v8199, 56
  %v10236 = vpop.permute.xlu0 %10235
  %10237 = vrot.lane.b32.xlu0 %v10179, 56
  %v10238 = vpop.permute.xlu0 %10237
  %10239 = vrot.lane.b32.xlu0 %v8204, 56
  %v10240 = vpop.permute.xlu0 %10239
  %10241 = vrot.lane.b32.xlu0 %v10180, 56
  %v10242 = vpop.permute.xlu0 %10241
  %10243 = vrot.lane.b32.xlu0 %v8209, 56
  %v10244 = vpop.permute.xlu0 %10243
  %10245 = vrot.lane.b32.xlu0 %v10181, 56
  %v10246 = vpop.permute.xlu0 %10245
  %10247 = vrot.lane.b32.xlu0 %v8214, 56
  %v10248 = vpop.permute.xlu0 %10247
  %10249 = vrot.lane.b32.xlu0 %v10182, 56
  %v10250 = vpop.permute.xlu0 %10249
  %10251 = vrot.lane.b32.xlu0 %v8219, 56
  %v10252 = vpop.permute.xlu0 %10251
  %10253 = vrot.lane.b32.xlu0 %v10183, 56
  %v10254 = vpop.permute.xlu0 %10253
  %10255 = vrot.lane.b32.xlu0 %v8224, 56
  %v10256 = vpop.permute.xlu0 %10255
  %10257 = vrot.lane.b32.xlu0 %v10184, 56
  %v10258 = vpop.permute.xlu0 %10257
  %10259 = vrot.lane.b32.xlu0 %v8229, 56
  %v10260 = vpop.permute.xlu0 %10259
  %10261 = vrot.lane.b32.xlu0 %v10185, 56
  %v10262 = vpop.permute.xlu0 %10261
  %10263 = vrot.lane.b32.xlu0 %v8234, 56
  %v10264 = vpop.permute.xlu0 %10263
  %10265 = vrot.lane.b32.xlu0 %v10186, 56
  %v10266 = vpop.permute.xlu0 %10265
  %10267 = vrot.lane.b32.xlu0 %v8239, 56
  %v10268 = vpop.permute.xlu0 %10267
  %10269 = vrot.lane.b32.xlu0 %v10187, 56
  %v10270 = vpop.permute.xlu0 %10269
  %10271 = vrot.lane.b32.xlu0 %v8244, 56
  %v10272 = vpop.permute.xlu0 %10271
  %10273 = vrot.lane.b32.xlu0 %v10188, 56
  %v10274 = vpop.permute.xlu0 %10273
  %10275 = vrot.lane.b32.xlu0 %v8249, 56
  %v10276 = vpop.permute.xlu0 %10275
  %10277 = vrot.lane.b32.xlu0 %v10189, 56
  %v10278 = vpop.permute.xlu0 %10277
  %10279 = vrot.lane.b32.xlu0 %v8254, 56
  %v10280 = vpop.permute.xlu0 %10279
  %10281 = vrot.lane.b32.xlu0 %v10190, 56
  %v10282 = vpop.permute.xlu0 %10281
  %10283 = vrot.lane.b32.xlu0 %v8259, 56
  %v10284 = vpop.permute.xlu0 %10283
  %10285 = vrot.lane.b32.xlu0 %v10191, 56
  %v10286 = vpop.permute.xlu0 %10285
  %10287 = vrot.lane.b32.xlu0 %v8264, 56
  %v10288 = vpop.permute.xlu0 %10287
  %10289 = vrot.lane.b32.xlu0 %v10192, 56
  %v10290 = vpop.permute.xlu0 %10289
  %10291 = vrot.lane.b32.xlu0 %v8269, 56
  %v10292 = vpop.permute.xlu0 %10291
  %10293 = vrot.lane.b32.xlu0 %v10193, 56
  %v10294 = vpop.permute.xlu0 %10293
  %10295 = vrot.lane.b32.xlu0 %v8274, 56
  %v10296 = vpop.permute.xlu0 %10295
  %10297 = vrot.lane.b32.xlu0 %v10194, 56
  %v10298 = vpop.permute.xlu0 %10297
  %10299 = vrot.lane.b32.xlu0 %v8279, 56
  %v10300 = vpop.permute.xlu0 %10299
  %10301 = vrot.lane.b32.xlu0 %v10195, 56
  %v10302 = vpop.permute.xlu0 %10301
  %10303 = vrot.lane.b32.xlu0 %v8284, 56
  %v10304 = vpop.permute.xlu0 %10303
  %10305 = vrot.lane.b32.xlu0 %v10196, 56
  %v10306 = vpop.permute.xlu0 %10305
  %10307 = vrot.lane.b32.xlu0 %v8289, 56
  %v10308 = vpop.permute.xlu0 %10307
  %10309 = vrot.lane.b32.xlu0 %v10197, 56
  %v10310 = vpop.permute.xlu0 %10309
  %10311 = vrot.lane.b32.xlu0 %v8294, 56
  %v10312 = vpop.permute.xlu0 %10311
  %10313 = vrot.lane.b32.xlu0 %v10198, 56
  %v10314 = vpop.permute.xlu0 %10313
  %10315 = vrot.lane.b32.xlu0 %v8299, 56
  %v10316 = vpop.permute.xlu0 %10315
  %10317 = vrot.lane.b32.xlu0 %v10199, 56
  %v10318 = vpop.permute.xlu0 %10317
  %10319 = vrot.lane.b32.xlu0 %v8304, 56
  %v10320 = vpop.permute.xlu0 %10319
  %10321 = vrot.lane.b32.xlu0 %v10200, 56
  %v10322 = vpop.permute.xlu0 %10321
  %10323 = vrot.lane.b32.xlu0 %v8309, 56
  %v10324 = vpop.permute.xlu0 %10323
  %10325 = vrot.lane.b32.xlu0 %v10201, 56
  %v10326 = vpop.permute.xlu0 %10325
  %10327 = vrot.lane.b32.xlu0 %v8314, 56
  %v10328 = vpop.permute.xlu0 %10327
  %10329 = vrot.lane.b32.xlu0 %v10202, 56
  %v10330 = vpop.permute.xlu0 %10329
  %v10395 = vsel %vm4488, %v6267, %v6556
  %v10396 = vsel %vm4488, %v6077, %v6558
  %v10397 = vsel %vm4488, %v6268, %v6560
  %v10398 = vsel %vm4488, %v6080, %v6562
  %v10399 = vsel %vm4488, %v6269, %v6564
  %v10400 = vsel %vm4488, %v6083, %v6566
  %v10401 = vsel %vm4488, %v6270, %v6568
  %v10402 = vsel %vm4488, %v6086, %v6570
  %v10403 = vsel %vm4488, %v6271, %v6572
  %v10404 = vsel %vm4488, %v6089, %v6574
  %v10405 = vsel %vm4488, %v6272, %v6576
  %v10406 = vsel %vm4488, %v6092, %v6578
  %v10407 = vsel %vm4488, %v6273, %v6580
  %v10408 = vsel %vm4488, %v6095, %v6582
  %v10409 = vsel %vm4488, %v6274, %v6584
  %v10410 = vsel %vm4488, %v6098, %v6586
  %v10411 = vsel %vm4488, %v6275, %v6588
  %v10412 = vsel %vm4488, %v6101, %v6590
  %v10413 = vsel %vm4488, %v6276, %v6592
  %v10414 = vsel %vm4488, %v6104, %v6594
  %v10415 = vsel %vm4488, %v6277, %v6596
  %v10416 = vsel %vm4488, %v6107, %v6598
  %v10417 = vsel %vm4488, %v6278, %v6600
  %v10418 = vsel %vm4488, %v6110, %v6602
  %v10419 = vsel %vm4488, %v6279, %v6604
  %v10420 = vsel %vm4488, %v6113, %v6606
  %v10421 = vsel %vm4488, %v6280, %v6608
  %v10422 = vsel %vm4488, %v6116, %v6610
  %v10423 = vsel %vm4488, %v6281, %v6612
  %v10424 = vsel %vm4488, %v6119, %v6614
  %v10425 = vsel %vm4488, %v6282, %v6616
  %v10426 = vsel %vm4488, %v6122, %v6618
  %v10427 = vsel %vm4488, %v6283, %v6620
  %v10428 = vsel %vm4488, %v6125, %v6622
  %v10429 = vsel %vm4488, %v6284, %v6624
  %v10430 = vsel %vm4488, %v6128, %v6626
  %v10431 = vsel %vm4488, %v6285, %v6628
  %v10432 = vsel %vm4488, %v6131, %v6630
  %v10433 = vsel %vm4488, %v6286, %v6632
  %v10434 = vsel %vm4488, %v6134, %v6634
  %v10435 = vsel %vm4488, %v6287, %v6636
  %v10436 = vsel %vm4488, %v6137, %v6638
  %v10437 = vsel %vm4488, %v6288, %v6640
  %v10438 = vsel %vm4488, %v6140, %v6642
  %v10439 = vsel %vm4488, %v6289, %v6644
  %v10440 = vsel %vm4488, %v6143, %v6646
  %v10441 = vsel %vm4488, %v6290, %v6648
  %v10442 = vsel %vm4488, %v6146, %v6650
  %v10443 = vsel %vm4488, %v6291, %v6652
  %v10444 = vsel %vm4488, %v6149, %v6654
  %v10445 = vsel %vm4488, %v6292, %v6656
  %v10446 = vsel %vm4488, %v6152, %v6658
  %v10447 = vsel %vm4488, %v6293, %v6660
  %v10448 = vsel %vm4488, %v6155, %v6662
  %v10449 = vsel %vm4488, %v6294, %v6664
  %v10450 = vsel %vm4488, %v6158, %v6666
  %v10451 = vsel %vm4488, %v6295, %v6668
  %v10452 = vsel %vm4488, %v6161, %v6670
  %v10453 = vsel %vm4488, %v6296, %v6672
  %v10454 = vsel %vm4488, %v6164, %v6674
  %v10455 = vsel %vm4488, %v6297, %v6676
  %v10456 = vsel %vm4488, %v6167, %v6678
  %v10457 = vsel %vm4488, %v6298, %v6680
  %v10458 = vsel %vm4488, %v6170, %v6682
  %v10459 = vsel %vm4553, %v10395, %v6908
  %v10460 = vsel %vm4553, %v10396, %v6910
  %v10461 = vsel %vm4553, %v10397, %v6912
  %v10462 = vsel %vm4553, %v10398, %v6914
  %v10463 = vsel %vm4553, %v10399, %v6916
  %v10464 = vsel %vm4553, %v10400, %v6918
  %v10465 = vsel %vm4553, %v10401, %v6920
  %v10466 = vsel %vm4553, %v10402, %v6922
  %v10467 = vsel %vm4553, %v10403, %v6924
  %v10468 = vsel %vm4553, %v10404, %v6926
  %v10469 = vsel %vm4553, %v10405, %v6928
  %v10470 = vsel %vm4553, %v10406, %v6930
  %v10471 = vsel %vm4553, %v10407, %v6932
  %v10472 = vsel %vm4553, %v10408, %v6934
  %v10473 = vsel %vm4553, %v10409, %v6936
  %v10474 = vsel %vm4553, %v10410, %v6938
  %v10475 = vsel %vm4553, %v10411, %v6940
  %v10476 = vsel %vm4553, %v10412, %v6942
  %v10477 = vsel %vm4553, %v10413, %v6944
  %v10478 = vsel %vm4553, %v10414, %v6946
  %v10479 = vsel %vm4553, %v10415, %v6948
  %v10480 = vsel %vm4553, %v10416, %v6950
  %v10481 = vsel %vm4553, %v10417, %v6952
  %v10482 = vsel %vm4553, %v10418, %v6954
  %v10483 = vsel %vm4553, %v10419, %v6956
  %v10484 = vsel %vm4553, %v10420, %v6958
  %v10485 = vsel %vm4553, %v10421, %v6960
  %v10486 = vsel %vm4553, %v10422, %v6962
  %v10487 = vsel %vm4553, %v10423, %v6964
  %v10488 = vsel %vm4553, %v10424, %v6966
  %v10489 = vsel %vm4553, %v10425, %v6968
  %v10490 = vsel %vm4553, %v10426, %v6970
  %v10491 = vsel %vm4553, %v10427, %v6972
  %v10492 = vsel %vm4553, %v10428, %v6974
  %v10493 = vsel %vm4553, %v10429, %v6976
  %v10494 = vsel %vm4553, %v10430, %v6978
  %v10495 = vsel %vm4553, %v10431, %v6980
  %v10496 = vsel %vm4553, %v10432, %v6982
  %v10497 = vsel %vm4553, %v10433, %v6984
  %v10498 = vsel %vm4553, %v10434, %v6986
  %v10499 = vsel %vm4553, %v10435, %v6988
  %v10500 = vsel %vm4553, %v10436, %v6990
  %v10501 = vsel %vm4553, %v10437, %v6992
  %v10502 = vsel %vm4553, %v10438, %v6994
  %v10503 = vsel %vm4553, %v10439, %v6996
  %v10504 = vsel %vm4553, %v10440, %v6998
  %v10505 = vsel %vm4553, %v10441, %v7000
  %v10506 = vsel %vm4553, %v10442, %v7002
  %v10507 = vsel %vm4553, %v10443, %v7004
  %v10508 = vsel %vm4553, %v10444, %v7006
  %v10509 = vsel %vm4553, %v10445, %v7008
  %v10510 = vsel %vm4553, %v10446, %v7010
  %v10511 = vsel %vm4553, %v10447, %v7012
  %v10512 = vsel %vm4553, %v10448, %v7014
  %v10513 = vsel %vm4553, %v10449, %v7016
  %v10514 = vsel %vm4553, %v10450, %v7018
  %v10515 = vsel %vm4553, %v10451, %v7020
  %v10516 = vsel %vm4553, %v10452, %v7022
  %v10517 = vsel %vm4553, %v10453, %v7024
  %v10518 = vsel %vm4553, %v10454, %v7026
  %v10519 = vsel %vm4553, %v10455, %v7028
  %v10520 = vsel %vm4553, %v10456, %v7030
  %v10521 = vsel %vm4553, %v10457, %v7032
  %v10522 = vsel %vm4553, %v10458, %v7034
  %v10523 = vsel %vm4618, %v10459, %v7260
  %v10524 = vsel %vm4618, %v10460, %v7262
  %v10525 = vsel %vm4618, %v10461, %v7264
  %v10526 = vsel %vm4618, %v10462, %v7266
  %v10527 = vsel %vm4618, %v10463, %v7268
  %v10528 = vsel %vm4618, %v10464, %v7270
  %v10529 = vsel %vm4618, %v10465, %v7272
  %v10530 = vsel %vm4618, %v10466, %v7274
  %v10531 = vsel %vm4618, %v10467, %v7276
  %v10532 = vsel %vm4618, %v10468, %v7278
  %v10533 = vsel %vm4618, %v10469, %v7280
  %v10534 = vsel %vm4618, %v10470, %v7282
  %v10535 = vsel %vm4618, %v10471, %v7284
  %v10536 = vsel %vm4618, %v10472, %v7286
  %v10537 = vsel %vm4618, %v10473, %v7288
  %v10538 = vsel %vm4618, %v10474, %v7290
  %v10539 = vsel %vm4618, %v10475, %v7292
  %v10540 = vsel %vm4618, %v10476, %v7294
  %v10541 = vsel %vm4618, %v10477, %v7296
  %v10542 = vsel %vm4618, %v10478, %v7298
  %v10543 = vsel %vm4618, %v10479, %v7300
  %v10544 = vsel %vm4618, %v10480, %v7302
  %v10545 = vsel %vm4618, %v10481, %v7304
  %v10546 = vsel %vm4618, %v10482, %v7306
  %v10547 = vsel %vm4618, %v10483, %v7308
  %v10548 = vsel %vm4618, %v10484, %v7310
  %v10549 = vsel %vm4618, %v10485, %v7312
  %v10550 = vsel %vm4618, %v10486, %v7314
  %v10551 = vsel %vm4618, %v10487, %v7316
  %v10552 = vsel %vm4618, %v10488, %v7318
  %v10553 = vsel %vm4618, %v10489, %v7320
  %v10554 = vsel %vm4618, %v10490, %v7322
  %v10555 = vsel %vm4618, %v10491, %v7324
  %v10556 = vsel %vm4618, %v10492, %v7326
  %v10557 = vsel %vm4618, %v10493, %v7328
  %v10558 = vsel %vm4618, %v10494, %v7330
  %v10559 = vsel %vm4618, %v10495, %v7332
  %v10560 = vsel %vm4618, %v10496, %v7334
  %v10561 = vsel %vm4618, %v10497, %v7336
  %v10562 = vsel %vm4618, %v10498, %v7338
  %v10563 = vsel %vm4618, %v10499, %v7340
  %v10564 = vsel %vm4618, %v10500, %v7342
  %v10565 = vsel %vm4618, %v10501, %v7344
  %v10566 = vsel %vm4618, %v10502, %v7346
  %v10567 = vsel %vm4618, %v10503, %v7348
  %v10568 = vsel %vm4618, %v10504, %v7350
  %v10569 = vsel %vm4618, %v10505, %v7352
  %v10570 = vsel %vm4618, %v10506, %v7354
  %v10571 = vsel %vm4618, %v10507, %v7356
  %v10572 = vsel %vm4618, %v10508, %v7358
  %v10573 = vsel %vm4618, %v10509, %v7360
  %v10574 = vsel %vm4618, %v10510, %v7362
  %v10575 = vsel %vm4618, %v10511, %v7364
  %v10576 = vsel %vm4618, %v10512, %v7366
  %v10577 = vsel %vm4618, %v10513, %v7368
  %v10578 = vsel %vm4618, %v10514, %v7370
  %v10579 = vsel %vm4618, %v10515, %v7372
  %v10580 = vsel %vm4618, %v10516, %v7374
  %v10581 = vsel %vm4618, %v10517, %v7376
  %v10582 = vsel %vm4618, %v10518, %v7378
  %v10583 = vsel %vm4618, %v10519, %v7380
  %v10584 = vsel %vm4618, %v10520, %v7382
  %v10585 = vsel %vm4618, %v10521, %v7384
  %v10586 = vsel %vm4618, %v10522, %v7386
  %v10587 = vsel %vm4683, %v10523, %v7612
  %v10588 = vsel %vm4683, %v10524, %v7614
  %v10589 = vsel %vm4683, %v10525, %v7616
  %v10590 = vsel %vm4683, %v10526, %v7618
  %v10591 = vsel %vm4683, %v10527, %v7620
  %v10592 = vsel %vm4683, %v10528, %v7622
  %v10593 = vsel %vm4683, %v10529, %v7624
  %v10594 = vsel %vm4683, %v10530, %v7626
  %v10595 = vsel %vm4683, %v10531, %v7628
  %v10596 = vsel %vm4683, %v10532, %v7630
  %v10597 = vsel %vm4683, %v10533, %v7632
  %v10598 = vsel %vm4683, %v10534, %v7634
  %v10599 = vsel %vm4683, %v10535, %v7636
  %v10600 = vsel %vm4683, %v10536, %v7638
  %v10601 = vsel %vm4683, %v10537, %v7640
  %v10602 = vsel %vm4683, %v10538, %v7642
  %v10603 = vsel %vm4683, %v10539, %v7644
  %v10604 = vsel %vm4683, %v10540, %v7646
  %v10605 = vsel %vm4683, %v10541, %v7648
  %v10606 = vsel %vm4683, %v10542, %v7650
  %v10607 = vsel %vm4683, %v10543, %v7652
  %v10608 = vsel %vm4683, %v10544, %v7654
  %v10609 = vsel %vm4683, %v10545, %v7656
  %v10610 = vsel %vm4683, %v10546, %v7658
  %v10611 = vsel %vm4683, %v10547, %v7660
  %v10612 = vsel %vm4683, %v10548, %v7662
  %v10613 = vsel %vm4683, %v10549, %v7664
  %v10614 = vsel %vm4683, %v10550, %v7666
  %v10615 = vsel %vm4683, %v10551, %v7668
  %v10616 = vsel %vm4683, %v10552, %v7670
  %v10617 = vsel %vm4683, %v10553, %v7672
  %v10618 = vsel %vm4683, %v10554, %v7674
  %v10619 = vsel %vm4683, %v10555, %v7676
  %v10620 = vsel %vm4683, %v10556, %v7678
  %v10621 = vsel %vm4683, %v10557, %v7680
  %v10622 = vsel %vm4683, %v10558, %v7682
  %v10623 = vsel %vm4683, %v10559, %v7684
  %v10624 = vsel %vm4683, %v10560, %v7686
  %v10625 = vsel %vm4683, %v10561, %v7688
  %v10626 = vsel %vm4683, %v10562, %v7690
  %v10627 = vsel %vm4683, %v10563, %v7692
  %v10628 = vsel %vm4683, %v10564, %v7694
  %v10629 = vsel %vm4683, %v10565, %v7696
  %v10630 = vsel %vm4683, %v10566, %v7698
  %v10631 = vsel %vm4683, %v10567, %v7700
  %v10632 = vsel %vm4683, %v10568, %v7702
  %v10633 = vsel %vm4683, %v10569, %v7704
  %v10634 = vsel %vm4683, %v10570, %v7706
  %v10635 = vsel %vm4683, %v10571, %v7708
  %v10636 = vsel %vm4683, %v10572, %v7710
  %v10637 = vsel %vm4683, %v10573, %v7712
  %v10638 = vsel %vm4683, %v10574, %v7714
  %v10639 = vsel %vm4683, %v10575, %v7716
  %v10640 = vsel %vm4683, %v10576, %v7718
  %v10641 = vsel %vm4683, %v10577, %v7720
  %v10642 = vsel %vm4683, %v10578, %v7722
  %v10643 = vsel %vm4683, %v10579, %v7724
  %v10644 = vsel %vm4683, %v10580, %v7726
  %v10645 = vsel %vm4683, %v10581, %v7728
  %v10646 = vsel %vm4683, %v10582, %v7730
  %v10647 = vsel %vm4683, %v10583, %v7732
  %v10648 = vsel %vm4683, %v10584, %v7734
  %v10649 = vsel %vm4683, %v10585, %v7736
  %v10650 = vsel %vm4683, %v10586, %v7738
  %v10651 = vsel %vm4748, %v10587, %v7964
  %v10652 = vsel %vm4748, %v10588, %v7966
  %v10653 = vsel %vm4748, %v10589, %v7968
  %v10654 = vsel %vm4748, %v10590, %v7970
  %v10655 = vsel %vm4748, %v10591, %v7972
  %v10656 = vsel %vm4748, %v10592, %v7974
  %v10657 = vsel %vm4748, %v10593, %v7976
  %v10658 = vsel %vm4748, %v10594, %v7978
  %v10659 = vsel %vm4748, %v10595, %v7980
  %v10660 = vsel %vm4748, %v10596, %v7982
  %v10661 = vsel %vm4748, %v10597, %v7984
  %v10662 = vsel %vm4748, %v10598, %v7986
  %v10663 = vsel %vm4748, %v10599, %v7988
  %v10664 = vsel %vm4748, %v10600, %v7990
  %v10665 = vsel %vm4748, %v10601, %v7992
  %v10666 = vsel %vm4748, %v10602, %v7994
  %v10667 = vsel %vm4748, %v10603, %v7996
  %v10668 = vsel %vm4748, %v10604, %v7998
  %v10669 = vsel %vm4748, %v10605, %v8000
  %v10670 = vsel %vm4748, %v10606, %v8002
  %v10671 = vsel %vm4748, %v10607, %v8004
  %v10672 = vsel %vm4748, %v10608, %v8006
  %v10673 = vsel %vm4748, %v10609, %v8008
  %v10674 = vsel %vm4748, %v10610, %v8010
  %v10675 = vsel %vm4748, %v10611, %v8012
  %v10676 = vsel %vm4748, %v10612, %v8014
  %v10677 = vsel %vm4748, %v10613, %v8016
  %v10678 = vsel %vm4748, %v10614, %v8018
  %v10679 = vsel %vm4748, %v10615, %v8020
  %v10680 = vsel %vm4748, %v10616, %v8022
  %v10681 = vsel %vm4748, %v10617, %v8024
  %v10682 = vsel %vm4748, %v10618, %v8026
  %v10683 = vsel %vm4748, %v10619, %v8028
  %v10684 = vsel %vm4748, %v10620, %v8030
  %v10685 = vsel %vm4748, %v10621, %v8032
  %v10686 = vsel %vm4748, %v10622, %v8034
  %v10687 = vsel %vm4748, %v10623, %v8036
  %v10688 = vsel %vm4748, %v10624, %v8038
  %v10689 = vsel %vm4748, %v10625, %v8040
  %v10690 = vsel %vm4748, %v10626, %v8042
  %v10691 = vsel %vm4748, %v10627, %v8044
  %v10692 = vsel %vm4748, %v10628, %v8046
  %v10693 = vsel %vm4748, %v10629, %v8048
  %v10694 = vsel %vm4748, %v10630, %v8050
  %v10695 = vsel %vm4748, %v10631, %v8052
  %v10696 = vsel %vm4748, %v10632, %v8054
  %v10697 = vsel %vm4748, %v10633, %v8056
  %v10698 = vsel %vm4748, %v10634, %v8058
  %v10699 = vsel %vm4748, %v10635, %v8060
  %v10700 = vsel %vm4748, %v10636, %v8062
  %v10701 = vsel %vm4748, %v10637, %v8064
  %v10702 = vsel %vm4748, %v10638, %v8066
  %v10703 = vsel %vm4748, %v10639, %v8068
  %v10704 = vsel %vm4748, %v10640, %v8070
  %v10705 = vsel %vm4748, %v10641, %v8072
  %v10706 = vsel %vm4748, %v10642, %v8074
  %v10707 = vsel %vm4748, %v10643, %v8076
  %v10708 = vsel %vm4748, %v10644, %v8078
  %v10709 = vsel %vm4748, %v10645, %v8080
  %v10710 = vsel %vm4748, %v10646, %v8082
  %v10711 = vsel %vm4748, %v10647, %v8084
  %v10712 = vsel %vm4748, %v10648, %v8086
  %v10713 = vsel %vm4748, %v10649, %v8088
  %v10714 = vsel %vm4748, %v10650, %v8090
  %v10715 = vsel %vm4813, %v10651, %v8316
  %v10716 = vsel %vm4813, %v10652, %v8318
  %v10717 = vsel %vm4813, %v10653, %v8320
  %v10718 = vsel %vm4813, %v10654, %v8322
  %v10719 = vsel %vm4813, %v10655, %v8324
  %v10720 = vsel %vm4813, %v10656, %v8326
  %v10721 = vsel %vm4813, %v10657, %v8328
  %v10722 = vsel %vm4813, %v10658, %v8330
  %v10723 = vsel %vm4813, %v10659, %v8332
  %v10724 = vsel %vm4813, %v10660, %v8334
  %v10725 = vsel %vm4813, %v10661, %v8336
  %v10726 = vsel %vm4813, %v10662, %v8338
  %v10727 = vsel %vm4813, %v10663, %v8340
  %v10728 = vsel %vm4813, %v10664, %v8342
  %v10729 = vsel %vm4813, %v10665, %v8344
  %v10730 = vsel %vm4813, %v10666, %v8346
  %v10731 = vsel %vm4813, %v10667, %v8348
  %v10732 = vsel %vm4813, %v10668, %v8350
  %v10733 = vsel %vm4813, %v10669, %v8352
  %v10734 = vsel %vm4813, %v10670, %v8354
  %v10735 = vsel %vm4813, %v10671, %v8356
  %v10736 = vsel %vm4813, %v10672, %v8358
  %v10737 = vsel %vm4813, %v10673, %v8360
  %v10738 = vsel %vm4813, %v10674, %v8362
  %v10739 = vsel %vm4813, %v10675, %v8364
  %v10740 = vsel %vm4813, %v10676, %v8366
  %v10741 = vsel %vm4813, %v10677, %v8368
  %v10742 = vsel %vm4813, %v10678, %v8370
  %v10743 = vsel %vm4813, %v10679, %v8372
  %v10744 = vsel %vm4813, %v10680, %v8374
  %v10745 = vsel %vm4813, %v10681, %v8376
  %v10746 = vsel %vm4813, %v10682, %v8378
  %v10747 = vsel %vm4813, %v10683, %v8380
  %v10748 = vsel %vm4813, %v10684, %v8382
  %v10749 = vsel %vm4813, %v10685, %v8384
  %v10750 = vsel %vm4813, %v10686, %v8386
  %v10751 = vsel %vm4813, %v10687, %v8388
  %v10752 = vsel %vm4813, %v10688, %v8390
  %v10753 = vsel %vm4813, %v10689, %v8392
  %v10754 = vsel %vm4813, %v10690, %v8394
  %v10755 = vsel %vm4813, %v10691, %v8396
  %v10756 = vsel %vm4813, %v10692, %v8398
  %v10757 = vsel %vm4813, %v10693, %v8400
  %v10758 = vsel %vm4813, %v10694, %v8402
  %v10759 = vsel %vm4813, %v10695, %v8404
  %v10760 = vsel %vm4813, %v10696, %v8406
  %v10761 = vsel %vm4813, %v10697, %v8408
  %v10762 = vsel %vm4813, %v10698, %v8410
  %v10763 = vsel %vm4813, %v10699, %v8412
  %v10764 = vsel %vm4813, %v10700, %v8414
  %v10765 = vsel %vm4813, %v10701, %v8416
  %v10766 = vsel %vm4813, %v10702, %v8418
  %v10767 = vsel %vm4813, %v10703, %v8420
  %v10768 = vsel %vm4813, %v10704, %v8422
  %v10769 = vsel %vm4813, %v10705, %v8424
  %v10770 = vsel %vm4813, %v10706, %v8426
  %v10771 = vsel %vm4813, %v10707, %v8428
  %v10772 = vsel %vm4813, %v10708, %v8430
  %v10773 = vsel %vm4813, %v10709, %v8432
  %v10774 = vsel %vm4813, %v10710, %v8434
  %v10775 = vsel %vm4813, %v10711, %v8436
  %v10776 = vsel %vm4813, %v10712, %v8438
  %v10777 = vsel %vm4813, %v10713, %v8440
  %v10778 = vsel %vm4813, %v10714, %v8442
  %v10779 = vsel %vm4878, %v10715, %v8668
  %v10780 = vsel %vm4878, %v10716, %v8670
  %v10781 = vsel %vm4878, %v10717, %v8672
  %v10782 = vsel %vm4878, %v10718, %v8674
  %v10783 = vsel %vm4878, %v10719, %v8676
  %v10784 = vsel %vm4878, %v10720, %v8678
  %v10785 = vsel %vm4878, %v10721, %v8680
  %v10786 = vsel %vm4878, %v10722, %v8682
  %v10787 = vsel %vm4878, %v10723, %v8684
  %v10788 = vsel %vm4878, %v10724, %v8686
  %v10789 = vsel %vm4878, %v10725, %v8688
  %v10790 = vsel %vm4878, %v10726, %v8690
  %v10791 = vsel %vm4878, %v10727, %v8692
  %v10792 = vsel %vm4878, %v10728, %v8694
  %v10793 = vsel %vm4878, %v10729, %v8696
  %v10794 = vsel %vm4878, %v10730, %v8698
  %v10795 = vsel %vm4878, %v10731, %v8700
  %v10796 = vsel %vm4878, %v10732, %v8702
  %v10797 = vsel %vm4878, %v10733, %v8704
  %v10798 = vsel %vm4878, %v10734, %v8706
  %v10799 = vsel %vm4878, %v10735, %v8708
  %v10800 = vsel %vm4878, %v10736, %v8710
  %v10801 = vsel %vm4878, %v10737, %v8712
  %v10802 = vsel %vm4878, %v10738, %v8714
  %v10803 = vsel %vm4878, %v10739, %v8716
  %v10804 = vsel %vm4878, %v10740, %v8718
  %v10805 = vsel %vm4878, %v10741, %v8720
  %v10806 = vsel %vm4878, %v10742, %v8722
  %v10807 = vsel %vm4878, %v10743, %v8724
  %v10808 = vsel %vm4878, %v10744, %v8726
  %v10809 = vsel %vm4878, %v10745, %v8728
  %v10810 = vsel %vm4878, %v10746, %v8730
  %v10811 = vsel %vm4878, %v10747, %v8732
  %v10812 = vsel %vm4878, %v10748, %v8734
  %v10813 = vsel %vm4878, %v10749, %v8736
  %v10814 = vsel %vm4878, %v10750, %v8738
  %v10815 = vsel %vm4878, %v10751, %v8740
  %v10816 = vsel %vm4878, %v10752, %v8742
  %v10817 = vsel %vm4878, %v10753, %v8744
  %v10818 = vsel %vm4878, %v10754, %v8746
  %v10819 = vsel %vm4878, %v10755, %v8748
  %v10820 = vsel %vm4878, %v10756, %v8750
  %v10821 = vsel %vm4878, %v10757, %v8752
  %v10822 = vsel %vm4878, %v10758, %v8754
  %v10823 = vsel %vm4878, %v10759, %v8756
  %v10824 = vsel %vm4878, %v10760, %v8758
  %v10825 = vsel %vm4878, %v10761, %v8760
  %v10826 = vsel %vm4878, %v10762, %v8762
  %v10827 = vsel %vm4878, %v10763, %v8764
  %v10828 = vsel %vm4878, %v10764, %v8766
  %v10829 = vsel %vm4878, %v10765, %v8768
  %v10830 = vsel %vm4878, %v10766, %v8770
  %v10831 = vsel %vm4878, %v10767, %v8772
  %v10832 = vsel %vm4878, %v10768, %v8774
  %v10833 = vsel %vm4878, %v10769, %v8776
  %v10834 = vsel %vm4878, %v10770, %v8778
  %v10835 = vsel %vm4878, %v10771, %v8780
  %v10836 = vsel %vm4878, %v10772, %v8782
  %v10837 = vsel %vm4878, %v10773, %v8784
  %v10838 = vsel %vm4878, %v10774, %v8786
  %v10839 = vsel %vm4878, %v10775, %v8788
  %v10840 = vsel %vm4878, %v10776, %v8790
  %v10841 = vsel %vm4878, %v10777, %v8792
  %v10842 = vsel %vm4878, %v10778, %v8794
  %v10843 = vsel %vm4943, %v10779, %v8860
  %v10844 = vsel %vm4943, %v10780, %v8862
  %v10845 = vsel %vm4943, %v10781, %v8864
  %v10846 = vsel %vm4943, %v10782, %v8866
  %v10847 = vsel %vm4943, %v10783, %v8868
  %v10848 = vsel %vm4943, %v10784, %v8870
  %v10849 = vsel %vm4943, %v10785, %v8872
  %v10850 = vsel %vm4943, %v10786, %v8874
  %v10851 = vsel %vm4943, %v10787, %v8876
  %v10852 = vsel %vm4943, %v10788, %v8878
  %v10853 = vsel %vm4943, %v10789, %v8880
  %v10854 = vsel %vm4943, %v10790, %v8882
  %v10855 = vsel %vm4943, %v10791, %v8884
  %v10856 = vsel %vm4943, %v10792, %v8886
  %v10857 = vsel %vm4943, %v10793, %v8888
  %v10858 = vsel %vm4943, %v10794, %v8890
  %v10859 = vsel %vm4943, %v10795, %v8892
  %v10860 = vsel %vm4943, %v10796, %v8894
  %v10861 = vsel %vm4943, %v10797, %v8896
  %v10862 = vsel %vm4943, %v10798, %v8898
  %v10863 = vsel %vm4943, %v10799, %v8900
  %v10864 = vsel %vm4943, %v10800, %v8902
  %v10865 = vsel %vm4943, %v10801, %v8904
  %v10866 = vsel %vm4943, %v10802, %v8906
  %v10867 = vsel %vm4943, %v10803, %v8908
  %v10868 = vsel %vm4943, %v10804, %v8910
  %v10869 = vsel %vm4943, %v10805, %v8912
  %v10870 = vsel %vm4943, %v10806, %v8914
  %v10871 = vsel %vm4943, %v10807, %v8916
  %v10872 = vsel %vm4943, %v10808, %v8918
  %v10873 = vsel %vm4943, %v10809, %v8920
  %v10874 = vsel %vm4943, %v10810, %v8922
  %v10875 = vsel %vm4943, %v10811, %v8924
  %v10876 = vsel %vm4943, %v10812, %v8926
  %v10877 = vsel %vm4943, %v10813, %v8928
  %v10878 = vsel %vm4943, %v10814, %v8930
  %v10879 = vsel %vm4943, %v10815, %v8932
  %v10880 = vsel %vm4943, %v10816, %v8934
  %v10881 = vsel %vm4943, %v10817, %v8936
  %v10882 = vsel %vm4943, %v10818, %v8938
  %v10883 = vsel %vm4943, %v10819, %v8940
  %v10884 = vsel %vm4943, %v10820, %v8942
  %v10885 = vsel %vm4943, %v10821, %v8944
  %v10886 = vsel %vm4943, %v10822, %v8946
  %v10887 = vsel %vm4943, %v10823, %v8948
  %v10888 = vsel %vm4943, %v10824, %v8950
  %v10889 = vsel %vm4943, %v10825, %v8952
  %v10890 = vsel %vm4943, %v10826, %v8954
  %v10891 = vsel %vm4943, %v10827, %v8956
  %v10892 = vsel %vm4943, %v10828, %v8958
  %v10893 = vsel %vm4943, %v10829, %v8960
  %v10894 = vsel %vm4943, %v10830, %v8962
  %v10895 = vsel %vm4943, %v10831, %v8964
  %v10896 = vsel %vm4943, %v10832, %v8966
  %v10897 = vsel %vm4943, %v10833, %v8968
  %v10898 = vsel %vm4943, %v10834, %v8970
  %v10899 = vsel %vm4943, %v10835, %v8972
  %v10900 = vsel %vm4943, %v10836, %v8974
  %v10901 = vsel %vm4943, %v10837, %v8976
  %v10902 = vsel %vm4943, %v10838, %v8978
  %v10903 = vsel %vm4943, %v10839, %v8980
  %v10904 = vsel %vm4943, %v10840, %v8982
  %v10905 = vsel %vm4943, %v10841, %v8984
  %v10906 = vsel %vm4943, %v10842, %v8986
  %v10907 = vsel %vm5008, %v10843, %v9084
  %v10908 = vsel %vm5008, %v10844, %v9086
  %v10909 = vsel %vm5008, %v10845, %v9088
  %v10910 = vsel %vm5008, %v10846, %v9090
  %v10911 = vsel %vm5008, %v10847, %v9092
  %v10912 = vsel %vm5008, %v10848, %v9094
  %v10913 = vsel %vm5008, %v10849, %v9096
  %v10914 = vsel %vm5008, %v10850, %v9098
  %v10915 = vsel %vm5008, %v10851, %v9100
  %v10916 = vsel %vm5008, %v10852, %v9102
  %v10917 = vsel %vm5008, %v10853, %v9104
  %v10918 = vsel %vm5008, %v10854, %v9106
  %v10919 = vsel %vm5008, %v10855, %v9108
  %v10920 = vsel %vm5008, %v10856, %v9110
  %v10921 = vsel %vm5008, %v10857, %v9112
  %v10922 = vsel %vm5008, %v10858, %v9114
  %v10923 = vsel %vm5008, %v10859, %v9116
  %v10924 = vsel %vm5008, %v10860, %v9118
  %v10925 = vsel %vm5008, %v10861, %v9120
  %v10926 = vsel %vm5008, %v10862, %v9122
  %v10927 = vsel %vm5008, %v10863, %v9124
  %v10928 = vsel %vm5008, %v10864, %v9126
  %v10929 = vsel %vm5008, %v10865, %v9128
  %v10930 = vsel %vm5008, %v10866, %v9130
  %v10931 = vsel %vm5008, %v10867, %v9132
  %v10932 = vsel %vm5008, %v10868, %v9134
  %v10933 = vsel %vm5008, %v10869, %v9136
  %v10934 = vsel %vm5008, %v10870, %v9138
  %v10935 = vsel %vm5008, %v10871, %v9140
  %v10936 = vsel %vm5008, %v10872, %v9142
  %v10937 = vsel %vm5008, %v10873, %v9144
  %v10938 = vsel %vm5008, %v10874, %v9146
  %v10939 = vsel %vm5008, %v10875, %v9148
  %v10940 = vsel %vm5008, %v10876, %v9150
  %v10941 = vsel %vm5008, %v10877, %v9152
  %v10942 = vsel %vm5008, %v10878, %v9154
  %v10943 = vsel %vm5008, %v10879, %v9156
  %v10944 = vsel %vm5008, %v10880, %v9158
  %v10945 = vsel %vm5008, %v10881, %v9160
  %v10946 = vsel %vm5008, %v10882, %v9162
  %v10947 = vsel %vm5008, %v10883, %v9164
  %v10948 = vsel %vm5008, %v10884, %v9166
  %v10949 = vsel %vm5008, %v10885, %v9168
  %v10950 = vsel %vm5008, %v10886, %v9170
  %v10951 = vsel %vm5008, %v10887, %v9172
  %v10952 = vsel %vm5008, %v10888, %v9174
  %v10953 = vsel %vm5008, %v10889, %v9176
  %v10954 = vsel %vm5008, %v10890, %v9178
  %v10955 = vsel %vm5008, %v10891, %v9180
  %v10956 = vsel %vm5008, %v10892, %v9182
  %v10957 = vsel %vm5008, %v10893, %v9184
  %v10958 = vsel %vm5008, %v10894, %v9186
  %v10959 = vsel %vm5008, %v10895, %v9188
  %v10960 = vsel %vm5008, %v10896, %v9190
  %v10961 = vsel %vm5008, %v10897, %v9192
  %v10962 = vsel %vm5008, %v10898, %v9194
  %v10963 = vsel %vm5008, %v10899, %v9196
  %v10964 = vsel %vm5008, %v10900, %v9198
  %v10965 = vsel %vm5008, %v10901, %v9200
  %v10966 = vsel %vm5008, %v10902, %v9202
  %v10967 = vsel %vm5008, %v10903, %v9204
  %v10968 = vsel %vm5008, %v10904, %v9206
  %v10969 = vsel %vm5008, %v10905, %v9208
  %v10970 = vsel %vm5008, %v10906, %v9210
  %v10971 = vsel %vm5073, %v10907, %v9308
  %v10972 = vsel %vm5073, %v10908, %v9310
  %v10973 = vsel %vm5073, %v10909, %v9312
  %v10974 = vsel %vm5073, %v10910, %v9314
  %v10975 = vsel %vm5073, %v10911, %v9316
  %v10976 = vsel %vm5073, %v10912, %v9318
  %v10977 = vsel %vm5073, %v10913, %v9320
  %v10978 = vsel %vm5073, %v10914, %v9322
  %v10979 = vsel %vm5073, %v10915, %v9324
  %v10980 = vsel %vm5073, %v10916, %v9326
  %v10981 = vsel %vm5073, %v10917, %v9328
  %v10982 = vsel %vm5073, %v10918, %v9330
  %v10983 = vsel %vm5073, %v10919, %v9332
  %v10984 = vsel %vm5073, %v10920, %v9334
  %v10985 = vsel %vm5073, %v10921, %v9336
  %v10986 = vsel %vm5073, %v10922, %v9338
  %v10987 = vsel %vm5073, %v10923, %v9340
  %v10988 = vsel %vm5073, %v10924, %v9342
  %v10989 = vsel %vm5073, %v10925, %v9344
  %v10990 = vsel %vm5073, %v10926, %v9346
  %v10991 = vsel %vm5073, %v10927, %v9348
  %v10992 = vsel %vm5073, %v10928, %v9350
  %v10993 = vsel %vm5073, %v10929, %v9352
  %v10994 = vsel %vm5073, %v10930, %v9354
  %v10995 = vsel %vm5073, %v10931, %v9356
  %v10996 = vsel %vm5073, %v10932, %v9358
  %v10997 = vsel %vm5073, %v10933, %v9360
  %v10998 = vsel %vm5073, %v10934, %v9362
  %v10999 = vsel %vm5073, %v10935, %v9364
  %v11000 = vsel %vm5073, %v10936, %v9366
  %v11001 = vsel %vm5073, %v10937, %v9368
  %v11002 = vsel %vm5073, %v10938, %v9370
  %v11003 = vsel %vm5073, %v10939, %v9372
  %v11004 = vsel %vm5073, %v10940, %v9374
  %v11005 = vsel %vm5073, %v10941, %v9376
  %v11006 = vsel %vm5073, %v10942, %v9378
  %v11007 = vsel %vm5073, %v10943, %v9380
  %v11008 = vsel %vm5073, %v10944, %v9382
  %v11009 = vsel %vm5073, %v10945, %v9384
  %v11010 = vsel %vm5073, %v10946, %v9386
  %v11011 = vsel %vm5073, %v10947, %v9388
  %v11012 = vsel %vm5073, %v10948, %v9390
  %v11013 = vsel %vm5073, %v10949, %v9392
  %v11014 = vsel %vm5073, %v10950, %v9394
  %v11015 = vsel %vm5073, %v10951, %v9396
  %v11016 = vsel %vm5073, %v10952, %v9398
  %v11017 = vsel %vm5073, %v10953, %v9400
  %v11018 = vsel %vm5073, %v10954, %v9402
  %v11019 = vsel %vm5073, %v10955, %v9404
  %v11020 = vsel %vm5073, %v10956, %v9406
  %v11021 = vsel %vm5073, %v10957, %v9408
  %v11022 = vsel %vm5073, %v10958, %v9410
  %v11023 = vsel %vm5073, %v10959, %v9412
  %v11024 = vsel %vm5073, %v10960, %v9414
  %v11025 = vsel %vm5073, %v10961, %v9416
  %v11026 = vsel %vm5073, %v10962, %v9418
  %v11027 = vsel %vm5073, %v10963, %v9420
  %v11028 = vsel %vm5073, %v10964, %v9422
  %v11029 = vsel %vm5073, %v10965, %v9424
  %v11030 = vsel %vm5073, %v10966, %v9426
  %v11031 = vsel %vm5073, %v10967, %v9428
  %v11032 = vsel %vm5073, %v10968, %v9430
  %v11033 = vsel %vm5073, %v10969, %v9432
  %v11034 = vsel %vm5073, %v10970, %v9434
  %v11035 = vsel %vm5138, %v10971, %v9532
  %v11036 = vsel %vm5138, %v10972, %v9534
  %v11037 = vsel %vm5138, %v10973, %v9536
  %v11038 = vsel %vm5138, %v10974, %v9538
  %v11039 = vsel %vm5138, %v10975, %v9540
  %v11040 = vsel %vm5138, %v10976, %v9542
  %v11041 = vsel %vm5138, %v10977, %v9544
  %v11042 = vsel %vm5138, %v10978, %v9546
  %v11043 = vsel %vm5138, %v10979, %v9548
  %v11044 = vsel %vm5138, %v10980, %v9550
  %v11045 = vsel %vm5138, %v10981, %v9552
  %v11046 = vsel %vm5138, %v10982, %v9554
  %v11047 = vsel %vm5138, %v10983, %v9556
  %v11048 = vsel %vm5138, %v10984, %v9558
  %v11049 = vsel %vm5138, %v10985, %v9560
  %v11050 = vsel %vm5138, %v10986, %v9562
  %v11051 = vsel %vm5138, %v10987, %v9564
  %v11052 = vsel %vm5138, %v10988, %v9566
  %v11053 = vsel %vm5138, %v10989, %v9568
  %v11054 = vsel %vm5138, %v10990, %v9570
  %v11055 = vsel %vm5138, %v10991, %v9572
  %v11056 = vsel %vm5138, %v10992, %v9574
  %v11057 = vsel %vm5138, %v10993, %v9576
  %v11058 = vsel %vm5138, %v10994, %v9578
  %v11059 = vsel %vm5138, %v10995, %v9580
  %v11060 = vsel %vm5138, %v10996, %v9582
  %v11061 = vsel %vm5138, %v10997, %v9584
  %v11062 = vsel %vm5138, %v10998, %v9586
  %v11063 = vsel %vm5138, %v10999, %v9588
  %v11064 = vsel %vm5138, %v11000, %v9590
  %v11065 = vsel %vm5138, %v11001, %v9592
  %v11066 = vsel %vm5138, %v11002, %v9594
  %v11067 = vsel %vm5138, %v11003, %v9596
  %v11068 = vsel %vm5138, %v11004, %v9598
  %v11069 = vsel %vm5138, %v11005, %v9600
  %v11070 = vsel %vm5138, %v11006, %v9602
  %v11071 = vsel %vm5138, %v11007, %v9604
  %v11072 = vsel %vm5138, %v11008, %v9606
  %v11073 = vsel %vm5138, %v11009, %v9608
  %v11074 = vsel %vm5138, %v11010, %v9610
  %v11075 = vsel %vm5138, %v11011, %v9612
  %v11076 = vsel %vm5138, %v11012, %v9614
  %v11077 = vsel %vm5138, %v11013, %v9616
  %v11078 = vsel %vm5138, %v11014, %v9618
  %v11079 = vsel %vm5138, %v11015, %v9620
  %v11080 = vsel %vm5138, %v11016, %v9622
  %v11081 = vsel %vm5138, %v11017, %v9624
  %v11082 = vsel %vm5138, %v11018, %v9626
  %v11083 = vsel %vm5138, %v11019, %v9628
  %v11084 = vsel %vm5138, %v11020, %v9630
  %v11085 = vsel %vm5138, %v11021, %v9632
  %v11086 = vsel %vm5138, %v11022, %v9634
  %v11087 = vsel %vm5138, %v11023, %v9636
  %v11088 = vsel %vm5138, %v11024, %v9638
  %v11089 = vsel %vm5138, %v11025, %v9640
  %v11090 = vsel %vm5138, %v11026, %v9642
  %v11091 = vsel %vm5138, %v11027, %v9644
  %v11092 = vsel %vm5138, %v11028, %v9646
  %v11093 = vsel %vm5138, %v11029, %v9648
  %v11094 = vsel %vm5138, %v11030, %v9650
  %v11095 = vsel %vm5138, %v11031, %v9652
  %v11096 = vsel %vm5138, %v11032, %v9654
  %v11097 = vsel %vm5138, %v11033, %v9656
  %v11098 = vsel %vm5138, %v11034, %v9658
  %v11099 = vsel %vm5203, %v11035, %v9756
  %v11100 = vsel %vm5203, %v11036, %v9758
  %v11101 = vsel %vm5203, %v11037, %v9760
  %v11102 = vsel %vm5203, %v11038, %v9762
  %v11103 = vsel %vm5203, %v11039, %v9764
  %v11104 = vsel %vm5203, %v11040, %v9766
  %v11105 = vsel %vm5203, %v11041, %v9768
  %v11106 = vsel %vm5203, %v11042, %v9770
  %v11107 = vsel %vm5203, %v11043, %v9772
  %v11108 = vsel %vm5203, %v11044, %v9774
  %v11109 = vsel %vm5203, %v11045, %v9776
  %v11110 = vsel %vm5203, %v11046, %v9778
  %v11111 = vsel %vm5203, %v11047, %v9780
  %v11112 = vsel %vm5203, %v11048, %v9782
  %v11113 = vsel %vm5203, %v11049, %v9784
  %v11114 = vsel %vm5203, %v11050, %v9786
  %v11115 = vsel %vm5203, %v11051, %v9788
  %v11116 = vsel %vm5203, %v11052, %v9790
  %v11117 = vsel %vm5203, %v11053, %v9792
  %v11118 = vsel %vm5203, %v11054, %v9794
  %v11119 = vsel %vm5203, %v11055, %v9796
  %v11120 = vsel %vm5203, %v11056, %v9798
  %v11121 = vsel %vm5203, %v11057, %v9800
  %v11122 = vsel %vm5203, %v11058, %v9802
  %v11123 = vsel %vm5203, %v11059, %v9804
  %v11124 = vsel %vm5203, %v11060, %v9806
  %v11125 = vsel %vm5203, %v11061, %v9808
  %v11126 = vsel %vm5203, %v11062, %v9810
  %v11127 = vsel %vm5203, %v11063, %v9812
  %v11128 = vsel %vm5203, %v11064, %v9814
  %v11129 = vsel %vm5203, %v11065, %v9816
  %v11130 = vsel %vm5203, %v11066, %v9818
  %v11131 = vsel %vm5203, %v11067, %v9820
  %v11132 = vsel %vm5203, %v11068, %v9822
  %v11133 = vsel %vm5203, %v11069, %v9824
  %v11134 = vsel %vm5203, %v11070, %v9826
  %v11135 = vsel %vm5203, %v11071, %v9828
  %v11136 = vsel %vm5203, %v11072, %v9830
  %v11137 = vsel %vm5203, %v11073, %v9832
  %v11138 = vsel %vm5203, %v11074, %v9834
  %v11139 = vsel %vm5203, %v11075, %v9836
  %v11140 = vsel %vm5203, %v11076, %v9838
  %v11141 = vsel %vm5203, %v11077, %v9840
  %v11142 = vsel %vm5203, %v11078, %v9842
  %v11143 = vsel %vm5203, %v11079, %v9844
  %v11144 = vsel %vm5203, %v11080, %v9846
  %v11145 = vsel %vm5203, %v11081, %v9848
  %v11146 = vsel %vm5203, %v11082, %v9850
  %v11147 = vsel %vm5203, %v11083, %v9852
  %v11148 = vsel %vm5203, %v11084, %v9854
  %v11149 = vsel %vm5203, %v11085, %v9856
  %v11150 = vsel %vm5203, %v11086, %v9858
  %v11151 = vsel %vm5203, %v11087, %v9860
  %v11152 = vsel %vm5203, %v11088, %v9862
  %v11153 = vsel %vm5203, %v11089, %v9864
  %v11154 = vsel %vm5203, %v11090, %v9866
  %v11155 = vsel %vm5203, %v11091, %v9868
  %v11156 = vsel %vm5203, %v11092, %v9870
  %v11157 = vsel %vm5203, %v11093, %v9872
  %v11158 = vsel %vm5203, %v11094, %v9874
  %v11159 = vsel %vm5203, %v11095, %v9876
  %v11160 = vsel %vm5203, %v11096, %v9878
  %v11161 = vsel %vm5203, %v11097, %v9880
  %v11162 = vsel %vm5203, %v11098, %v9882
  %v11163 = vsel %vm5268, %v11099, %v9980
  %v11164 = vsel %vm5268, %v11100, %v9982
  %v11165 = vsel %vm5268, %v11101, %v9984
  %v11166 = vsel %vm5268, %v11102, %v9986
  %v11167 = vsel %vm5268, %v11103, %v9988
  %v11168 = vsel %vm5268, %v11104, %v9990
  %v11169 = vsel %vm5268, %v11105, %v9992
  %v11170 = vsel %vm5268, %v11106, %v9994
  %v11171 = vsel %vm5268, %v11107, %v9996
  %v11172 = vsel %vm5268, %v11108, %v9998
  %v11173 = vsel %vm5268, %v11109, %v10000
  %v11174 = vsel %vm5268, %v11110, %v10002
  %v11175 = vsel %vm5268, %v11111, %v10004
  %v11176 = vsel %vm5268, %v11112, %v10006
  %v11177 = vsel %vm5268, %v11113, %v10008
  %v11178 = vsel %vm5268, %v11114, %v10010
  %v11179 = vsel %vm5268, %v11115, %v10012
  %v11180 = vsel %vm5268, %v11116, %v10014
  %v11181 = vsel %vm5268, %v11117, %v10016
  %v11182 = vsel %vm5268, %v11118, %v10018
  %v11183 = vsel %vm5268, %v11119, %v10020
  %v11184 = vsel %vm5268, %v11120, %v10022
  %v11185 = vsel %vm5268, %v11121, %v10024
  %v11186 = vsel %vm5268, %v11122, %v10026
  %v11187 = vsel %vm5268, %v11123, %v10028
  %v11188 = vsel %vm5268, %v11124, %v10030
  %v11189 = vsel %vm5268, %v11125, %v10032
  %v11190 = vsel %vm5268, %v11126, %v10034
  %v11191 = vsel %vm5268, %v11127, %v10036
  %v11192 = vsel %vm5268, %v11128, %v10038
  %v11193 = vsel %vm5268, %v11129, %v10040
  %v11194 = vsel %vm5268, %v11130, %v10042
  %v11195 = vsel %vm5268, %v11131, %v10044
  %v11196 = vsel %vm5268, %v11132, %v10046
  %v11197 = vsel %vm5268, %v11133, %v10048
  %v11198 = vsel %vm5268, %v11134, %v10050
  %v11199 = vsel %vm5268, %v11135, %v10052
  %v11200 = vsel %vm5268, %v11136, %v10054
  %v11201 = vsel %vm5268, %v11137, %v10056
  %v11202 = vsel %vm5268, %v11138, %v10058
  %v11203 = vsel %vm5268, %v11139, %v10060
  %v11204 = vsel %vm5268, %v11140, %v10062
  %v11205 = vsel %vm5268, %v11141, %v10064
  %v11206 = vsel %vm5268, %v11142, %v10066
  %v11207 = vsel %vm5268, %v11143, %v10068
  %v11208 = vsel %vm5268, %v11144, %v10070
  %v11209 = vsel %vm5268, %v11145, %v10072
  %v11210 = vsel %vm5268, %v11146, %v10074
  %v11211 = vsel %vm5268, %v11147, %v10076
  %v11212 = vsel %vm5268, %v11148, %v10078
  %v11213 = vsel %vm5268, %v11149, %v10080
  %v11214 = vsel %vm5268, %v11150, %v10082
  %v11215 = vsel %vm5268, %v11151, %v10084
  %v11216 = vsel %vm5268, %v11152, %v10086
  %v11217 = vsel %vm5268, %v11153, %v10088
  %v11218 = vsel %vm5268, %v11154, %v10090
  %v11219 = vsel %vm5268, %v11155, %v10092
  %v11220 = vsel %vm5268, %v11156, %v10094
  %v11221 = vsel %vm5268, %v11157, %v10096
  %v11222 = vsel %vm5268, %v11158, %v10098
  %v11223 = vsel %vm5268, %v11159, %v10100
  %v11224 = vsel %vm5268, %v11160, %v10102
  %v11225 = vsel %vm5268, %v11161, %v10104
  %v11226 = vsel %vm5268, %v11162, %v10106
  %v11227 = vsel %vm5333, %v11163, %v10204
  %v11228 = vsel %vm5333, %v11164, %v10206
  %v11229 = vsel %vm5333, %v11165, %v10208
  %v11230 = vsel %vm5333, %v11166, %v10210
  %v11231 = vsel %vm5333, %v11167, %v10212
  %v11232 = vsel %vm5333, %v11168, %v10214
  %v11233 = vsel %vm5333, %v11169, %v10216
  %v11234 = vsel %vm5333, %v11170, %v10218
  %v11235 = vsel %vm5333, %v11171, %v10220
  %v11236 = vsel %vm5333, %v11172, %v10222
  %v11237 = vsel %vm5333, %v11173, %v10224
  %v11238 = vsel %vm5333, %v11174, %v10226
  %v11239 = vsel %vm5333, %v11175, %v10228
  %v11240 = vsel %vm5333, %v11176, %v10230
  %v11241 = vsel %vm5333, %v11177, %v10232
  %v11242 = vsel %vm5333, %v11178, %v10234
  %v11243 = vsel %vm5333, %v11179, %v10236
  %v11244 = vsel %vm5333, %v11180, %v10238
  %v11245 = vsel %vm5333, %v11181, %v10240
  %v11246 = vsel %vm5333, %v11182, %v10242
  %v11247 = vsel %vm5333, %v11183, %v10244
  %v11248 = vsel %vm5333, %v11184, %v10246
  %v11249 = vsel %vm5333, %v11185, %v10248
  %v11250 = vsel %vm5333, %v11186, %v10250
  %v11251 = vsel %vm5333, %v11187, %v10252
  %v11252 = vsel %vm5333, %v11188, %v10254
  %v11253 = vsel %vm5333, %v11189, %v10256
  %v11254 = vsel %vm5333, %v11190, %v10258
  %v11255 = vsel %vm5333, %v11191, %v10260
  %v11256 = vsel %vm5333, %v11192, %v10262
  %v11257 = vsel %vm5333, %v11193, %v10264
  %v11258 = vsel %vm5333, %v11194, %v10266
  %v11259 = vsel %vm5333, %v11195, %v10268
  %v11260 = vsel %vm5333, %v11196, %v10270
  %v11261 = vsel %vm5333, %v11197, %v10272
  %v11262 = vsel %vm5333, %v11198, %v10274
  %v11263 = vsel %vm5333, %v11199, %v10276
  %v11264 = vsel %vm5333, %v11200, %v10278
  %v11265 = vsel %vm5333, %v11201, %v10280
  %v11266 = vsel %vm5333, %v11202, %v10282
  %v11267 = vsel %vm5333, %v11203, %v10284
  %v11268 = vsel %vm5333, %v11204, %v10286
  %v11269 = vsel %vm5333, %v11205, %v10288
  %v11270 = vsel %vm5333, %v11206, %v10290
  %v11271 = vsel %vm5333, %v11207, %v10292
  %v11272 = vsel %vm5333, %v11208, %v10294
  %v11273 = vsel %vm5333, %v11209, %v10296
  %v11274 = vsel %vm5333, %v11210, %v10298
  %v11275 = vsel %vm5333, %v11211, %v10300
  %v11276 = vsel %vm5333, %v11212, %v10302
  %v11277 = vsel %vm5333, %v11213, %v10304
  %v11278 = vsel %vm5333, %v11214, %v10306
  %v11279 = vsel %vm5333, %v11215, %v10308
  %v11280 = vsel %vm5333, %v11216, %v10310
  %v11281 = vsel %vm5333, %v11217, %v10312
  %v11282 = vsel %vm5333, %v11218, %v10314
  %v11283 = vsel %vm5333, %v11219, %v10316
  %v11284 = vsel %vm5333, %v11220, %v10318
  %v11285 = vsel %vm5333, %v11221, %v10320
  %v11286 = vsel %vm5333, %v11222, %v10322
  %v11287 = vsel %vm5333, %v11223, %v10324
  %v11288 = vsel %vm5333, %v11224, %v10326
  %v11289 = vsel %vm5333, %v11225, %v10328
  %v11290 = vsel %vm5333, %v11226, %v10330
  %v11291 = vld [vmem:[%s2] sm:$0xff]
  %v11292 = vld [vmem:[%s2 + $0x8] sm:$0xff]
  %v11293 = vld [vmem:[%s2 + $0x10] sm:$0xff]
  %v11294 = vld [vmem:[%s2 + $0x18] sm:$0xff]
  %v11295 = vld [vmem:[%s2 + $0x20] sm:$0xff]
  %v11296 = vld [vmem:[%s2 + $0x28] sm:$0xff]
  %v11297 = vld [vmem:[%s2 + $0x30] sm:$0xff]
  %v11298 = vld [vmem:[%s2 + $0x38] sm:$0xf]
  %v11300 = vsel %vm5406, %v11227, 0
  %v11303 = vsel %vm5406, %v11228, 0
  %v11306 = vsel %vm5406, %v11229, 0
  %v11309 = vsel %vm5406, %v11230, 0
  %v11312 = vsel %vm5406, %v11231, 0
  %v11315 = vsel %vm5406, %v11232, 0
  %v11318 = vsel %vm5406, %v11233, 0
  %v11321 = vsel %vm5406, %v11234, 0
  %v11324 = vsel %vm5406, %v11235, 0
  %v11327 = vsel %vm5406, %v11236, 0
  %v11330 = vsel %vm5406, %v11237, 0
  %v11333 = vsel %vm5406, %v11238, 0
  %v11336 = vsel %vm5406, %v11239, 0
  %v11339 = vsel %vm5406, %v11240, 0
  %v11342 = vsel %vm5406, %v11241, 0
  %v11345 = vsel %vm5406, %v11242, 0
  %v11348 = vsel %vm5406, %v11243, 0
  %v11351 = vsel %vm5406, %v11244, 0
  %v11354 = vsel %vm5406, %v11245, 0
  %v11357 = vsel %vm5406, %v11246, 0
  %v11360 = vsel %vm5406, %v11247, 0
  %v11363 = vsel %vm5406, %v11248, 0
  %v11366 = vsel %vm5406, %v11249, 0
  %v11369 = vsel %vm5406, %v11250, 0
  %v11372 = vsel %vm5406, %v11251, 0
  %v11375 = vsel %vm5406, %v11252, 0
  %v11378 = vsel %vm5406, %v11253, 0
  %v11381 = vsel %vm5406, %v11254, 0
  %v11384 = vsel %vm5406, %v11255, 0
  %v11387 = vsel %vm5406, %v11256, 0
  %v11390 = vsel %vm5406, %v11257, 0
  %v11393 = vsel %vm5406, %v11258, 0
  %v11396 = vsel %vm5406, %v11259, 0
  %v11399 = vsel %vm5406, %v11260, 0
  %v11402 = vsel %vm5406, %v11261, 0
  %v11405 = vsel %vm5406, %v11262, 0
  %v11408 = vsel %vm5406, %v11263, 0
  %v11411 = vsel %vm5406, %v11264, 0
  %v11414 = vsel %vm5406, %v11265, 0
  %v11417 = vsel %vm5406, %v11266, 0
  %v11420 = vsel %vm5406, %v11267, 0
  %v11423 = vsel %vm5406, %v11268, 0
  %v11426 = vsel %vm5406, %v11269, 0
  %v11429 = vsel %vm5406, %v11270, 0
  %v11432 = vsel %vm5406, %v11271, 0
  %v11435 = vsel %vm5406, %v11272, 0
  %v11438 = vsel %vm5406, %v11273, 0
  %v11441 = vsel %vm5406, %v11274, 0
  %v11444 = vsel %vm5406, %v11275, 0
  %v11447 = vsel %vm5406, %v11276, 0
  %v11450 = vsel %vm5406, %v11277, 0
  %v11453 = vsel %vm5406, %v11278, 0
  %v11456 = vsel %vm5406, %v11279, 0
  %v11459 = vsel %vm5406, %v11280, 0
  %v11462 = vsel %vm5406, %v11281, 0
  %v11465 = vsel %vm5406, %v11282, 0
  %v11468 = vsel %vm5406, %v11283, 0
  %v11471 = vsel %vm5406, %v11284, 0
  %v11474 = vsel %vm5406, %v11285, 0
  %v11477 = vsel %vm5406, %v11286, 0
  %v11480 = vsel %vm5406, %v11287, 0
  %v11483 = vsel %vm5406, %v11288, 0
  %v11486 = vsel %vm5406, %v11289, 0
  %v11489 = vsel %vm5406, %v11290, 0
  %v11492 = vsel %vm1533, %v11298, 0
  %11494 = vmatpush.msra.mxu0 0.0
  %11495 = vmatpush.msra.mxu0 0.0
  %11496 = vmatpush.msra.mxu0 0.0
  %11497 = vmatpush.msra.mxu0 0.0
  %11498 = vmatpush.msra.mxu0 0.0
  %11499 = vmatpush.msra.mxu0 0.0
  %11500 = vmatpush.msra.mxu0 0.0
  %11501 = vmatpush.msra.mxu0 0.0
  %11502 = vmatpush.msra.mxu0 %v11492
  %11503 = vmatpush.msra.mxu0 %v11297
  %11504 = vmatpush.msra.mxu0 %v11296
  %11505 = vmatpush.msra.mxu0 %v11295
  %11506 = vmatpush.msra.mxu0 %v11294
  %11507 = vmatpush.msra.mxu0 %v11293
  %11508 = vmatpush.msra.mxu0 %v11292
  %11509 = vmatpush.msra.mxu0 %v11291
  %11510 = vmatmul.f32.gmra.mxu0 %v11300
  %v11511 = vpop.f32.mrf.mxu0
  %v11512 = vadd.f32 0.0, %v11511
  %11513 = vmatmul.f32.gmra.mxu0 %v11303
  %v11514 = vpop.f32.mrf.mxu0
  %v11515 = vadd.f32 0.0, %v11514
  %11516 = vmatmul.f32.gmra.mxu0 %v11306
  %v11517 = vpop.f32.mrf.mxu0
  %v11518 = vadd.f32 0.0, %v11517
  %11519 = vmatmul.f32.gmra.mxu0 %v11309
  %v11520 = vpop.f32.mrf.mxu0
  %v11521 = vadd.f32 0.0, %v11520
  %11522 = vmatmul.f32.gmra.mxu0 %v11312
  %v11523 = vpop.f32.mrf.mxu0
  %v11524 = vadd.f32 0.0, %v11523
  %11525 = vmatmul.f32.gmra.mxu0 %v11315
  %v11526 = vpop.f32.mrf.mxu0
  %v11527 = vadd.f32 0.0, %v11526
  %11528 = vmatmul.f32.gmra.mxu0 %v11318
  %v11529 = vpop.f32.mrf.mxu0
  %v11530 = vadd.f32 0.0, %v11529
  %11531 = vmatmul.f32.gmra.mxu0 %v11321
  %v11532 = vpop.f32.mrf.mxu0
  %v11533 = vadd.f32 0.0, %v11532
  %11534 = vmatmul.f32.gmra.mxu0 %v11324
  %v11535 = vpop.f32.mrf.mxu0
  %v11536 = vadd.f32 0.0, %v11535
  %11537 = vmatmul.f32.gmra.mxu0 %v11327
  %v11538 = vpop.f32.mrf.mxu0
  %v11539 = vadd.f32 0.0, %v11538
  %11540 = vmatmul.f32.gmra.mxu0 %v11330
  %v11541 = vpop.f32.mrf.mxu0
  %v11542 = vadd.f32 0.0, %v11541
  %11543 = vmatmul.f32.gmra.mxu0 %v11333
  %v11544 = vpop.f32.mrf.mxu0
  %v11545 = vadd.f32 0.0, %v11544
  %11546 = vmatmul.f32.gmra.mxu0 %v11336
  %v11547 = vpop.f32.mrf.mxu0
  %v11548 = vadd.f32 0.0, %v11547
  %11549 = vmatmul.f32.gmra.mxu0 %v11339
  %v11550 = vpop.f32.mrf.mxu0
  %v11551 = vadd.f32 0.0, %v11550
  %11552 = vmatmul.f32.gmra.mxu0 %v11342
  %v11553 = vpop.f32.mrf.mxu0
  %v11554 = vadd.f32 0.0, %v11553
  %11555 = vmatmul.f32.gmra.mxu0 %v11345
  %v11556 = vpop.f32.mrf.mxu0
  %v11557 = vadd.f32 0.0, %v11556
  %11558 = vmatmul.f32.gmra.mxu0 %v11348
  %v11559 = vpop.f32.mrf.mxu0
  %v11560 = vadd.f32 0.0, %v11559
  %11561 = vmatmul.f32.gmra.mxu0 %v11351
  %v11562 = vpop.f32.mrf.mxu0
  %v11563 = vadd.f32 0.0, %v11562
  %11564 = vmatmul.f32.gmra.mxu0 %v11354
  %v11565 = vpop.f32.mrf.mxu0
  %v11566 = vadd.f32 0.0, %v11565
  %11567 = vmatmul.f32.gmra.mxu0 %v11357
  %v11568 = vpop.f32.mrf.mxu0
  %v11569 = vadd.f32 0.0, %v11568
  %11570 = vmatmul.f32.gmra.mxu0 %v11360
  %v11571 = vpop.f32.mrf.mxu0
  %v11572 = vadd.f32 0.0, %v11571
  %11573 = vmatmul.f32.gmra.mxu0 %v11363
  %v11574 = vpop.f32.mrf.mxu0
  %v11575 = vadd.f32 0.0, %v11574
  %11576 = vmatmul.f32.gmra.mxu0 %v11366
  %v11577 = vpop.f32.mrf.mxu0
  %v11578 = vadd.f32 0.0, %v11577
  %11579 = vmatmul.f32.gmra.mxu0 %v11369
  %v11580 = vpop.f32.mrf.mxu0
  %v11581 = vadd.f32 0.0, %v11580
  %11582 = vmatmul.f32.gmra.mxu0 %v11372
  %v11583 = vpop.f32.mrf.mxu0
  %v11584 = vadd.f32 0.0, %v11583
  %11585 = vmatmul.f32.gmra.mxu0 %v11375
  %v11586 = vpop.f32.mrf.mxu0
  %v11587 = vadd.f32 0.0, %v11586
  %11588 = vmatmul.f32.gmra.mxu0 %v11378
  %v11589 = vpop.f32.mrf.mxu0
  %v11590 = vadd.f32 0.0, %v11589
  %11591 = vmatmul.f32.gmra.mxu0 %v11381
  %v11592 = vpop.f32.mrf.mxu0
  %v11593 = vadd.f32 0.0, %v11592
  %11594 = vmatmul.f32.gmra.mxu0 %v11384
  %v11595 = vpop.f32.mrf.mxu0
  %v11596 = vadd.f32 0.0, %v11595
  %11597 = vmatmul.f32.gmra.mxu0 %v11387
  %v11598 = vpop.f32.mrf.mxu0
  %v11599 = vadd.f32 0.0, %v11598
  %11600 = vmatmul.f32.gmra.mxu0 %v11390
  %v11601 = vpop.f32.mrf.mxu0
  %v11602 = vadd.f32 0.0, %v11601
  %11603 = vmatmul.f32.gmra.mxu0 %v11393
  %v11604 = vpop.f32.mrf.mxu0
  %v11605 = vadd.f32 0.0, %v11604
  %11606 = vmatmul.f32.gmra.mxu0 %v11396
  %v11607 = vpop.f32.mrf.mxu0
  %v11608 = vadd.f32 0.0, %v11607
  %11609 = vmatmul.f32.gmra.mxu0 %v11399
  %v11610 = vpop.f32.mrf.mxu0
  %v11611 = vadd.f32 0.0, %v11610
  %11612 = vmatmul.f32.gmra.mxu0 %v11402
  %v11613 = vpop.f32.mrf.mxu0
  %v11614 = vadd.f32 0.0, %v11613
  %11615 = vmatmul.f32.gmra.mxu0 %v11405
  %v11616 = vpop.f32.mrf.mxu0
  %v11617 = vadd.f32 0.0, %v11616
  %11618 = vmatmul.f32.gmra.mxu0 %v11408
  %v11619 = vpop.f32.mrf.mxu0
  %v11620 = vadd.f32 0.0, %v11619
  %11621 = vmatmul.f32.gmra.mxu0 %v11411
  %v11622 = vpop.f32.mrf.mxu0
  %v11623 = vadd.f32 0.0, %v11622
  %11624 = vmatmul.f32.gmra.mxu0 %v11414
  %v11625 = vpop.f32.mrf.mxu0
  %v11626 = vadd.f32 0.0, %v11625
  %11627 = vmatmul.f32.gmra.mxu0 %v11417
  %v11628 = vpop.f32.mrf.mxu0
  %v11629 = vadd.f32 0.0, %v11628
  %11630 = vmatmul.f32.gmra.mxu0 %v11420
  %v11631 = vpop.f32.mrf.mxu0
  %v11632 = vadd.f32 0.0, %v11631
  %11633 = vmatmul.f32.gmra.mxu0 %v11423
  %v11634 = vpop.f32.mrf.mxu0
  %v11635 = vadd.f32 0.0, %v11634
  %11636 = vmatmul.f32.gmra.mxu0 %v11426
  %v11637 = vpop.f32.mrf.mxu0
  %v11638 = vadd.f32 0.0, %v11637
  %11639 = vmatmul.f32.gmra.mxu0 %v11429
  %v11640 = vpop.f32.mrf.mxu0
  %v11641 = vadd.f32 0.0, %v11640
  %11642 = vmatmul.f32.gmra.mxu0 %v11432
  %v11643 = vpop.f32.mrf.mxu0
  %v11644 = vadd.f32 0.0, %v11643
  %11645 = vmatmul.f32.gmra.mxu0 %v11435
  %v11646 = vpop.f32.mrf.mxu0
  %v11647 = vadd.f32 0.0, %v11646
  %11648 = vmatmul.f32.gmra.mxu0 %v11438
  %v11649 = vpop.f32.mrf.mxu0
  %v11650 = vadd.f32 0.0, %v11649
  %11651 = vmatmul.f32.gmra.mxu0 %v11441
  %v11652 = vpop.f32.mrf.mxu0
  %v11653 = vadd.f32 0.0, %v11652
  %11654 = vmatmul.f32.gmra.mxu0 %v11444
  %v11655 = vpop.f32.mrf.mxu0
  %v11656 = vadd.f32 0.0, %v11655
  %11657 = vmatmul.f32.gmra.mxu0 %v11447
  %v11658 = vpop.f32.mrf.mxu0
  %v11659 = vadd.f32 0.0, %v11658
  %11660 = vmatmul.f32.gmra.mxu0 %v11450
  %v11661 = vpop.f32.mrf.mxu0
  %v11662 = vadd.f32 0.0, %v11661
  %11663 = vmatmul.f32.gmra.mxu0 %v11453
  %v11664 = vpop.f32.mrf.mxu0
  %v11665 = vadd.f32 0.0, %v11664
  %11666 = vmatmul.f32.gmra.mxu0 %v11456
  %v11667 = vpop.f32.mrf.mxu0
  %v11668 = vadd.f32 0.0, %v11667
  %11669 = vmatmul.f32.gmra.mxu0 %v11459
  %v11670 = vpop.f32.mrf.mxu0
  %v11671 = vadd.f32 0.0, %v11670
  %11672 = vmatmul.f32.gmra.mxu0 %v11462
  %v11673 = vpop.f32.mrf.mxu0
  %v11674 = vadd.f32 0.0, %v11673
  %11675 = vmatmul.f32.gmra.mxu0 %v11465
  %v11676 = vpop.f32.mrf.mxu0
  %v11677 = vadd.f32 0.0, %v11676
  %11678 = vmatmul.f32.gmra.mxu0 %v11468
  %v11679 = vpop.f32.mrf.mxu0
  %v11680 = vadd.f32 0.0, %v11679
  %11681 = vmatmul.f32.gmra.mxu0 %v11471
  %v11682 = vpop.f32.mrf.mxu0
  %v11683 = vadd.f32 0.0, %v11682
  %11684 = vmatmul.f32.gmra.mxu0 %v11474
  %v11685 = vpop.f32.mrf.mxu0
  %v11686 = vadd.f32 0.0, %v11685
  %11687 = vmatmul.f32.gmra.mxu0 %v11477
  %v11688 = vpop.f32.mrf.mxu0
  %v11689 = vadd.f32 0.0, %v11688
  %11690 = vmatmul.f32.gmra.mxu0 %v11480
  %v11691 = vpop.f32.mrf.mxu0
  %v11692 = vadd.f32 0.0, %v11691
  %11693 = vmatmul.f32.gmra.mxu0 %v11483
  %v11694 = vpop.f32.mrf.mxu0
  %v11695 = vadd.f32 0.0, %v11694
  %11696 = vmatmul.f32.gmra.mxu0 %v11486
  %v11697 = vpop.f32.mrf.mxu0
  %v11698 = vadd.f32 0.0, %v11697
  %11699 = vmatmul.f32.gmra.mxu0 %v11489
  %v11700 = vpop.f32.mrf.mxu0
  %v11701 = vadd.f32 0.0, %v11700
  %11702 = vdwg.mxu0
  %v11703 = vld [vmem:[%s5] sm:$0x1]
  %v11705 = vperm.slane %v11703, 0
  %v11707 = vmul.f32 %v11512, %v11705
  %v11708 = vmul.f32 %v11515, %v11705
  %v11709 = vmul.f32 %v11518, %v11705
  %v11710 = vmul.f32 %v11521, %v11705
  %v11711 = vmul.f32 %v11524, %v11705
  %v11712 = vmul.f32 %v11527, %v11705
  %v11713 = vmul.f32 %v11530, %v11705
  %v11714 = vmul.f32 %v11533, %v11705
  %v11715 = vmul.f32 %v11536, %v11705
  %v11716 = vmul.f32 %v11539, %v11705
  %v11717 = vmul.f32 %v11542, %v11705
  %v11718 = vmul.f32 %v11545, %v11705
  %v11719 = vmul.f32 %v11548, %v11705
  %v11720 = vmul.f32 %v11551, %v11705
  %v11721 = vmul.f32 %v11554, %v11705
  %v11722 = vmul.f32 %v11557, %v11705
  %v11723 = vmul.f32 %v11560, %v11705
  %v11724 = vmul.f32 %v11563, %v11705
  %v11725 = vmul.f32 %v11566, %v11705
  %v11726 = vmul.f32 %v11569, %v11705
  %v11727 = vmul.f32 %v11572, %v11705
  %v11728 = vmul.f32 %v11575, %v11705
  %v11729 = vmul.f32 %v11578, %v11705
  %v11730 = vmul.f32 %v11581, %v11705
  %v11731 = vmul.f32 %v11584, %v11705
  %v11732 = vmul.f32 %v11587, %v11705
  %v11733 = vmul.f32 %v11590, %v11705
  %v11734 = vmul.f32 %v11593, %v11705
  %v11735 = vmul.f32 %v11596, %v11705
  %v11736 = vmul.f32 %v11599, %v11705
  %v11737 = vmul.f32 %v11602, %v11705
  %v11738 = vmul.f32 %v11605, %v11705
  %v11739 = vmul.f32 %v11608, %v11705
  %v11740 = vmul.f32 %v11611, %v11705
  %v11741 = vmul.f32 %v11614, %v11705
  %v11742 = vmul.f32 %v11617, %v11705
  %v11743 = vmul.f32 %v11620, %v11705
  %v11744 = vmul.f32 %v11623, %v11705
  %v11745 = vmul.f32 %v11626, %v11705
  %v11746 = vmul.f32 %v11629, %v11705
  %v11747 = vmul.f32 %v11632, %v11705
  %v11748 = vmul.f32 %v11635, %v11705
  %v11749 = vmul.f32 %v11638, %v11705
  %v11750 = vmul.f32 %v11641, %v11705
  %v11751 = vmul.f32 %v11644, %v11705
  %v11752 = vmul.f32 %v11647, %v11705
  %v11753 = vmul.f32 %v11650, %v11705
  %v11754 = vmul.f32 %v11653, %v11705
  %v11755 = vmul.f32 %v11656, %v11705
  %v11756 = vmul.f32 %v11659, %v11705
  %v11757 = vmul.f32 %v11662, %v11705
  %v11758 = vmul.f32 %v11665, %v11705
  %v11759 = vmul.f32 %v11668, %v11705
  %v11760 = vmul.f32 %v11671, %v11705
  %v11761 = vmul.f32 %v11674, %v11705
  %v11762 = vmul.f32 %v11677, %v11705
  %v11763 = vmul.f32 %v11680, %v11705
  %v11764 = vmul.f32 %v11683, %v11705
  %v11765 = vmul.f32 %v11686, %v11705
  %v11766 = vmul.f32 %v11689, %v11705
  %v11767 = vmul.f32 %v11692, %v11705
  %v11768 = vmul.f32 %v11695, %v11705
  %v11769 = vmul.f32 %v11698, %v11705
  %v11770 = vmul.f32 %v11701, %v11705
  %v11771 = vld [vmem:[%s6] sm:$0x1]
  %v11773 = vperm.slane %v11771, 0
  %v11775 = vadd.f32 %v11707, %v11773
  %v11776 = vadd.f32 %v11708, %v11773
  %v11777 = vadd.f32 %v11709, %v11773
  %v11778 = vadd.f32 %v11710, %v11773
  %v11779 = vadd.f32 %v11711, %v11773
  %v11780 = vadd.f32 %v11712, %v11773
  %v11781 = vadd.f32 %v11713, %v11773
  %v11782 = vadd.f32 %v11714, %v11773
  %v11783 = vadd.f32 %v11715, %v11773
  %v11784 = vadd.f32 %v11716, %v11773
  %v11785 = vadd.f32 %v11717, %v11773
  %v11786 = vadd.f32 %v11718, %v11773
  %v11787 = vadd.f32 %v11719, %v11773
  %v11788 = vadd.f32 %v11720, %v11773
  %v11789 = vadd.f32 %v11721, %v11773
  %v11790 = vadd.f32 %v11722, %v11773
  %v11791 = vadd.f32 %v11723, %v11773
  %v11792 = vadd.f32 %v11724, %v11773
  %v11793 = vadd.f32 %v11725, %v11773
  %v11794 = vadd.f32 %v11726, %v11773
  %v11795 = vadd.f32 %v11727, %v11773
  %v11796 = vadd.f32 %v11728, %v11773
  %v11797 = vadd.f32 %v11729, %v11773
  %v11798 = vadd.f32 %v11730, %v11773
  %v11799 = vadd.f32 %v11731, %v11773
  %v11800 = vadd.f32 %v11732, %v11773
  %v11801 = vadd.f32 %v11733, %v11773
  %v11802 = vadd.f32 %v11734, %v11773
  %v11803 = vadd.f32 %v11735, %v11773
  %v11804 = vadd.f32 %v11736, %v11773
  %v11805 = vadd.f32 %v11737, %v11773
  %v11806 = vadd.f32 %v11738, %v11773
  %v11807 = vadd.f32 %v11739, %v11773
  %v11808 = vadd.f32 %v11740, %v11773
  %v11809 = vadd.f32 %v11741, %v11773
  %v11810 = vadd.f32 %v11742, %v11773
  %v11811 = vadd.f32 %v11743, %v11773
  %v11812 = vadd.f32 %v11744, %v11773
  %v11813 = vadd.f32 %v11745, %v11773
  %v11814 = vadd.f32 %v11746, %v11773
  %v11815 = vadd.f32 %v11747, %v11773
  %v11816 = vadd.f32 %v11748, %v11773
  %v11817 = vadd.f32 %v11749, %v11773
  %v11818 = vadd.f32 %v11750, %v11773
  %v11819 = vadd.f32 %v11751, %v11773
  %v11820 = vadd.f32 %v11752, %v11773
  %v11821 = vadd.f32 %v11753, %v11773
  %v11822 = vadd.f32 %v11754, %v11773
  %v11823 = vadd.f32 %v11755, %v11773
  %v11824 = vadd.f32 %v11756, %v11773
  %v11825 = vadd.f32 %v11757, %v11773
  %v11826 = vadd.f32 %v11758, %v11773
  %v11827 = vadd.f32 %v11759, %v11773
  %v11828 = vadd.f32 %v11760, %v11773
  %v11829 = vadd.f32 %v11761, %v11773
  %v11830 = vadd.f32 %v11762, %v11773
  %v11831 = vadd.f32 %v11763, %v11773
  %v11832 = vadd.f32 %v11764, %v11773
  %v11833 = vadd.f32 %v11765, %v11773
  %v11834 = vadd.f32 %v11766, %v11773
  %v11835 = vadd.f32 %v11767, %v11773
  %v11836 = vadd.f32 %v11768, %v11773
  %v11837 = vadd.f32 %v11769, %v11773
  %v11838 = vadd.f32 %v11770, %v11773
  %v11839 = vadd.f32 %v11775, %v26
  %v11840 = vadd.f32 %v11776, %v27
  %v11841 = vadd.f32 %v11777, %v28
  %v11842 = vadd.f32 %v11778, %v29
  %v11843 = vadd.f32 %v11779, %v30
  %v11844 = vadd.f32 %v11780, %v31
  %v11845 = vadd.f32 %v11781, %v32
  %v11846 = vadd.f32 %v11782, %v33
  %v11847 = vadd.f32 %v11783, %v34
  %v11848 = vadd.f32 %v11784, %v35
  %v11849 = vadd.f32 %v11785, %v36
  %v11850 = vadd.f32 %v11786, %v37
  %v11851 = vadd.f32 %v11787, %v38
  %v11852 = vadd.f32 %v11788, %v39
  %v11853 = vadd.f32 %v11789, %v40
  %v11854 = vadd.f32 %v11790, %v41
  %v11855 = vadd.f32 %v11791, %v42
  %v11856 = vadd.f32 %v11792, %v43
  %v11857 = vadd.f32 %v11793, %v44
  %v11858 = vadd.f32 %v11794, %v45
  %v11859 = vadd.f32 %v11795, %v46
  %v11860 = vadd.f32 %v11796, %v47
  %v11861 = vadd.f32 %v11797, %v48
  %v11862 = vadd.f32 %v11798, %v49
  %v11863 = vadd.f32 %v11799, %v50
  %v11864 = vadd.f32 %v11800, %v51
  %v11865 = vadd.f32 %v11801, %v52
  %v11866 = vadd.f32 %v11802, %v53
  %v11867 = vadd.f32 %v11803, %v54
  %v11868 = vadd.f32 %v11804, %v55
  %v11869 = vadd.f32 %v11805, %v56
  %v11870 = vadd.f32 %v11806, %v57
  %v11871 = vadd.f32 %v11807, %v58
  %v11872 = vadd.f32 %v11808, %v59
  %v11873 = vadd.f32 %v11809, %v60
  %v11874 = vadd.f32 %v11810, %v61
  %v11875 = vadd.f32 %v11811, %v62
  %v11876 = vadd.f32 %v11812, %v63
  %v11877 = vadd.f32 %v11813, %v64
  %v11878 = vadd.f32 %v11814, %v65
  %v11879 = vadd.f32 %v11815, %v66
  %v11880 = vadd.f32 %v11816, %v67
  %v11881 = vadd.f32 %v11817, %v68
  %v11882 = vadd.f32 %v11818, %v69
  %v11883 = vadd.f32 %v11819, %v70
  %v11884 = vadd.f32 %v11820, %v71
  %v11885 = vadd.f32 %v11821, %v72
  %v11886 = vadd.f32 %v11822, %v73
  %v11887 = vadd.f32 %v11823, %v74
  %v11888 = vadd.f32 %v11824, %v75
  %v11889 = vadd.f32 %v11825, %v76
  %v11890 = vadd.f32 %v11826, %v77
  %v11891 = vadd.f32 %v11827, %v78
  %v11892 = vadd.f32 %v11828, %v79
  %v11893 = vadd.f32 %v11829, %v80
  %v11894 = vadd.f32 %v11830, %v81
  %v11895 = vadd.f32 %v11831, %v82
  %v11896 = vadd.f32 %v11832, %v83
  %v11897 = vadd.f32 %v11833, %v84
  %v11898 = vadd.f32 %v11834, %v85
  %v11899 = vadd.f32 %v11835, %v86
  %v11900 = vadd.f32 %v11836, %v87
  %v11901 = vadd.f32 %v11837, %v88
  %v11902 = vadd.f32 %v11838, %v89
  %v11903 = vmax.f32 %v11839, 0.0
  %v11904 = vmax.f32 %v11840, 0.0
  %v11905 = vmax.f32 %v11841, 0.0
  %v11906 = vmax.f32 %v11842, 0.0
  %v11907 = vmax.f32 %v11843, 0.0
  %v11908 = vmax.f32 %v11844, 0.0
  %v11909 = vmax.f32 %v11845, 0.0
  %v11910 = vmax.f32 %v11846, 0.0
  %v11911 = vmax.f32 %v11847, 0.0
  %v11912 = vmax.f32 %v11848, 0.0
  %v11913 = vmax.f32 %v11849, 0.0
  %v11914 = vmax.f32 %v11850, 0.0
  %v11915 = vmax.f32 %v11851, 0.0
  %v11916 = vmax.f32 %v11852, 0.0
  %v11917 = vmax.f32 %v11853, 0.0
  %v11918 = vmax.f32 %v11854, 0.0
  %v11919 = vmax.f32 %v11855, 0.0
  %v11920 = vmax.f32 %v11856, 0.0
  %v11921 = vmax.f32 %v11857, 0.0
  %v11922 = vmax.f32 %v11858, 0.0
  %v11923 = vmax.f32 %v11859, 0.0
  %v11924 = vmax.f32 %v11860, 0.0
  %v11925 = vmax.f32 %v11861, 0.0
  %v11926 = vmax.f32 %v11862, 0.0
  %v11927 = vmax.f32 %v11863, 0.0
  %v11928 = vmax.f32 %v11864, 0.0
  %v11929 = vmax.f32 %v11865, 0.0
  %v11930 = vmax.f32 %v11866, 0.0
  %v11931 = vmax.f32 %v11867, 0.0
  %v11932 = vmax.f32 %v11868, 0.0
  %v11933 = vmax.f32 %v11869, 0.0
  %v11934 = vmax.f32 %v11870, 0.0
  %v11935 = vmax.f32 %v11871, 0.0
  %v11936 = vmax.f32 %v11872, 0.0
  %v11937 = vmax.f32 %v11873, 0.0
  %v11938 = vmax.f32 %v11874, 0.0
  %v11939 = vmax.f32 %v11875, 0.0
  %v11940 = vmax.f32 %v11876, 0.0
  %v11941 = vmax.f32 %v11877, 0.0
  %v11942 = vmax.f32 %v11878, 0.0
  %v11943 = vmax.f32 %v11879, 0.0
  %v11944 = vmax.f32 %v11880, 0.0
  %v11945 = vmax.f32 %v11881, 0.0
  %v11946 = vmax.f32 %v11882, 0.0
  %v11947 = vmax.f32 %v11883, 0.0
  %v11948 = vmax.f32 %v11884, 0.0
  %v11949 = vmax.f32 %v11885, 0.0
  %v11950 = vmax.f32 %v11886, 0.0
  %v11951 = vmax.f32 %v11887, 0.0
  %v11952 = vmax.f32 %v11888, 0.0
  %v11953 = vmax.f32 %v11889, 0.0
  %v11954 = vmax.f32 %v11890, 0.0
  %v11955 = vmax.f32 %v11891, 0.0
  %v11956 = vmax.f32 %v11892, 0.0
  %v11957 = vmax.f32 %v11893, 0.0
  %v11958 = vmax.f32 %v11894, 0.0
  %v11959 = vmax.f32 %v11895, 0.0
  %v11960 = vmax.f32 %v11896, 0.0
  %v11961 = vmax.f32 %v11897, 0.0
  %v11962 = vmax.f32 %v11898, 0.0
  %v11963 = vmax.f32 %v11899, 0.0
  %v11964 = vmax.f32 %v11900, 0.0
  %v11965 = vmax.f32 %v11901, 0.0
  %v11966 = vmax.f32 %v11902, 0.0
  %11967 = vst.msk [vmem:[%s7] sm:$0xff] %vm4488, %v11903
  %11968 = vst.msk [vmem:[%s7 + $0x8] sm:$0xff] %vm4488, %v11904
  %11969 = vst.msk [vmem:[%s7 + $0x10] sm:$0xff] %vm4488, %v11905
  %11970 = vst.msk [vmem:[%s7 + $0x18] sm:$0xff] %vm4488, %v11906
  %11971 = vst.msk [vmem:[%s7 + $0x20] sm:$0xff] %vm4488, %v11907
  %11972 = vst.msk [vmem:[%s7 + $0x28] sm:$0xff] %vm4488, %v11908
  %11973 = vst.msk [vmem:[%s7 + $0x30] sm:$0xff] %vm4488, %v11909
  %11974 = vst.msk [vmem:[%s7 + $0x38] sm:$0xff] %vm4488, %v11910
  %11975 = vst.msk [vmem:[%s7 + $0x40] sm:$0xff] %vm4488, %v11911
  %11976 = vst.msk [vmem:[%s7 + $0x48] sm:$0xff] %vm4488, %v11912
  %11977 = vst.msk [vmem:[%s7 + $0x50] sm:$0xff] %vm4488, %v11913
  %11978 = vst.msk [vmem:[%s7 + $0x58] sm:$0xff] %vm4488, %v11914
  %11979 = vst.msk [vmem:[%s7 + $0x60] sm:$0xff] %vm4488, %v11915
  %11980 = vst.msk [vmem:[%s7 + $0x68] sm:$0xff] %vm4488, %v11916
  %11981 = vst.msk [vmem:[%s7 + $0x70] sm:$0xff] %vm4488, %v11917
  %11982 = vst.msk [vmem:[%s7 + $0x78] sm:$0xff] %vm4488, %v11918
  %11983 = vst.msk [vmem:[%s7 + $0x80] sm:$0xff] %vm4488, %v11919
  %11984 = vst.msk [vmem:[%s7 + $0x88] sm:$0xff] %vm4488, %v11920
  %11985 = vst.msk [vmem:[%s7 + $0x90] sm:$0xff] %vm4488, %v11921
  %11986 = vst.msk [vmem:[%s7 + $0x98] sm:$0xff] %vm4488, %v11922
  %11987 = vst.msk [vmem:[%s7 + $0xa0] sm:$0xff] %vm4488, %v11923
  %11988 = vst.msk [vmem:[%s7 + $0xa8] sm:$0xff] %vm4488, %v11924
  %11989 = vst.msk [vmem:[%s7 + $0xb0] sm:$0xff] %vm4488, %v11925
  %11990 = vst.msk [vmem:[%s7 + $0xb8] sm:$0xff] %vm4488, %v11926
  %11991 = vst.msk [vmem:[%s7 + $0xc0] sm:$0xff] %vm4488, %v11927
  %11992 = vst.msk [vmem:[%s7 + $0xc8] sm:$0xff] %vm4488, %v11928
  %11993 = vst.msk [vmem:[%s7 + $0xd0] sm:$0xff] %vm4488, %v11929
  %11994 = vst.msk [vmem:[%s7 + $0xd8] sm:$0xff] %vm4488, %v11930
  %11995 = vst.msk [vmem:[%s7 + $0xe0] sm:$0xff] %vm4488, %v11931
  %11996 = vst.msk [vmem:[%s7 + $0xe8] sm:$0xff] %vm4488, %v11932
  %11997 = vst.msk [vmem:[%s7 + $0xf0] sm:$0xff] %vm4488, %v11933
  %11998 = vst.msk [vmem:[%s7 + $0xf8] sm:$0xff] %vm4488, %v11934
  %11999 = vst.msk [vmem:[%s7 + $0x100] sm:$0xff] %vm4488, %v11935
  %12000 = vst.msk [vmem:[%s7 + $0x108] sm:$0xff] %vm4488, %v11936
  %12001 = vst.msk [vmem:[%s7 + $0x110] sm:$0xff] %vm4488, %v11937
  %12002 = vst.msk [vmem:[%s7 + $0x118] sm:$0xff] %vm4488, %v11938
  %12003 = vst.msk [vmem:[%s7 + $0x120] sm:$0xff] %vm4488, %v11939
  %12004 = vst.msk [vmem:[%s7 + $0x128] sm:$0xff] %vm4488, %v11940
  %12005 = vst.msk [vmem:[%s7 + $0x130] sm:$0xff] %vm4488, %v11941
  %12006 = vst.msk [vmem:[%s7 + $0x138] sm:$0xff] %vm4488, %v11942
  %12007 = vst.msk [vmem:[%s7 + $0x140] sm:$0xff] %vm4488, %v11943
  %12008 = vst.msk [vmem:[%s7 + $0x148] sm:$0xff] %vm4488, %v11944
  %12009 = vst.msk [vmem:[%s7 + $0x150] sm:$0xff] %vm4488, %v11945
  %12010 = vst.msk [vmem:[%s7 + $0x158] sm:$0xff] %vm4488, %v11946
  %12011 = vst.msk [vmem:[%s7 + $0x160] sm:$0xff] %vm4488, %v11947
  %12012 = vst.msk [vmem:[%s7 + $0x168] sm:$0xff] %vm4488, %v11948
  %12013 = vst.msk [vmem:[%s7 + $0x170] sm:$0xff] %vm4488, %v11949
  %12014 = vst.msk [vmem:[%s7 + $0x178] sm:$0xff] %vm4488, %v11950
  %12015 = vst.msk [vmem:[%s7 + $0x180] sm:$0xff] %vm4488, %v11951
  %12016 = vst.msk [vmem:[%s7 + $0x188] sm:$0xff] %vm4488, %v11952
  %12017 = vst.msk [vmem:[%s7 + $0x190] sm:$0xff] %vm4488, %v11953
  %12018 = vst.msk [vmem:[%s7 + $0x198] sm:$0xff] %vm4488, %v11954
  %12019 = vst.msk [vmem:[%s7 + $0x1a0] sm:$0xff] %vm4488, %v11955
  %12020 = vst.msk [vmem:[%s7 + $0x1a8] sm:$0xff] %vm4488, %v11956
  %12021 = vst.msk [vmem:[%s7 + $0x1b0] sm:$0xff] %vm4488, %v11957
  %12022 = vst.msk [vmem:[%s7 + $0x1b8] sm:$0xff] %vm4488, %v11958
  %12023 = vst.msk [vmem:[%s7 + $0x1c0] sm:$0xff] %vm4488, %v11959
  %12024 = vst.msk [vmem:[%s7 + $0x1c8] sm:$0xff] %vm4488, %v11960
  %12025 = vst.msk [vmem:[%s7 + $0x1d0] sm:$0xff] %vm4488, %v11961
  %12026 = vst.msk [vmem:[%s7 + $0x1d8] sm:$0xff] %vm4488, %v11962
  %12027 = vst.msk [vmem:[%s7 + $0x1e0] sm:$0xff] %vm4488, %v11963
  %12028 = vst.msk [vmem:[%s7 + $0x1e8] sm:$0xff] %vm4488, %v11964
  %12029 = vst.msk [vmem:[%s7 + $0x1f0] sm:$0xff] %vm4488, %v11965
  %12030 = vst.msk [vmem:[%s7 + $0x1f8] sm:$0xff] %vm4488, %v11966
  // Predicated region
  $region30: #{basic_block.1} parent=0 // pred_check
    _
  $region31: #{basic_block.1} parent=0 // pred_check_branch
    %12032 = sbr.rel (0) target = $region33
  $region32: #{basic_block.1} parent=0 // pred_region
    _
  $region33: #{basic_block.1} parent=0 // pred_fallthru
    _
  // Predicated region
  $region34: #{basic_block.1} parent=0 // pred_check
    _
  $region35: #{basic_block.1} parent=0 // pred_check_branch
    %12034 = sbr.rel (0) target = $region37
  $region36: #{basic_block.1} parent=0 // pred_region
    _
  $region37: #{basic_block.1} parent=0 // pred_fallthru
    _

</llo_original>
